<compile_context>
chip_gen: v5e
topology: v5e:2x2
jax: 0.10.0
libtpu: 0.0.40
codegen_flags: <defaults>
</compile_context>

<pallas_src>
import functools
import math

import jax
import jax.numpy as jnp
from jax.experimental import pallas as pl
from jax.experimental.pallas import tpu as pltpu


# ----------------------------- kernel ---------------------------------------


def _layer_norm(x, gamma, beta, eps=1e-5):
    mean = jnp.mean(x, axis=-1, keepdims=True)
    var = jnp.mean((x - mean) ** 2, axis=-1, keepdims=True)
    return (x - mean) * jax.lax.rsqrt(var + eps) * gamma + beta


def _fused_encoder_kernel(nhead, x_ref, temb_ref, w_in_ref, b_in_ref,
                          wqkv_ref, bqkv_ref, wo_ref, hvec_ref,
                          w1_ref, b1_ref, w2_ref,
                          w_out_ref, b_out_ref, o_ref):
    bc, T, _ = x_ref.shape                  # batch chunk, seq len
    H = w_in_ref.shape[1]
    L = wqkv_ref.shape[0]
    hd = H // nhead
    R = bc * T                              # folded matmul M dimension
    bf16 = jnp.bfloat16

    # Fold the batch chunk into matmul rows (layout-safe leading-dim merge).
    x = x_ref[...].reshape(R, x_ref.shape[2])
    temb = temb_ref[...].reshape(R, H)

    # --- adapt_in + temporal embeddings (dropout == identity at eval) ---
    h = (jnp.dot(x.astype(bf16), w_in_ref[...], preferred_element_type=jnp.float32)
         + b_in_ref[...] + temb)                                   # (R, H) f32

    # --- nn.TransformerEncoder: static loop over post-norm layers (L is small) ---
    for l in range(L):
        wqkv = wqkv_ref[l]                  # (H, 3H) bf16, q-cols pre-scaled by 1/sqrt(hd)
        bqkv = bqkv_ref[l]                  # (1, 3H) f32,  q-part pre-scaled
        wo = wo_ref[l]                      # (H, H)  bf16
        hv = hvec_ref[l]                    # (6, H)  f32: bo, g1, be1, b2, g2, be2
        w1 = w1_ref[l]                      # (H, F)  bf16
        b1 = b1_ref[l]                      # (1, F)  f32
        w2 = w2_ref[l]                      # (F, H)  bf16

        # merged QKV projection: one full-width matmul, one bias add
        qkv = jnp.dot(h.astype(bf16), wqkv,
                      preferred_element_type=jnp.float32) + bqkv   # (R, 3H) f32

        # attention core per (batch element, head); softmax in f32
        ctx_rows = []
        for b in range(bc):
            r0 = b * T
            head_ctx = []
            for n in range(nhead):
                q = qkv[r0:r0 + T, n * hd:(n + 1) * hd].astype(bf16)            # (T, hd)
                k = qkv[r0:r0 + T, H + n * hd:H + (n + 1) * hd].astype(bf16)    # (T, hd)
                v = qkv[r0:r0 + T, 2 * H + n * hd:2 * H + (n + 1) * hd].astype(bf16)
                s = jnp.einsum('td,sd->ts', q, k,
                               preferred_element_type=jnp.float32)              # (T, T)
                s = s - jnp.max(s, axis=-1, keepdims=True)
                p = jnp.exp(s)
                p = p * pl.reciprocal(jnp.sum(p, axis=-1, keepdims=True), approx=True)
                head_ctx.append(jnp.dot(p.astype(bf16), v,
                                        preferred_element_type=jnp.float32))    # (T, hd)
            ctx_rows.append(jnp.concatenate(head_ctx, axis=-1))                 # (T, H)
        ctx = jnp.concatenate(ctx_rows, axis=0)                                  # (R, H)

        # single full-width output projection (heads already back on the lane axis)
        attn = jnp.dot(ctx.astype(bf16), wo,
                       preferred_element_type=jnp.float32) + hv[0:1]

        # residual + norm1  (dropout1 == identity at eval)
        src = _layer_norm(h + attn, hv[1:2], hv[2:3])

        # feedforward: linear1 -> relu -> linear2, hidden kept bf16
        hid = jnp.dot(src.astype(bf16), w1, preferred_element_type=jnp.float32) + b1
        hid = jnp.maximum(hid, 0.0).astype(bf16)
        ff = jnp.dot(hid, w2, preferred_element_type=jnp.float32) + hv[3:4]

        # residual + norm2  (dropout2 == identity at eval)
        h = _layer_norm(src + ff, hv[4:5], hv[5:6])

    # --- adapt_out (output dim padded lane-dense; sliced wrapper-side) ---
    out = jnp.dot(h.astype(bf16), w_out_ref[...],
                  preferred_element_type=jnp.float32) + b_out_ref[...]
    o_ref[...] = out.reshape(bc, T, -1)


# ----------------------------- packing ---------------------------------------


def pack_params(nhead, w_in, b_in, layer_params, w_out, b_out,
                matmul_dtype=jnp.bfloat16):
    """Pack conventional (x @ W) layout params into the kernel's stacked layout.

    layer_params: list of dicts with
      wqkv (H,3H), bqkv (1,3H), wo (H,H), bo (1,H), g1 (1,H), be1 (1,H),
      w1 (H,F), b1 (1,F), w2 (F,H), b2 (1,H), g2 (1,H), be2 (1,H).
    When porting from nn.TransformerEncoderLayer, transpose in_proj_weight /
    out_proj.weight / linear{1,2}.weight first.
    """
    _, H = w_in.shape
    assert H % nhead == 0, "hidden_size must be divisible by nhead"
    hd = H // nhead
    scale = 1.0 / math.sqrt(hd)
    Dout = w_out.shape[1]
    dp = ((Dout + 127) // 128) * 128        # lane-dense padded output width

    def scale_q_w(w):                       # fold attention scale into q columns
        return jnp.concatenate([w[:, :H] * scale, w[:, H:]], axis=1)

    def scale_q_b(b):
        return jnp.concatenate([b[:, :H] * scale, b[:, H:]], axis=1)

    wqkv = jnp.stack([scale_q_w(lp["wqkv"]) for lp in layer_params], 0).astype(matmul_dtype)
    bqkv = jnp.stack([scale_q_b(lp["bqkv"]) for lp in layer_params], 0).astype(jnp.float32)
    wo = jnp.stack([lp["wo"] for lp in layer_params], 0).astype(matmul_dtype)
    hvec = jnp.stack([jnp.concatenate([lp["bo"], lp["g1"], lp["be1"],
                                       lp["b2"], lp["g2"], lp["be2"]], axis=0)
                      for lp in layer_params], 0).astype(jnp.float32)            # (L, 6, H)
    w1 = jnp.stack([lp["w1"] for lp in layer_params], 0).astype(matmul_dtype)    # (L, H, F)
    b1 = jnp.stack([lp["b1"] for lp in layer_params], 0).astype(jnp.float32)     # (L, 1, F)
    w2 = jnp.stack([lp["w2"] for lp in layer_params], 0).astype(matmul_dtype)    # (L, F, H)

    w_out_p = jnp.zeros((H, dp), jnp.float32).at[:, :Dout].set(w_out).astype(matmul_dtype)
    b_out_p = jnp.zeros((1, dp), jnp.float32).at[:, :Dout].set(b_out)

    return dict(nhead=nhead, size_out=Dout,
                w_in=w_in.astype(matmul_dtype), b_in=b_in.astype(jnp.float32),
                wqkv=wqkv, bqkv=bqkv, wo=wo, hvec=hvec,
                w1=w1, b1=b1, w2=w2,
                w_out=w_out_p, b_out=b_out_p)


# ----------------------------- wrapper ---------------------------------------


def transformer_encoder_forward(x, temb, params, batch_chunk=None):
    """x: [B, T, in_size], temb: [B, T, hidden] -> [B, T, size_out]."""
    B, T, C = x.shape
    H = params["w_in"].shape[1]
    L, _, F = params["w1"].shape
    dp = params["w_out"].shape[1]
    nhead = params["nhead"]
    size_out = params["size_out"]

    bc = batch_chunk if batch_chunk is not None else (2 if B % 2 == 0 else 1)
    assert B % bc == 0, "batch must be divisible by batch_chunk"
    nc = B // bc

    def rep(shape):
        # replicated weight: constant block index => DMA'd once, resident for all steps
        return pl.BlockSpec(shape, lambda i, n=len(shape): (0,) * n)

    kern = functools.partial(_fused_encoder_kernel, nhead)
    out = pl.pallas_call(
        kern,
        out_shape=jax.ShapeDtypeStruct((B, T, dp), jnp.float32),
        grid=(nc,),
        in_specs=[pl.BlockSpec((bc, T, C), lambda i: (i, 0, 0)),
                  pl.BlockSpec((bc, T, H), lambda i: (i, 0, 0)),
                  rep((C, H)), rep((1, H)),
                  rep((L, H, 3 * H)), rep((L, 1, 3 * H)),
                  rep((L, H, H)), rep((L, 6, H)),
                  rep((L, H, F)), rep((L, 1, F)), rep((L, F, H)),
                  rep((H, dp)), rep((1, dp))],
        out_specs=pl.BlockSpec((bc, T, dp), lambda i: (i, 0, 0)),
        compiler_params=pltpu.CompilerParams(
            dimension_semantics=("parallel",),
            vmem_limit_bytes=64 * 1024 * 1024),
    )(x, temb, params["w_in"], params["b_in"],
      params["wqkv"], params["bqkv"], params["wo"], params["hvec"],
      params["w1"], params["b1"], params["w2"],
      params["w_out"], params["b_out"])
    return out[:, :, :size_out]


# ----------------------------- main ------------------------------------------


if __name__ == "__main__":
    B, T = 4, 16
    in_size, hidden, nhead, num_layers = 16, 32, 4, 2
    feature_size = 24                  # size_out = feature_size * num_latent_dims(=1)
    dim_ff = 2048                      # nn.TransformerEncoderLayer default dim_feedforward

    key = jax.random.PRNGKey(0)
    keys = iter(jax.random.split(key, 128))

    def nrm(shape, s=0.05):
        return s * jax.random.normal(next(keys), shape, dtype=jnp.float32)

    x = nrm((B, T, in_size), 1.0)
    temb = nrm((B, T, hidden), 0.1)

    layers = []
    for _ in range(num_layers):
        layers.append(dict(
            wqkv=nrm((hidden, 3 * hidden)), bqkv=nrm((1, 3 * hidden)),
            wo=nrm((hidden, hidden)), bo=nrm((1, hidden)),
            g1=jnp.ones((1, hidden), jnp.float32), be1=jnp.zeros((1, hidden), jnp.float32),
            w1=nrm((hidden, dim_ff)), b1=nrm((1, dim_ff)),
            w2=nrm((dim_ff, hidden)), b2=nrm((1, hidden)),
            g2=jnp.ones((1, hidden), jnp.float32), be2=jnp.zeros((1, hidden), jnp.float32),
        ))

    params = pack_params(
        nhead,
        w_in=nrm((in_size, hidden)), b_in=nrm((1, hidden)),
        layer_params=layers,
        w_out=nrm((hidden, feature_size)), b_out=nrm((1, feature_size)),
    )

    out = transformer_encoder_forward(x, temb, params, batch_chunk=2)
    out = jax.block_until_ready(out)
    assert out.shape == (B, T, feature_size), out.shape
    assert bool(jnp.all(jnp.isfinite(out)))
    print("KERNEL_OK")
</pallas_src>

<mosaic_0001>
module attributes {stable_mosaic.version = 11 : i64} {
  func.func @_fused_encoder_kernel(%arg0: i32, %arg1: memref<2x16x16xf32, #tpu.memory_space<vmem>>, %arg2: memref<2x16x32xf32, #tpu.memory_space<vmem>>, %arg3: memref<16x32xbf16, #tpu.memory_space<vmem>>, %arg4: memref<1x32xf32, #tpu.memory_space<vmem>>, %arg5: memref<2x32x96xbf16, #tpu.memory_space<vmem>>, %arg6: memref<2x1x96xf32, #tpu.memory_space<vmem>>, %arg7: memref<2x32x32xbf16, #tpu.memory_space<vmem>>, %arg8: memref<2x6x32xf32, #tpu.memory_space<vmem>>, %arg9: memref<2x32x2048xbf16, #tpu.memory_space<vmem>>, %arg10: memref<2x1x2048xf32, #tpu.memory_space<vmem>>, %arg11: memref<2x2048x32xbf16, #tpu.memory_space<vmem>>, %arg12: memref<32x128xbf16, #tpu.memory_space<vmem>>, %arg13: memref<1x128xf32, #tpu.memory_space<vmem>>, %arg14: memref<2x16x128xf32, #tpu.memory_space<vmem>>) attributes {dimension_semantics = [#tpu.dimension_semantics<parallel>], iteration_bounds = array<i64: 2>, scalar_prefetch = 0 : i64, scratch_operands = 0 : i64, tpu.core_type = #tpu.core_type<tc>, window_params = [{transform_indices = @transform_0, window_bounds = array<i64: 2, 16, 16>}, {transform_indices = @transform_1, window_bounds = array<i64: 2, 16, 32>}, {pipeline_mode = #tpu.pipeline_mode<synchronous>, transform_indices = @transform_2, window_bounds = array<i64: 16, 32>}, {pipeline_mode = #tpu.pipeline_mode<synchronous>, transform_indices = @transform_3, window_bounds = array<i64: 1, 32>}, {pipeline_mode = #tpu.pipeline_mode<synchronous>, transform_indices = @transform_4, window_bounds = array<i64: 2, 32, 96>}, {pipeline_mode = #tpu.pipeline_mode<synchronous>, transform_indices = @transform_5, window_bounds = array<i64: 2, 1, 96>}, {pipeline_mode = #tpu.pipeline_mode<synchronous>, transform_indices = @transform_6, window_bounds = array<i64: 2, 32, 32>}, {pipeline_mode = #tpu.pipeline_mode<synchronous>, transform_indices = @transform_7, window_bounds = array<i64: 2, 6, 32>}, {pipeline_mode = #tpu.pipeline_mode<synchronous>, transform_indices = @transform_8, window_bounds = array<i64: 2, 32, 2048>}, {pipeline_mode = #tpu.pipeline_mode<synchronous>, transform_indices = @transform_9, window_bounds = array<i64: 2, 1, 2048>}, {pipeline_mode = #tpu.pipeline_mode<synchronous>, transform_indices = @transform_10, window_bounds = array<i64: 2, 2048, 32>}, {pipeline_mode = #tpu.pipeline_mode<synchronous>, transform_indices = @transform_11, window_bounds = array<i64: 32, 128>}, {pipeline_mode = #tpu.pipeline_mode<synchronous>, transform_indices = @transform_12, window_bounds = array<i64: 1, 128>}, {transform_indices = @transform_13, window_bounds = array<i64: 2, 16, 128>}]} {
    %c0 = arith.constant 0 : index
    %c0_0 = arith.constant 0 : index
    %c0_1 = arith.constant 0 : index
    %0 = vector.load %arg1[%c0, %c0_0, %c0_1] : memref<2x16x16xf32, #tpu.memory_space<vmem>>, vector<2x16x16xf32>
    %1 = vector.shape_cast %0 : vector<2x16x16xf32> to vector<32x16xf32>
    %c0_2 = arith.constant 0 : index
    %c0_3 = arith.constant 0 : index
    %c0_4 = arith.constant 0 : index
    %2 = vector.load %arg2[%c0_2, %c0_3, %c0_4] : memref<2x16x32xf32, #tpu.memory_space<vmem>>, vector<2x16x32xf32>
    %3 = vector.shape_cast %2 : vector<2x16x32xf32> to vector<32x32xf32>
    %4 = arith.truncf %1 : vector<32x16xf32> to vector<32x16xbf16>
    %c0_5 = arith.constant 0 : index
    %c0_6 = arith.constant 0 : index
    %5 = vector.load %arg3[%c0_5, %c0_6] : memref<16x32xbf16, #tpu.memory_space<vmem>>, vector<16x32xbf16>
    %cst = arith.constant dense<0.000000e+00> : vector<32x32xf32>
    %6 = tpu.matmul %4, %5, %cst {dimension_numbers = #tpu.dot_dimension_numbers<[1], [0], [0], [1], [0, 0, 1, 1], [], []>} : vector<32x16xbf16>, vector<16x32xbf16>, vector<32x32xf32> -> vector<32x32xf32>
    %c0_7 = arith.constant 0 : index
    %c0_8 = arith.constant 0 : index
    %7 = vector.load %arg4[%c0_7, %c0_8] : memref<1x32xf32, #tpu.memory_space<vmem>>, vector<1x32xf32>
    %8 = vector.broadcast %7 : vector<1x32xf32> to vector<32x32xf32>
    %9 = arith.addf %6, %8 : vector<32x32xf32>
    %10 = arith.addf %9, %3 : vector<32x32xf32>
    %c0_9 = arith.constant 0 : index
    %c0_10 = arith.constant 0 : index
    %c0_11 = arith.constant 0 : index
    %11 = vector.load %arg5[%c0_9, %c0_10, %c0_11] : memref<2x32x96xbf16, #tpu.memory_space<vmem>>, vector<1x32x96xbf16>
    %12 = vector.shape_cast %11 : vector<1x32x96xbf16> to vector<32x96xbf16>
    %c0_12 = arith.constant 0 : index
    %c0_13 = arith.constant 0 : index
    %c0_14 = arith.constant 0 : index
    %13 = vector.load %arg6[%c0_12, %c0_13, %c0_14] : memref<2x1x96xf32, #tpu.memory_space<vmem>>, vector<1x1x96xf32>
    %14 = vector.shape_cast %13 : vector<1x1x96xf32> to vector<1x96xf32>
    %c0_15 = arith.constant 0 : index
    %c0_16 = arith.constant 0 : index
    %c0_17 = arith.constant 0 : index
    %15 = vector.load %arg7[%c0_15, %c0_16, %c0_17] : memref<2x32x32xbf16, #tpu.memory_space<vmem>>, vector<1x32x32xbf16>
    %16 = vector.shape_cast %15 : vector<1x32x32xbf16> to vector<32x32xbf16>
    %c0_18 = arith.constant 0 : index
    %c0_19 = arith.constant 0 : index
    %c0_20 = arith.constant 0 : index
    %17 = vector.load %arg8[%c0_18, %c0_19, %c0_20] : memref<2x6x32xf32, #tpu.memory_space<vmem>>, vector<1x6x32xf32>
    %18 = vector.shape_cast %17 : vector<1x6x32xf32> to vector<6x32xf32>
    %c0_21 = arith.constant 0 : index
    %c0_22 = arith.constant 0 : index
    %c0_23 = arith.constant 0 : index
    %19 = vector.load %arg9[%c0_21, %c0_22, %c0_23] : memref<2x32x2048xbf16, #tpu.memory_space<vmem>>, vector<1x32x2048xbf16>
    %20 = vector.shape_cast %19 : vector<1x32x2048xbf16> to vector<32x2048xbf16>
    %c0_24 = arith.constant 0 : index
    %c0_25 = arith.constant 0 : index
    %c0_26 = arith.constant 0 : index
    %21 = vector.load %arg10[%c0_24, %c0_25, %c0_26] : memref<2x1x2048xf32, #tpu.memory_space<vmem>>, vector<1x1x2048xf32>
    %22 = vector.shape_cast %21 : vector<1x1x2048xf32> to vector<1x2048xf32>
    %c0_27 = arith.constant 0 : index
    %c0_28 = arith.constant 0 : index
    %c0_29 = arith.constant 0 : index
    %23 = vector.load %arg11[%c0_27, %c0_28, %c0_29] : memref<2x2048x32xbf16, #tpu.memory_space<vmem>>, vector<1x2048x32xbf16>
    %24 = vector.shape_cast %23 : vector<1x2048x32xbf16> to vector<2048x32xbf16>
    %25 = arith.truncf %10 : vector<32x32xf32> to vector<32x32xbf16>
    %cst_30 = arith.constant dense<0.000000e+00> : vector<32x96xf32>
    %26 = tpu.matmul %25, %12, %cst_30 {dimension_numbers = #tpu.dot_dimension_numbers<[1], [0], [0], [1], [0, 0, 1, 1], [], []>} : vector<32x32xbf16>, vector<32x96xbf16>, vector<32x96xf32> -> vector<32x96xf32>
    %27 = vector.broadcast %14 : vector<1x96xf32> to vector<32x96xf32>
    %28 = arith.addf %26, %27 : vector<32x96xf32>
    %29 = vector.extract_strided_slice %28 {offsets = [0, 0], sizes = [16, 8], strides = [1, 1]} : vector<32x96xf32> to vector<16x8xf32>
    %30 = arith.truncf %29 : vector<16x8xf32> to vector<16x8xbf16>
    %31 = vector.extract_strided_slice %28 {offsets = [0, 32], sizes = [16, 8], strides = [1, 1]} : vector<32x96xf32> to vector<16x8xf32>
    %32 = arith.truncf %31 : vector<16x8xf32> to vector<16x8xbf16>
    %33 = vector.extract_strided_slice %28 {offsets = [0, 64], sizes = [16, 8], strides = [1, 1]} : vector<32x96xf32> to vector<16x8xf32>
    %34 = arith.truncf %33 : vector<16x8xf32> to vector<16x8xbf16>
    "tpu.trace_start"() <{level = 10 : i32, message = "td,sd->ts"}> : () -> ()
    %cst_31 = arith.constant dense<0.000000e+00> : vector<16x16xf32>
    %35 = tpu.matmul %30, %32, %cst_31 {dimension_numbers = #tpu.dot_dimension_numbers<[1], [1], [0], [0], [0, 0, 1, 0], [], []>} : vector<16x8xbf16>, vector<16x8xbf16>, vector<16x16xf32> -> vector<16x16xf32>
    "tpu.trace_stop"() : () -> ()
    %cst_32 = arith.constant dense<0xFF800000> : vector<16xf32>
    %36 = vector.multi_reduction <maximumf>, %35, %cst_32 [1] : vector<16x16xf32> to vector<16xf32>
    %37 = vector.shape_cast %36 : vector<16xf32> to vector<16x1xf32>
    %38 = vector.broadcast %37 : vector<16x1xf32> to vector<16x16xf32>
    %39 = arith.subf %35, %38 : vector<16x16xf32>
    %40 = math.exp %39 : vector<16x16xf32>
    %cst_33 = arith.constant dense<0.000000e+00> : vector<16xf32>
    %41 = vector.multi_reduction <add>, %40, %cst_33 [1] : vector<16x16xf32> to vector<16xf32>
    %42 = vector.shape_cast %41 : vector<16xf32> to vector<16x1xf32>
    %43 = tpu.reciprocal %42 {approx = true} : vector<16x1xf32> -> vector<16x1xf32>
    %44 = vector.broadcast %43 : vector<16x1xf32> to vector<16x16xf32>
    %45 = arith.mulf %40, %44 : vector<16x16xf32>
    %46 = arith.truncf %45 : vector<16x16xf32> to vector<16x16xbf16>
    %cst_34 = arith.constant dense<0.000000e+00> : vector<16x8xf32>
    %47 = tpu.matmul %46, %34, %cst_34 {dimension_numbers = #tpu.dot_dimension_numbers<[1], [0], [0], [1], [0, 0, 1, 1], [], []>} : vector<16x16xbf16>, vector<16x8xbf16>, vector<16x8xf32> -> vector<16x8xf32>
    %48 = vector.extract_strided_slice %28 {offsets = [0, 8], sizes = [16, 8], strides = [1, 1]} : vector<32x96xf32> to vector<16x8xf32>
    %49 = arith.truncf %48 : vector<16x8xf32> to vector<16x8xbf16>
    %50 = vector.extract_strided_slice %28 {offsets = [0, 40], sizes = [16, 8], strides = [1, 1]} : vector<32x96xf32> to vector<16x8xf32>
    %51 = arith.truncf %50 : vector<16x8xf32> to vector<16x8xbf16>
    %52 = vector.extract_strided_slice %28 {offsets = [0, 72], sizes = [16, 8], strides = [1, 1]} : vector<32x96xf32> to vector<16x8xf32>
    %53 = arith.truncf %52 : vector<16x8xf32> to vector<16x8xbf16>
    "tpu.trace_start"() <{level = 10 : i32, message = "td,sd->ts"}> : () -> ()
    %cst_35 = arith.constant dense<0.000000e+00> : vector<16x16xf32>
    %54 = tpu.matmul %49, %51, %cst_35 {dimension_numbers = #tpu.dot_dimension_numbers<[1], [1], [0], [0], [0, 0, 1, 0], [], []>} : vector<16x8xbf16>, vector<16x8xbf16>, vector<16x16xf32> -> vector<16x16xf32>
    "tpu.trace_stop"() : () -> ()
    %cst_36 = arith.constant dense<0xFF800000> : vector<16xf32>
    %55 = vector.multi_reduction <maximumf>, %54, %cst_36 [1] : vector<16x16xf32> to vector<16xf32>
    %56 = vector.shape_cast %55 : vector<16xf32> to vector<16x1xf32>
    %57 = vector.broadcast %56 : vector<16x1xf32> to vector<16x16xf32>
    %58 = arith.subf %54, %57 : vector<16x16xf32>
    %59 = math.exp %58 : vector<16x16xf32>
    %cst_37 = arith.constant dense<0.000000e+00> : vector<16xf32>
    %60 = vector.multi_reduction <add>, %59, %cst_37 [1] : vector<16x16xf32> to vector<16xf32>
    %61 = vector.shape_cast %60 : vector<16xf32> to vector<16x1xf32>
    %62 = tpu.reciprocal %61 {approx = true} : vector<16x1xf32> -> vector<16x1xf32>
    %63 = vector.broadcast %62 : vector<16x1xf32> to vector<16x16xf32>
    %64 = arith.mulf %59, %63 : vector<16x16xf32>
    %65 = arith.truncf %64 : vector<16x16xf32> to vector<16x16xbf16>
    %cst_38 = arith.constant dense<0.000000e+00> : vector<16x8xf32>
    %66 = tpu.matmul %65, %53, %cst_38 {dimension_numbers = #tpu.dot_dimension_numbers<[1], [0], [0], [1], [0, 0, 1, 1], [], []>} : vector<16x16xbf16>, vector<16x8xbf16>, vector<16x8xf32> -> vector<16x8xf32>
    %67 = vector.extract_strided_slice %28 {offsets = [0, 16], sizes = [16, 8], strides = [1, 1]} : vector<32x96xf32> to vector<16x8xf32>
    %68 = arith.truncf %67 : vector<16x8xf32> to vector<16x8xbf16>
    %69 = vector.extract_strided_slice %28 {offsets = [0, 48], sizes = [16, 8], strides = [1, 1]} : vector<32x96xf32> to vector<16x8xf32>
    %70 = arith.truncf %69 : vector<16x8xf32> to vector<16x8xbf16>
    %71 = vector.extract_strided_slice %28 {offsets = [0, 80], sizes = [16, 8], strides = [1, 1]} : vector<32x96xf32> to vector<16x8xf32>
    %72 = arith.truncf %71 : vector<16x8xf32> to vector<16x8xbf16>
    "tpu.trace_start"() <{level = 10 : i32, message = "td,sd->ts"}> : () -> ()
    %cst_39 = arith.constant dense<0.000000e+00> : vector<16x16xf32>
    %73 = tpu.matmul %68, %70, %cst_39 {dimension_numbers = #tpu.dot_dimension_numbers<[1], [1], [0], [0], [0, 0, 1, 0], [], []>} : vector<16x8xbf16>, vector<16x8xbf16>, vector<16x16xf32> -> vector<16x16xf32>
    "tpu.trace_stop"() : () -> ()
    %cst_40 = arith.constant dense<0xFF800000> : vector<16xf32>
    %74 = vector.multi_reduction <maximumf>, %73, %cst_40 [1] : vector<16x16xf32> to vector<16xf32>
    %75 = vector.shape_cast %74 : vector<16xf32> to vector<16x1xf32>
    %76 = vector.broadcast %75 : vector<16x1xf32> to vector<16x16xf32>
    %77 = arith.subf %73, %76 : vector<16x16xf32>
    %78 = math.exp %77 : vector<16x16xf32>
    %cst_41 = arith.constant dense<0.000000e+00> : vector<16xf32>
    %79 = vector.multi_reduction <add>, %78, %cst_41 [1] : vector<16x16xf32> to vector<16xf32>
    %80 = vector.shape_cast %79 : vector<16xf32> to vector<16x1xf32>
    %81 = tpu.reciprocal %80 {approx = true} : vector<16x1xf32> -> vector<16x1xf32>
    %82 = vector.broadcast %81 : vector<16x1xf32> to vector<16x16xf32>
    %83 = arith.mulf %78, %82 : vector<16x16xf32>
    %84 = arith.truncf %83 : vector<16x16xf32> to vector<16x16xbf16>
    %cst_42 = arith.constant dense<0.000000e+00> : vector<16x8xf32>
    %85 = tpu.matmul %84, %72, %cst_42 {dimension_numbers = #tpu.dot_dimension_numbers<[1], [0], [0], [1], [0, 0, 1, 1], [], []>} : vector<16x16xbf16>, vector<16x8xbf16>, vector<16x8xf32> -> vector<16x8xf32>
    %86 = vector.extract_strided_slice %28 {offsets = [0, 24], sizes = [16, 8], strides = [1, 1]} : vector<32x96xf32> to vector<16x8xf32>
    %87 = arith.truncf %86 : vector<16x8xf32> to vector<16x8xbf16>
    %88 = vector.extract_strided_slice %28 {offsets = [0, 56], sizes = [16, 8], strides = [1, 1]} : vector<32x96xf32> to vector<16x8xf32>
    %89 = arith.truncf %88 : vector<16x8xf32> to vector<16x8xbf16>
    %90 = vector.extract_strided_slice %28 {offsets = [0, 88], sizes = [16, 8], strides = [1, 1]} : vector<32x96xf32> to vector<16x8xf32>
    %91 = arith.truncf %90 : vector<16x8xf32> to vector<16x8xbf16>
    "tpu.trace_start"() <{level = 10 : i32, message = "td,sd->ts"}> : () -> ()
    %cst_43 = arith.constant dense<0.000000e+00> : vector<16x16xf32>
    %92 = tpu.matmul %87, %89, %cst_43 {dimension_numbers = #tpu.dot_dimension_numbers<[1], [1], [0], [0], [0, 0, 1, 0], [], []>} : vector<16x8xbf16>, vector<16x8xbf16>, vector<16x16xf32> -> vector<16x16xf32>
    "tpu.trace_stop"() : () -> ()
    %cst_44 = arith.constant dense<0xFF800000> : vector<16xf32>
    %93 = vector.multi_reduction <maximumf>, %92, %cst_44 [1] : vector<16x16xf32> to vector<16xf32>
    %94 = vector.shape_cast %93 : vector<16xf32> to vector<16x1xf32>
    %95 = vector.broadcast %94 : vector<16x1xf32> to vector<16x16xf32>
    %96 = arith.subf %92, %95 : vector<16x16xf32>
    %97 = math.exp %96 : vector<16x16xf32>
    %cst_45 = arith.constant dense<0.000000e+00> : vector<16xf32>
    %98 = vector.multi_reduction <add>, %97, %cst_45 [1] : vector<16x16xf32> to vector<16xf32>
    %99 = vector.shape_cast %98 : vector<16xf32> to vector<16x1xf32>
    %100 = tpu.reciprocal %99 {approx = true} : vector<16x1xf32> -> vector<16x1xf32>
    %101 = vector.broadcast %100 : vector<16x1xf32> to vector<16x16xf32>
    %102 = arith.mulf %97, %101 : vector<16x16xf32>
    %103 = arith.truncf %102 : vector<16x16xf32> to vector<16x16xbf16>
    %cst_46 = arith.constant dense<0.000000e+00> : vector<16x8xf32>
    %104 = tpu.matmul %103, %91, %cst_46 {dimension_numbers = #tpu.dot_dimension_numbers<[1], [0], [0], [1], [0, 0, 1, 1], [], []>} : vector<16x16xbf16>, vector<16x8xbf16>, vector<16x8xf32> -> vector<16x8xf32>
    %105 = tpu.concatenate %47, %66, %85, %104 in 1 : vector<16x8xf32>, vector<16x8xf32>, vector<16x8xf32>, vector<16x8xf32> -> vector<16x32xf32>
    %106 = vector.extract_strided_slice %28 {offsets = [16, 0], sizes = [16, 8], strides = [1, 1]} : vector<32x96xf32> to vector<16x8xf32>
    %107 = arith.truncf %106 : vector<16x8xf32> to vector<16x8xbf16>
    %108 = vector.extract_strided_slice %28 {offsets = [16, 32], sizes = [16, 8], strides = [1, 1]} : vector<32x96xf32> to vector<16x8xf32>
    %109 = arith.truncf %108 : vector<16x8xf32> to vector<16x8xbf16>
    %110 = vector.extract_strided_slice %28 {offsets = [16, 64], sizes = [16, 8], strides = [1, 1]} : vector<32x96xf32> to vector<16x8xf32>
    %111 = arith.truncf %110 : vector<16x8xf32> to vector<16x8xbf16>
    "tpu.trace_start"() <{level = 10 : i32, message = "td,sd->ts"}> : () -> ()
    %cst_47 = arith.constant dense<0.000000e+00> : vector<16x16xf32>
    %112 = tpu.matmul %107, %109, %cst_47 {dimension_numbers = #tpu.dot_dimension_numbers<[1], [1], [0], [0], [0, 0, 1, 0], [], []>} : vector<16x8xbf16>, vector<16x8xbf16>, vector<16x16xf32> -> vector<16x16xf32>
    "tpu.trace_stop"() : () -> ()
    %cst_48 = arith.constant dense<0xFF800000> : vector<16xf32>
    %113 = vector.multi_reduction <maximumf>, %112, %cst_48 [1] : vector<16x16xf32> to vector<16xf32>
    %114 = vector.shape_cast %113 : vector<16xf32> to vector<16x1xf32>
    %115 = vector.broadcast %114 : vector<16x1xf32> to vector<16x16xf32>
    %116 = arith.subf %112, %115 : vector<16x16xf32>
    %117 = math.exp %116 : vector<16x16xf32>
    %cst_49 = arith.constant dense<0.000000e+00> : vector<16xf32>
    %118 = vector.multi_reduction <add>, %117, %cst_49 [1] : vector<16x16xf32> to vector<16xf32>
    %119 = vector.shape_cast %118 : vector<16xf32> to vector<16x1xf32>
    %120 = tpu.reciprocal %119 {approx = true} : vector<16x1xf32> -> vector<16x1xf32>
    %121 = vector.broadcast %120 : vector<16x1xf32> to vector<16x16xf32>
    %122 = arith.mulf %117, %121 : vector<16x16xf32>
    %123 = arith.truncf %122 : vector<16x16xf32> to vector<16x16xbf16>
    %cst_50 = arith.constant dense<0.000000e+00> : vector<16x8xf32>
    %124 = tpu.matmul %123, %111, %cst_50 {dimension_numbers = #tpu.dot_dimension_numbers<[1], [0], [0], [1], [0, 0, 1, 1], [], []>} : vector<16x16xbf16>, vector<16x8xbf16>, vector<16x8xf32> -> vector<16x8xf32>
    %125 = vector.extract_strided_slice %28 {offsets = [16, 8], sizes = [16, 8], strides = [1, 1]} : vector<32x96xf32> to vector<16x8xf32>
    %126 = arith.truncf %125 : vector<16x8xf32> to vector<16x8xbf16>
    %127 = vector.extract_strided_slice %28 {offsets = [16, 40], sizes = [16, 8], strides = [1, 1]} : vector<32x96xf32> to vector<16x8xf32>
    %128 = arith.truncf %127 : vector<16x8xf32> to vector<16x8xbf16>
    %129 = vector.extract_strided_slice %28 {offsets = [16, 72], sizes = [16, 8], strides = [1, 1]} : vector<32x96xf32> to vector<16x8xf32>
    %130 = arith.truncf %129 : vector<16x8xf32> to vector<16x8xbf16>
    "tpu.trace_start"() <{level = 10 : i32, message = "td,sd->ts"}> : () -> ()
    %cst_51 = arith.constant dense<0.000000e+00> : vector<16x16xf32>
    %131 = tpu.matmul %126, %128, %cst_51 {dimension_numbers = #tpu.dot_dimension_numbers<[1], [1], [0], [0], [0, 0, 1, 0], [], []>} : vector<16x8xbf16>, vector<16x8xbf16>, vector<16x16xf32> -> vector<16x16xf32>
    "tpu.trace_stop"() : () -> ()
    %cst_52 = arith.constant dense<0xFF800000> : vector<16xf32>
    %132 = vector.multi_reduction <maximumf>, %131, %cst_52 [1] : vector<16x16xf32> to vector<16xf32>
    %133 = vector.shape_cast %132 : vector<16xf32> to vector<16x1xf32>
    %134 = vector.broadcast %133 : vector<16x1xf32> to vector<16x16xf32>
    %135 = arith.subf %131, %134 : vector<16x16xf32>
    %136 = math.exp %135 : vector<16x16xf32>
    %cst_53 = arith.constant dense<0.000000e+00> : vector<16xf32>
    %137 = vector.multi_reduction <add>, %136, %cst_53 [1] : vector<16x16xf32> to vector<16xf32>
    %138 = vector.shape_cast %137 : vector<16xf32> to vector<16x1xf32>
    %139 = tpu.reciprocal %138 {approx = true} : vector<16x1xf32> -> vector<16x1xf32>
    %140 = vector.broadcast %139 : vector<16x1xf32> to vector<16x16xf32>
    %141 = arith.mulf %136, %140 : vector<16x16xf32>
    %142 = arith.truncf %141 : vector<16x16xf32> to vector<16x16xbf16>
    %cst_54 = arith.constant dense<0.000000e+00> : vector<16x8xf32>
    %143 = tpu.matmul %142, %130, %cst_54 {dimension_numbers = #tpu.dot_dimension_numbers<[1], [0], [0], [1], [0, 0, 1, 1], [], []>} : vector<16x16xbf16>, vector<16x8xbf16>, vector<16x8xf32> -> vector<16x8xf32>
    %144 = vector.extract_strided_slice %28 {offsets = [16, 16], sizes = [16, 8], strides = [1, 1]} : vector<32x96xf32> to vector<16x8xf32>
    %145 = arith.truncf %144 : vector<16x8xf32> to vector<16x8xbf16>
    %146 = vector.extract_strided_slice %28 {offsets = [16, 48], sizes = [16, 8], strides = [1, 1]} : vector<32x96xf32> to vector<16x8xf32>
    %147 = arith.truncf %146 : vector<16x8xf32> to vector<16x8xbf16>
    %148 = vector.extract_strided_slice %28 {offsets = [16, 80], sizes = [16, 8], strides = [1, 1]} : vector<32x96xf32> to vector<16x8xf32>
    %149 = arith.truncf %148 : vector<16x8xf32> to vector<16x8xbf16>
    "tpu.trace_start"() <{level = 10 : i32, message = "td,sd->ts"}> : () -> ()
    %cst_55 = arith.constant dense<0.000000e+00> : vector<16x16xf32>
    %150 = tpu.matmul %145, %147, %cst_55 {dimension_numbers = #tpu.dot_dimension_numbers<[1], [1], [0], [0], [0, 0, 1, 0], [], []>} : vector<16x8xbf16>, vector<16x8xbf16>, vector<16x16xf32> -> vector<16x16xf32>
    "tpu.trace_stop"() : () -> ()
    %cst_56 = arith.constant dense<0xFF800000> : vector<16xf32>
    %151 = vector.multi_reduction <maximumf>, %150, %cst_56 [1] : vector<16x16xf32> to vector<16xf32>
    %152 = vector.shape_cast %151 : vector<16xf32> to vector<16x1xf32>
    %153 = vector.broadcast %152 : vector<16x1xf32> to vector<16x16xf32>
    %154 = arith.subf %150, %153 : vector<16x16xf32>
    %155 = math.exp %154 : vector<16x16xf32>
    %cst_57 = arith.constant dense<0.000000e+00> : vector<16xf32>
    %156 = vector.multi_reduction <add>, %155, %cst_57 [1] : vector<16x16xf32> to vector<16xf32>
    %157 = vector.shape_cast %156 : vector<16xf32> to vector<16x1xf32>
    %158 = tpu.reciprocal %157 {approx = true} : vector<16x1xf32> -> vector<16x1xf32>
    %159 = vector.broadcast %158 : vector<16x1xf32> to vector<16x16xf32>
    %160 = arith.mulf %155, %159 : vector<16x16xf32>
    %161 = arith.truncf %160 : vector<16x16xf32> to vector<16x16xbf16>
    %cst_58 = arith.constant dense<0.000000e+00> : vector<16x8xf32>
    %162 = tpu.matmul %161, %149, %cst_58 {dimension_numbers = #tpu.dot_dimension_numbers<[1], [0], [0], [1], [0, 0, 1, 1], [], []>} : vector<16x16xbf16>, vector<16x8xbf16>, vector<16x8xf32> -> vector<16x8xf32>
    %163 = vector.extract_strided_slice %28 {offsets = [16, 24], sizes = [16, 8], strides = [1, 1]} : vector<32x96xf32> to vector<16x8xf32>
    %164 = arith.truncf %163 : vector<16x8xf32> to vector<16x8xbf16>
    %165 = vector.extract_strided_slice %28 {offsets = [16, 56], sizes = [16, 8], strides = [1, 1]} : vector<32x96xf32> to vector<16x8xf32>
    %166 = arith.truncf %165 : vector<16x8xf32> to vector<16x8xbf16>
    %167 = vector.extract_strided_slice %28 {offsets = [16, 88], sizes = [16, 8], strides = [1, 1]} : vector<32x96xf32> to vector<16x8xf32>
    %168 = arith.truncf %167 : vector<16x8xf32> to vector<16x8xbf16>
    "tpu.trace_start"() <{level = 10 : i32, message = "td,sd->ts"}> : () -> ()
    %cst_59 = arith.constant dense<0.000000e+00> : vector<16x16xf32>
    %169 = tpu.matmul %164, %166, %cst_59 {dimension_numbers = #tpu.dot_dimension_numbers<[1], [1], [0], [0], [0, 0, 1, 0], [], []>} : vector<16x8xbf16>, vector<16x8xbf16>, vector<16x16xf32> -> vector<16x16xf32>
    "tpu.trace_stop"() : () -> ()
    %cst_60 = arith.constant dense<0xFF800000> : vector<16xf32>
    %170 = vector.multi_reduction <maximumf>, %169, %cst_60 [1] : vector<16x16xf32> to vector<16xf32>
    %171 = vector.shape_cast %170 : vector<16xf32> to vector<16x1xf32>
    %172 = vector.broadcast %171 : vector<16x1xf32> to vector<16x16xf32>
    %173 = arith.subf %169, %172 : vector<16x16xf32>
    %174 = math.exp %173 : vector<16x16xf32>
    %cst_61 = arith.constant dense<0.000000e+00> : vector<16xf32>
    %175 = vector.multi_reduction <add>, %174, %cst_61 [1] : vector<16x16xf32> to vector<16xf32>
    %176 = vector.shape_cast %175 : vector<16xf32> to vector<16x1xf32>
    %177 = tpu.reciprocal %176 {approx = true} : vector<16x1xf32> -> vector<16x1xf32>
    %178 = vector.broadcast %177 : vector<16x1xf32> to vector<16x16xf32>
    %179 = arith.mulf %174, %178 : vector<16x16xf32>
    %180 = arith.truncf %179 : vector<16x16xf32> to vector<16x16xbf16>
    %cst_62 = arith.constant dense<0.000000e+00> : vector<16x8xf32>
    %181 = tpu.matmul %180, %168, %cst_62 {dimension_numbers = #tpu.dot_dimension_numbers<[1], [0], [0], [1], [0, 0, 1, 1], [], []>} : vector<16x16xbf16>, vector<16x8xbf16>, vector<16x8xf32> -> vector<16x8xf32>
    %182 = tpu.concatenate %124, %143, %162, %181 in 1 : vector<16x8xf32>, vector<16x8xf32>, vector<16x8xf32>, vector<16x8xf32> -> vector<16x32xf32>
    %183 = tpu.concatenate %105, %182 in 0 : vector<16x32xf32>, vector<16x32xf32> -> vector<32x32xf32>
    %184 = arith.truncf %183 : vector<32x32xf32> to vector<32x32xbf16>
    %cst_63 = arith.constant dense<0.000000e+00> : vector<32x32xf32>
    %185 = tpu.matmul %184, %16, %cst_63 {dimension_numbers = #tpu.dot_dimension_numbers<[1], [0], [0], [1], [0, 0, 1, 1], [], []>} : vector<32x32xbf16>, vector<32x32xbf16>, vector<32x32xf32> -> vector<32x32xf32>
    %186 = vector.extract_strided_slice %18 {offsets = [0, 0], sizes = [1, 32], strides = [1, 1]} : vector<6x32xf32> to vector<1x32xf32>
    %187 = vector.broadcast %186 : vector<1x32xf32> to vector<32x32xf32>
    %188 = arith.addf %185, %187 : vector<32x32xf32>
    %189 = arith.addf %10, %188 : vector<32x32xf32>
    %190 = vector.extract_strided_slice %18 {offsets = [1, 0], sizes = [1, 32], strides = [1, 1]} : vector<6x32xf32> to vector<1x32xf32>
    %191 = vector.extract_strided_slice %18 {offsets = [2, 0], sizes = [1, 32], strides = [1, 1]} : vector<6x32xf32> to vector<1x32xf32>
    %cst_64 = arith.constant dense<0.000000e+00> : vector<32xf32>
    %192 = vector.multi_reduction <add>, %189, %cst_64 [1] : vector<32x32xf32> to vector<32xf32>
    %193 = vector.shape_cast %192 : vector<32xf32> to vector<32x1xf32>
    %cst_65 = arith.constant 3.200000e+01 : f32
    %194 = vector.broadcast %cst_65 : f32 to vector<32x1xf32>
    %195 = arith.divf %193, %194 : vector<32x1xf32>
    %196 = vector.broadcast %195 : vector<32x1xf32> to vector<32x32xf32>
    %197 = arith.subf %189, %196 : vector<32x32xf32>
    %198 = arith.mulf %197, %197 : vector<32x32xf32>
    %cst_66 = arith.constant dense<0.000000e+00> : vector<32xf32>
    %199 = vector.multi_reduction <add>, %198, %cst_66 [1] : vector<32x32xf32> to vector<32xf32>
    %200 = vector.shape_cast %199 : vector<32xf32> to vector<32x1xf32>
    %cst_67 = arith.constant 3.200000e+01 : f32
    %201 = vector.broadcast %cst_67 : f32 to vector<32x1xf32>
    %202 = arith.divf %200, %201 : vector<32x1xf32>
    %203 = vector.broadcast %195 : vector<32x1xf32> to vector<32x32xf32>
    %204 = arith.subf %189, %203 : vector<32x32xf32>
    %cst_68 = arith.constant 9.99999974E-6 : f32
    %205 = vector.broadcast %cst_68 : f32 to vector<32x1xf32>
    %206 = arith.addf %202, %205 : vector<32x1xf32>
    %207 = math.rsqrt %206 : vector<32x1xf32>
    %208 = vector.broadcast %207 : vector<32x1xf32> to vector<32x32xf32>
    %209 = arith.mulf %204, %208 : vector<32x32xf32>
    %210 = vector.broadcast %190 : vector<1x32xf32> to vector<32x32xf32>
    %211 = arith.mulf %209, %210 : vector<32x32xf32>
    %212 = vector.broadcast %191 : vector<1x32xf32> to vector<32x32xf32>
    %213 = arith.addf %211, %212 : vector<32x32xf32>
    %214 = arith.truncf %213 : vector<32x32xf32> to vector<32x32xbf16>
    %cst_69 = arith.constant dense<0.000000e+00> : vector<32x2048xf32>
    %215 = tpu.matmul %214, %20, %cst_69 {dimension_numbers = #tpu.dot_dimension_numbers<[1], [0], [0], [1], [0, 0, 1, 1], [], []>} : vector<32x32xbf16>, vector<32x2048xbf16>, vector<32x2048xf32> -> vector<32x2048xf32>
    %216 = vector.broadcast %22 : vector<1x2048xf32> to vector<32x2048xf32>
    %217 = arith.addf %215, %216 : vector<32x2048xf32>
    %cst_70 = arith.constant 0.000000e+00 : f32
    %218 = vector.broadcast %cst_70 : f32 to vector<32x2048xf32>
    %219 = arith.maximumf %217, %218 : vector<32x2048xf32>
    %220 = arith.truncf %219 : vector<32x2048xf32> to vector<32x2048xbf16>
    %cst_71 = arith.constant dense<0.000000e+00> : vector<32x32xf32>
    %221 = tpu.matmul %220, %24, %cst_71 {dimension_numbers = #tpu.dot_dimension_numbers<[1], [0], [0], [1], [0, 0, 1, 1], [], []>} : vector<32x2048xbf16>, vector<2048x32xbf16>, vector<32x32xf32> -> vector<32x32xf32>
    %222 = vector.extract_strided_slice %18 {offsets = [3, 0], sizes = [1, 32], strides = [1, 1]} : vector<6x32xf32> to vector<1x32xf32>
    %223 = vector.broadcast %222 : vector<1x32xf32> to vector<32x32xf32>
    %224 = arith.addf %221, %223 : vector<32x32xf32>
    %225 = arith.addf %213, %224 : vector<32x32xf32>
    %226 = vector.extract_strided_slice %18 {offsets = [4, 0], sizes = [1, 32], strides = [1, 1]} : vector<6x32xf32> to vector<1x32xf32>
    %227 = vector.extract_strided_slice %18 {offsets = [5, 0], sizes = [1, 32], strides = [1, 1]} : vector<6x32xf32> to vector<1x32xf32>
    %cst_72 = arith.constant dense<0.000000e+00> : vector<32xf32>
    %228 = vector.multi_reduction <add>, %225, %cst_72 [1] : vector<32x32xf32> to vector<32xf32>
    %229 = vector.shape_cast %228 : vector<32xf32> to vector<32x1xf32>
    %cst_73 = arith.constant 3.200000e+01 : f32
    %230 = vector.broadcast %cst_73 : f32 to vector<32x1xf32>
    %231 = arith.divf %229, %230 : vector<32x1xf32>
    %232 = vector.broadcast %231 : vector<32x1xf32> to vector<32x32xf32>
    %233 = arith.subf %225, %232 : vector<32x32xf32>
    %234 = arith.mulf %233, %233 : vector<32x32xf32>
    %cst_74 = arith.constant dense<0.000000e+00> : vector<32xf32>
    %235 = vector.multi_reduction <add>, %234, %cst_74 [1] : vector<32x32xf32> to vector<32xf32>
    %236 = vector.shape_cast %235 : vector<32xf32> to vector<32x1xf32>
    %cst_75 = arith.constant 3.200000e+01 : f32
    %237 = vector.broadcast %cst_75 : f32 to vector<32x1xf32>
    %238 = arith.divf %236, %237 : vector<32x1xf32>
    %239 = vector.broadcast %231 : vector<32x1xf32> to vector<32x32xf32>
    %240 = arith.subf %225, %239 : vector<32x32xf32>
    %cst_76 = arith.constant 9.99999974E-6 : f32
    %241 = vector.broadcast %cst_76 : f32 to vector<32x1xf32>
    %242 = arith.addf %238, %241 : vector<32x1xf32>
    %243 = math.rsqrt %242 : vector<32x1xf32>
    %244 = vector.broadcast %243 : vector<32x1xf32> to vector<32x32xf32>
    %245 = arith.mulf %240, %244 : vector<32x32xf32>
    %246 = vector.broadcast %226 : vector<1x32xf32> to vector<32x32xf32>
    %247 = arith.mulf %245, %246 : vector<32x32xf32>
    %248 = vector.broadcast %227 : vector<1x32xf32> to vector<32x32xf32>
    %249 = arith.addf %247, %248 : vector<32x32xf32>
    %c1 = arith.constant 1 : index
    %c0_77 = arith.constant 0 : index
    %c0_78 = arith.constant 0 : index
    %250 = vector.load %arg5[%c1, %c0_77, %c0_78] : memref<2x32x96xbf16, #tpu.memory_space<vmem>>, vector<1x32x96xbf16>
    %251 = vector.shape_cast %250 : vector<1x32x96xbf16> to vector<32x96xbf16>
    %c1_79 = arith.constant 1 : index
    %c0_80 = arith.constant 0 : index
    %c0_81 = arith.constant 0 : index
    %252 = vector.load %arg6[%c1_79, %c0_80, %c0_81] : memref<2x1x96xf32, #tpu.memory_space<vmem>>, vector<1x1x96xf32>
    %253 = vector.shape_cast %252 : vector<1x1x96xf32> to vector<1x96xf32>
    %c1_82 = arith.constant 1 : index
    %c0_83 = arith.constant 0 : index
    %c0_84 = arith.constant 0 : index
    %254 = vector.load %arg7[%c1_82, %c0_83, %c0_84] : memref<2x32x32xbf16, #tpu.memory_space<vmem>>, vector<1x32x32xbf16>
    %255 = vector.shape_cast %254 : vector<1x32x32xbf16> to vector<32x32xbf16>
    %c1_85 = arith.constant 1 : index
    %c0_86 = arith.constant 0 : index
    %c0_87 = arith.constant 0 : index
    %256 = vector.load %arg8[%c1_85, %c0_86, %c0_87] : memref<2x6x32xf32, #tpu.memory_space<vmem>>, vector<1x6x32xf32>
    %257 = vector.shape_cast %256 : vector<1x6x32xf32> to vector<6x32xf32>
    %c1_88 = arith.constant 1 : index
    %c0_89 = arith.constant 0 : index
    %c0_90 = arith.constant 0 : index
    %258 = vector.load %arg9[%c1_88, %c0_89, %c0_90] : memref<2x32x2048xbf16, #tpu.memory_space<vmem>>, vector<1x32x2048xbf16>
    %259 = vector.shape_cast %258 : vector<1x32x2048xbf16> to vector<32x2048xbf16>
    %c1_91 = arith.constant 1 : index
    %c0_92 = arith.constant 0 : index
    %c0_93 = arith.constant 0 : index
    %260 = vector.load %arg10[%c1_91, %c0_92, %c0_93] : memref<2x1x2048xf32, #tpu.memory_space<vmem>>, vector<1x1x2048xf32>
    %261 = vector.shape_cast %260 : vector<1x1x2048xf32> to vector<1x2048xf32>
    %c1_94 = arith.constant 1 : index
    %c0_95 = arith.constant 0 : index
    %c0_96 = arith.constant 0 : index
    %262 = vector.load %arg11[%c1_94, %c0_95, %c0_96] : memref<2x2048x32xbf16, #tpu.memory_space<vmem>>, vector<1x2048x32xbf16>
    %263 = vector.shape_cast %262 : vector<1x2048x32xbf16> to vector<2048x32xbf16>
    %264 = arith.truncf %249 : vector<32x32xf32> to vector<32x32xbf16>
    %cst_97 = arith.constant dense<0.000000e+00> : vector<32x96xf32>
    %265 = tpu.matmul %264, %251, %cst_97 {dimension_numbers = #tpu.dot_dimension_numbers<[1], [0], [0], [1], [0, 0, 1, 1], [], []>} : vector<32x32xbf16>, vector<32x96xbf16>, vector<32x96xf32> -> vector<32x96xf32>
    %266 = vector.broadcast %253 : vector<1x96xf32> to vector<32x96xf32>
    %267 = arith.addf %265, %266 : vector<32x96xf32>
    %268 = vector.extract_strided_slice %267 {offsets = [0, 0], sizes = [16, 8], strides = [1, 1]} : vector<32x96xf32> to vector<16x8xf32>
    %269 = arith.truncf %268 : vector<16x8xf32> to vector<16x8xbf16>
    %270 = vector.extract_strided_slice %267 {offsets = [0, 32], sizes = [16, 8], strides = [1, 1]} : vector<32x96xf32> to vector<16x8xf32>
    %271 = arith.truncf %270 : vector<16x8xf32> to vector<16x8xbf16>
    %272 = vector.extract_strided_slice %267 {offsets = [0, 64], sizes = [16, 8], strides = [1, 1]} : vector<32x96xf32> to vector<16x8xf32>
    %273 = arith.truncf %272 : vector<16x8xf32> to vector<16x8xbf16>
    "tpu.trace_start"() <{level = 10 : i32, message = "td,sd->ts"}> : () -> ()
    %cst_98 = arith.constant dense<0.000000e+00> : vector<16x16xf32>
    %274 = tpu.matmul %269, %271, %cst_98 {dimension_numbers = #tpu.dot_dimension_numbers<[1], [1], [0], [0], [0, 0, 1, 0], [], []>} : vector<16x8xbf16>, vector<16x8xbf16>, vector<16x16xf32> -> vector<16x16xf32>
    "tpu.trace_stop"() : () -> ()
    %cst_99 = arith.constant dense<0xFF800000> : vector<16xf32>
    %275 = vector.multi_reduction <maximumf>, %274, %cst_99 [1] : vector<16x16xf32> to vector<16xf32>
    %276 = vector.shape_cast %275 : vector<16xf32> to vector<16x1xf32>
    %277 = vector.broadcast %276 : vector<16x1xf32> to vector<16x16xf32>
    %278 = arith.subf %274, %277 : vector<16x16xf32>
    %279 = math.exp %278 : vector<16x16xf32>
    %cst_100 = arith.constant dense<0.000000e+00> : vector<16xf32>
    %280 = vector.multi_reduction <add>, %279, %cst_100 [1] : vector<16x16xf32> to vector<16xf32>
    %281 = vector.shape_cast %280 : vector<16xf32> to vector<16x1xf32>
    %282 = tpu.reciprocal %281 {approx = true} : vector<16x1xf32> -> vector<16x1xf32>
    %283 = vector.broadcast %282 : vector<16x1xf32> to vector<16x16xf32>
    %284 = arith.mulf %279, %283 : vector<16x16xf32>
    %285 = arith.truncf %284 : vector<16x16xf32> to vector<16x16xbf16>
    %cst_101 = arith.constant dense<0.000000e+00> : vector<16x8xf32>
    %286 = tpu.matmul %285, %273, %cst_101 {dimension_numbers = #tpu.dot_dimension_numbers<[1], [0], [0], [1], [0, 0, 1, 1], [], []>} : vector<16x16xbf16>, vector<16x8xbf16>, vector<16x8xf32> -> vector<16x8xf32>
    %287 = vector.extract_strided_slice %267 {offsets = [0, 8], sizes = [16, 8], strides = [1, 1]} : vector<32x96xf32> to vector<16x8xf32>
    %288 = arith.truncf %287 : vector<16x8xf32> to vector<16x8xbf16>
    %289 = vector.extract_strided_slice %267 {offsets = [0, 40], sizes = [16, 8], strides = [1, 1]} : vector<32x96xf32> to vector<16x8xf32>
    %290 = arith.truncf %289 : vector<16x8xf32> to vector<16x8xbf16>
    %291 = vector.extract_strided_slice %267 {offsets = [0, 72], sizes = [16, 8], strides = [1, 1]} : vector<32x96xf32> to vector<16x8xf32>
    %292 = arith.truncf %291 : vector<16x8xf32> to vector<16x8xbf16>
    "tpu.trace_start"() <{level = 10 : i32, message = "td,sd->ts"}> : () -> ()
    %cst_102 = arith.constant dense<0.000000e+00> : vector<16x16xf32>
    %293 = tpu.matmul %288, %290, %cst_102 {dimension_numbers = #tpu.dot_dimension_numbers<[1], [1], [0], [0], [0, 0, 1, 0], [], []>} : vector<16x8xbf16>, vector<16x8xbf16>, vector<16x16xf32> -> vector<16x16xf32>
    "tpu.trace_stop"() : () -> ()
    %cst_103 = arith.constant dense<0xFF800000> : vector<16xf32>
    %294 = vector.multi_reduction <maximumf>, %293, %cst_103 [1] : vector<16x16xf32> to vector<16xf32>
    %295 = vector.shape_cast %294 : vector<16xf32> to vector<16x1xf32>
    %296 = vector.broadcast %295 : vector<16x1xf32> to vector<16x16xf32>
    %297 = arith.subf %293, %296 : vector<16x16xf32>
    %298 = math.exp %297 : vector<16x16xf32>
    %cst_104 = arith.constant dense<0.000000e+00> : vector<16xf32>
    %299 = vector.multi_reduction <add>, %298, %cst_104 [1] : vector<16x16xf32> to vector<16xf32>
    %300 = vector.shape_cast %299 : vector<16xf32> to vector<16x1xf32>
    %301 = tpu.reciprocal %300 {approx = true} : vector<16x1xf32> -> vector<16x1xf32>
    %302 = vector.broadcast %301 : vector<16x1xf32> to vector<16x16xf32>
    %303 = arith.mulf %298, %302 : vector<16x16xf32>
    %304 = arith.truncf %303 : vector<16x16xf32> to vector<16x16xbf16>
    %cst_105 = arith.constant dense<0.000000e+00> : vector<16x8xf32>
    %305 = tpu.matmul %304, %292, %cst_105 {dimension_numbers = #tpu.dot_dimension_numbers<[1], [0], [0], [1], [0, 0, 1, 1], [], []>} : vector<16x16xbf16>, vector<16x8xbf16>, vector<16x8xf32> -> vector<16x8xf32>
    %306 = vector.extract_strided_slice %267 {offsets = [0, 16], sizes = [16, 8], strides = [1, 1]} : vector<32x96xf32> to vector<16x8xf32>
    %307 = arith.truncf %306 : vector<16x8xf32> to vector<16x8xbf16>
    %308 = vector.extract_strided_slice %267 {offsets = [0, 48], sizes = [16, 8], strides = [1, 1]} : vector<32x96xf32> to vector<16x8xf32>
    %309 = arith.truncf %308 : vector<16x8xf32> to vector<16x8xbf16>
    %310 = vector.extract_strided_slice %267 {offsets = [0, 80], sizes = [16, 8], strides = [1, 1]} : vector<32x96xf32> to vector<16x8xf32>
    %311 = arith.truncf %310 : vector<16x8xf32> to vector<16x8xbf16>
    "tpu.trace_start"() <{level = 10 : i32, message = "td,sd->ts"}> : () -> ()
    %cst_106 = arith.constant dense<0.000000e+00> : vector<16x16xf32>
    %312 = tpu.matmul %307, %309, %cst_106 {dimension_numbers = #tpu.dot_dimension_numbers<[1], [1], [0], [0], [0, 0, 1, 0], [], []>} : vector<16x8xbf16>, vector<16x8xbf16>, vector<16x16xf32> -> vector<16x16xf32>
    "tpu.trace_stop"() : () -> ()
    %cst_107 = arith.constant dense<0xFF800000> : vector<16xf32>
    %313 = vector.multi_reduction <maximumf>, %312, %cst_107 [1] : vector<16x16xf32> to vector<16xf32>
    %314 = vector.shape_cast %313 : vector<16xf32> to vector<16x1xf32>
    %315 = vector.broadcast %314 : vector<16x1xf32> to vector<16x16xf32>
    %316 = arith.subf %312, %315 : vector<16x16xf32>
    %317 = math.exp %316 : vector<16x16xf32>
    %cst_108 = arith.constant dense<0.000000e+00> : vector<16xf32>
    %318 = vector.multi_reduction <add>, %317, %cst_108 [1] : vector<16x16xf32> to vector<16xf32>
    %319 = vector.shape_cast %318 : vector<16xf32> to vector<16x1xf32>
    %320 = tpu.reciprocal %319 {approx = true} : vector<16x1xf32> -> vector<16x1xf32>
    %321 = vector.broadcast %320 : vector<16x1xf32> to vector<16x16xf32>
    %322 = arith.mulf %317, %321 : vector<16x16xf32>
    %323 = arith.truncf %322 : vector<16x16xf32> to vector<16x16xbf16>
    %cst_109 = arith.constant dense<0.000000e+00> : vector<16x8xf32>
    %324 = tpu.matmul %323, %311, %cst_109 {dimension_numbers = #tpu.dot_dimension_numbers<[1], [0], [0], [1], [0, 0, 1, 1], [], []>} : vector<16x16xbf16>, vector<16x8xbf16>, vector<16x8xf32> -> vector<16x8xf32>
    %325 = vector.extract_strided_slice %267 {offsets = [0, 24], sizes = [16, 8], strides = [1, 1]} : vector<32x96xf32> to vector<16x8xf32>
    %326 = arith.truncf %325 : vector<16x8xf32> to vector<16x8xbf16>
    %327 = vector.extract_strided_slice %267 {offsets = [0, 56], sizes = [16, 8], strides = [1, 1]} : vector<32x96xf32> to vector<16x8xf32>
    %328 = arith.truncf %327 : vector<16x8xf32> to vector<16x8xbf16>
    %329 = vector.extract_strided_slice %267 {offsets = [0, 88], sizes = [16, 8], strides = [1, 1]} : vector<32x96xf32> to vector<16x8xf32>
    %330 = arith.truncf %329 : vector<16x8xf32> to vector<16x8xbf16>
    "tpu.trace_start"() <{level = 10 : i32, message = "td,sd->ts"}> : () -> ()
    %cst_110 = arith.constant dense<0.000000e+00> : vector<16x16xf32>
    %331 = tpu.matmul %326, %328, %cst_110 {dimension_numbers = #tpu.dot_dimension_numbers<[1], [1], [0], [0], [0, 0, 1, 0], [], []>} : vector<16x8xbf16>, vector<16x8xbf16>, vector<16x16xf32> -> vector<16x16xf32>
    "tpu.trace_stop"() : () -> ()
    %cst_111 = arith.constant dense<0xFF800000> : vector<16xf32>
    %332 = vector.multi_reduction <maximumf>, %331, %cst_111 [1] : vector<16x16xf32> to vector<16xf32>
    %333 = vector.shape_cast %332 : vector<16xf32> to vector<16x1xf32>
    %334 = vector.broadcast %333 : vector<16x1xf32> to vector<16x16xf32>
    %335 = arith.subf %331, %334 : vector<16x16xf32>
    %336 = math.exp %335 : vector<16x16xf32>
    %cst_112 = arith.constant dense<0.000000e+00> : vector<16xf32>
    %337 = vector.multi_reduction <add>, %336, %cst_112 [1] : vector<16x16xf32> to vector<16xf32>
    %338 = vector.shape_cast %337 : vector<16xf32> to vector<16x1xf32>
    %339 = tpu.reciprocal %338 {approx = true} : vector<16x1xf32> -> vector<16x1xf32>
    %340 = vector.broadcast %339 : vector<16x1xf32> to vector<16x16xf32>
    %341 = arith.mulf %336, %340 : vector<16x16xf32>
    %342 = arith.truncf %341 : vector<16x16xf32> to vector<16x16xbf16>
    %cst_113 = arith.constant dense<0.000000e+00> : vector<16x8xf32>
    %343 = tpu.matmul %342, %330, %cst_113 {dimension_numbers = #tpu.dot_dimension_numbers<[1], [0], [0], [1], [0, 0, 1, 1], [], []>} : vector<16x16xbf16>, vector<16x8xbf16>, vector<16x8xf32> -> vector<16x8xf32>
    %344 = tpu.concatenate %286, %305, %324, %343 in 1 : vector<16x8xf32>, vector<16x8xf32>, vector<16x8xf32>, vector<16x8xf32> -> vector<16x32xf32>
    %345 = vector.extract_strided_slice %267 {offsets = [16, 0], sizes = [16, 8], strides = [1, 1]} : vector<32x96xf32> to vector<16x8xf32>
    %346 = arith.truncf %345 : vector<16x8xf32> to vector<16x8xbf16>
    %347 = vector.extract_strided_slice %267 {offsets = [16, 32], sizes = [16, 8], strides = [1, 1]} : vector<32x96xf32> to vector<16x8xf32>
    %348 = arith.truncf %347 : vector<16x8xf32> to vector<16x8xbf16>
    %349 = vector.extract_strided_slice %267 {offsets = [16, 64], sizes = [16, 8], strides = [1, 1]} : vector<32x96xf32> to vector<16x8xf32>
    %350 = arith.truncf %349 : vector<16x8xf32> to vector<16x8xbf16>
    "tpu.trace_start"() <{level = 10 : i32, message = "td,sd->ts"}> : () -> ()
    %cst_114 = arith.constant dense<0.000000e+00> : vector<16x16xf32>
    %351 = tpu.matmul %346, %348, %cst_114 {dimension_numbers = #tpu.dot_dimension_numbers<[1], [1], [0], [0], [0, 0, 1, 0], [], []>} : vector<16x8xbf16>, vector<16x8xbf16>, vector<16x16xf32> -> vector<16x16xf32>
    "tpu.trace_stop"() : () -> ()
    %cst_115 = arith.constant dense<0xFF800000> : vector<16xf32>
    %352 = vector.multi_reduction <maximumf>, %351, %cst_115 [1] : vector<16x16xf32> to vector<16xf32>
    %353 = vector.shape_cast %352 : vector<16xf32> to vector<16x1xf32>
    %354 = vector.broadcast %353 : vector<16x1xf32> to vector<16x16xf32>
    %355 = arith.subf %351, %354 : vector<16x16xf32>
    %356 = math.exp %355 : vector<16x16xf32>
    %cst_116 = arith.constant dense<0.000000e+00> : vector<16xf32>
    %357 = vector.multi_reduction <add>, %356, %cst_116 [1] : vector<16x16xf32> to vector<16xf32>
    %358 = vector.shape_cast %357 : vector<16xf32> to vector<16x1xf32>
    %359 = tpu.reciprocal %358 {approx = true} : vector<16x1xf32> -> vector<16x1xf32>
    %360 = vector.broadcast %359 : vector<16x1xf32> to vector<16x16xf32>
    %361 = arith.mulf %356, %360 : vector<16x16xf32>
    %362 = arith.truncf %361 : vector<16x16xf32> to vector<16x16xbf16>
    %cst_117 = arith.constant dense<0.000000e+00> : vector<16x8xf32>
    %363 = tpu.matmul %362, %350, %cst_117 {dimension_numbers = #tpu.dot_dimension_numbers<[1], [0], [0], [1], [0, 0, 1, 1], [], []>} : vector<16x16xbf16>, vector<16x8xbf16>, vector<16x8xf32> -> vector<16x8xf32>
    %364 = vector.extract_strided_slice %267 {offsets = [16, 8], sizes = [16, 8], strides = [1, 1]} : vector<32x96xf32> to vector<16x8xf32>
    %365 = arith.truncf %364 : vector<16x8xf32> to vector<16x8xbf16>
    %366 = vector.extract_strided_slice %267 {offsets = [16, 40], sizes = [16, 8], strides = [1, 1]} : vector<32x96xf32> to vector<16x8xf32>
    %367 = arith.truncf %366 : vector<16x8xf32> to vector<16x8xbf16>
    %368 = vector.extract_strided_slice %267 {offsets = [16, 72], sizes = [16, 8], strides = [1, 1]} : vector<32x96xf32> to vector<16x8xf32>
    %369 = arith.truncf %368 : vector<16x8xf32> to vector<16x8xbf16>
    "tpu.trace_start"() <{level = 10 : i32, message = "td,sd->ts"}> : () -> ()
    %cst_118 = arith.constant dense<0.000000e+00> : vector<16x16xf32>
    %370 = tpu.matmul %365, %367, %cst_118 {dimension_numbers = #tpu.dot_dimension_numbers<[1], [1], [0], [0], [0, 0, 1, 0], [], []>} : vector<16x8xbf16>, vector<16x8xbf16>, vector<16x16xf32> -> vector<16x16xf32>
    "tpu.trace_stop"() : () -> ()
    %cst_119 = arith.constant dense<0xFF800000> : vector<16xf32>
    %371 = vector.multi_reduction <maximumf>, %370, %cst_119 [1] : vector<16x16xf32> to vector<16xf32>
    %372 = vector.shape_cast %371 : vector<16xf32> to vector<16x1xf32>
    %373 = vector.broadcast %372 : vector<16x1xf32> to vector<16x16xf32>
    %374 = arith.subf %370, %373 : vector<16x16xf32>
    %375 = math.exp %374 : vector<16x16xf32>
    %cst_120 = arith.constant dense<0.000000e+00> : vector<16xf32>
    %376 = vector.multi_reduction <add>, %375, %cst_120 [1] : vector<16x16xf32> to vector<16xf32>
    %377 = vector.shape_cast %376 : vector<16xf32> to vector<16x1xf32>
    %378 = tpu.reciprocal %377 {approx = true} : vector<16x1xf32> -> vector<16x1xf32>
    %379 = vector.broadcast %378 : vector<16x1xf32> to vector<16x16xf32>
    %380 = arith.mulf %375, %379 : vector<16x16xf32>
    %381 = arith.truncf %380 : vector<16x16xf32> to vector<16x16xbf16>
    %cst_121 = arith.constant dense<0.000000e+00> : vector<16x8xf32>
    %382 = tpu.matmul %381, %369, %cst_121 {dimension_numbers = #tpu.dot_dimension_numbers<[1], [0], [0], [1], [0, 0, 1, 1], [], []>} : vector<16x16xbf16>, vector<16x8xbf16>, vector<16x8xf32> -> vector<16x8xf32>
    %383 = vector.extract_strided_slice %267 {offsets = [16, 16], sizes = [16, 8], strides = [1, 1]} : vector<32x96xf32> to vector<16x8xf32>
    %384 = arith.truncf %383 : vector<16x8xf32> to vector<16x8xbf16>
    %385 = vector.extract_strided_slice %267 {offsets = [16, 48], sizes = [16, 8], strides = [1, 1]} : vector<32x96xf32> to vector<16x8xf32>
    %386 = arith.truncf %385 : vector<16x8xf32> to vector<16x8xbf16>
    %387 = vector.extract_strided_slice %267 {offsets = [16, 80], sizes = [16, 8], strides = [1, 1]} : vector<32x96xf32> to vector<16x8xf32>
    %388 = arith.truncf %387 : vector<16x8xf32> to vector<16x8xbf16>
    "tpu.trace_start"() <{level = 10 : i32, message = "td,sd->ts"}> : () -> ()
    %cst_122 = arith.constant dense<0.000000e+00> : vector<16x16xf32>
    %389 = tpu.matmul %384, %386, %cst_122 {dimension_numbers = #tpu.dot_dimension_numbers<[1], [1], [0], [0], [0, 0, 1, 0], [], []>} : vector<16x8xbf16>, vector<16x8xbf16>, vector<16x16xf32> -> vector<16x16xf32>
    "tpu.trace_stop"() : () -> ()
    %cst_123 = arith.constant dense<0xFF800000> : vector<16xf32>
    %390 = vector.multi_reduction <maximumf>, %389, %cst_123 [1] : vector<16x16xf32> to vector<16xf32>
    %391 = vector.shape_cast %390 : vector<16xf32> to vector<16x1xf32>
    %392 = vector.broadcast %391 : vector<16x1xf32> to vector<16x16xf32>
    %393 = arith.subf %389, %392 : vector<16x16xf32>
    %394 = math.exp %393 : vector<16x16xf32>
    %cst_124 = arith.constant dense<0.000000e+00> : vector<16xf32>
    %395 = vector.multi_reduction <add>, %394, %cst_124 [1] : vector<16x16xf32> to vector<16xf32>
    %396 = vector.shape_cast %395 : vector<16xf32> to vector<16x1xf32>
    %397 = tpu.reciprocal %396 {approx = true} : vector<16x1xf32> -> vector<16x1xf32>
    %398 = vector.broadcast %397 : vector<16x1xf32> to vector<16x16xf32>
    %399 = arith.mulf %394, %398 : vector<16x16xf32>
    %400 = arith.truncf %399 : vector<16x16xf32> to vector<16x16xbf16>
    %cst_125 = arith.constant dense<0.000000e+00> : vector<16x8xf32>
    %401 = tpu.matmul %400, %388, %cst_125 {dimension_numbers = #tpu.dot_dimension_numbers<[1], [0], [0], [1], [0, 0, 1, 1], [], []>} : vector<16x16xbf16>, vector<16x8xbf16>, vector<16x8xf32> -> vector<16x8xf32>
    %402 = vector.extract_strided_slice %267 {offsets = [16, 24], sizes = [16, 8], strides = [1, 1]} : vector<32x96xf32> to vector<16x8xf32>
    %403 = arith.truncf %402 : vector<16x8xf32> to vector<16x8xbf16>
    %404 = vector.extract_strided_slice %267 {offsets = [16, 56], sizes = [16, 8], strides = [1, 1]} : vector<32x96xf32> to vector<16x8xf32>
    %405 = arith.truncf %404 : vector<16x8xf32> to vector<16x8xbf16>
    %406 = vector.extract_strided_slice %267 {offsets = [16, 88], sizes = [16, 8], strides = [1, 1]} : vector<32x96xf32> to vector<16x8xf32>
    %407 = arith.truncf %406 : vector<16x8xf32> to vector<16x8xbf16>
    "tpu.trace_start"() <{level = 10 : i32, message = "td,sd->ts"}> : () -> ()
    %cst_126 = arith.constant dense<0.000000e+00> : vector<16x16xf32>
    %408 = tpu.matmul %403, %405, %cst_126 {dimension_numbers = #tpu.dot_dimension_numbers<[1], [1], [0], [0], [0, 0, 1, 0], [], []>} : vector<16x8xbf16>, vector<16x8xbf16>, vector<16x16xf32> -> vector<16x16xf32>
    "tpu.trace_stop"() : () -> ()
    %cst_127 = arith.constant dense<0xFF800000> : vector<16xf32>
    %409 = vector.multi_reduction <maximumf>, %408, %cst_127 [1] : vector<16x16xf32> to vector<16xf32>
    %410 = vector.shape_cast %409 : vector<16xf32> to vector<16x1xf32>
    %411 = vector.broadcast %410 : vector<16x1xf32> to vector<16x16xf32>
    %412 = arith.subf %408, %411 : vector<16x16xf32>
    %413 = math.exp %412 : vector<16x16xf32>
    %cst_128 = arith.constant dense<0.000000e+00> : vector<16xf32>
    %414 = vector.multi_reduction <add>, %413, %cst_128 [1] : vector<16x16xf32> to vector<16xf32>
    %415 = vector.shape_cast %414 : vector<16xf32> to vector<16x1xf32>
    %416 = tpu.reciprocal %415 {approx = true} : vector<16x1xf32> -> vector<16x1xf32>
    %417 = vector.broadcast %416 : vector<16x1xf32> to vector<16x16xf32>
    %418 = arith.mulf %413, %417 : vector<16x16xf32>
    %419 = arith.truncf %418 : vector<16x16xf32> to vector<16x16xbf16>
    %cst_129 = arith.constant dense<0.000000e+00> : vector<16x8xf32>
    %420 = tpu.matmul %419, %407, %cst_129 {dimension_numbers = #tpu.dot_dimension_numbers<[1], [0], [0], [1], [0, 0, 1, 1], [], []>} : vector<16x16xbf16>, vector<16x8xbf16>, vector<16x8xf32> -> vector<16x8xf32>
    %421 = tpu.concatenate %363, %382, %401, %420 in 1 : vector<16x8xf32>, vector<16x8xf32>, vector<16x8xf32>, vector<16x8xf32> -> vector<16x32xf32>
    %422 = tpu.concatenate %344, %421 in 0 : vector<16x32xf32>, vector<16x32xf32> -> vector<32x32xf32>
    %423 = arith.truncf %422 : vector<32x32xf32> to vector<32x32xbf16>
    %cst_130 = arith.constant dense<0.000000e+00> : vector<32x32xf32>
    %424 = tpu.matmul %423, %255, %cst_130 {dimension_numbers = #tpu.dot_dimension_numbers<[1], [0], [0], [1], [0, 0, 1, 1], [], []>} : vector<32x32xbf16>, vector<32x32xbf16>, vector<32x32xf32> -> vector<32x32xf32>
    %425 = vector.extract_strided_slice %257 {offsets = [0, 0], sizes = [1, 32], strides = [1, 1]} : vector<6x32xf32> to vector<1x32xf32>
    %426 = vector.broadcast %425 : vector<1x32xf32> to vector<32x32xf32>
    %427 = arith.addf %424, %426 : vector<32x32xf32>
    %428 = arith.addf %249, %427 : vector<32x32xf32>
    %429 = vector.extract_strided_slice %257 {offsets = [1, 0], sizes = [1, 32], strides = [1, 1]} : vector<6x32xf32> to vector<1x32xf32>
    %430 = vector.extract_strided_slice %257 {offsets = [2, 0], sizes = [1, 32], strides = [1, 1]} : vector<6x32xf32> to vector<1x32xf32>
    %cst_131 = arith.constant dense<0.000000e+00> : vector<32xf32>
    %431 = vector.multi_reduction <add>, %428, %cst_131 [1] : vector<32x32xf32> to vector<32xf32>
    %432 = vector.shape_cast %431 : vector<32xf32> to vector<32x1xf32>
    %cst_132 = arith.constant 3.200000e+01 : f32
    %433 = vector.broadcast %cst_132 : f32 to vector<32x1xf32>
    %434 = arith.divf %432, %433 : vector<32x1xf32>
    %435 = vector.broadcast %434 : vector<32x1xf32> to vector<32x32xf32>
    %436 = arith.subf %428, %435 : vector<32x32xf32>
    %437 = arith.mulf %436, %436 : vector<32x32xf32>
    %cst_133 = arith.constant dense<0.000000e+00> : vector<32xf32>
    %438 = vector.multi_reduction <add>, %437, %cst_133 [1] : vector<32x32xf32> to vector<32xf32>
    %439 = vector.shape_cast %438 : vector<32xf32> to vector<32x1xf32>
    %cst_134 = arith.constant 3.200000e+01 : f32
    %440 = vector.broadcast %cst_134 : f32 to vector<32x1xf32>
    %441 = arith.divf %439, %440 : vector<32x1xf32>
    %442 = vector.broadcast %434 : vector<32x1xf32> to vector<32x32xf32>
    %443 = arith.subf %428, %442 : vector<32x32xf32>
    %cst_135 = arith.constant 9.99999974E-6 : f32
    %444 = vector.broadcast %cst_135 : f32 to vector<32x1xf32>
    %445 = arith.addf %441, %444 : vector<32x1xf32>
    %446 = math.rsqrt %445 : vector<32x1xf32>
    %447 = vector.broadcast %446 : vector<32x1xf32> to vector<32x32xf32>
    %448 = arith.mulf %443, %447 : vector<32x32xf32>
    %449 = vector.broadcast %429 : vector<1x32xf32> to vector<32x32xf32>
    %450 = arith.mulf %448, %449 : vector<32x32xf32>
    %451 = vector.broadcast %430 : vector<1x32xf32> to vector<32x32xf32>
    %452 = arith.addf %450, %451 : vector<32x32xf32>
    %453 = arith.truncf %452 : vector<32x32xf32> to vector<32x32xbf16>
    %cst_136 = arith.constant dense<0.000000e+00> : vector<32x2048xf32>
    %454 = tpu.matmul %453, %259, %cst_136 {dimension_numbers = #tpu.dot_dimension_numbers<[1], [0], [0], [1], [0, 0, 1, 1], [], []>} : vector<32x32xbf16>, vector<32x2048xbf16>, vector<32x2048xf32> -> vector<32x2048xf32>
    %455 = vector.broadcast %261 : vector<1x2048xf32> to vector<32x2048xf32>
    %456 = arith.addf %454, %455 : vector<32x2048xf32>
    %cst_137 = arith.constant 0.000000e+00 : f32
    %457 = vector.broadcast %cst_137 : f32 to vector<32x2048xf32>
    %458 = arith.maximumf %456, %457 : vector<32x2048xf32>
    %459 = arith.truncf %458 : vector<32x2048xf32> to vector<32x2048xbf16>
    %cst_138 = arith.constant dense<0.000000e+00> : vector<32x32xf32>
    %460 = tpu.matmul %459, %263, %cst_138 {dimension_numbers = #tpu.dot_dimension_numbers<[1], [0], [0], [1], [0, 0, 1, 1], [], []>} : vector<32x2048xbf16>, vector<2048x32xbf16>, vector<32x32xf32> -> vector<32x32xf32>
    %461 = vector.extract_strided_slice %257 {offsets = [3, 0], sizes = [1, 32], strides = [1, 1]} : vector<6x32xf32> to vector<1x32xf32>
    %462 = vector.broadcast %461 : vector<1x32xf32> to vector<32x32xf32>
    %463 = arith.addf %460, %462 : vector<32x32xf32>
    %464 = arith.addf %452, %463 : vector<32x32xf32>
    %465 = vector.extract_strided_slice %257 {offsets = [4, 0], sizes = [1, 32], strides = [1, 1]} : vector<6x32xf32> to vector<1x32xf32>
    %466 = vector.extract_strided_slice %257 {offsets = [5, 0], sizes = [1, 32], strides = [1, 1]} : vector<6x32xf32> to vector<1x32xf32>
    %cst_139 = arith.constant dense<0.000000e+00> : vector<32xf32>
    %467 = vector.multi_reduction <add>, %464, %cst_139 [1] : vector<32x32xf32> to vector<32xf32>
    %468 = vector.shape_cast %467 : vector<32xf32> to vector<32x1xf32>
    %cst_140 = arith.constant 3.200000e+01 : f32
    %469 = vector.broadcast %cst_140 : f32 to vector<32x1xf32>
    %470 = arith.divf %468, %469 : vector<32x1xf32>
    %471 = vector.broadcast %470 : vector<32x1xf32> to vector<32x32xf32>
    %472 = arith.subf %464, %471 : vector<32x32xf32>
    %473 = arith.mulf %472, %472 : vector<32x32xf32>
    %cst_141 = arith.constant dense<0.000000e+00> : vector<32xf32>
    %474 = vector.multi_reduction <add>, %473, %cst_141 [1] : vector<32x32xf32> to vector<32xf32>
    %475 = vector.shape_cast %474 : vector<32xf32> to vector<32x1xf32>
    %cst_142 = arith.constant 3.200000e+01 : f32
    %476 = vector.broadcast %cst_142 : f32 to vector<32x1xf32>
    %477 = arith.divf %475, %476 : vector<32x1xf32>
    %478 = vector.broadcast %470 : vector<32x1xf32> to vector<32x32xf32>
    %479 = arith.subf %464, %478 : vector<32x32xf32>
    %cst_143 = arith.constant 9.99999974E-6 : f32
    %480 = vector.broadcast %cst_143 : f32 to vector<32x1xf32>
    %481 = arith.addf %477, %480 : vector<32x1xf32>
    %482 = math.rsqrt %481 : vector<32x1xf32>
    %483 = vector.broadcast %482 : vector<32x1xf32> to vector<32x32xf32>
    %484 = arith.mulf %479, %483 : vector<32x32xf32>
    %485 = vector.broadcast %465 : vector<1x32xf32> to vector<32x32xf32>
    %486 = arith.mulf %484, %485 : vector<32x32xf32>
    %487 = vector.broadcast %466 : vector<1x32xf32> to vector<32x32xf32>
    %488 = arith.addf %486, %487 : vector<32x32xf32>
    %489 = arith.truncf %488 : vector<32x32xf32> to vector<32x32xbf16>
    %c0_144 = arith.constant 0 : index
    %c0_145 = arith.constant 0 : index
    %490 = vector.load %arg12[%c0_144, %c0_145] : memref<32x128xbf16, #tpu.memory_space<vmem>>, vector<32x128xbf16>
    %cst_146 = arith.constant dense<0.000000e+00> : vector<32x128xf32>
    %491 = tpu.matmul %489, %490, %cst_146 {dimension_numbers = #tpu.dot_dimension_numbers<[1], [0], [0], [1], [0, 0, 1, 1], [], []>} : vector<32x32xbf16>, vector<32x128xbf16>, vector<32x128xf32> -> vector<32x128xf32>
    %c0_147 = arith.constant 0 : index
    %c0_148 = arith.constant 0 : index
    %492 = vector.load %arg13[%c0_147, %c0_148] : memref<1x128xf32, #tpu.memory_space<vmem>>, vector<1x128xf32>
    %493 = vector.broadcast %492 : vector<1x128xf32> to vector<32x128xf32>
    %494 = arith.addf %491, %493 : vector<32x128xf32>
    %495 = vector.shape_cast %494 : vector<32x128xf32> to vector<2x16x128xf32>
    %c0_149 = arith.constant 0 : index
    %c0_150 = arith.constant 0 : index
    %c0_151 = arith.constant 0 : index
    %496 = vector.load %arg14[%c0_149, %c0_150, %c0_151] : memref<2x16x128xf32, #tpu.memory_space<vmem>>, vector<2x16x128xf32>
    tpu.vector_store %arg14[%c0_149, %c0_150, %c0_151], %495 {strides = array<i32>} : memref<2x16x128xf32, #tpu.memory_space<vmem>>, vector<2x16x128xf32>,
    return
  }
  func.func @transform_0(%arg0: i32) -> (i32, i32, i32) {
    %c0_i32 = arith.constant 0 : i32
    %c0_i32_0 = arith.constant 0 : i32
    %c0_i32_1 = arith.constant 0 : i32
    return %arg0, %c0_i32, %c0_i32_0 : i32, i32, i32
  }
  func.func @transform_1(%arg0: i32) -> (i32, i32, i32) {
    %c0_i32 = arith.constant 0 : i32
    %c0_i32_0 = arith.constant 0 : i32
    %c0_i32_1 = arith.constant 0 : i32
    return %arg0, %c0_i32, %c0_i32_0 : i32, i32, i32
  }
  func.func @transform_2(%arg0: i32) -> (i32, i32) {
    %c0_i32 = arith.constant 0 : i32
    %c0_i32_0 = arith.constant 0 : i32
    %c0_i32_1 = arith.constant 0 : i32
    return %c0_i32, %c0_i32_0 : i32, i32
  }
  func.func @transform_3(%arg0: i32) -> (i32, i32) {
    %c0_i32 = arith.constant 0 : i32
    %c0_i32_0 = arith.constant 0 : i32
    %c0_i32_1 = arith.constant 0 : i32
    return %c0_i32, %c0_i32_0 : i32, i32
  }
  func.func @transform_4(%arg0: i32) -> (i32, i32, i32) {
    %c0_i32 = arith.constant 0 : i32
    %c0_i32_0 = arith.constant 0 : i32
    %c0_i32_1 = arith.constant 0 : i32
    %c0_i32_2 = arith.constant 0 : i32
    return %c0_i32, %c0_i32_0, %c0_i32_1 : i32, i32, i32
  }
  func.func @transform_5(%arg0: i32) -> (i32, i32, i32) {
    %c0_i32 = arith.constant 0 : i32
    %c0_i32_0 = arith.constant 0 : i32
    %c0_i32_1 = arith.constant 0 : i32
    %c0_i32_2 = arith.constant 0 : i32
    return %c0_i32, %c0_i32_0, %c0_i32_1 : i32, i32, i32
  }
  func.func @transform_6(%arg0: i32) -> (i32, i32, i32) {
    %c0_i32 = arith.constant 0 : i32
    %c0_i32_0 = arith.constant 0 : i32
    %c0_i32_1 = arith.constant 0 : i32
    %c0_i32_2 = arith.constant 0 : i32
    return %c0_i32, %c0_i32_0, %c0_i32_1 : i32, i32, i32
  }
  func.func @transform_7(%arg0: i32) -> (i32, i32, i32) {
    %c0_i32 = arith.constant 0 : i32
    %c0_i32_0 = arith.constant 0 : i32
    %c0_i32_1 = arith.constant 0 : i32
    %c0_i32_2 = arith.constant 0 : i32
    return %c0_i32, %c0_i32_0, %c0_i32_1 : i32, i32, i32
  }
  func.func @transform_8(%arg0: i32) -> (i32, i32, i32) {
    %c0_i32 = arith.constant 0 : i32
    %c0_i32_0 = arith.constant 0 : i32
    %c0_i32_1 = arith.constant 0 : i32
    %c0_i32_2 = arith.constant 0 : i32
    return %c0_i32, %c0_i32_0, %c0_i32_1 : i32, i32, i32
  }
  func.func @transform_9(%arg0: i32) -> (i32, i32, i32) {
    %c0_i32 = arith.constant 0 : i32
    %c0_i32_0 = arith.constant 0 : i32
    %c0_i32_1 = arith.constant 0 : i32
    %c0_i32_2 = arith.constant 0 : i32
    return %c0_i32, %c0_i32_0, %c0_i32_1 : i32, i32, i32
  }
  func.func @transform_10(%arg0: i32) -> (i32, i32, i32) {
    %c0_i32 = arith.constant 0 : i32
    %c0_i32_0 = arith.constant 0 : i32
    %c0_i32_1 = arith.constant 0 : i32
    %c0_i32_2 = arith.constant 0 : i32
    return %c0_i32, %c0_i32_0, %c0_i32_1 : i32, i32, i32
  }
  func.func @transform_11(%arg0: i32) -> (i32, i32) {
    %c0_i32 = arith.constant 0 : i32
    %c0_i32_0 = arith.constant 0 : i32
    %c0_i32_1 = arith.constant 0 : i32
    return %c0_i32, %c0_i32_0 : i32, i32
  }
  func.func @transform_12(%arg0: i32) -> (i32, i32) {
    %c0_i32 = arith.constant 0 : i32
    %c0_i32_0 = arith.constant 0 : i32
    %c0_i32_1 = arith.constant 0 : i32
    return %c0_i32, %c0_i32_0 : i32, i32
  }
  func.func @transform_13(%arg0: i32) -> (i32, i32, i32) {
    %c0_i32 = arith.constant 0 : i32
    %c0_i32_0 = arith.constant 0 : i32
    %c0_i32_1 = arith.constant 0 : i32
    return %arg0, %c0_i32, %c0_i32_0 : i32, i32, i32
  }
}

</mosaic_0001>

<llo_original>
// kernel: tpu_custom_call.1
$region0: #{tpu_custom_call.1}
  #allocation0 [shape = 'u32[]', space=smem, size = 0x4, offset = 0x4, fixed_abs, tag = 'smem constant byte address 0x4 - core index']
  #allocation1 [shape = 'u32[72,128]{1,0:T(1,128)}', space=vmem, size = 0x9000, scoped, tag = 'internal scratch']
  %s0 = inlined_call_operand.vmem [shape: f32[4,16,16], index: 0, kind: input, shape index: {}]
  %s1 = inlined_call_operand.vmem [shape: f32[4,16,32], index: 1, kind: input, shape index: {}]
  %s2 = inlined_call_operand.vmem [shape: bf16[16,32], index: 2, kind: input, shape index: {}]
  %s3 = inlined_call_operand.vmem [shape: f32[1,32], index: 3, kind: input, shape index: {}]
  %s4 = inlined_call_operand.vmem [shape: bf16[2,32,96], index: 4, kind: input, shape index: {}]
  %s5 = inlined_call_operand.vmem [shape: f32[2,1,96], index: 5, kind: input, shape index: {}]
  %s6 = inlined_call_operand.vmem [shape: bf16[2,32,32], index: 6, kind: input, shape index: {}]
  %s7 = inlined_call_operand.vmem [shape: f32[2,6,32], index: 7, kind: input, shape index: {}]
  %s8 = inlined_call_operand.vmem [shape: bf16[2,32,2048], index: 8, kind: input, shape index: {}]
  %s9 = inlined_call_operand.vmem [shape: f32[2,1,2048], index: 9, kind: input, shape index: {}]
  %s10 = inlined_call_operand.vmem [shape: bf16[2,2048,32], index: 10, kind: input, shape index: {}]
  %s11 = inlined_call_operand.vmem [shape: bf16[32,128], index: 11, kind: input, shape index: {}]
  %s12 = inlined_call_operand.vmem [shape: f32[1,128], index: 12, kind: input, shape index: {}]
  %s13 = inlined_call_operand.hbm [shape: f32[4,16,128], index: 13, kind: output, shape index: {}]
  %s14 = sld [smem:[#allocation0]]
  $region85: #{tpu_custom_call.1} parent=0
    _
  %s16 = ssub.s32 1, %s14
  %s17 = scalar_select 0, %s16, %s14
  $region1: #{tpu_custom_call.1} parent=0
    #allocation2 [shape = 'u8[32768]{0}', space=vmem, size = 0x8000, scoped, tag = 'output window, operand 0']
    #allocation3 [shape = 's32[2]{0}', space=sflag, size = 0x8, scoped, tag = 'scoped memory for tpu_custom_call.1']
    %18 = vsyncpa [#allocation3], 0
    %s19 = scalar_lea.sflag [#allocation3], 1
    %20 = vsyncpa %s19, 0
    loop: start=0, step=1, limit=4
    $region2: #{tpu_custom_call.1} parent=1 // loop_pre_header
      _
    $region3: #{tpu_custom_call.1} parent=1 // loop_header
      %s22 = sphi 0, %s26
      %p23 = scmp.ge.s32.totalorder %s22, 4
      %s32 = sphi 0, %s34
      %s35 = sphi 0, %s32
      %s36 = sphi 0, %s35
      %s52 = sphi 0, %s36
      %s58 = sphi 0, %s60
      %s61 = sphi 0, %s58
      %s62 = sphi 0, %s61
      %s78 = sphi 0, %s62
      %s82 = sphi 0, %s82
      %s84 = sphi 0, %s82
      %s85 = sphi 0, %s84
      %s99 = sphi 0, %s85
      %s103 = sphi 0, %s103
      %s105 = sphi 0, %s103
      %s106 = sphi 0, %s105
      %s120 = sphi 0, %s106
      %s124 = sphi 0, %s124
      %s126 = sphi 0, %s124
      %s127 = sphi 0, %s126
      %s141 = sphi 0, %s127
      %s145 = sphi 0, %s145
      %s147 = sphi 0, %s145
      %s148 = sphi 0, %s147
      %s162 = sphi 0, %s148
      %s166 = sphi 0, %s166
      %s168 = sphi 0, %s166
      %s169 = sphi 0, %s168
      %s183 = sphi 0, %s169
      %s187 = sphi 0, %s187
      %s189 = sphi 0, %s187
      %s190 = sphi 0, %s189
      %s204 = sphi 0, %s190
      %s208 = sphi 0, %s208
      %s210 = sphi 0, %s208
      %s211 = sphi 0, %s210
      %s225 = sphi 0, %s211
      %s229 = sphi 0, %s229
      %s231 = sphi 0, %s229
      %s232 = sphi 0, %s231
      %s246 = sphi 0, %s232
      %s250 = sphi 0, %s250
      %s252 = sphi 0, %s250
      %s253 = sphi 0, %s252
      %s267 = sphi 0, %s253
      %s271 = sphi 0, %s271
      %s273 = sphi 0, %s271
      %s274 = sphi 0, %s273
      %s288 = sphi 0, %s274
      %s292 = sphi 0, %s292
      %s294 = sphi 0, %s292
      %s295 = sphi 0, %s294
      %s309 = sphi 0, %s295
      %s315 = sphi 0, %s317
      %s318 = sphi 0, %s315
      %s319 = sphi 0, %s318
      %s335 = sphi 0, %s319
    $region4: #{tpu_custom_call.1} parent=1 // loop_header_branch
      %25 = sbr.rel (%p23) target = $region8
    $region5: #{tpu_custom_call.1} parent=1 // loop_body
      %s27 = ssub.s32 %s22, 1
      %s28 = ssub.s32 %s22, 2
      %s29 = sadd.s32 %s22, 1
      %s30 = ssub.s32 %s22, %s29
      %p31 = scmp.eq.s32.totalorder %s30, 0
      %s33 = sadd.s32 %s32, 1
      %s34 = scalar_select %p31, %s32, %s33
      %p37 = pneg %p31
      %p38 = scmp.eq.s32.totalorder %s22, 1
      %p39 = por %p37, %p38
      %p40 = scmp.ne.s32.totalorder %s32, %s35
      %p41 = scmp.eq.s32.totalorder %s22, 0
      %p42 = por %p40, %p41
      %p43 = scmp.ne.s32.totalorder %s32, %s35
      %p44 = scmp.eq.s32.totalorder %s27, 1
      %p45 = por %p43, %p44
      %p46 = scmp.ne.s32.totalorder %s35, %s36
      %p47 = scmp.eq.s32.totalorder %s27, 0
      %p48 = por %p46, %p47
      %p49 = scmp.ne.s32.totalorder %s35, %s36
      %p50 = scmp.eq.s32.totalorder %s28, 1
      %p51 = por %p49, %p50
      %p53 = scmp.ne.s32.totalorder %s36, %s52
      %p54 = scmp.eq.s32.totalorder %s28, 0
      %p55 = por %p53, %p54
      %s56 = ssub.s32 %s22, %s29
      %p57 = scmp.eq.s32.totalorder %s56, 0
      %s59 = sadd.s32 %s58, 1
      %s60 = scalar_select %p57, %s58, %s59
      %p63 = pneg %p57
      %p64 = scmp.eq.s32.totalorder %s22, 1
      %p65 = por %p63, %p64
      %p66 = scmp.ne.s32.totalorder %s58, %s61
      %p67 = scmp.eq.s32.totalorder %s22, 0
      %p68 = por %p66, %p67
      %p69 = scmp.ne.s32.totalorder %s58, %s61
      %p70 = scmp.eq.s32.totalorder %s27, 1
      %p71 = por %p69, %p70
      %p72 = scmp.ne.s32.totalorder %s61, %s62
      %p73 = scmp.eq.s32.totalorder %s27, 0
      %p74 = por %p72, %p73
      %p75 = scmp.ne.s32.totalorder %s61, %s62
      %p76 = scmp.eq.s32.totalorder %s28, 1
      %p77 = por %p75, %p76
      %p79 = scmp.ne.s32.totalorder %s62, %s78
      %p80 = scmp.eq.s32.totalorder %s28, 0
      %p81 = por %p79, %p80
      %s83 = sadd.s32 %s82, 1
      %p86 = scmp.eq.s32.totalorder %s22, 1
      %p87 = scmp.ne.s32.totalorder %s82, %s84
      %p88 = scmp.eq.s32.totalorder %s22, 0
      %p89 = por %p87, %p88
      %p90 = scmp.ne.s32.totalorder %s82, %s84
      %p91 = scmp.eq.s32.totalorder %s27, 1
      %p92 = por %p90, %p91
      %p93 = scmp.ne.s32.totalorder %s84, %s85
      %p94 = scmp.eq.s32.totalorder %s27, 0
      %p95 = por %p93, %p94
      %p96 = scmp.ne.s32.totalorder %s84, %s85
      %p97 = scmp.eq.s32.totalorder %s28, 1
      %p98 = por %p96, %p97
      %p100 = scmp.ne.s32.totalorder %s85, %s99
      %p101 = scmp.eq.s32.totalorder %s28, 0
      %p102 = por %p100, %p101
      %s104 = sadd.s32 %s103, 1
      %p107 = scmp.eq.s32.totalorder %s22, 1
      %p108 = scmp.ne.s32.totalorder %s103, %s105
      %p109 = scmp.eq.s32.totalorder %s22, 0
      %p110 = por %p108, %p109
      %p111 = scmp.ne.s32.totalorder %s103, %s105
      %p112 = scmp.eq.s32.totalorder %s27, 1
      %p113 = por %p111, %p112
      %p114 = scmp.ne.s32.totalorder %s105, %s106
      %p115 = scmp.eq.s32.totalorder %s27, 0
      %p116 = por %p114, %p115
      %p117 = scmp.ne.s32.totalorder %s105, %s106
      %p118 = scmp.eq.s32.totalorder %s28, 1
      %p119 = por %p117, %p118
      %p121 = scmp.ne.s32.totalorder %s106, %s120
      %p122 = scmp.eq.s32.totalorder %s28, 0
      %p123 = por %p121, %p122
      %s125 = sadd.s32 %s124, 1
      %p128 = scmp.eq.s32.totalorder %s22, 1
      %p129 = scmp.ne.s32.totalorder %s124, %s126
      %p130 = scmp.eq.s32.totalorder %s22, 0
      %p131 = por %p129, %p130
      %p132 = scmp.ne.s32.totalorder %s124, %s126
      %p133 = scmp.eq.s32.totalorder %s27, 1
      %p134 = por %p132, %p133
      %p135 = scmp.ne.s32.totalorder %s126, %s127
      %p136 = scmp.eq.s32.totalorder %s27, 0
      %p137 = por %p135, %p136
      %p138 = scmp.ne.s32.totalorder %s126, %s127
      %p139 = scmp.eq.s32.totalorder %s28, 1
      %p140 = por %p138, %p139
      %p142 = scmp.ne.s32.totalorder %s127, %s141
      %p143 = scmp.eq.s32.totalorder %s28, 0
      %p144 = por %p142, %p143
      %s146 = sadd.s32 %s145, 1
      %p149 = scmp.eq.s32.totalorder %s22, 1
      %p150 = scmp.ne.s32.totalorder %s145, %s147
      %p151 = scmp.eq.s32.totalorder %s22, 0
      %p152 = por %p150, %p151
      %p153 = scmp.ne.s32.totalorder %s145, %s147
      %p154 = scmp.eq.s32.totalorder %s27, 1
      %p155 = por %p153, %p154
      %p156 = scmp.ne.s32.totalorder %s147, %s148
      %p157 = scmp.eq.s32.totalorder %s27, 0
      %p158 = por %p156, %p157
      %p159 = scmp.ne.s32.totalorder %s147, %s148
      %p160 = scmp.eq.s32.totalorder %s28, 1
      %p161 = por %p159, %p160
      %p163 = scmp.ne.s32.totalorder %s148, %s162
      %p164 = scmp.eq.s32.totalorder %s28, 0
      %p165 = por %p163, %p164
      %s167 = sadd.s32 %s166, 1
      %p170 = scmp.eq.s32.totalorder %s22, 1
      %p171 = scmp.ne.s32.totalorder %s166, %s168
      %p172 = scmp.eq.s32.totalorder %s22, 0
      %p173 = por %p171, %p172
      %p174 = scmp.ne.s32.totalorder %s166, %s168
      %p175 = scmp.eq.s32.totalorder %s27, 1
      %p176 = por %p174, %p175
      %p177 = scmp.ne.s32.totalorder %s168, %s169
      %p178 = scmp.eq.s32.totalorder %s27, 0
      %p179 = por %p177, %p178
      %p180 = scmp.ne.s32.totalorder %s168, %s169
      %p181 = scmp.eq.s32.totalorder %s28, 1
      %p182 = por %p180, %p181
      %p184 = scmp.ne.s32.totalorder %s169, %s183
      %p185 = scmp.eq.s32.totalorder %s28, 0
      %p186 = por %p184, %p185
      %s188 = sadd.s32 %s187, 1
      %p191 = scmp.eq.s32.totalorder %s22, 1
      %p192 = scmp.ne.s32.totalorder %s187, %s189
      %p193 = scmp.eq.s32.totalorder %s22, 0
      %p194 = por %p192, %p193
      %p195 = scmp.ne.s32.totalorder %s187, %s189
      %p196 = scmp.eq.s32.totalorder %s27, 1
      %p197 = por %p195, %p196
      %p198 = scmp.ne.s32.totalorder %s189, %s190
      %p199 = scmp.eq.s32.totalorder %s27, 0
      %p200 = por %p198, %p199
      %p201 = scmp.ne.s32.totalorder %s189, %s190
      %p202 = scmp.eq.s32.totalorder %s28, 1
      %p203 = por %p201, %p202
      %p205 = scmp.ne.s32.totalorder %s190, %s204
      %p206 = scmp.eq.s32.totalorder %s28, 0
      %p207 = por %p205, %p206
      %s209 = sadd.s32 %s208, 1
      %p212 = scmp.eq.s32.totalorder %s22, 1
      %p213 = scmp.ne.s32.totalorder %s208, %s210
      %p214 = scmp.eq.s32.totalorder %s22, 0
      %p215 = por %p213, %p214
      %p216 = scmp.ne.s32.totalorder %s208, %s210
      %p217 = scmp.eq.s32.totalorder %s27, 1
      %p218 = por %p216, %p217
      %p219 = scmp.ne.s32.totalorder %s210, %s211
      %p220 = scmp.eq.s32.totalorder %s27, 0
      %p221 = por %p219, %p220
      %p222 = scmp.ne.s32.totalorder %s210, %s211
      %p223 = scmp.eq.s32.totalorder %s28, 1
      %p224 = por %p222, %p223
      %p226 = scmp.ne.s32.totalorder %s211, %s225
      %p227 = scmp.eq.s32.totalorder %s28, 0
      %p228 = por %p226, %p227
      %s230 = sadd.s32 %s229, 1
      %p233 = scmp.eq.s32.totalorder %s22, 1
      %p234 = scmp.ne.s32.totalorder %s229, %s231
      %p235 = scmp.eq.s32.totalorder %s22, 0
      %p236 = por %p234, %p235
      %p237 = scmp.ne.s32.totalorder %s229, %s231
      %p238 = scmp.eq.s32.totalorder %s27, 1
      %p239 = por %p237, %p238
      %p240 = scmp.ne.s32.totalorder %s231, %s232
      %p241 = scmp.eq.s32.totalorder %s27, 0
      %p242 = por %p240, %p241
      %p243 = scmp.ne.s32.totalorder %s231, %s232
      %p244 = scmp.eq.s32.totalorder %s28, 1
      %p245 = por %p243, %p244
      %p247 = scmp.ne.s32.totalorder %s232, %s246
      %p248 = scmp.eq.s32.totalorder %s28, 0
      %p249 = por %p247, %p248
      %s251 = sadd.s32 %s250, 1
      %p254 = scmp.eq.s32.totalorder %s22, 1
      %p255 = scmp.ne.s32.totalorder %s250, %s252
      %p256 = scmp.eq.s32.totalorder %s22, 0
      %p257 = por %p255, %p256
      %p258 = scmp.ne.s32.totalorder %s250, %s252
      %p259 = scmp.eq.s32.totalorder %s27, 1
      %p260 = por %p258, %p259
      %p261 = scmp.ne.s32.totalorder %s252, %s253
      %p262 = scmp.eq.s32.totalorder %s27, 0
      %p263 = por %p261, %p262
      %p264 = scmp.ne.s32.totalorder %s252, %s253
      %p265 = scmp.eq.s32.totalorder %s28, 1
      %p266 = por %p264, %p265
      %p268 = scmp.ne.s32.totalorder %s253, %s267
      %p269 = scmp.eq.s32.totalorder %s28, 0
      %p270 = por %p268, %p269
      %s272 = sadd.s32 %s271, 1
      %p275 = scmp.eq.s32.totalorder %s22, 1
      %p276 = scmp.ne.s32.totalorder %s271, %s273
      %p277 = scmp.eq.s32.totalorder %s22, 0
      %p278 = por %p276, %p277
      %p279 = scmp.ne.s32.totalorder %s271, %s273
      %p280 = scmp.eq.s32.totalorder %s27, 1
      %p281 = por %p279, %p280
      %p282 = scmp.ne.s32.totalorder %s273, %s274
      %p283 = scmp.eq.s32.totalorder %s27, 0
      %p284 = por %p282, %p283
      %p285 = scmp.ne.s32.totalorder %s273, %s274
      %p286 = scmp.eq.s32.totalorder %s28, 1
      %p287 = por %p285, %p286
      %p289 = scmp.ne.s32.totalorder %s274, %s288
      %p290 = scmp.eq.s32.totalorder %s28, 0
      %p291 = por %p289, %p290
      %s293 = sadd.s32 %s292, 1
      %p296 = scmp.eq.s32.totalorder %s22, 1
      %p297 = scmp.ne.s32.totalorder %s292, %s294
      %p298 = scmp.eq.s32.totalorder %s22, 0
      %p299 = por %p297, %p298
      %p300 = scmp.ne.s32.totalorder %s292, %s294
      %p301 = scmp.eq.s32.totalorder %s27, 1
      %p302 = por %p300, %p301
      %p303 = scmp.ne.s32.totalorder %s294, %s295
      %p304 = scmp.eq.s32.totalorder %s27, 0
      %p305 = por %p303, %p304
      %p306 = scmp.ne.s32.totalorder %s294, %s295
      %p307 = scmp.eq.s32.totalorder %s28, 1
      %p308 = por %p306, %p307
      %p310 = scmp.ne.s32.totalorder %s295, %s309
      %p311 = scmp.eq.s32.totalorder %s28, 0
      %p312 = por %p310, %p311
      %s313 = ssub.s32 %s22, %s29
      %p314 = scmp.eq.s32.totalorder %s313, 0
      %s316 = sadd.s32 %s315, 1
      %s317 = scalar_select %p314, %s315, %s316
      %p320 = pneg %p314
      %p321 = scmp.eq.s32.totalorder %s22, 1
      %p322 = por %p320, %p321
      %p323 = scmp.ne.s32.totalorder %s315, %s318
      %p324 = scmp.eq.s32.totalorder %s22, 0
      %p325 = por %p323, %p324
      %p326 = scmp.ne.s32.totalorder %s315, %s318
      %p327 = scmp.eq.s32.totalorder %s27, 1
      %p328 = por %p326, %p327
      %p329 = scmp.ne.s32.totalorder %s318, %s319
      %p330 = scmp.eq.s32.totalorder %s27, 0
      %p331 = por %p329, %p330
      %p332 = scmp.ne.s32.totalorder %s318, %s319
      %p333 = scmp.eq.s32.totalorder %s28, 1
      %p334 = por %p332, %p333
      %p336 = scmp.ne.s32.totalorder %s319, %s335
      %p337 = scmp.eq.s32.totalorder %s28, 0
      %p338 = por %p336, %p337
      %p339 = scmp.le.s32.totalorder 1, %s22
      %p340 = scmp.lt.s32.totalorder %s22, 3
      %p341 = pnand %p339, %p340
      %p342 = pneg %p341
      // Predicated region
      $region9: #{tpu_custom_call.1} parent=5 // pred_check
        _
      $region10: #{tpu_custom_call.1} parent=5 // pred_check_branch
        %344 = sbr.rel (%p341) target = $region12
      $region11: #{tpu_custom_call.1} parent=5 // pred_region
        %s345 = ssub.s32 %s22, 1
        // Predicated region
        $region13: #{tpu_custom_call.1} parent=11 // pred_check
          %p346 = pneg %p95
        $region14: #{tpu_custom_call.1} parent=11 // pred_check_branch
          %348 = sbr.rel (%p346) target = $region16
        $region15: #{tpu_custom_call.1} parent=11 // pred_region
          _
        $region16: #{tpu_custom_call.1} parent=11 // pred_fallthru
          _
        // Predicated region
        $region17: #{tpu_custom_call.1} parent=11 // pred_check
          %p349 = pneg %p116
        $region18: #{tpu_custom_call.1} parent=11 // pred_check_branch
          %351 = sbr.rel (%p349) target = $region20
        $region19: #{tpu_custom_call.1} parent=11 // pred_region
          _
        $region20: #{tpu_custom_call.1} parent=11 // pred_fallthru
          _
        // Predicated region
        $region21: #{tpu_custom_call.1} parent=11 // pred_check
          %p352 = pneg %p137
        $region22: #{tpu_custom_call.1} parent=11 // pred_check_branch
          %354 = sbr.rel (%p352) target = $region24
        $region23: #{tpu_custom_call.1} parent=11 // pred_region
          _
        $region24: #{tpu_custom_call.1} parent=11 // pred_fallthru
          _
        // Predicated region
        $region25: #{tpu_custom_call.1} parent=11 // pred_check
          %p355 = pneg %p158
        $region26: #{tpu_custom_call.1} parent=11 // pred_check_branch
          %357 = sbr.rel (%p355) target = $region28
        $region27: #{tpu_custom_call.1} parent=11 // pred_region
          _
        $region28: #{tpu_custom_call.1} parent=11 // pred_fallthru
          _
        // Predicated region
        $region29: #{tpu_custom_call.1} parent=11 // pred_check
          %p358 = pneg %p179
        $region30: #{tpu_custom_call.1} parent=11 // pred_check_branch
          %360 = sbr.rel (%p358) target = $region32
        $region31: #{tpu_custom_call.1} parent=11 // pred_region
          _
        $region32: #{tpu_custom_call.1} parent=11 // pred_fallthru
          _
        // Predicated region
        $region33: #{tpu_custom_call.1} parent=11 // pred_check
          %p361 = pneg %p200
        $region34: #{tpu_custom_call.1} parent=11 // pred_check_branch
          %363 = sbr.rel (%p361) target = $region36
        $region35: #{tpu_custom_call.1} parent=11 // pred_region
          _
        $region36: #{tpu_custom_call.1} parent=11 // pred_fallthru
          _
        // Predicated region
        $region37: #{tpu_custom_call.1} parent=11 // pred_check
          %p364 = pneg %p221
        $region38: #{tpu_custom_call.1} parent=11 // pred_check_branch
          %366 = sbr.rel (%p364) target = $region40
        $region39: #{tpu_custom_call.1} parent=11 // pred_region
          _
        $region40: #{tpu_custom_call.1} parent=11 // pred_fallthru
          _
        // Predicated region
        $region41: #{tpu_custom_call.1} parent=11 // pred_check
          %p367 = pneg %p242
        $region42: #{tpu_custom_call.1} parent=11 // pred_check_branch
          %369 = sbr.rel (%p367) target = $region44
        $region43: #{tpu_custom_call.1} parent=11 // pred_region
          _
        $region44: #{tpu_custom_call.1} parent=11 // pred_fallthru
          _
        // Predicated region
        $region45: #{tpu_custom_call.1} parent=11 // pred_check
          %p370 = pneg %p263
        $region46: #{tpu_custom_call.1} parent=11 // pred_check_branch
          %372 = sbr.rel (%p370) target = $region48
        $region47: #{tpu_custom_call.1} parent=11 // pred_region
          _
        $region48: #{tpu_custom_call.1} parent=11 // pred_fallthru
          _
        // Predicated region
        $region49: #{tpu_custom_call.1} parent=11 // pred_check
          %p373 = pneg %p284
        $region50: #{tpu_custom_call.1} parent=11 // pred_check_branch
          %375 = sbr.rel (%p373) target = $region52
        $region51: #{tpu_custom_call.1} parent=11 // pred_region
          _
        $region52: #{tpu_custom_call.1} parent=11 // pred_fallthru
          _
        // Predicated region
        $region53: #{tpu_custom_call.1} parent=11 // pred_check
          %p376 = pneg %p305
        $region54: #{tpu_custom_call.1} parent=11 // pred_check_branch
          %378 = sbr.rel (%p376) target = $region56
        $region55: #{tpu_custom_call.1} parent=11 // pred_region
          _
        $region56: #{tpu_custom_call.1} parent=11 // pred_fallthru
          _
      $region12: #{tpu_custom_call.1} parent=5 // pred_fallthru
        _
      %p379 = scmp.lt.s32.totalorder %s22, 2
      // Predicated region
      $region57: #{tpu_custom_call.1} parent=5 // pred_check
        %p380 = pneg %p379
      $region58: #{tpu_custom_call.1} parent=5 // pred_check_branch
        %382 = sbr.rel (%p380) target = $region60
      $region59: #{tpu_custom_call.1} parent=5 // pred_region
        // Predicated region
        $region61: #{tpu_custom_call.1} parent=59 // pred_check
          %p383 = pneg %p42
        $region62: #{tpu_custom_call.1} parent=59 // pred_check_branch
          %385 = sbr.rel (%p383) target = $region64
        $region63: #{tpu_custom_call.1} parent=59 // pred_region
          %s386 = smul.u32 2, %s22
          %p387 = scmp.lt.s32.totalorder %s386, 3
          %s388 = scalar_select %p387, %s386, 3
          %s389 = smul.addr %s388, 2
          %s390 = smul.addr %s389, 8
          %s391 = scalar_lea.vmem %s0, %s390
          %s392 = smul.u32 2, %s22
        $region64: #{tpu_custom_call.1} parent=59 // pred_fallthru
          _
        // Predicated region
        $region65: #{tpu_custom_call.1} parent=59 // pred_check
          %p393 = pneg %p68
        $region66: #{tpu_custom_call.1} parent=59 // pred_check_branch
          %395 = sbr.rel (%p393) target = $region68
        $region67: #{tpu_custom_call.1} parent=59 // pred_region
          %s396 = smul.u32 2, %s22
          %p397 = scmp.lt.s32.totalorder %s396, 3
          %s398 = scalar_select %p397, %s396, 3
          %s399 = smul.addr %s398, 2
          %s400 = smul.addr %s399, 8
          %s401 = scalar_lea.vmem %s1, %s400
          %s402 = smul.u32 2, %s22
        $region68: #{tpu_custom_call.1} parent=59 // pred_fallthru
          _
      $region60: #{tpu_custom_call.1} parent=5 // pred_fallthru
        _
      %p403 = scmp.le.s32.totalorder 1, %s22
      %p404 = scmp.lt.s32.totalorder %s22, 3
      %p405 = pnand %p403, %p404
      %p406 = pneg %p405
      // Predicated region
      $region69: #{tpu_custom_call.1} parent=5 // pred_check
        _
      $region70: #{tpu_custom_call.1} parent=5 // pred_check_branch
        %408 = sbr.rel (%p405) target = $region72
      $region71: #{tpu_custom_call.1} parent=5 // pred_region
        %s409 = ssub.s32 %s22, 1
        %s410 = smul.u32 2, %s27
        %p411 = scmp.lt.s32.totalorder %s410, 3
        %s412 = scalar_select %p411, %s410, 3
        %s413 = smul.addr %s412, 2
        %s414 = smul.addr %s413, 8
        %s415 = scalar_lea.vmem %s0, %s414
        %p416 = pneg %p48
        %p417 = pneg %p45
        %s418 = smul.u32 2, %s27
        %p419 = scmp.lt.s32.totalorder %s418, 3
        %s420 = scalar_select %p419, %s418, 3
        %s421 = smul.addr %s420, 2
        %s422 = smul.addr %s421, 8
        %s423 = scalar_lea.vmem %s1, %s422
        %p424 = pneg %p74
        %p425 = pneg %p71
        %p426 = pneg %p95
        %p427 = pneg %p92
        %p428 = pneg %p116
        %p429 = pneg %p113
        %p430 = pneg %p137
        %p431 = pneg %p134
        %p432 = pneg %p158
        %p433 = pneg %p155
        %p434 = pneg %p179
        %p435 = pneg %p176
        %p436 = pneg %p200
        %p437 = pneg %p197
        %p438 = pneg %p221
        %p439 = pneg %p218
        %p440 = pneg %p242
        %p441 = pneg %p239
        %p442 = pneg %p263
        %p443 = pneg %p260
        %p444 = pneg %p284
        %p445 = pneg %p281
        %p446 = pneg %p305
        %p447 = pneg %p302
        %p448 = pneg %p331
        %p449 = pneg %p328
        %s450 = sand.u32 %s318, 1
        %s451 = scalar_lea.sflag [#allocation3], %s450
        %s452 = sand.u32 %s318, 1
        %s453 = smul.addr %s452, 32
        %s454 = scalar_lea.vmem [#allocation2], %s453
        %s455 = smul.u32 2, %s27
        %p456 = scmp.lt.s32.totalorder %s455, 3
        %s457 = scalar_select %p456, %s455, 3
        %s458 = smul.addr %s457, 2
        %s459 = smul.addr %s458, 8
        %s460 = scalar_lea.vmem %s0, %s459
        %s461 = smul.u32 2, %s27
        %s462 = smul.u32 2, %s27
        %p463 = scmp.lt.s32.totalorder %s462, 3
        %s464 = scalar_select %p463, %s462, 3
        %s465 = smul.addr %s464, 2
        %s466 = smul.addr %s465, 8
        %s467 = scalar_lea.vmem %s1, %s466
        %s468 = smul.u32 2, %s27
        %s469 = smul.u32 2, %s27
        %v471 = vld [vmem:[%s460] sm:$0xff]
        %v472 = vld [vmem:[%s460 + $0x8] sm:$0xff]
        %v473 = vld [vmem:[%s460 + $0x10] sm:$0xff]
        %v474 = vld [vmem:[%s460 + $0x18] sm:$0xff]
        %v475 = vld [vmem:[%s467] sm:$0xff]
        %v476 = vld [vmem:[%s467 + $0x8] sm:$0xff]
        %v477 = vld [vmem:[%s467 + $0x10] sm:$0xff]
        %v478 = vld [vmem:[%s467 + $0x18] sm:$0xff]
        %v479 = vpack.c.bf16 %v472, %v471
        %v480 = vpack.c.bf16 %v474, %v473
        %v481 = vld [vmem:[%s2] sm:$0xf]
        %v482 = vld [vmem:[%s2 + $0x4] sm:$0xf]
        %v483 = vld [vmem:[%s3] sm:$0x1]
        %v485 = vperm.slane %v483, 0
        %v489 = vunpack.c.l.b16 %v481
        %v490 = vunpack.c.l.b16 %v482
        %v491 = vpack.c.b16 %v490, %v489
        %vm493 = vcmask 130048
        %v495 = vsel %vm493, %v479, 0
        %v498 = vsel %vm493, %v480, 0
        %500 = vmatpush.bf16.msra.mxu0 0
        %501 = vmatpush.bf16.msra.mxu0 0
        %502 = vmatpush.bf16.msra.mxu0 0
        %503 = vmatpush.bf16.msra.mxu0 0
        %504 = vmatpush.bf16.msra.mxu0 0
        %505 = vmatpush.bf16.msra.mxu0 0
        %506 = vmatpush.bf16.msra.mxu0 0
        %507 = vmatpush.bf16.msra.mxu0 %v491
        %508 = vmatmul.bf16.gmra.mxu0 %v495
        %v509 = vpop.f32.mrf.mxu0
        %v510 = vadd.f32 %v485, %v509
        %v511 = vpop.f32.mrf.mxu0
        %v512 = vadd.f32 %v485, %v511
        %513 = vmatmul.bf16.gmra.mxu0 %v498
        %v514 = vpop.f32.mrf.mxu0
        %v515 = vadd.f32 %v485, %v514
        %v516 = vpop.f32.mrf.mxu0
        %v517 = vadd.f32 %v485, %v516
        %518 = vdwg.mxu0
        %v519 = vadd.f32 %v510, %v475
        %v520 = vadd.f32 %v512, %v476
        %v521 = vadd.f32 %v515, %v477
        %v522 = vadd.f32 %v517, %v478
        %v523 = vld [vmem:[%s4] sm:$0xf]
        %v524 = vld [vmem:[%s4 + $0x4] sm:$0xf]
        %v525 = vld [vmem:[%s4 + $0x8] sm:$0xf]
        %v526 = vld [vmem:[%s4 + $0xc] sm:$0xf]
        %v527 = vld [vmem:[%s5] sm:$0x1]
        %v528 = vld [vmem:[%s6] sm:$0xf]
        %v529 = vld [vmem:[%s6 + $0x4] sm:$0xf]
        %v530 = vld [vmem:[%s6 + $0x8] sm:$0xf]
        %v531 = vld [vmem:[%s6 + $0xc] sm:$0xf]
        %v532 = vld [vmem:[%s7] sm:$0x3f]
        %v533 = vld [vmem:[%s8] sm:$0xff]
        %v534 = vld [vmem:[%s8 + $0x8] sm:$0xff]
        %v535 = vld [vmem:[%s8 + $0x10] sm:$0xff]
        %v536 = vld [vmem:[%s8 + $0x18] sm:$0xff]
        %v537 = vld [vmem:[%s8 + $0x20] sm:$0xff]
        %v538 = vld [vmem:[%s8 + $0x28] sm:$0xff]
        %v539 = vld [vmem:[%s8 + $0x30] sm:$0xff]
        %v540 = vld [vmem:[%s8 + $0x38] sm:$0xff]
        %v541 = vld [vmem:[%s8 + $0x40] sm:$0xff]
        %v542 = vld [vmem:[%s8 + $0x48] sm:$0xff]
        %v543 = vld [vmem:[%s8 + $0x50] sm:$0xff]
        %v544 = vld [vmem:[%s8 + $0x58] sm:$0xff]
        %v545 = vld [vmem:[%s8 + $0x60] sm:$0xff]
        %v546 = vld [vmem:[%s8 + $0x68] sm:$0xff]
        %v547 = vld [vmem:[%s8 + $0x70] sm:$0xff]
        %v548 = vld [vmem:[%s8 + $0x78] sm:$0xff]
        %v549 = vld [vmem:[%s8 + $0x80] sm:$0xff]
        %v550 = vld [vmem:[%s8 + $0x88] sm:$0xff]
        %v551 = vld [vmem:[%s8 + $0x90] sm:$0xff]
        %v552 = vld [vmem:[%s8 + $0x98] sm:$0xff]
        %v553 = vld [vmem:[%s8 + $0xa0] sm:$0xff]
        %v554 = vld [vmem:[%s8 + $0xa8] sm:$0xff]
        %v555 = vld [vmem:[%s8 + $0xb0] sm:$0xff]
        %v556 = vld [vmem:[%s8 + $0xb8] sm:$0xff]
        %v557 = vld [vmem:[%s8 + $0xc0] sm:$0xff]
        %v558 = vld [vmem:[%s8 + $0xc8] sm:$0xff]
        %v559 = vld [vmem:[%s8 + $0xd0] sm:$0xff]
        %v560 = vld [vmem:[%s8 + $0xd8] sm:$0xff]
        %v561 = vld [vmem:[%s8 + $0xe0] sm:$0xff]
        %v562 = vld [vmem:[%s8 + $0xe8] sm:$0xff]
        %v563 = vld [vmem:[%s8 + $0xf0] sm:$0xff]
        %v564 = vld [vmem:[%s8 + $0xf8] sm:$0xff]
        %v565 = vld [vmem:[%s9] sm:$0xff]
        %v566 = vld [vmem:[%s9 + $0x8] sm:$0xff]
        %v567 = vld [vmem:[%s10] sm:$0xf]
        %v568 = vld [vmem:[%s10 + $0x4] sm:$0xf]
        %v569 = vld [vmem:[%s10 + $0x8] sm:$0xf]
        %v570 = vld [vmem:[%s10 + $0xc] sm:$0xf]
        %v571 = vld [vmem:[%s10 + $0x10] sm:$0xf]
        %v572 = vld [vmem:[%s10 + $0x14] sm:$0xf]
        %v573 = vld [vmem:[%s10 + $0x18] sm:$0xf]
        %v574 = vld [vmem:[%s10 + $0x1c] sm:$0xf]
        %v575 = vld [vmem:[%s10 + $0x20] sm:$0xf]
        %v576 = vld [vmem:[%s10 + $0x24] sm:$0xf]
        %v577 = vld [vmem:[%s10 + $0x28] sm:$0xf]
        %v578 = vld [vmem:[%s10 + $0x2c] sm:$0xf]
        %v579 = vld [vmem:[%s10 + $0x30] sm:$0xf]
        %v580 = vld [vmem:[%s10 + $0x34] sm:$0xf]
        %v581 = vld [vmem:[%s10 + $0x38] sm:$0xf]
        %v582 = vld [vmem:[%s10 + $0x3c] sm:$0xf]
        %v583 = vld [vmem:[%s10 + $0x40] sm:$0xf]
        %v584 = vld [vmem:[%s10 + $0x44] sm:$0xf]
        %v585 = vld [vmem:[%s10 + $0x48] sm:$0xf]
        %v586 = vld [vmem:[%s10 + $0x4c] sm:$0xf]
        %v587 = vld [vmem:[%s10 + $0x50] sm:$0xf]
        %v588 = vld [vmem:[%s10 + $0x54] sm:$0xf]
        %v589 = vld [vmem:[%s10 + $0x58] sm:$0xf]
        %v590 = vld [vmem:[%s10 + $0x5c] sm:$0xf]
        %v591 = vld [vmem:[%s10 + $0x60] sm:$0xf]
        %v592 = vld [vmem:[%s10 + $0x64] sm:$0xf]
        %v593 = vld [vmem:[%s10 + $0x68] sm:$0xf]
        %v594 = vld [vmem:[%s10 + $0x6c] sm:$0xf]
        %v595 = vld [vmem:[%s10 + $0x70] sm:$0xf]
        %v596 = vld [vmem:[%s10 + $0x74] sm:$0xf]
        %v597 = vld [vmem:[%s10 + $0x78] sm:$0xf]
        %v598 = vld [vmem:[%s10 + $0x7c] sm:$0xf]
        %v599 = vld [vmem:[%s10 + $0x80] sm:$0xf]
        %v600 = vld [vmem:[%s10 + $0x84] sm:$0xf]
        %v601 = vld [vmem:[%s10 + $0x88] sm:$0xf]
        %v602 = vld [vmem:[%s10 + $0x8c] sm:$0xf]
        %v603 = vld [vmem:[%s10 + $0x90] sm:$0xf]
        %v604 = vld [vmem:[%s10 + $0x94] sm:$0xf]
        %v605 = vld [vmem:[%s10 + $0x98] sm:$0xf]
        %v606 = vld [vmem:[%s10 + $0x9c] sm:$0xf]
        %v607 = vld [vmem:[%s10 + $0xa0] sm:$0xf]
        %v608 = vld [vmem:[%s10 + $0xa4] sm:$0xf]
        %v609 = vld [vmem:[%s10 + $0xa8] sm:$0xf]
        %v610 = vld [vmem:[%s10 + $0xac] sm:$0xf]
        %v611 = vld [vmem:[%s10 + $0xb0] sm:$0xf]
        %v612 = vld [vmem:[%s10 + $0xb4] sm:$0xf]
        %v613 = vld [vmem:[%s10 + $0xb8] sm:$0xf]
        %v614 = vld [vmem:[%s10 + $0xbc] sm:$0xf]
        %v615 = vld [vmem:[%s10 + $0xc0] sm:$0xf]
        %v616 = vld [vmem:[%s10 + $0xc4] sm:$0xf]
        %v617 = vld [vmem:[%s10 + $0xc8] sm:$0xf]
        %v618 = vld [vmem:[%s10 + $0xcc] sm:$0xf]
        %v619 = vld [vmem:[%s10 + $0xd0] sm:$0xf]
        %v620 = vld [vmem:[%s10 + $0xd4] sm:$0xf]
        %v621 = vld [vmem:[%s10 + $0xd8] sm:$0xf]
        %v622 = vld [vmem:[%s10 + $0xdc] sm:$0xf]
        %v623 = vld [vmem:[%s10 + $0xe0] sm:$0xf]
        %v624 = vld [vmem:[%s10 + $0xe4] sm:$0xf]
        %v625 = vld [vmem:[%s10 + $0xe8] sm:$0xf]
        %v626 = vld [vmem:[%s10 + $0xec] sm:$0xf]
        %v627 = vld [vmem:[%s10 + $0xf0] sm:$0xf]
        %v628 = vld [vmem:[%s10 + $0xf4] sm:$0xf]
        %v629 = vld [vmem:[%s10 + $0xf8] sm:$0xf]
        %v630 = vld [vmem:[%s10 + $0xfc] sm:$0xf]
        %v631 = vld [vmem:[%s10 + $0x100] sm:$0xf]
        %v632 = vld [vmem:[%s10 + $0x104] sm:$0xf]
        %v633 = vld [vmem:[%s10 + $0x108] sm:$0xf]
        %v634 = vld [vmem:[%s10 + $0x10c] sm:$0xf]
        %v635 = vld [vmem:[%s10 + $0x110] sm:$0xf]
        %v636 = vld [vmem:[%s10 + $0x114] sm:$0xf]
        %v637 = vld [vmem:[%s10 + $0x118] sm:$0xf]
        %v638 = vld [vmem:[%s10 + $0x11c] sm:$0xf]
        %v639 = vld [vmem:[%s10 + $0x120] sm:$0xf]
        %v640 = vld [vmem:[%s10 + $0x124] sm:$0xf]
        %v641 = vld [vmem:[%s10 + $0x128] sm:$0xf]
        %v642 = vld [vmem:[%s10 + $0x12c] sm:$0xf]
        %v643 = vld [vmem:[%s10 + $0x130] sm:$0xf]
        %v644 = vld [vmem:[%s10 + $0x134] sm:$0xf]
        %v645 = vld [vmem:[%s10 + $0x138] sm:$0xf]
        %v646 = vld [vmem:[%s10 + $0x13c] sm:$0xf]
        %v647 = vld [vmem:[%s10 + $0x140] sm:$0xf]
        %v648 = vld [vmem:[%s10 + $0x144] sm:$0xf]
        %v649 = vld [vmem:[%s10 + $0x148] sm:$0xf]
        %v650 = vld [vmem:[%s10 + $0x14c] sm:$0xf]
        %v651 = vld [vmem:[%s10 + $0x150] sm:$0xf]
        %v652 = vld [vmem:[%s10 + $0x154] sm:$0xf]
        %v653 = vld [vmem:[%s10 + $0x158] sm:$0xf]
        %v654 = vld [vmem:[%s10 + $0x15c] sm:$0xf]
        %v655 = vld [vmem:[%s10 + $0x160] sm:$0xf]
        %v656 = vld [vmem:[%s10 + $0x164] sm:$0xf]
        %v657 = vld [vmem:[%s10 + $0x168] sm:$0xf]
        %v658 = vld [vmem:[%s10 + $0x16c] sm:$0xf]
        %v659 = vld [vmem:[%s10 + $0x170] sm:$0xf]
        %v660 = vld [vmem:[%s10 + $0x174] sm:$0xf]
        %v661 = vld [vmem:[%s10 + $0x178] sm:$0xf]
        %v662 = vld [vmem:[%s10 + $0x17c] sm:$0xf]
        %v663 = vld [vmem:[%s10 + $0x180] sm:$0xf]
        %v664 = vld [vmem:[%s10 + $0x184] sm:$0xf]
        %v665 = vld [vmem:[%s10 + $0x188] sm:$0xf]
        %v666 = vld [vmem:[%s10 + $0x18c] sm:$0xf]
        %v667 = vld [vmem:[%s10 + $0x190] sm:$0xf]
        %v668 = vld [vmem:[%s10 + $0x194] sm:$0xf]
        %v669 = vld [vmem:[%s10 + $0x198] sm:$0xf]
        %v670 = vld [vmem:[%s10 + $0x19c] sm:$0xf]
        %v671 = vld [vmem:[%s10 + $0x1a0] sm:$0xf]
        %v672 = vld [vmem:[%s10 + $0x1a4] sm:$0xf]
        %v673 = vld [vmem:[%s10 + $0x1a8] sm:$0xf]
        %v674 = vld [vmem:[%s10 + $0x1ac] sm:$0xf]
        %v675 = vld [vmem:[%s10 + $0x1b0] sm:$0xf]
        %v676 = vld [vmem:[%s10 + $0x1b4] sm:$0xf]
        %v677 = vld [vmem:[%s10 + $0x1b8] sm:$0xf]
        %v678 = vld [vmem:[%s10 + $0x1bc] sm:$0xf]
        %v679 = vld [vmem:[%s10 + $0x1c0] sm:$0xf]
        %v680 = vld [vmem:[%s10 + $0x1c4] sm:$0xf]
        %v681 = vld [vmem:[%s10 + $0x1c8] sm:$0xf]
        %v682 = vld [vmem:[%s10 + $0x1cc] sm:$0xf]
        %v683 = vld [vmem:[%s10 + $0x1d0] sm:$0xf]
        %v684 = vld [vmem:[%s10 + $0x1d4] sm:$0xf]
        %v685 = vld [vmem:[%s10 + $0x1d8] sm:$0xf]
        %v686 = vld [vmem:[%s10 + $0x1dc] sm:$0xf]
        %v687 = vld [vmem:[%s10 + $0x1e0] sm:$0xf]
        %v688 = vld [vmem:[%s10 + $0x1e4] sm:$0xf]
        %v689 = vld [vmem:[%s10 + $0x1e8] sm:$0xf]
        %v690 = vld [vmem:[%s10 + $0x1ec] sm:$0xf]
        %v691 = vld [vmem:[%s10 + $0x1f0] sm:$0xf]
        %v692 = vld [vmem:[%s10 + $0x1f4] sm:$0xf]
        %v693 = vld [vmem:[%s10 + $0x1f8] sm:$0xf]
        %v694 = vld [vmem:[%s10 + $0x1fc] sm:$0xf]
        %v695 = vld [vmem:[%s10 + $0x200] sm:$0xf]
        %v696 = vld [vmem:[%s10 + $0x204] sm:$0xf]
        %v697 = vld [vmem:[%s10 + $0x208] sm:$0xf]
        %v698 = vld [vmem:[%s10 + $0x20c] sm:$0xf]
        %v699 = vld [vmem:[%s10 + $0x210] sm:$0xf]
        %v700 = vld [vmem:[%s10 + $0x214] sm:$0xf]
        %v701 = vld [vmem:[%s10 + $0x218] sm:$0xf]
        %v702 = vld [vmem:[%s10 + $0x21c] sm:$0xf]
        %v703 = vld [vmem:[%s10 + $0x220] sm:$0xf]
        %v704 = vld [vmem:[%s10 + $0x224] sm:$0xf]
        %v705 = vld [vmem:[%s10 + $0x228] sm:$0xf]
        %v706 = vld [vmem:[%s10 + $0x22c] sm:$0xf]
        %v707 = vld [vmem:[%s10 + $0x230] sm:$0xf]
        %v708 = vld [vmem:[%s10 + $0x234] sm:$0xf]
        %v709 = vld [vmem:[%s10 + $0x238] sm:$0xf]
        %v710 = vld [vmem:[%s10 + $0x23c] sm:$0xf]
        %v711 = vld [vmem:[%s10 + $0x240] sm:$0xf]
        %v712 = vld [vmem:[%s10 + $0x244] sm:$0xf]
        %v713 = vld [vmem:[%s10 + $0x248] sm:$0xf]
        %v714 = vld [vmem:[%s10 + $0x24c] sm:$0xf]
        %v715 = vld [vmem:[%s10 + $0x250] sm:$0xf]
        %v716 = vld [vmem:[%s10 + $0x254] sm:$0xf]
        %v717 = vld [vmem:[%s10 + $0x258] sm:$0xf]
        %v718 = vld [vmem:[%s10 + $0x25c] sm:$0xf]
        %v719 = vld [vmem:[%s10 + $0x260] sm:$0xf]
        %v720 = vld [vmem:[%s10 + $0x264] sm:$0xf]
        %v721 = vld [vmem:[%s10 + $0x268] sm:$0xf]
        %v722 = vld [vmem:[%s10 + $0x26c] sm:$0xf]
        %v723 = vld [vmem:[%s10 + $0x270] sm:$0xf]
        %v724 = vld [vmem:[%s10 + $0x274] sm:$0xf]
        %v725 = vld [vmem:[%s10 + $0x278] sm:$0xf]
        %v726 = vld [vmem:[%s10 + $0x27c] sm:$0xf]
        %v727 = vld [vmem:[%s10 + $0x280] sm:$0xf]
        %v728 = vld [vmem:[%s10 + $0x284] sm:$0xf]
        %v729 = vld [vmem:[%s10 + $0x288] sm:$0xf]
        %v730 = vld [vmem:[%s10 + $0x28c] sm:$0xf]
        %v731 = vld [vmem:[%s10 + $0x290] sm:$0xf]
        %v732 = vld [vmem:[%s10 + $0x294] sm:$0xf]
        %v733 = vld [vmem:[%s10 + $0x298] sm:$0xf]
        %v734 = vld [vmem:[%s10 + $0x29c] sm:$0xf]
        %v735 = vld [vmem:[%s10 + $0x2a0] sm:$0xf]
        %v736 = vld [vmem:[%s10 + $0x2a4] sm:$0xf]
        %v737 = vld [vmem:[%s10 + $0x2a8] sm:$0xf]
        %v738 = vld [vmem:[%s10 + $0x2ac] sm:$0xf]
        %v739 = vld [vmem:[%s10 + $0x2b0] sm:$0xf]
        %v740 = vld [vmem:[%s10 + $0x2b4] sm:$0xf]
        %v741 = vld [vmem:[%s10 + $0x2b8] sm:$0xf]
        %v742 = vld [vmem:[%s10 + $0x2bc] sm:$0xf]
        %v743 = vld [vmem:[%s10 + $0x2c0] sm:$0xf]
        %v744 = vld [vmem:[%s10 + $0x2c4] sm:$0xf]
        %v745 = vld [vmem:[%s10 + $0x2c8] sm:$0xf]
        %v746 = vld [vmem:[%s10 + $0x2cc] sm:$0xf]
        %v747 = vld [vmem:[%s10 + $0x2d0] sm:$0xf]
        %v748 = vld [vmem:[%s10 + $0x2d4] sm:$0xf]
        %v749 = vld [vmem:[%s10 + $0x2d8] sm:$0xf]
        %v750 = vld [vmem:[%s10 + $0x2dc] sm:$0xf]
        %v751 = vld [vmem:[%s10 + $0x2e0] sm:$0xf]
        %v752 = vld [vmem:[%s10 + $0x2e4] sm:$0xf]
        %v753 = vld [vmem:[%s10 + $0x2e8] sm:$0xf]
        %v754 = vld [vmem:[%s10 + $0x2ec] sm:$0xf]
        %v755 = vld [vmem:[%s10 + $0x2f0] sm:$0xf]
        %v756 = vld [vmem:[%s10 + $0x2f4] sm:$0xf]
        %v757 = vld [vmem:[%s10 + $0x2f8] sm:$0xf]
        %v758 = vld [vmem:[%s10 + $0x2fc] sm:$0xf]
        %v759 = vld [vmem:[%s10 + $0x300] sm:$0xf]
        %v760 = vld [vmem:[%s10 + $0x304] sm:$0xf]
        %v761 = vld [vmem:[%s10 + $0x308] sm:$0xf]
        %v762 = vld [vmem:[%s10 + $0x30c] sm:$0xf]
        %v763 = vld [vmem:[%s10 + $0x310] sm:$0xf]
        %v764 = vld [vmem:[%s10 + $0x314] sm:$0xf]
        %v765 = vld [vmem:[%s10 + $0x318] sm:$0xf]
        %v766 = vld [vmem:[%s10 + $0x31c] sm:$0xf]
        %v767 = vld [vmem:[%s10 + $0x320] sm:$0xf]
        %v768 = vld [vmem:[%s10 + $0x324] sm:$0xf]
        %v769 = vld [vmem:[%s10 + $0x328] sm:$0xf]
        %v770 = vld [vmem:[%s10 + $0x32c] sm:$0xf]
        %v771 = vld [vmem:[%s10 + $0x330] sm:$0xf]
        %v772 = vld [vmem:[%s10 + $0x334] sm:$0xf]
        %v773 = vld [vmem:[%s10 + $0x338] sm:$0xf]
        %v774 = vld [vmem:[%s10 + $0x33c] sm:$0xf]
        %v775 = vld [vmem:[%s10 + $0x340] sm:$0xf]
        %v776 = vld [vmem:[%s10 + $0x344] sm:$0xf]
        %v777 = vld [vmem:[%s10 + $0x348] sm:$0xf]
        %v778 = vld [vmem:[%s10 + $0x34c] sm:$0xf]
        %v779 = vld [vmem:[%s10 + $0x350] sm:$0xf]
        %v780 = vld [vmem:[%s10 + $0x354] sm:$0xf]
        %v781 = vld [vmem:[%s10 + $0x358] sm:$0xf]
        %v782 = vld [vmem:[%s10 + $0x35c] sm:$0xf]
        %v783 = vld [vmem:[%s10 + $0x360] sm:$0xf]
        %v784 = vld [vmem:[%s10 + $0x364] sm:$0xf]
        %v785 = vld [vmem:[%s10 + $0x368] sm:$0xf]
        %v786 = vld [vmem:[%s10 + $0x36c] sm:$0xf]
        %v787 = vld [vmem:[%s10 + $0x370] sm:$0xf]
        %v788 = vld [vmem:[%s10 + $0x374] sm:$0xf]
        %v789 = vld [vmem:[%s10 + $0x378] sm:$0xf]
        %v790 = vld [vmem:[%s10 + $0x37c] sm:$0xf]
        %v791 = vld [vmem:[%s10 + $0x380] sm:$0xf]
        %v792 = vld [vmem:[%s10 + $0x384] sm:$0xf]
        %v793 = vld [vmem:[%s10 + $0x388] sm:$0xf]
        %v794 = vld [vmem:[%s10 + $0x38c] sm:$0xf]
        %v795 = vld [vmem:[%s10 + $0x390] sm:$0xf]
        %v796 = vld [vmem:[%s10 + $0x394] sm:$0xf]
        %v797 = vld [vmem:[%s10 + $0x398] sm:$0xf]
        %v798 = vld [vmem:[%s10 + $0x39c] sm:$0xf]
        %v799 = vld [vmem:[%s10 + $0x3a0] sm:$0xf]
        %v800 = vld [vmem:[%s10 + $0x3a4] sm:$0xf]
        %v801 = vld [vmem:[%s10 + $0x3a8] sm:$0xf]
        %v802 = vld [vmem:[%s10 + $0x3ac] sm:$0xf]
        %v803 = vld [vmem:[%s10 + $0x3b0] sm:$0xf]
        %v804 = vld [vmem:[%s10 + $0x3b4] sm:$0xf]
        %v805 = vld [vmem:[%s10 + $0x3b8] sm:$0xf]
        %v806 = vld [vmem:[%s10 + $0x3bc] sm:$0xf]
        %v807 = vld [vmem:[%s10 + $0x3c0] sm:$0xf]
        %v808 = vld [vmem:[%s10 + $0x3c4] sm:$0xf]
        %v809 = vld [vmem:[%s10 + $0x3c8] sm:$0xf]
        %v810 = vld [vmem:[%s10 + $0x3cc] sm:$0xf]
        %v811 = vld [vmem:[%s10 + $0x3d0] sm:$0xf]
        %v812 = vld [vmem:[%s10 + $0x3d4] sm:$0xf]
        %v813 = vld [vmem:[%s10 + $0x3d8] sm:$0xf]
        %v814 = vld [vmem:[%s10 + $0x3dc] sm:$0xf]
        %v815 = vld [vmem:[%s10 + $0x3e0] sm:$0xf]
        %v816 = vld [vmem:[%s10 + $0x3e4] sm:$0xf]
        %v817 = vld [vmem:[%s10 + $0x3e8] sm:$0xf]
        %v818 = vld [vmem:[%s10 + $0x3ec] sm:$0xf]
        %v819 = vld [vmem:[%s10 + $0x3f0] sm:$0xf]
        %v820 = vld [vmem:[%s10 + $0x3f4] sm:$0xf]
        %v821 = vld [vmem:[%s10 + $0x3f8] sm:$0xf]
        %v822 = vld [vmem:[%s10 + $0x3fc] sm:$0xf]
        %v823 = vpack.c.bf16 %v520, %v519
        %v824 = vpack.c.bf16 %v522, %v521
        %v826 = vperm.slane %v527, 0
        %v832 = vunpack.c.l.b16 %v523
        %v833 = vunpack.c.l.b16 %v524
        %v834 = vunpack.c.l.b16 %v525
        %v835 = vunpack.c.l.b16 %v526
        %v836 = vpack.c.b16 %v833, %v832
        %v837 = vpack.c.b16 %v835, %v834
        %vm840 = vcmask 261120
        %v842 = vsel %vm840, %v823, 0
        %v845 = vsel %vm840, %v824, 0
        %847 = vmatpush.bf16.msra.mxu0 0
        %848 = vmatpush.bf16.msra.mxu0 0
        %849 = vmatpush.bf16.msra.mxu0 0
        %850 = vmatpush.bf16.msra.mxu0 0
        %851 = vmatpush.bf16.msra.mxu0 0
        %852 = vmatpush.bf16.msra.mxu0 0
        %853 = vmatpush.bf16.msra.mxu0 %v837
        %854 = vmatpush.bf16.msra.mxu0 %v836
        %855 = vmatmul.bf16.gmra.mxu0 %v842
        %v856 = vpop.f32.mrf.mxu0
        %v857 = vadd.f32 %v826, %v856
        %v858 = vpop.f32.mrf.mxu0
        %v859 = vadd.f32 %v826, %v858
        %860 = vmatmul.bf16.gmra.mxu0 %v845
        %v861 = vpop.f32.mrf.mxu0
        %v862 = vadd.f32 %v826, %v861
        %v863 = vpop.f32.mrf.mxu0
        %v864 = vadd.f32 %v826, %v863
        %865 = vdwg.mxu0
        %v866 = vpack.c.bf16 %v859, %v857
        %868 = vrot.lane.b32.xlu0 %v866, 96
        %v869 = vpop.permute.xlu0 %868
        %vm870 = vcmask 64512
        %v872 = vsel %vm870, %v866, 0
        %v875 = vsel %vm870, %v869, 0
        %877 = vmatpush.bf16.xpose.msra.mxu0 0
        %878 = vmatpush.bf16.xpose.msra.mxu0 0
        %879 = vmatpush.bf16.xpose.msra.mxu0 0
        %880 = vmatpush.bf16.xpose.msra.mxu0 0
        %881 = vmatpush.bf16.xpose.msra.mxu0 0
        %882 = vmatpush.bf16.xpose.msra.mxu0 0
        %883 = vmatpush.bf16.xpose.msra.mxu0 0
        %884 = vmatpush.bf16.xpose.msra.mxu0 %v875
        %885 = vmatmul.bf16.gmra.mxu0 %v872
        %v886 = vpop.f32.mrf.mxu0
        %v887 = vadd.f32 0.0, %v886
        %v888 = vpop.f32.mrf.mxu0
        %v889 = vadd.f32 0.0, %v888
        %890 = vdwg.mxu0
        %v891 = vsel %vm493, %v887, -inf
        %892 = vmax.xlane.f32.xlu0 %v891
        %v893 = vpop.xlane.xlu0 %892
        %v894 = vsel %vm493, %v889, -inf
        %895 = vmax.xlane.f32.xlu0 %v894
        %v896 = vpop.xlane.xlu0 %895
        %v897 = vsub.f32 %v887, %v893
        %v898 = vsub.f32 %v889, %v896
        %v899 = vmul.f32 %v897, 1.442695
        %v900 = vpow.pop %v899
        %v901 = vmul.f32 %v898, 1.442695
        %v902 = vpow.pop %v901
        %v903 = vsel %vm493, %v900, 0.0
        %904 = vadd.xlane.f32.xlu0 %v903
        %v905 = vpop.xlane.xlu0 %904
        %v906 = vsel %vm493, %v902, 0.0
        %907 = vadd.xlane.f32.xlu0 %v906
        %v908 = vpop.xlane.xlu0 %907
        %v909 = vrcp.pop %v905
        %v910 = vrcp.pop %v908
        %v911 = vmul.f32 %v900, %v909
        %v912 = vmul.f32 %v902, %v910
        %v913 = vpack.c.bf16 %v912, %v911
        %914 = vrot.lane.b32.xlu0 %v866, 64
        %v915 = vpop.permute.xlu0 %914
        %v918 = vsel %vm493, %v913, 0
        %920 = vmatpush.bf16.msra.mxu0 0
        %921 = vmatpush.bf16.msra.mxu0 0
        %922 = vmatpush.bf16.msra.mxu0 0
        %923 = vmatpush.bf16.msra.mxu0 0
        %924 = vmatpush.bf16.msra.mxu0 0
        %925 = vmatpush.bf16.msra.mxu0 0
        %926 = vmatpush.bf16.msra.mxu0 0
        %927 = vmatpush.bf16.msra.mxu0 %v915
        %928 = vmatmul.bf16.gmra.mxu0 %v918
        %v929 = vpop.f32.mrf.mxu0
        %v930 = vadd.f32 0.0, %v929
        %v931 = vpop.f32.mrf.mxu0
        %v932 = vadd.f32 0.0, %v931
        %933 = vdwg.mxu0
        %934 = vrot.lane.b32.xlu0 %v866, 120
        %v935 = vpop.permute.xlu0 %934
        %936 = vrot.lane.b32.xlu0 %v866, 88
        %v937 = vpop.permute.xlu0 %936
        %v939 = vsel %vm870, %v935, 0
        %v942 = vsel %vm870, %v937, 0
        %944 = vmatpush.bf16.xpose.msra.mxu0 0
        %945 = vmatpush.bf16.xpose.msra.mxu0 0
        %946 = vmatpush.bf16.xpose.msra.mxu0 0
        %947 = vmatpush.bf16.xpose.msra.mxu0 0
        %948 = vmatpush.bf16.xpose.msra.mxu0 0
        %949 = vmatpush.bf16.xpose.msra.mxu0 0
        %950 = vmatpush.bf16.xpose.msra.mxu0 0
        %951 = vmatpush.bf16.xpose.msra.mxu0 %v942
        %952 = vmatmul.bf16.gmra.mxu0 %v939
        %v953 = vpop.f32.mrf.mxu0
        %v954 = vadd.f32 0.0, %v953
        %v955 = vpop.f32.mrf.mxu0
        %v956 = vadd.f32 0.0, %v955
        %957 = vdwg.mxu0
        %v958 = vsel %vm493, %v954, -inf
        %959 = vmax.xlane.f32.xlu0 %v958
        %v960 = vpop.xlane.xlu0 %959
        %v961 = vsel %vm493, %v956, -inf
        %962 = vmax.xlane.f32.xlu0 %v961
        %v963 = vpop.xlane.xlu0 %962
        %v964 = vsub.f32 %v954, %v960
        %v965 = vsub.f32 %v956, %v963
        %v966 = vmul.f32 %v964, 1.442695
        %v967 = vpow.pop %v966
        %v968 = vmul.f32 %v965, 1.442695
        %v969 = vpow.pop %v968
        %v970 = vsel %vm493, %v967, 0.0
        %971 = vadd.xlane.f32.xlu0 %v970
        %v972 = vpop.xlane.xlu0 %971
        %v973 = vsel %vm493, %v969, 0.0
        %974 = vadd.xlane.f32.xlu0 %v973
        %v975 = vpop.xlane.xlu0 %974
        %v976 = vrcp.pop %v972
        %v977 = vrcp.pop %v975
        %v978 = vmul.f32 %v967, %v976
        %v979 = vmul.f32 %v969, %v977
        %v980 = vpack.c.bf16 %v979, %v978
        %981 = vrot.lane.b32.xlu0 %v866, 56
        %v982 = vpop.permute.xlu0 %981
        %v985 = vsel %vm493, %v980, 0
        %987 = vmatpush.bf16.msra.mxu0 0
        %988 = vmatpush.bf16.msra.mxu0 0
        %989 = vmatpush.bf16.msra.mxu0 0
        %990 = vmatpush.bf16.msra.mxu0 0
        %991 = vmatpush.bf16.msra.mxu0 0
        %992 = vmatpush.bf16.msra.mxu0 0
        %993 = vmatpush.bf16.msra.mxu0 0
        %994 = vmatpush.bf16.msra.mxu0 %v982
        %995 = vmatmul.bf16.gmra.mxu0 %v985
        %v996 = vpop.f32.mrf.mxu0
        %v997 = vadd.f32 0.0, %v996
        %v998 = vpop.f32.mrf.mxu0
        %v999 = vadd.f32 0.0, %v998
        %1000 = vdwg.mxu0
        %1001 = vrot.lane.b32.xlu0 %v866, 112
        %v1002 = vpop.permute.xlu0 %1001
        %1003 = vrot.lane.b32.xlu0 %v866, 80
        %v1004 = vpop.permute.xlu0 %1003
        %v1006 = vsel %vm870, %v1002, 0
        %v1009 = vsel %vm870, %v1004, 0
        %1011 = vmatpush.bf16.xpose.msra.mxu0 0
        %1012 = vmatpush.bf16.xpose.msra.mxu0 0
        %1013 = vmatpush.bf16.xpose.msra.mxu0 0
        %1014 = vmatpush.bf16.xpose.msra.mxu0 0
        %1015 = vmatpush.bf16.xpose.msra.mxu0 0
        %1016 = vmatpush.bf16.xpose.msra.mxu0 0
        %1017 = vmatpush.bf16.xpose.msra.mxu0 0
        %1018 = vmatpush.bf16.xpose.msra.mxu0 %v1009
        %1019 = vmatmul.bf16.gmra.mxu0 %v1006
        %v1020 = vpop.f32.mrf.mxu0
        %v1021 = vadd.f32 0.0, %v1020
        %v1022 = vpop.f32.mrf.mxu0
        %v1023 = vadd.f32 0.0, %v1022
        %1024 = vdwg.mxu0
        %v1025 = vsel %vm493, %v1021, -inf
        %1026 = vmax.xlane.f32.xlu0 %v1025
        %v1027 = vpop.xlane.xlu0 %1026
        %v1028 = vsel %vm493, %v1023, -inf
        %1029 = vmax.xlane.f32.xlu0 %v1028
        %v1030 = vpop.xlane.xlu0 %1029
        %v1031 = vsub.f32 %v1021, %v1027
        %v1032 = vsub.f32 %v1023, %v1030
        %v1033 = vmul.f32 %v1031, 1.442695
        %v1034 = vpow.pop %v1033
        %v1035 = vmul.f32 %v1032, 1.442695
        %v1036 = vpow.pop %v1035
        %v1037 = vsel %vm493, %v1034, 0.0
        %1038 = vadd.xlane.f32.xlu0 %v1037
        %v1039 = vpop.xlane.xlu0 %1038
        %v1040 = vsel %vm493, %v1036, 0.0
        %1041 = vadd.xlane.f32.xlu0 %v1040
        %v1042 = vpop.xlane.xlu0 %1041
        %v1043 = vrcp.pop %v1039
        %v1044 = vrcp.pop %v1042
        %v1045 = vmul.f32 %v1034, %v1043
        %v1046 = vmul.f32 %v1036, %v1044
        %v1047 = vpack.c.bf16 %v1046, %v1045
        %1048 = vrot.lane.b32.xlu0 %v866, 48
        %v1049 = vpop.permute.xlu0 %1048
        %v1052 = vsel %vm493, %v1047, 0
        %1054 = vmatpush.bf16.msra.mxu0 0
        %1055 = vmatpush.bf16.msra.mxu0 0
        %1056 = vmatpush.bf16.msra.mxu0 0
        %1057 = vmatpush.bf16.msra.mxu0 0
        %1058 = vmatpush.bf16.msra.mxu0 0
        %1059 = vmatpush.bf16.msra.mxu0 0
        %1060 = vmatpush.bf16.msra.mxu0 0
        %1061 = vmatpush.bf16.msra.mxu0 %v1049
        %1062 = vmatmul.bf16.gmra.mxu0 %v1052
        %v1063 = vpop.f32.mrf.mxu0
        %v1064 = vadd.f32 0.0, %v1063
        %v1065 = vpop.f32.mrf.mxu0
        %v1066 = vadd.f32 0.0, %v1065
        %1067 = vdwg.mxu0
        %1068 = vrot.lane.b32.xlu0 %v866, 104
        %v1069 = vpop.permute.xlu0 %1068
        %1070 = vrot.lane.b32.xlu0 %v866, 72
        %v1071 = vpop.permute.xlu0 %1070
        %v1073 = vsel %vm870, %v1069, 0
        %v1076 = vsel %vm870, %v1071, 0
        %1078 = vmatpush.bf16.xpose.msra.mxu0 0
        %1079 = vmatpush.bf16.xpose.msra.mxu0 0
        %1080 = vmatpush.bf16.xpose.msra.mxu0 0
        %1081 = vmatpush.bf16.xpose.msra.mxu0 0
        %1082 = vmatpush.bf16.xpose.msra.mxu0 0
        %1083 = vmatpush.bf16.xpose.msra.mxu0 0
        %1084 = vmatpush.bf16.xpose.msra.mxu0 0
        %1085 = vmatpush.bf16.xpose.msra.mxu0 %v1076
        %1086 = vmatmul.bf16.gmra.mxu0 %v1073
        %v1087 = vpop.f32.mrf.mxu0
        %v1088 = vadd.f32 0.0, %v1087
        %v1089 = vpop.f32.mrf.mxu0
        %v1090 = vadd.f32 0.0, %v1089
        %1091 = vdwg.mxu0
        %v1092 = vsel %vm493, %v1088, -inf
        %1093 = vmax.xlane.f32.xlu0 %v1092
        %v1094 = vpop.xlane.xlu0 %1093
        %v1095 = vsel %vm493, %v1090, -inf
        %1096 = vmax.xlane.f32.xlu0 %v1095
        %v1097 = vpop.xlane.xlu0 %1096
        %v1098 = vsub.f32 %v1088, %v1094
        %v1099 = vsub.f32 %v1090, %v1097
        %v1100 = vmul.f32 %v1098, 1.442695
        %v1101 = vpow.pop %v1100
        %v1102 = vmul.f32 %v1099, 1.442695
        %v1103 = vpow.pop %v1102
        %v1104 = vsel %vm493, %v1101, 0.0
        %1105 = vadd.xlane.f32.xlu0 %v1104
        %v1106 = vpop.xlane.xlu0 %1105
        %v1107 = vsel %vm493, %v1103, 0.0
        %1108 = vadd.xlane.f32.xlu0 %v1107
        %v1109 = vpop.xlane.xlu0 %1108
        %v1110 = vrcp.pop %v1106
        %v1111 = vrcp.pop %v1109
        %v1112 = vmul.f32 %v1101, %v1110
        %v1113 = vmul.f32 %v1103, %v1111
        %v1114 = vpack.c.bf16 %v1113, %v1112
        %1115 = vrot.lane.b32.xlu0 %v866, 40
        %v1116 = vpop.permute.xlu0 %1115
        %v1119 = vsel %vm493, %v1114, 0
        %1121 = vmatpush.bf16.msra.mxu0 0
        %1122 = vmatpush.bf16.msra.mxu0 0
        %1123 = vmatpush.bf16.msra.mxu0 0
        %1124 = vmatpush.bf16.msra.mxu0 0
        %1125 = vmatpush.bf16.msra.mxu0 0
        %1126 = vmatpush.bf16.msra.mxu0 0
        %1127 = vmatpush.bf16.msra.mxu0 0
        %1128 = vmatpush.bf16.msra.mxu0 %v1116
        %1129 = vmatmul.bf16.gmra.mxu0 %v1119
        %v1130 = vpop.f32.mrf.mxu0
        %v1131 = vadd.f32 0.0, %v1130
        %v1132 = vpop.f32.mrf.mxu0
        %v1133 = vadd.f32 0.0, %v1132
        %1134 = vdwg.mxu0
        %1137 = vrot.lane.b32.xlu0 %v997, 8
        %v1138 = vpop.permute.xlu0 %1137
        %1139 = vrot.lane.b32.xlu0 %v999, 8
        %v1140 = vpop.permute.xlu0 %1139
        %1145 = vrot.lane.b32.xlu0 %v1064, 16
        %v1146 = vpop.permute.xlu0 %1145
        %1147 = vrot.lane.b32.xlu0 %v1066, 16
        %v1148 = vpop.permute.xlu0 %1147
        %1153 = vrot.lane.b32.xlu0 %v1131, 24
        %v1154 = vpop.permute.xlu0 %1153
        %1155 = vrot.lane.b32.xlu0 %v1133, 24
        %v1156 = vpop.permute.xlu0 %1155
        %v1159 = vsel %vm870, %v930, %v1138
        %v1160 = vsel %vm870, %v932, %v1140
        %v1161 = vsel %vm493, %v1159, %v1146
        %v1162 = vsel %vm493, %v1160, %v1148
        %vm1163 = vcmask 195584
        %v1164 = vsel %vm1163, %v1161, %v1154
        %v1165 = vsel %vm1163, %v1162, %v1156
        %v1166 = vpack.c.bf16 %v864, %v862
        %1168 = vrot.lane.b32.xlu0 %v1166, 96
        %v1169 = vpop.permute.xlu0 %1168
        %v1171 = vsel %vm870, %v1166, 0
        %v1174 = vsel %vm870, %v1169, 0
        %1176 = vmatpush.bf16.xpose.msra.mxu0 0
        %1177 = vmatpush.bf16.xpose.msra.mxu0 0
        %1178 = vmatpush.bf16.xpose.msra.mxu0 0
        %1179 = vmatpush.bf16.xpose.msra.mxu0 0
        %1180 = vmatpush.bf16.xpose.msra.mxu0 0
        %1181 = vmatpush.bf16.xpose.msra.mxu0 0
        %1182 = vmatpush.bf16.xpose.msra.mxu0 0
        %1183 = vmatpush.bf16.xpose.msra.mxu0 %v1174
        %1184 = vmatmul.bf16.gmra.mxu0 %v1171
        %v1185 = vpop.f32.mrf.mxu0
        %v1186 = vadd.f32 0.0, %v1185
        %v1187 = vpop.f32.mrf.mxu0
        %v1188 = vadd.f32 0.0, %v1187
        %1189 = vdwg.mxu0
        %v1190 = vsel %vm493, %v1186, -inf
        %1191 = vmax.xlane.f32.xlu0 %v1190
        %v1192 = vpop.xlane.xlu0 %1191
        %v1193 = vsel %vm493, %v1188, -inf
        %1194 = vmax.xlane.f32.xlu0 %v1193
        %v1195 = vpop.xlane.xlu0 %1194
        %v1196 = vsub.f32 %v1186, %v1192
        %v1197 = vsub.f32 %v1188, %v1195
        %v1198 = vmul.f32 %v1196, 1.442695
        %v1199 = vpow.pop %v1198
        %v1200 = vmul.f32 %v1197, 1.442695
        %v1201 = vpow.pop %v1200
        %v1202 = vsel %vm493, %v1199, 0.0
        %1203 = vadd.xlane.f32.xlu0 %v1202
        %v1204 = vpop.xlane.xlu0 %1203
        %v1205 = vsel %vm493, %v1201, 0.0
        %1206 = vadd.xlane.f32.xlu0 %v1205
        %v1207 = vpop.xlane.xlu0 %1206
        %v1208 = vrcp.pop %v1204
        %v1209 = vrcp.pop %v1207
        %v1210 = vmul.f32 %v1199, %v1208
        %v1211 = vmul.f32 %v1201, %v1209
        %v1212 = vpack.c.bf16 %v1211, %v1210
        %1213 = vrot.lane.b32.xlu0 %v1166, 64
        %v1214 = vpop.permute.xlu0 %1213
        %v1217 = vsel %vm493, %v1212, 0
        %1219 = vmatpush.bf16.msra.mxu0 0
        %1220 = vmatpush.bf16.msra.mxu0 0
        %1221 = vmatpush.bf16.msra.mxu0 0
        %1222 = vmatpush.bf16.msra.mxu0 0
        %1223 = vmatpush.bf16.msra.mxu0 0
        %1224 = vmatpush.bf16.msra.mxu0 0
        %1225 = vmatpush.bf16.msra.mxu0 0
        %1226 = vmatpush.bf16.msra.mxu0 %v1214
        %1227 = vmatmul.bf16.gmra.mxu0 %v1217
        %v1228 = vpop.f32.mrf.mxu0
        %v1229 = vadd.f32 0.0, %v1228
        %v1230 = vpop.f32.mrf.mxu0
        %v1231 = vadd.f32 0.0, %v1230
        %1232 = vdwg.mxu0
        %1233 = vrot.lane.b32.xlu0 %v1166, 120
        %v1234 = vpop.permute.xlu0 %1233
        %1235 = vrot.lane.b32.xlu0 %v1166, 88
        %v1236 = vpop.permute.xlu0 %1235
        %v1238 = vsel %vm870, %v1234, 0
        %v1241 = vsel %vm870, %v1236, 0
        %1243 = vmatpush.bf16.xpose.msra.mxu0 0
        %1244 = vmatpush.bf16.xpose.msra.mxu0 0
        %1245 = vmatpush.bf16.xpose.msra.mxu0 0
        %1246 = vmatpush.bf16.xpose.msra.mxu0 0
        %1247 = vmatpush.bf16.xpose.msra.mxu0 0
        %1248 = vmatpush.bf16.xpose.msra.mxu0 0
        %1249 = vmatpush.bf16.xpose.msra.mxu0 0
        %1250 = vmatpush.bf16.xpose.msra.mxu0 %v1241
        %1251 = vmatmul.bf16.gmra.mxu0 %v1238
        %v1252 = vpop.f32.mrf.mxu0
        %v1253 = vadd.f32 0.0, %v1252
        %v1254 = vpop.f32.mrf.mxu0
        %v1255 = vadd.f32 0.0, %v1254
        %1256 = vdwg.mxu0
        %v1257 = vsel %vm493, %v1253, -inf
        %1258 = vmax.xlane.f32.xlu0 %v1257
        %v1259 = vpop.xlane.xlu0 %1258
        %v1260 = vsel %vm493, %v1255, -inf
        %1261 = vmax.xlane.f32.xlu0 %v1260
        %v1262 = vpop.xlane.xlu0 %1261
        %v1263 = vsub.f32 %v1253, %v1259
        %v1264 = vsub.f32 %v1255, %v1262
        %v1265 = vmul.f32 %v1263, 1.442695
        %v1266 = vpow.pop %v1265
        %v1267 = vmul.f32 %v1264, 1.442695
        %v1268 = vpow.pop %v1267
        %v1269 = vsel %vm493, %v1266, 0.0
        %1270 = vadd.xlane.f32.xlu0 %v1269
        %v1271 = vpop.xlane.xlu0 %1270
        %v1272 = vsel %vm493, %v1268, 0.0
        %1273 = vadd.xlane.f32.xlu0 %v1272
        %v1274 = vpop.xlane.xlu0 %1273
        %v1275 = vrcp.pop %v1271
        %v1276 = vrcp.pop %v1274
        %v1277 = vmul.f32 %v1266, %v1275
        %v1278 = vmul.f32 %v1268, %v1276
        %v1279 = vpack.c.bf16 %v1278, %v1277
        %1280 = vrot.lane.b32.xlu0 %v1166, 56
        %v1281 = vpop.permute.xlu0 %1280
        %v1284 = vsel %vm493, %v1279, 0
        %1286 = vmatpush.bf16.msra.mxu0 0
        %1287 = vmatpush.bf16.msra.mxu0 0
        %1288 = vmatpush.bf16.msra.mxu0 0
        %1289 = vmatpush.bf16.msra.mxu0 0
        %1290 = vmatpush.bf16.msra.mxu0 0
        %1291 = vmatpush.bf16.msra.mxu0 0
        %1292 = vmatpush.bf16.msra.mxu0 0
        %1293 = vmatpush.bf16.msra.mxu0 %v1281
        %1294 = vmatmul.bf16.gmra.mxu0 %v1284
        %v1295 = vpop.f32.mrf.mxu0
        %v1296 = vadd.f32 0.0, %v1295
        %v1297 = vpop.f32.mrf.mxu0
        %v1298 = vadd.f32 0.0, %v1297
        %1299 = vdwg.mxu0
        %1300 = vrot.lane.b32.xlu0 %v1166, 112
        %v1301 = vpop.permute.xlu0 %1300
        %1302 = vrot.lane.b32.xlu0 %v1166, 80
        %v1303 = vpop.permute.xlu0 %1302
        %v1305 = vsel %vm870, %v1301, 0
        %v1308 = vsel %vm870, %v1303, 0
        %1310 = vmatpush.bf16.xpose.msra.mxu0 0
        %1311 = vmatpush.bf16.xpose.msra.mxu0 0
        %1312 = vmatpush.bf16.xpose.msra.mxu0 0
        %1313 = vmatpush.bf16.xpose.msra.mxu0 0
        %1314 = vmatpush.bf16.xpose.msra.mxu0 0
        %1315 = vmatpush.bf16.xpose.msra.mxu0 0
        %1316 = vmatpush.bf16.xpose.msra.mxu0 0
        %1317 = vmatpush.bf16.xpose.msra.mxu0 %v1308
        %1318 = vmatmul.bf16.gmra.mxu0 %v1305
        %v1319 = vpop.f32.mrf.mxu0
        %v1320 = vadd.f32 0.0, %v1319
        %v1321 = vpop.f32.mrf.mxu0
        %v1322 = vadd.f32 0.0, %v1321
        %1323 = vdwg.mxu0
        %v1324 = vsel %vm493, %v1320, -inf
        %1325 = vmax.xlane.f32.xlu0 %v1324
        %v1326 = vpop.xlane.xlu0 %1325
        %v1327 = vsel %vm493, %v1322, -inf
        %1328 = vmax.xlane.f32.xlu0 %v1327
        %v1329 = vpop.xlane.xlu0 %1328
        %v1330 = vsub.f32 %v1320, %v1326
        %v1331 = vsub.f32 %v1322, %v1329
        %v1332 = vmul.f32 %v1330, 1.442695
        %v1333 = vpow.pop %v1332
        %v1334 = vmul.f32 %v1331, 1.442695
        %v1335 = vpow.pop %v1334
        %v1336 = vsel %vm493, %v1333, 0.0
        %1337 = vadd.xlane.f32.xlu0 %v1336
        %v1338 = vpop.xlane.xlu0 %1337
        %v1339 = vsel %vm493, %v1335, 0.0
        %1340 = vadd.xlane.f32.xlu0 %v1339
        %v1341 = vpop.xlane.xlu0 %1340
        %v1342 = vrcp.pop %v1338
        %v1343 = vrcp.pop %v1341
        %v1344 = vmul.f32 %v1333, %v1342
        %v1345 = vmul.f32 %v1335, %v1343
        %v1346 = vpack.c.bf16 %v1345, %v1344
        %1347 = vrot.lane.b32.xlu0 %v1166, 48
        %v1348 = vpop.permute.xlu0 %1347
        %v1351 = vsel %vm493, %v1346, 0
        %1353 = vmatpush.bf16.msra.mxu0 0
        %1354 = vmatpush.bf16.msra.mxu0 0
        %1355 = vmatpush.bf16.msra.mxu0 0
        %1356 = vmatpush.bf16.msra.mxu0 0
        %1357 = vmatpush.bf16.msra.mxu0 0
        %1358 = vmatpush.bf16.msra.mxu0 0
        %1359 = vmatpush.bf16.msra.mxu0 0
        %1360 = vmatpush.bf16.msra.mxu0 %v1348
        %1361 = vmatmul.bf16.gmra.mxu0 %v1351
        %v1362 = vpop.f32.mrf.mxu0
        %v1363 = vadd.f32 0.0, %v1362
        %v1364 = vpop.f32.mrf.mxu0
        %v1365 = vadd.f32 0.0, %v1364
        %1366 = vdwg.mxu0
        %1367 = vrot.lane.b32.xlu0 %v1166, 104
        %v1368 = vpop.permute.xlu0 %1367
        %1369 = vrot.lane.b32.xlu0 %v1166, 72
        %v1370 = vpop.permute.xlu0 %1369
        %v1372 = vsel %vm870, %v1368, 0
        %v1375 = vsel %vm870, %v1370, 0
        %1377 = vmatpush.bf16.xpose.msra.mxu0 0
        %1378 = vmatpush.bf16.xpose.msra.mxu0 0
        %1379 = vmatpush.bf16.xpose.msra.mxu0 0
        %1380 = vmatpush.bf16.xpose.msra.mxu0 0
        %1381 = vmatpush.bf16.xpose.msra.mxu0 0
        %1382 = vmatpush.bf16.xpose.msra.mxu0 0
        %1383 = vmatpush.bf16.xpose.msra.mxu0 0
        %1384 = vmatpush.bf16.xpose.msra.mxu0 %v1375
        %1385 = vmatmul.bf16.gmra.mxu0 %v1372
        %v1386 = vpop.f32.mrf.mxu0
        %v1387 = vadd.f32 0.0, %v1386
        %v1388 = vpop.f32.mrf.mxu0
        %v1389 = vadd.f32 0.0, %v1388
        %1390 = vdwg.mxu0
        %v1391 = vsel %vm493, %v1387, -inf
        %1392 = vmax.xlane.f32.xlu0 %v1391
        %v1393 = vpop.xlane.xlu0 %1392
        %v1394 = vsel %vm493, %v1389, -inf
        %1395 = vmax.xlane.f32.xlu0 %v1394
        %v1396 = vpop.xlane.xlu0 %1395
        %v1397 = vsub.f32 %v1387, %v1393
        %v1398 = vsub.f32 %v1389, %v1396
        %v1399 = vmul.f32 %v1397, 1.442695
        %v1400 = vpow.pop %v1399
        %v1401 = vmul.f32 %v1398, 1.442695
        %v1402 = vpow.pop %v1401
        %v1403 = vsel %vm493, %v1400, 0.0
        %1404 = vadd.xlane.f32.xlu0 %v1403
        %v1405 = vpop.xlane.xlu0 %1404
        %v1406 = vsel %vm493, %v1402, 0.0
        %1407 = vadd.xlane.f32.xlu0 %v1406
        %v1408 = vpop.xlane.xlu0 %1407
        %v1409 = vrcp.pop %v1405
        %v1410 = vrcp.pop %v1408
        %v1411 = vmul.f32 %v1400, %v1409
        %v1412 = vmul.f32 %v1402, %v1410
        %v1413 = vpack.c.bf16 %v1412, %v1411
        %1414 = vrot.lane.b32.xlu0 %v1166, 40
        %v1415 = vpop.permute.xlu0 %1414
        %v1418 = vsel %vm493, %v1413, 0
        %1420 = vmatpush.bf16.msra.mxu0 0
        %1421 = vmatpush.bf16.msra.mxu0 0
        %1422 = vmatpush.bf16.msra.mxu0 0
        %1423 = vmatpush.bf16.msra.mxu0 0
        %1424 = vmatpush.bf16.msra.mxu0 0
        %1425 = vmatpush.bf16.msra.mxu0 0
        %1426 = vmatpush.bf16.msra.mxu0 0
        %1427 = vmatpush.bf16.msra.mxu0 %v1415
        %1428 = vmatmul.bf16.gmra.mxu0 %v1418
        %v1429 = vpop.f32.mrf.mxu0
        %v1430 = vadd.f32 0.0, %v1429
        %v1431 = vpop.f32.mrf.mxu0
        %v1432 = vadd.f32 0.0, %v1431
        %1433 = vdwg.mxu0
        %1436 = vrot.lane.b32.xlu0 %v1296, 8
        %v1437 = vpop.permute.xlu0 %1436
        %1438 = vrot.lane.b32.xlu0 %v1298, 8
        %v1439 = vpop.permute.xlu0 %1438
        %1444 = vrot.lane.b32.xlu0 %v1363, 16
        %v1445 = vpop.permute.xlu0 %1444
        %1446 = vrot.lane.b32.xlu0 %v1365, 16
        %v1447 = vpop.permute.xlu0 %1446
        %1452 = vrot.lane.b32.xlu0 %v1430, 24
        %v1453 = vpop.permute.xlu0 %1452
        %1454 = vrot.lane.b32.xlu0 %v1432, 24
        %v1455 = vpop.permute.xlu0 %1454
        %v1458 = vsel %vm870, %v1229, %v1437
        %v1459 = vsel %vm870, %v1231, %v1439
        %v1460 = vsel %vm493, %v1458, %v1445
        %v1461 = vsel %vm493, %v1459, %v1447
        %v1462 = vsel %vm1163, %v1460, %v1453
        %v1463 = vsel %vm1163, %v1461, %v1455
        %v1464 = vpack.c.bf16 %v1165, %v1164
        %v1465 = vpack.c.bf16 %v1463, %v1462
        %v1466 = vperm.slane %v532, 0
        %v1471 = vunpack.c.l.b16 %v528
        %v1472 = vunpack.c.l.b16 %v529
        %v1473 = vunpack.c.l.b16 %v530
        %v1474 = vunpack.c.l.b16 %v531
        %v1475 = vpack.c.b16 %v1472, %v1471
        %v1476 = vpack.c.b16 %v1474, %v1473
        %v1480 = vsel %vm840, %v1464, 0
        %v1483 = vsel %vm840, %v1465, 0
        %1485 = vmatpush.bf16.msra.mxu0 0
        %1486 = vmatpush.bf16.msra.mxu0 0
        %1487 = vmatpush.bf16.msra.mxu0 0
        %1488 = vmatpush.bf16.msra.mxu0 0
        %1489 = vmatpush.bf16.msra.mxu0 0
        %1490 = vmatpush.bf16.msra.mxu0 0
        %1491 = vmatpush.bf16.msra.mxu0 %v1476
        %1492 = vmatpush.bf16.msra.mxu0 %v1475
        %1493 = vmatmul.bf16.gmra.mxu0 %v1480
        %v1494 = vpop.f32.mrf.mxu0
        %v1495 = vadd.f32 %v1466, %v1494
        %v1496 = vpop.f32.mrf.mxu0
        %v1497 = vadd.f32 %v1466, %v1496
        %1498 = vmatmul.bf16.gmra.mxu0 %v1483
        %v1499 = vpop.f32.mrf.mxu0
        %v1500 = vadd.f32 %v1466, %v1499
        %v1501 = vpop.f32.mrf.mxu0
        %v1502 = vadd.f32 %v1466, %v1501
        %1503 = vdwg.mxu0
        %v1504 = vadd.f32 %v519, %v1495
        %v1505 = vadd.f32 %v520, %v1497
        %v1506 = vadd.f32 %v521, %v1500
        %v1507 = vadd.f32 %v522, %v1502
        %v1508 = vsel %vm840, %v1504, 0.0
        %1509 = vadd.xlane.f32.xlu0 %v1508
        %v1510 = vpop.xlane.xlu0 %1509
        %v1511 = vsel %vm840, %v1505, 0.0
        %1512 = vadd.xlane.f32.xlu0 %v1511
        %v1513 = vpop.xlane.xlu0 %1512
        %v1514 = vsel %vm840, %v1506, 0.0
        %1515 = vadd.xlane.f32.xlu0 %v1514
        %v1516 = vpop.xlane.xlu0 %1515
        %v1517 = vsel %vm840, %v1507, 0.0
        %1518 = vadd.xlane.f32.xlu0 %v1517
        %v1519 = vpop.xlane.xlu0 %1518
        %v1520 = vrcp.pop 32.0
        %v1521 = vmul.f32 32.0, %v1520
        %v1522 = vsub.f32 1.0, %v1521
        %v1523 = vmul.f32 %v1520, %v1522
        %v1524 = vadd.f32 %v1520, %v1523
        %vm1525 = vweird.f32 %v1520
        %v1526 = vsel %vm1525, %v1520, %v1524
        %v1527 = vmul.f32 %v1510, %v1526
        %v1528 = vmul.f32 %v1513, %v1526
        %v1529 = vmul.f32 %v1516, %v1526
        %v1530 = vmul.f32 %v1519, %v1526
        %v1531 = vsub.f32 %v1504, %v1527
        %v1532 = vsub.f32 %v1505, %v1528
        %v1533 = vsub.f32 %v1506, %v1529
        %v1534 = vsub.f32 %v1507, %v1530
        %v1535 = vmul.f32 %v1531, %v1531
        %v1536 = vmul.f32 %v1532, %v1532
        %v1537 = vmul.f32 %v1533, %v1533
        %v1538 = vmul.f32 %v1534, %v1534
        %v1539 = vsel %vm840, %v1535, 0.0
        %1540 = vadd.xlane.f32.xlu0 %v1539
        %v1541 = vpop.xlane.xlu0 %1540
        %v1542 = vsel %vm840, %v1536, 0.0
        %1543 = vadd.xlane.f32.xlu0 %v1542
        %v1544 = vpop.xlane.xlu0 %1543
        %v1545 = vsel %vm840, %v1537, 0.0
        %1546 = vadd.xlane.f32.xlu0 %v1545
        %v1547 = vpop.xlane.xlu0 %1546
        %v1548 = vsel %vm840, %v1538, 0.0
        %1549 = vadd.xlane.f32.xlu0 %v1548
        %v1550 = vpop.xlane.xlu0 %1549
        %v1551 = vmul.f32 %v1541, %v1526
        %v1552 = vmul.f32 %v1544, %v1526
        %v1553 = vmul.f32 %v1547, %v1526
        %v1554 = vmul.f32 %v1550, %v1526
        %v1555 = vadd.f32 %v1551, 1e-05
        %v1556 = vadd.f32 %v1552, 1e-05
        %v1557 = vadd.f32 %v1553, 1e-05
        %v1558 = vadd.f32 %v1554, 1e-05
        %v1559 = vrsqrt.pop %v1555
        %v1560 = vmul.f32 %v1559, %v1555
        %v1561 = vmul.f32 %v1560, %v1559
        %v1562 = vmul.f32 0.5, %v1561
        %v1563 = vsub.f32 1.5, %v1562
        %v1564 = vmul.f32 %v1559, %v1563
        %vm1565 = vweird.f32 %v1555
        %vm1566 = vweird.f32 %v1559
        %vm1567 = vmor %vm1565, %vm1566
        %v1568 = vsel %vm1567, %v1559, %v1564
        %v1569 = vrsqrt.pop %v1556
        %v1570 = vmul.f32 %v1569, %v1556
        %v1571 = vmul.f32 %v1570, %v1569
        %v1572 = vmul.f32 0.5, %v1571
        %v1573 = vsub.f32 1.5, %v1572
        %v1574 = vmul.f32 %v1569, %v1573
        %vm1575 = vweird.f32 %v1556
        %vm1576 = vweird.f32 %v1569
        %vm1577 = vmor %vm1575, %vm1576
        %v1578 = vsel %vm1577, %v1569, %v1574
        %v1579 = vrsqrt.pop %v1557
        %v1580 = vmul.f32 %v1579, %v1557
        %v1581 = vmul.f32 %v1580, %v1579
        %v1582 = vmul.f32 0.5, %v1581
        %v1583 = vsub.f32 1.5, %v1582
        %v1584 = vmul.f32 %v1579, %v1583
        %vm1585 = vweird.f32 %v1557
        %vm1586 = vweird.f32 %v1579
        %vm1587 = vmor %vm1585, %vm1586
        %v1588 = vsel %vm1587, %v1579, %v1584
        %v1589 = vrsqrt.pop %v1558
        %v1590 = vmul.f32 %v1589, %v1558
        %v1591 = vmul.f32 %v1590, %v1589
        %v1592 = vmul.f32 0.5, %v1591
        %v1593 = vsub.f32 1.5, %v1592
        %v1594 = vmul.f32 %v1589, %v1593
        %vm1595 = vweird.f32 %v1558
        %vm1596 = vweird.f32 %v1589
        %vm1597 = vmor %vm1595, %vm1596
        %v1598 = vsel %vm1597, %v1589, %v1594
        %v1599 = vmul.f32 %v1531, %v1568
        %v1600 = vmul.f32 %v1532, %v1578
        %v1601 = vmul.f32 %v1533, %v1588
        %v1602 = vmul.f32 %v1534, %v1598
        %v1603 = vperm.slane %v532, 1
        %v1604 = vmul.f32 %v1599, %v1603
        %v1605 = vmul.f32 %v1600, %v1603
        %v1606 = vmul.f32 %v1601, %v1603
        %v1607 = vmul.f32 %v1602, %v1603
        %v1608 = vperm.slane %v532, 2
        %v1609 = vadd.f32 %v1604, %v1608
        %v1610 = vadd.f32 %v1605, %v1608
        %v1611 = vadd.f32 %v1606, %v1608
        %v1612 = vadd.f32 %v1607, %v1608
        %v1613 = vpack.c.bf16 %v1610, %v1609
        %v1614 = vpack.c.bf16 %v1612, %v1611
        %v1617 = vperm.slane %v565, 0
        %v1618 = vperm.slane %v565, 1
        %v1619 = vperm.slane %v565, 2
        %v1620 = vperm.slane %v565, 3
        %v1621 = vperm.slane %v565, 4
        %v1622 = vperm.slane %v565, 5
        %v1623 = vperm.slane %v565, 6
        %v1624 = vperm.slane %v565, 7
        %v1625 = vperm.slane %v566, 0
        %v1626 = vperm.slane %v566, 1
        %v1627 = vperm.slane %v566, 2
        %v1628 = vperm.slane %v566, 3
        %v1629 = vperm.slane %v566, 4
        %v1630 = vperm.slane %v566, 5
        %v1631 = vperm.slane %v566, 6
        %v1632 = vperm.slane %v566, 7
        %v1681 = vunpack.c.l.b16 %v533
        %v1682 = vunpack.c.h.b16 %v533
        %v1683 = vunpack.c.l.b16 %v534
        %v1684 = vunpack.c.h.b16 %v534
        %v1685 = vunpack.c.l.b16 %v535
        %v1686 = vunpack.c.h.b16 %v535
        %v1687 = vunpack.c.l.b16 %v536
        %v1688 = vunpack.c.h.b16 %v536
        %v1689 = vunpack.c.l.b16 %v537
        %v1690 = vunpack.c.h.b16 %v537
        %v1691 = vunpack.c.l.b16 %v538
        %v1692 = vunpack.c.h.b16 %v538
        %v1693 = vunpack.c.l.b16 %v539
        %v1694 = vunpack.c.h.b16 %v539
        %v1695 = vunpack.c.l.b16 %v540
        %v1696 = vunpack.c.h.b16 %v540
        %v1697 = vunpack.c.l.b16 %v541
        %v1698 = vunpack.c.h.b16 %v541
        %v1699 = vunpack.c.l.b16 %v542
        %v1700 = vunpack.c.h.b16 %v542
        %v1701 = vunpack.c.l.b16 %v543
        %v1702 = vunpack.c.h.b16 %v543
        %v1703 = vunpack.c.l.b16 %v544
        %v1704 = vunpack.c.h.b16 %v544
        %v1705 = vunpack.c.l.b16 %v545
        %v1706 = vunpack.c.h.b16 %v545
        %v1707 = vunpack.c.l.b16 %v546
        %v1708 = vunpack.c.h.b16 %v546
        %v1709 = vunpack.c.l.b16 %v547
        %v1710 = vunpack.c.h.b16 %v547
        %v1711 = vunpack.c.l.b16 %v548
        %v1712 = vunpack.c.h.b16 %v548
        %v1713 = vunpack.c.l.b16 %v549
        %v1714 = vunpack.c.h.b16 %v549
        %v1715 = vunpack.c.l.b16 %v550
        %v1716 = vunpack.c.h.b16 %v550
        %v1717 = vunpack.c.l.b16 %v551
        %v1718 = vunpack.c.h.b16 %v551
        %v1719 = vunpack.c.l.b16 %v552
        %v1720 = vunpack.c.h.b16 %v552
        %v1721 = vunpack.c.l.b16 %v553
        %v1722 = vunpack.c.h.b16 %v553
        %v1723 = vunpack.c.l.b16 %v554
        %v1724 = vunpack.c.h.b16 %v554
        %v1725 = vunpack.c.l.b16 %v555
        %v1726 = vunpack.c.h.b16 %v555
        %v1727 = vunpack.c.l.b16 %v556
        %v1728 = vunpack.c.h.b16 %v556
        %v1729 = vunpack.c.l.b16 %v557
        %v1730 = vunpack.c.h.b16 %v557
        %v1731 = vunpack.c.l.b16 %v558
        %v1732 = vunpack.c.h.b16 %v558
        %v1733 = vunpack.c.l.b16 %v559
        %v1734 = vunpack.c.h.b16 %v559
        %v1735 = vunpack.c.l.b16 %v560
        %v1736 = vunpack.c.h.b16 %v560
        %v1737 = vunpack.c.l.b16 %v561
        %v1738 = vunpack.c.h.b16 %v561
        %v1739 = vunpack.c.l.b16 %v562
        %v1740 = vunpack.c.h.b16 %v562
        %v1741 = vunpack.c.l.b16 %v563
        %v1742 = vunpack.c.h.b16 %v563
        %v1743 = vunpack.c.l.b16 %v564
        %v1744 = vunpack.c.h.b16 %v564
        %v1745 = vpack.c.b16 %v1697, %v1681
        %v1746 = vpack.c.b16 %v1698, %v1682
        %v1747 = vpack.c.b16 %v1699, %v1683
        %v1748 = vpack.c.b16 %v1700, %v1684
        %v1749 = vpack.c.b16 %v1701, %v1685
        %v1750 = vpack.c.b16 %v1702, %v1686
        %v1751 = vpack.c.b16 %v1703, %v1687
        %v1752 = vpack.c.b16 %v1704, %v1688
        %v1753 = vpack.c.b16 %v1705, %v1689
        %v1754 = vpack.c.b16 %v1706, %v1690
        %v1755 = vpack.c.b16 %v1707, %v1691
        %v1756 = vpack.c.b16 %v1708, %v1692
        %v1757 = vpack.c.b16 %v1709, %v1693
        %v1758 = vpack.c.b16 %v1710, %v1694
        %v1759 = vpack.c.b16 %v1711, %v1695
        %v1760 = vpack.c.b16 %v1712, %v1696
        %v1761 = vpack.c.b16 %v1729, %v1713
        %v1762 = vpack.c.b16 %v1730, %v1714
        %v1763 = vpack.c.b16 %v1731, %v1715
        %v1764 = vpack.c.b16 %v1732, %v1716
        %v1765 = vpack.c.b16 %v1733, %v1717
        %v1766 = vpack.c.b16 %v1734, %v1718
        %v1767 = vpack.c.b16 %v1735, %v1719
        %v1768 = vpack.c.b16 %v1736, %v1720
        %v1769 = vpack.c.b16 %v1737, %v1721
        %v1770 = vpack.c.b16 %v1738, %v1722
        %v1771 = vpack.c.b16 %v1739, %v1723
        %v1772 = vpack.c.b16 %v1740, %v1724
        %v1773 = vpack.c.b16 %v1741, %v1725
        %v1774 = vpack.c.b16 %v1742, %v1726
        %v1775 = vpack.c.b16 %v1743, %v1727
        %v1776 = vpack.c.b16 %v1744, %v1728
        %v1810 = vsel %vm840, %v1613, 0
        %v1813 = vsel %vm840, %v1614, 0
        %1815 = vmatpush.bf16.msra.mxu0 0
        %1816 = vmatpush.bf16.msra.mxu0 0
        %1817 = vmatpush.bf16.msra.mxu0 0
        %1818 = vmatpush.bf16.msra.mxu0 0
        %1819 = vmatpush.bf16.msra.mxu0 0
        %1820 = vmatpush.bf16.msra.mxu0 0
        %1821 = vmatpush.bf16.msra.mxu0 %v1761
        %1822 = vmatpush.bf16.msra.mxu0 %v1745
        %1823 = vmatmul.bf16.gmra.mxu0 %v1810
        %v1824 = vpop.f32.mrf.mxu0
        %v1825 = vadd.f32 %v1617, %v1824
        %v1826 = vpop.f32.mrf.mxu0
        %v1827 = vadd.f32 %v1617, %v1826
        %1828 = vmatmul.bf16.gmra.mxu0 %v1813
        %v1829 = vpop.f32.mrf.mxu0
        %v1830 = vadd.f32 %v1617, %v1829
        %v1831 = vpop.f32.mrf.mxu0
        %v1832 = vadd.f32 %v1617, %v1831
        %1833 = vdwg.mxu0
        %1834 = vmatpush.bf16.msra.mxu0 0
        %1835 = vmatpush.bf16.msra.mxu0 0
        %1836 = vmatpush.bf16.msra.mxu0 0
        %1837 = vmatpush.bf16.msra.mxu0 0
        %1838 = vmatpush.bf16.msra.mxu0 0
        %1839 = vmatpush.bf16.msra.mxu0 0
        %1840 = vmatpush.bf16.msra.mxu0 %v1762
        %1841 = vmatpush.bf16.msra.mxu0 %v1746
        %1842 = vmatmul.bf16.gmra.mxu0 %v1810
        %v1843 = vpop.f32.mrf.mxu0
        %v1844 = vadd.f32 %v1618, %v1843
        %v1845 = vpop.f32.mrf.mxu0
        %v1846 = vadd.f32 %v1618, %v1845
        %1847 = vmatmul.bf16.gmra.mxu0 %v1813
        %v1848 = vpop.f32.mrf.mxu0
        %v1849 = vadd.f32 %v1618, %v1848
        %v1850 = vpop.f32.mrf.mxu0
        %v1851 = vadd.f32 %v1618, %v1850
        %1852 = vdwg.mxu0
        %1853 = vmatpush.bf16.msra.mxu0 0
        %1854 = vmatpush.bf16.msra.mxu0 0
        %1855 = vmatpush.bf16.msra.mxu0 0
        %1856 = vmatpush.bf16.msra.mxu0 0
        %1857 = vmatpush.bf16.msra.mxu0 0
        %1858 = vmatpush.bf16.msra.mxu0 0
        %1859 = vmatpush.bf16.msra.mxu0 %v1763
        %1860 = vmatpush.bf16.msra.mxu0 %v1747
        %1861 = vmatmul.bf16.gmra.mxu0 %v1810
        %v1862 = vpop.f32.mrf.mxu0
        %v1863 = vadd.f32 %v1619, %v1862
        %v1864 = vpop.f32.mrf.mxu0
        %v1865 = vadd.f32 %v1619, %v1864
        %1866 = vmatmul.bf16.gmra.mxu0 %v1813
        %v1867 = vpop.f32.mrf.mxu0
        %v1868 = vadd.f32 %v1619, %v1867
        %v1869 = vpop.f32.mrf.mxu0
        %v1870 = vadd.f32 %v1619, %v1869
        %1871 = vdwg.mxu0
        %1872 = vmatpush.bf16.msra.mxu0 0
        %1873 = vmatpush.bf16.msra.mxu0 0
        %1874 = vmatpush.bf16.msra.mxu0 0
        %1875 = vmatpush.bf16.msra.mxu0 0
        %1876 = vmatpush.bf16.msra.mxu0 0
        %1877 = vmatpush.bf16.msra.mxu0 0
        %1878 = vmatpush.bf16.msra.mxu0 %v1764
        %1879 = vmatpush.bf16.msra.mxu0 %v1748
        %1880 = vmatmul.bf16.gmra.mxu0 %v1810
        %v1881 = vpop.f32.mrf.mxu0
        %v1882 = vadd.f32 %v1620, %v1881
        %v1883 = vpop.f32.mrf.mxu0
        %v1884 = vadd.f32 %v1620, %v1883
        %1885 = vmatmul.bf16.gmra.mxu0 %v1813
        %v1886 = vpop.f32.mrf.mxu0
        %v1887 = vadd.f32 %v1620, %v1886
        %v1888 = vpop.f32.mrf.mxu0
        %v1889 = vadd.f32 %v1620, %v1888
        %1890 = vdwg.mxu0
        %1891 = vmatpush.bf16.msra.mxu0 0
        %1892 = vmatpush.bf16.msra.mxu0 0
        %1893 = vmatpush.bf16.msra.mxu0 0
        %1894 = vmatpush.bf16.msra.mxu0 0
        %1895 = vmatpush.bf16.msra.mxu0 0
        %1896 = vmatpush.bf16.msra.mxu0 0
        %1897 = vmatpush.bf16.msra.mxu0 %v1765
        %1898 = vmatpush.bf16.msra.mxu0 %v1749
        %1899 = vmatmul.bf16.gmra.mxu0 %v1810
        %v1900 = vpop.f32.mrf.mxu0
        %v1901 = vadd.f32 %v1621, %v1900
        %v1902 = vpop.f32.mrf.mxu0
        %v1903 = vadd.f32 %v1621, %v1902
        %1904 = vmatmul.bf16.gmra.mxu0 %v1813
        %v1905 = vpop.f32.mrf.mxu0
        %v1906 = vadd.f32 %v1621, %v1905
        %v1907 = vpop.f32.mrf.mxu0
        %v1908 = vadd.f32 %v1621, %v1907
        %1909 = vdwg.mxu0
        %1910 = vmatpush.bf16.msra.mxu0 0
        %1911 = vmatpush.bf16.msra.mxu0 0
        %1912 = vmatpush.bf16.msra.mxu0 0
        %1913 = vmatpush.bf16.msra.mxu0 0
        %1914 = vmatpush.bf16.msra.mxu0 0
        %1915 = vmatpush.bf16.msra.mxu0 0
        %1916 = vmatpush.bf16.msra.mxu0 %v1766
        %1917 = vmatpush.bf16.msra.mxu0 %v1750
        %1918 = vmatmul.bf16.gmra.mxu0 %v1810
        %v1919 = vpop.f32.mrf.mxu0
        %v1920 = vadd.f32 %v1622, %v1919
        %v1921 = vpop.f32.mrf.mxu0
        %v1922 = vadd.f32 %v1622, %v1921
        %1923 = vmatmul.bf16.gmra.mxu0 %v1813
        %v1924 = vpop.f32.mrf.mxu0
        %v1925 = vadd.f32 %v1622, %v1924
        %v1926 = vpop.f32.mrf.mxu0
        %v1927 = vadd.f32 %v1622, %v1926
        %1928 = vdwg.mxu0
        %1929 = vmatpush.bf16.msra.mxu0 0
        %1930 = vmatpush.bf16.msra.mxu0 0
        %1931 = vmatpush.bf16.msra.mxu0 0
        %1932 = vmatpush.bf16.msra.mxu0 0
        %1933 = vmatpush.bf16.msra.mxu0 0
        %1934 = vmatpush.bf16.msra.mxu0 0
        %1935 = vmatpush.bf16.msra.mxu0 %v1767
        %1936 = vmatpush.bf16.msra.mxu0 %v1751
        %1937 = vmatmul.bf16.gmra.mxu0 %v1810
        %v1938 = vpop.f32.mrf.mxu0
        %v1939 = vadd.f32 %v1623, %v1938
        %v1940 = vpop.f32.mrf.mxu0
        %v1941 = vadd.f32 %v1623, %v1940
        %1942 = vmatmul.bf16.gmra.mxu0 %v1813
        %v1943 = vpop.f32.mrf.mxu0
        %v1944 = vadd.f32 %v1623, %v1943
        %v1945 = vpop.f32.mrf.mxu0
        %v1946 = vadd.f32 %v1623, %v1945
        %1947 = vdwg.mxu0
        %1948 = vmatpush.bf16.msra.mxu0 0
        %1949 = vmatpush.bf16.msra.mxu0 0
        %1950 = vmatpush.bf16.msra.mxu0 0
        %1951 = vmatpush.bf16.msra.mxu0 0
        %1952 = vmatpush.bf16.msra.mxu0 0
        %1953 = vmatpush.bf16.msra.mxu0 0
        %1954 = vmatpush.bf16.msra.mxu0 %v1768
        %1955 = vmatpush.bf16.msra.mxu0 %v1752
        %1956 = vmatmul.bf16.gmra.mxu0 %v1810
        %v1957 = vpop.f32.mrf.mxu0
        %v1958 = vadd.f32 %v1624, %v1957
        %v1959 = vpop.f32.mrf.mxu0
        %v1960 = vadd.f32 %v1624, %v1959
        %1961 = vmatmul.bf16.gmra.mxu0 %v1813
        %v1962 = vpop.f32.mrf.mxu0
        %v1963 = vadd.f32 %v1624, %v1962
        %v1964 = vpop.f32.mrf.mxu0
        %v1965 = vadd.f32 %v1624, %v1964
        %1966 = vdwg.mxu0
        %1967 = vmatpush.bf16.msra.mxu0 0
        %1968 = vmatpush.bf16.msra.mxu0 0
        %1969 = vmatpush.bf16.msra.mxu0 0
        %1970 = vmatpush.bf16.msra.mxu0 0
        %1971 = vmatpush.bf16.msra.mxu0 0
        %1972 = vmatpush.bf16.msra.mxu0 0
        %1973 = vmatpush.bf16.msra.mxu0 %v1769
        %1974 = vmatpush.bf16.msra.mxu0 %v1753
        %1975 = vmatmul.bf16.gmra.mxu0 %v1810
        %v1976 = vpop.f32.mrf.mxu0
        %v1977 = vadd.f32 %v1625, %v1976
        %v1978 = vpop.f32.mrf.mxu0
        %v1979 = vadd.f32 %v1625, %v1978
        %1980 = vmatmul.bf16.gmra.mxu0 %v1813
        %v1981 = vpop.f32.mrf.mxu0
        %v1982 = vadd.f32 %v1625, %v1981
        %v1983 = vpop.f32.mrf.mxu0
        %v1984 = vadd.f32 %v1625, %v1983
        %1985 = vdwg.mxu0
        %1986 = vmatpush.bf16.msra.mxu0 0
        %1987 = vmatpush.bf16.msra.mxu0 0
        %1988 = vmatpush.bf16.msra.mxu0 0
        %1989 = vmatpush.bf16.msra.mxu0 0
        %1990 = vmatpush.bf16.msra.mxu0 0
        %1991 = vmatpush.bf16.msra.mxu0 0
        %1992 = vmatpush.bf16.msra.mxu0 %v1770
        %1993 = vmatpush.bf16.msra.mxu0 %v1754
        %1994 = vmatmul.bf16.gmra.mxu0 %v1810
        %v1995 = vpop.f32.mrf.mxu0
        %v1996 = vadd.f32 %v1626, %v1995
        %v1997 = vpop.f32.mrf.mxu0
        %v1998 = vadd.f32 %v1626, %v1997
        %1999 = vmatmul.bf16.gmra.mxu0 %v1813
        %v2000 = vpop.f32.mrf.mxu0
        %v2001 = vadd.f32 %v1626, %v2000
        %v2002 = vpop.f32.mrf.mxu0
        %v2003 = vadd.f32 %v1626, %v2002
        %2004 = vdwg.mxu0
        %2005 = vmatpush.bf16.msra.mxu0 0
        %2006 = vmatpush.bf16.msra.mxu0 0
        %2007 = vmatpush.bf16.msra.mxu0 0
        %2008 = vmatpush.bf16.msra.mxu0 0
        %2009 = vmatpush.bf16.msra.mxu0 0
        %2010 = vmatpush.bf16.msra.mxu0 0
        %2011 = vmatpush.bf16.msra.mxu0 %v1771
        %2012 = vmatpush.bf16.msra.mxu0 %v1755
        %2013 = vmatmul.bf16.gmra.mxu0 %v1810
        %v2014 = vpop.f32.mrf.mxu0
        %v2015 = vadd.f32 %v1627, %v2014
        %v2016 = vpop.f32.mrf.mxu0
        %v2017 = vadd.f32 %v1627, %v2016
        %2018 = vmatmul.bf16.gmra.mxu0 %v1813
        %v2019 = vpop.f32.mrf.mxu0
        %v2020 = vadd.f32 %v1627, %v2019
        %v2021 = vpop.f32.mrf.mxu0
        %v2022 = vadd.f32 %v1627, %v2021
        %2023 = vdwg.mxu0
        %2024 = vmatpush.bf16.msra.mxu0 0
        %2025 = vmatpush.bf16.msra.mxu0 0
        %2026 = vmatpush.bf16.msra.mxu0 0
        %2027 = vmatpush.bf16.msra.mxu0 0
        %2028 = vmatpush.bf16.msra.mxu0 0
        %2029 = vmatpush.bf16.msra.mxu0 0
        %2030 = vmatpush.bf16.msra.mxu0 %v1772
        %2031 = vmatpush.bf16.msra.mxu0 %v1756
        %2032 = vmatmul.bf16.gmra.mxu0 %v1810
        %v2033 = vpop.f32.mrf.mxu0
        %v2034 = vadd.f32 %v1628, %v2033
        %v2035 = vpop.f32.mrf.mxu0
        %v2036 = vadd.f32 %v1628, %v2035
        %2037 = vmatmul.bf16.gmra.mxu0 %v1813
        %v2038 = vpop.f32.mrf.mxu0
        %v2039 = vadd.f32 %v1628, %v2038
        %v2040 = vpop.f32.mrf.mxu0
        %v2041 = vadd.f32 %v1628, %v2040
        %2042 = vdwg.mxu0
        %2043 = vmatpush.bf16.msra.mxu0 0
        %2044 = vmatpush.bf16.msra.mxu0 0
        %2045 = vmatpush.bf16.msra.mxu0 0
        %2046 = vmatpush.bf16.msra.mxu0 0
        %2047 = vmatpush.bf16.msra.mxu0 0
        %2048 = vmatpush.bf16.msra.mxu0 0
        %2049 = vmatpush.bf16.msra.mxu0 %v1773
        %2050 = vmatpush.bf16.msra.mxu0 %v1757
        %2051 = vmatmul.bf16.gmra.mxu0 %v1810
        %v2052 = vpop.f32.mrf.mxu0
        %v2053 = vadd.f32 %v1629, %v2052
        %v2054 = vpop.f32.mrf.mxu0
        %v2055 = vadd.f32 %v1629, %v2054
        %2056 = vmatmul.bf16.gmra.mxu0 %v1813
        %v2057 = vpop.f32.mrf.mxu0
        %v2058 = vadd.f32 %v1629, %v2057
        %v2059 = vpop.f32.mrf.mxu0
        %v2060 = vadd.f32 %v1629, %v2059
        %2061 = vdwg.mxu0
        %2062 = vmatpush.bf16.msra.mxu0 0
        %2063 = vmatpush.bf16.msra.mxu0 0
        %2064 = vmatpush.bf16.msra.mxu0 0
        %2065 = vmatpush.bf16.msra.mxu0 0
        %2066 = vmatpush.bf16.msra.mxu0 0
        %2067 = vmatpush.bf16.msra.mxu0 0
        %2068 = vmatpush.bf16.msra.mxu0 %v1774
        %2069 = vmatpush.bf16.msra.mxu0 %v1758
        %2070 = vmatmul.bf16.gmra.mxu0 %v1810
        %v2071 = vpop.f32.mrf.mxu0
        %v2072 = vadd.f32 %v1630, %v2071
        %v2073 = vpop.f32.mrf.mxu0
        %v2074 = vadd.f32 %v1630, %v2073
        %2075 = vmatmul.bf16.gmra.mxu0 %v1813
        %v2076 = vpop.f32.mrf.mxu0
        %v2077 = vadd.f32 %v1630, %v2076
        %v2078 = vpop.f32.mrf.mxu0
        %v2079 = vadd.f32 %v1630, %v2078
        %2080 = vdwg.mxu0
        %2081 = vmatpush.bf16.msra.mxu0 0
        %2082 = vmatpush.bf16.msra.mxu0 0
        %2083 = vmatpush.bf16.msra.mxu0 0
        %2084 = vmatpush.bf16.msra.mxu0 0
        %2085 = vmatpush.bf16.msra.mxu0 0
        %2086 = vmatpush.bf16.msra.mxu0 0
        %2087 = vmatpush.bf16.msra.mxu0 %v1775
        %2088 = vmatpush.bf16.msra.mxu0 %v1759
        %2089 = vmatmul.bf16.gmra.mxu0 %v1810
        %v2090 = vpop.f32.mrf.mxu0
        %v2091 = vadd.f32 %v1631, %v2090
        %v2092 = vpop.f32.mrf.mxu0
        %v2093 = vadd.f32 %v1631, %v2092
        %2094 = vmatmul.bf16.gmra.mxu0 %v1813
        %v2095 = vpop.f32.mrf.mxu0
        %v2096 = vadd.f32 %v1631, %v2095
        %v2097 = vpop.f32.mrf.mxu0
        %v2098 = vadd.f32 %v1631, %v2097
        %2099 = vdwg.mxu0
        %2100 = vmatpush.bf16.msra.mxu0 0
        %2101 = vmatpush.bf16.msra.mxu0 0
        %2102 = vmatpush.bf16.msra.mxu0 0
        %2103 = vmatpush.bf16.msra.mxu0 0
        %2104 = vmatpush.bf16.msra.mxu0 0
        %2105 = vmatpush.bf16.msra.mxu0 0
        %2106 = vmatpush.bf16.msra.mxu0 %v1776
        %2107 = vmatpush.bf16.msra.mxu0 %v1760
        %2108 = vmatmul.bf16.gmra.mxu0 %v1810
        %v2109 = vpop.f32.mrf.mxu0
        %v2110 = vadd.f32 %v1632, %v2109
        %v2111 = vpop.f32.mrf.mxu0
        %v2112 = vadd.f32 %v1632, %v2111
        %2113 = vmatmul.bf16.gmra.mxu0 %v1813
        %v2114 = vpop.f32.mrf.mxu0
        %v2115 = vadd.f32 %v1632, %v2114
        %v2116 = vpop.f32.mrf.mxu0
        %v2117 = vadd.f32 %v1632, %v2116
        %2118 = vdwg.mxu0
        %v2119 = vmax.f32 %v1825, 0.0
        %v2120 = vmax.f32 %v1844, 0.0
        %v2121 = vmax.f32 %v1863, 0.0
        %v2122 = vmax.f32 %v1882, 0.0
        %v2123 = vmax.f32 %v1901, 0.0
        %v2124 = vmax.f32 %v1920, 0.0
        %v2125 = vmax.f32 %v1939, 0.0
        %v2126 = vmax.f32 %v1958, 0.0
        %v2127 = vmax.f32 %v1977, 0.0
        %v2128 = vmax.f32 %v1996, 0.0
        %v2129 = vmax.f32 %v2015, 0.0
        %v2130 = vmax.f32 %v2034, 0.0
        %v2131 = vmax.f32 %v2053, 0.0
        %v2132 = vmax.f32 %v2072, 0.0
        %v2133 = vmax.f32 %v2091, 0.0
        %v2134 = vmax.f32 %v2110, 0.0
        %v2135 = vmax.f32 %v1827, 0.0
        %v2136 = vmax.f32 %v1846, 0.0
        %v2137 = vmax.f32 %v1865, 0.0
        %v2138 = vmax.f32 %v1884, 0.0
        %v2139 = vmax.f32 %v1903, 0.0
        %v2140 = vmax.f32 %v1922, 0.0
        %v2141 = vmax.f32 %v1941, 0.0
        %v2142 = vmax.f32 %v1960, 0.0
        %v2143 = vmax.f32 %v1979, 0.0
        %v2144 = vmax.f32 %v1998, 0.0
        %v2145 = vmax.f32 %v2017, 0.0
        %v2146 = vmax.f32 %v2036, 0.0
        %v2147 = vmax.f32 %v2055, 0.0
        %v2148 = vmax.f32 %v2074, 0.0
        %v2149 = vmax.f32 %v2093, 0.0
        %v2150 = vmax.f32 %v2112, 0.0
        %v2151 = vmax.f32 %v1830, 0.0
        %v2152 = vmax.f32 %v1849, 0.0
        %v2153 = vmax.f32 %v1868, 0.0
        %v2154 = vmax.f32 %v1887, 0.0
        %v2155 = vmax.f32 %v1906, 0.0
        %v2156 = vmax.f32 %v1925, 0.0
        %v2157 = vmax.f32 %v1944, 0.0
        %v2158 = vmax.f32 %v1963, 0.0
        %v2159 = vmax.f32 %v1982, 0.0
        %v2160 = vmax.f32 %v2001, 0.0
        %v2161 = vmax.f32 %v2020, 0.0
        %v2162 = vmax.f32 %v2039, 0.0
        %v2163 = vmax.f32 %v2058, 0.0
        %v2164 = vmax.f32 %v2077, 0.0
        %v2165 = vmax.f32 %v2096, 0.0
        %v2166 = vmax.f32 %v2115, 0.0
        %v2167 = vmax.f32 %v1832, 0.0
        %v2168 = vmax.f32 %v1851, 0.0
        %v2169 = vmax.f32 %v1870, 0.0
        %v2170 = vmax.f32 %v1889, 0.0
        %v2171 = vmax.f32 %v1908, 0.0
        %v2172 = vmax.f32 %v1927, 0.0
        %v2173 = vmax.f32 %v1946, 0.0
        %v2174 = vmax.f32 %v1965, 0.0
        %v2175 = vmax.f32 %v1984, 0.0
        %v2176 = vmax.f32 %v2003, 0.0
        %v2177 = vmax.f32 %v2022, 0.0
        %v2178 = vmax.f32 %v2041, 0.0
        %v2179 = vmax.f32 %v2060, 0.0
        %v2180 = vmax.f32 %v2079, 0.0
        %v2181 = vmax.f32 %v2098, 0.0
        %v2182 = vmax.f32 %v2117, 0.0
        %v2183 = vpack.c.bf16 %v2135, %v2119
        %v2184 = vpack.c.bf16 %v2136, %v2120
        %v2185 = vpack.c.bf16 %v2137, %v2121
        %v2186 = vpack.c.bf16 %v2138, %v2122
        %v2187 = vpack.c.bf16 %v2139, %v2123
        %v2188 = vpack.c.bf16 %v2140, %v2124
        %v2189 = vpack.c.bf16 %v2141, %v2125
        %v2190 = vpack.c.bf16 %v2142, %v2126
        %v2191 = vpack.c.bf16 %v2143, %v2127
        %v2192 = vpack.c.bf16 %v2144, %v2128
        %v2193 = vpack.c.bf16 %v2145, %v2129
        %v2194 = vpack.c.bf16 %v2146, %v2130
        %v2195 = vpack.c.bf16 %v2147, %v2131
        %v2196 = vpack.c.bf16 %v2148, %v2132
        %v2197 = vpack.c.bf16 %v2149, %v2133
        %v2198 = vpack.c.bf16 %v2150, %v2134
        %v2199 = vpack.c.bf16 %v2167, %v2151
        %v2200 = vpack.c.bf16 %v2168, %v2152
        %v2201 = vpack.c.bf16 %v2169, %v2153
        %v2202 = vpack.c.bf16 %v2170, %v2154
        %v2203 = vpack.c.bf16 %v2171, %v2155
        %v2204 = vpack.c.bf16 %v2172, %v2156
        %v2205 = vpack.c.bf16 %v2173, %v2157
        %v2206 = vpack.c.bf16 %v2174, %v2158
        %v2207 = vpack.c.bf16 %v2175, %v2159
        %v2208 = vpack.c.bf16 %v2176, %v2160
        %v2209 = vpack.c.bf16 %v2177, %v2161
        %v2210 = vpack.c.bf16 %v2178, %v2162
        %v2211 = vpack.c.bf16 %v2179, %v2163
        %v2212 = vpack.c.bf16 %v2180, %v2164
        %v2213 = vpack.c.bf16 %v2181, %v2165
        %v2214 = vpack.c.bf16 %v2182, %v2166
        %v2215 = vperm.slane %v532, 3
        %v2472 = vunpack.c.l.b16 %v567
        %v2473 = vunpack.c.l.b16 %v568
        %v2474 = vunpack.c.l.b16 %v569
        %v2475 = vunpack.c.l.b16 %v570
        %v2476 = vunpack.c.l.b16 %v571
        %v2477 = vunpack.c.l.b16 %v572
        %v2478 = vunpack.c.l.b16 %v573
        %v2479 = vunpack.c.l.b16 %v574
        %v2480 = vunpack.c.l.b16 %v575
        %v2481 = vunpack.c.l.b16 %v576
        %v2482 = vunpack.c.l.b16 %v577
        %v2483 = vunpack.c.l.b16 %v578
        %v2484 = vunpack.c.l.b16 %v579
        %v2485 = vunpack.c.l.b16 %v580
        %v2486 = vunpack.c.l.b16 %v581
        %v2487 = vunpack.c.l.b16 %v582
        %v2488 = vunpack.c.l.b16 %v583
        %v2489 = vunpack.c.l.b16 %v584
        %v2490 = vunpack.c.l.b16 %v585
        %v2491 = vunpack.c.l.b16 %v586
        %v2492 = vunpack.c.l.b16 %v587
        %v2493 = vunpack.c.l.b16 %v588
        %v2494 = vunpack.c.l.b16 %v589
        %v2495 = vunpack.c.l.b16 %v590
        %v2496 = vunpack.c.l.b16 %v591
        %v2497 = vunpack.c.l.b16 %v592
        %v2498 = vunpack.c.l.b16 %v593
        %v2499 = vunpack.c.l.b16 %v594
        %v2500 = vunpack.c.l.b16 %v595
        %v2501 = vunpack.c.l.b16 %v596
        %v2502 = vunpack.c.l.b16 %v597
        %v2503 = vunpack.c.l.b16 %v598
        %v2504 = vunpack.c.l.b16 %v599
        %v2505 = vunpack.c.l.b16 %v600
        %v2506 = vunpack.c.l.b16 %v601
        %v2507 = vunpack.c.l.b16 %v602
        %v2508 = vunpack.c.l.b16 %v603
        %v2509 = vunpack.c.l.b16 %v604
        %v2510 = vunpack.c.l.b16 %v605
        %v2511 = vunpack.c.l.b16 %v606
        %v2512 = vunpack.c.l.b16 %v607
        %v2513 = vunpack.c.l.b16 %v608
        %v2514 = vunpack.c.l.b16 %v609
        %v2515 = vunpack.c.l.b16 %v610
        %v2516 = vunpack.c.l.b16 %v611
        %v2517 = vunpack.c.l.b16 %v612
        %v2518 = vunpack.c.l.b16 %v613
        %v2519 = vunpack.c.l.b16 %v614
        %v2520 = vunpack.c.l.b16 %v615
        %v2521 = vunpack.c.l.b16 %v616
        %v2522 = vunpack.c.l.b16 %v617
        %v2523 = vunpack.c.l.b16 %v618
        %v2524 = vunpack.c.l.b16 %v619
        %v2525 = vunpack.c.l.b16 %v620
        %v2526 = vunpack.c.l.b16 %v621
        %v2527 = vunpack.c.l.b16 %v622
        %v2528 = vunpack.c.l.b16 %v623
        %v2529 = vunpack.c.l.b16 %v624
        %v2530 = vunpack.c.l.b16 %v625
        %v2531 = vunpack.c.l.b16 %v626
        %v2532 = vunpack.c.l.b16 %v627
        %v2533 = vunpack.c.l.b16 %v628
        %v2534 = vunpack.c.l.b16 %v629
        %v2535 = vunpack.c.l.b16 %v630
        %v2536 = vunpack.c.l.b16 %v631
        %v2537 = vunpack.c.l.b16 %v632
        %v2538 = vunpack.c.l.b16 %v633
        %v2539 = vunpack.c.l.b16 %v634
        %v2540 = vunpack.c.l.b16 %v635
        %v2541 = vunpack.c.l.b16 %v636
        %v2542 = vunpack.c.l.b16 %v637
        %v2543 = vunpack.c.l.b16 %v638
        %v2544 = vunpack.c.l.b16 %v639
        %v2545 = vunpack.c.l.b16 %v640
        %v2546 = vunpack.c.l.b16 %v641
        %v2547 = vunpack.c.l.b16 %v642
        %v2548 = vunpack.c.l.b16 %v643
        %v2549 = vunpack.c.l.b16 %v644
        %v2550 = vunpack.c.l.b16 %v645
        %v2551 = vunpack.c.l.b16 %v646
        %v2552 = vunpack.c.l.b16 %v647
        %v2553 = vunpack.c.l.b16 %v648
        %v2554 = vunpack.c.l.b16 %v649
        %v2555 = vunpack.c.l.b16 %v650
        %v2556 = vunpack.c.l.b16 %v651
        %v2557 = vunpack.c.l.b16 %v652
        %v2558 = vunpack.c.l.b16 %v653
        %v2559 = vunpack.c.l.b16 %v654
        %v2560 = vunpack.c.l.b16 %v655
        %v2561 = vunpack.c.l.b16 %v656
        %v2562 = vunpack.c.l.b16 %v657
        %v2563 = vunpack.c.l.b16 %v658
        %v2564 = vunpack.c.l.b16 %v659
        %v2565 = vunpack.c.l.b16 %v660
        %v2566 = vunpack.c.l.b16 %v661
        %v2567 = vunpack.c.l.b16 %v662
        %v2568 = vunpack.c.l.b16 %v663
        %v2569 = vunpack.c.l.b16 %v664
        %v2570 = vunpack.c.l.b16 %v665
        %v2571 = vunpack.c.l.b16 %v666
        %v2572 = vunpack.c.l.b16 %v667
        %v2573 = vunpack.c.l.b16 %v668
        %v2574 = vunpack.c.l.b16 %v669
        %v2575 = vunpack.c.l.b16 %v670
        %v2576 = vunpack.c.l.b16 %v671
        %v2577 = vunpack.c.l.b16 %v672
        %v2578 = vunpack.c.l.b16 %v673
        %v2579 = vunpack.c.l.b16 %v674
        %v2580 = vunpack.c.l.b16 %v675
        %v2581 = vunpack.c.l.b16 %v676
        %v2582 = vunpack.c.l.b16 %v677
        %v2583 = vunpack.c.l.b16 %v678
        %v2584 = vunpack.c.l.b16 %v679
        %v2585 = vunpack.c.l.b16 %v680
        %v2586 = vunpack.c.l.b16 %v681
        %v2587 = vunpack.c.l.b16 %v682
        %v2588 = vunpack.c.l.b16 %v683
        %v2589 = vunpack.c.l.b16 %v684
        %v2590 = vunpack.c.l.b16 %v685
        %v2591 = vunpack.c.l.b16 %v686
        %v2592 = vunpack.c.l.b16 %v687
        %v2593 = vunpack.c.l.b16 %v688
        %v2594 = vunpack.c.l.b16 %v689
        %v2595 = vunpack.c.l.b16 %v690
        %v2596 = vunpack.c.l.b16 %v691
        %v2597 = vunpack.c.l.b16 %v692
        %v2598 = vunpack.c.l.b16 %v693
        %v2599 = vunpack.c.l.b16 %v694
        %v2600 = vunpack.c.l.b16 %v695
        %v2601 = vunpack.c.l.b16 %v696
        %v2602 = vunpack.c.l.b16 %v697
        %v2603 = vunpack.c.l.b16 %v698
        %v2604 = vunpack.c.l.b16 %v699
        %v2605 = vunpack.c.l.b16 %v700
        %v2606 = vunpack.c.l.b16 %v701
        %v2607 = vunpack.c.l.b16 %v702
        %v2608 = vunpack.c.l.b16 %v703
        %v2609 = vunpack.c.l.b16 %v704
        %v2610 = vunpack.c.l.b16 %v705
        %v2611 = vunpack.c.l.b16 %v706
        %v2612 = vunpack.c.l.b16 %v707
        %v2613 = vunpack.c.l.b16 %v708
        %v2614 = vunpack.c.l.b16 %v709
        %v2615 = vunpack.c.l.b16 %v710
        %v2616 = vunpack.c.l.b16 %v711
        %v2617 = vunpack.c.l.b16 %v712
        %v2618 = vunpack.c.l.b16 %v713
        %v2619 = vunpack.c.l.b16 %v714
        %v2620 = vunpack.c.l.b16 %v715
        %v2621 = vunpack.c.l.b16 %v716
        %v2622 = vunpack.c.l.b16 %v717
        %v2623 = vunpack.c.l.b16 %v718
        %v2624 = vunpack.c.l.b16 %v719
        %v2625 = vunpack.c.l.b16 %v720
        %v2626 = vunpack.c.l.b16 %v721
        %v2627 = vunpack.c.l.b16 %v722
        %v2628 = vunpack.c.l.b16 %v723
        %v2629 = vunpack.c.l.b16 %v724
        %v2630 = vunpack.c.l.b16 %v725
        %v2631 = vunpack.c.l.b16 %v726
        %v2632 = vunpack.c.l.b16 %v727
        %v2633 = vunpack.c.l.b16 %v728
        %v2634 = vunpack.c.l.b16 %v729
        %v2635 = vunpack.c.l.b16 %v730
        %v2636 = vunpack.c.l.b16 %v731
        %v2637 = vunpack.c.l.b16 %v732
        %v2638 = vunpack.c.l.b16 %v733
        %v2639 = vunpack.c.l.b16 %v734
        %v2640 = vunpack.c.l.b16 %v735
        %v2641 = vunpack.c.l.b16 %v736
        %v2642 = vunpack.c.l.b16 %v737
        %v2643 = vunpack.c.l.b16 %v738
        %v2644 = vunpack.c.l.b16 %v739
        %v2645 = vunpack.c.l.b16 %v740
        %v2646 = vunpack.c.l.b16 %v741
        %v2647 = vunpack.c.l.b16 %v742
        %v2648 = vunpack.c.l.b16 %v743
        %v2649 = vunpack.c.l.b16 %v744
        %v2650 = vunpack.c.l.b16 %v745
        %v2651 = vunpack.c.l.b16 %v746
        %v2652 = vunpack.c.l.b16 %v747
        %v2653 = vunpack.c.l.b16 %v748
        %v2654 = vunpack.c.l.b16 %v749
        %v2655 = vunpack.c.l.b16 %v750
        %v2656 = vunpack.c.l.b16 %v751
        %v2657 = vunpack.c.l.b16 %v752
        %v2658 = vunpack.c.l.b16 %v753
        %v2659 = vunpack.c.l.b16 %v754
        %v2660 = vunpack.c.l.b16 %v755
        %v2661 = vunpack.c.l.b16 %v756
        %v2662 = vunpack.c.l.b16 %v757
        %v2663 = vunpack.c.l.b16 %v758
        %v2664 = vunpack.c.l.b16 %v759
        %v2665 = vunpack.c.l.b16 %v760
        %v2666 = vunpack.c.l.b16 %v761
        %v2667 = vunpack.c.l.b16 %v762
        %v2668 = vunpack.c.l.b16 %v763
        %v2669 = vunpack.c.l.b16 %v764
        %v2670 = vunpack.c.l.b16 %v765
        %v2671 = vunpack.c.l.b16 %v766
        %v2672 = vunpack.c.l.b16 %v767
        %v2673 = vunpack.c.l.b16 %v768
        %v2674 = vunpack.c.l.b16 %v769
        %v2675 = vunpack.c.l.b16 %v770
        %v2676 = vunpack.c.l.b16 %v771
        %v2677 = vunpack.c.l.b16 %v772
        %v2678 = vunpack.c.l.b16 %v773
        %v2679 = vunpack.c.l.b16 %v774
        %v2680 = vunpack.c.l.b16 %v775
        %v2681 = vunpack.c.l.b16 %v776
        %v2682 = vunpack.c.l.b16 %v777
        %v2683 = vunpack.c.l.b16 %v778
        %v2684 = vunpack.c.l.b16 %v779
        %v2685 = vunpack.c.l.b16 %v780
        %v2686 = vunpack.c.l.b16 %v781
        %v2687 = vunpack.c.l.b16 %v782
        %v2688 = vunpack.c.l.b16 %v783
        %v2689 = vunpack.c.l.b16 %v784
        %v2690 = vunpack.c.l.b16 %v785
        %v2691 = vunpack.c.l.b16 %v786
        %v2692 = vunpack.c.l.b16 %v787
        %v2693 = vunpack.c.l.b16 %v788
        %v2694 = vunpack.c.l.b16 %v789
        %v2695 = vunpack.c.l.b16 %v790
        %v2696 = vunpack.c.l.b16 %v791
        %v2697 = vunpack.c.l.b16 %v792
        %v2698 = vunpack.c.l.b16 %v793
        %v2699 = vunpack.c.l.b16 %v794
        %v2700 = vunpack.c.l.b16 %v795
        %v2701 = vunpack.c.l.b16 %v796
        %v2702 = vunpack.c.l.b16 %v797
        %v2703 = vunpack.c.l.b16 %v798
        %v2704 = vunpack.c.l.b16 %v799
        %v2705 = vunpack.c.l.b16 %v800
        %v2706 = vunpack.c.l.b16 %v801
        %v2707 = vunpack.c.l.b16 %v802
        %v2708 = vunpack.c.l.b16 %v803
        %v2709 = vunpack.c.l.b16 %v804
        %v2710 = vunpack.c.l.b16 %v805
        %v2711 = vunpack.c.l.b16 %v806
        %v2712 = vunpack.c.l.b16 %v807
        %v2713 = vunpack.c.l.b16 %v808
        %v2714 = vunpack.c.l.b16 %v809
        %v2715 = vunpack.c.l.b16 %v810
        %v2716 = vunpack.c.l.b16 %v811
        %v2717 = vunpack.c.l.b16 %v812
        %v2718 = vunpack.c.l.b16 %v813
        %v2719 = vunpack.c.l.b16 %v814
        %v2720 = vunpack.c.l.b16 %v815
        %v2721 = vunpack.c.l.b16 %v816
        %v2722 = vunpack.c.l.b16 %v817
        %v2723 = vunpack.c.l.b16 %v818
        %v2724 = vunpack.c.l.b16 %v819
        %v2725 = vunpack.c.l.b16 %v820
        %v2726 = vunpack.c.l.b16 %v821
        %v2727 = vunpack.c.l.b16 %v822
        %v2728 = vpack.c.b16 %v2473, %v2472
        %v2729 = vpack.c.b16 %v2475, %v2474
        %v2730 = vpack.c.b16 %v2477, %v2476
        %v2731 = vpack.c.b16 %v2479, %v2478
        %v2732 = vpack.c.b16 %v2481, %v2480
        %v2733 = vpack.c.b16 %v2483, %v2482
        %v2734 = vpack.c.b16 %v2485, %v2484
        %v2735 = vpack.c.b16 %v2487, %v2486
        %v2736 = vpack.c.b16 %v2489, %v2488
        %v2737 = vpack.c.b16 %v2491, %v2490
        %v2738 = vpack.c.b16 %v2493, %v2492
        %v2739 = vpack.c.b16 %v2495, %v2494
        %v2740 = vpack.c.b16 %v2497, %v2496
        %v2741 = vpack.c.b16 %v2499, %v2498
        %v2742 = vpack.c.b16 %v2501, %v2500
        %v2743 = vpack.c.b16 %v2503, %v2502
        %v2744 = vpack.c.b16 %v2505, %v2504
        %v2745 = vpack.c.b16 %v2507, %v2506
        %v2746 = vpack.c.b16 %v2509, %v2508
        %v2747 = vpack.c.b16 %v2511, %v2510
        %v2748 = vpack.c.b16 %v2513, %v2512
        %v2749 = vpack.c.b16 %v2515, %v2514
        %v2750 = vpack.c.b16 %v2517, %v2516
        %v2751 = vpack.c.b16 %v2519, %v2518
        %v2752 = vpack.c.b16 %v2521, %v2520
        %v2753 = vpack.c.b16 %v2523, %v2522
        %v2754 = vpack.c.b16 %v2525, %v2524
        %v2755 = vpack.c.b16 %v2527, %v2526
        %v2756 = vpack.c.b16 %v2529, %v2528
        %v2757 = vpack.c.b16 %v2531, %v2530
        %v2758 = vpack.c.b16 %v2533, %v2532
        %v2759 = vpack.c.b16 %v2535, %v2534
        %v2760 = vpack.c.b16 %v2537, %v2536
        %v2761 = vpack.c.b16 %v2539, %v2538
        %v2762 = vpack.c.b16 %v2541, %v2540
        %v2763 = vpack.c.b16 %v2543, %v2542
        %v2764 = vpack.c.b16 %v2545, %v2544
        %v2765 = vpack.c.b16 %v2547, %v2546
        %v2766 = vpack.c.b16 %v2549, %v2548
        %v2767 = vpack.c.b16 %v2551, %v2550
        %v2768 = vpack.c.b16 %v2553, %v2552
        %v2769 = vpack.c.b16 %v2555, %v2554
        %v2770 = vpack.c.b16 %v2557, %v2556
        %v2771 = vpack.c.b16 %v2559, %v2558
        %v2772 = vpack.c.b16 %v2561, %v2560
        %v2773 = vpack.c.b16 %v2563, %v2562
        %v2774 = vpack.c.b16 %v2565, %v2564
        %v2775 = vpack.c.b16 %v2567, %v2566
        %v2776 = vpack.c.b16 %v2569, %v2568
        %v2777 = vpack.c.b16 %v2571, %v2570
        %v2778 = vpack.c.b16 %v2573, %v2572
        %v2779 = vpack.c.b16 %v2575, %v2574
        %v2780 = vpack.c.b16 %v2577, %v2576
        %v2781 = vpack.c.b16 %v2579, %v2578
        %v2782 = vpack.c.b16 %v2581, %v2580
        %v2783 = vpack.c.b16 %v2583, %v2582
        %v2784 = vpack.c.b16 %v2585, %v2584
        %v2785 = vpack.c.b16 %v2587, %v2586
        %v2786 = vpack.c.b16 %v2589, %v2588
        %v2787 = vpack.c.b16 %v2591, %v2590
        %v2788 = vpack.c.b16 %v2593, %v2592
        %v2789 = vpack.c.b16 %v2595, %v2594
        %v2790 = vpack.c.b16 %v2597, %v2596
        %v2791 = vpack.c.b16 %v2599, %v2598
        %v2792 = vpack.c.b16 %v2601, %v2600
        %v2793 = vpack.c.b16 %v2603, %v2602
        %v2794 = vpack.c.b16 %v2605, %v2604
        %v2795 = vpack.c.b16 %v2607, %v2606
        %v2796 = vpack.c.b16 %v2609, %v2608
        %v2797 = vpack.c.b16 %v2611, %v2610
        %v2798 = vpack.c.b16 %v2613, %v2612
        %v2799 = vpack.c.b16 %v2615, %v2614
        %v2800 = vpack.c.b16 %v2617, %v2616
        %v2801 = vpack.c.b16 %v2619, %v2618
        %v2802 = vpack.c.b16 %v2621, %v2620
        %v2803 = vpack.c.b16 %v2623, %v2622
        %v2804 = vpack.c.b16 %v2625, %v2624
        %v2805 = vpack.c.b16 %v2627, %v2626
        %v2806 = vpack.c.b16 %v2629, %v2628
        %v2807 = vpack.c.b16 %v2631, %v2630
        %v2808 = vpack.c.b16 %v2633, %v2632
        %v2809 = vpack.c.b16 %v2635, %v2634
        %v2810 = vpack.c.b16 %v2637, %v2636
        %v2811 = vpack.c.b16 %v2639, %v2638
        %v2812 = vpack.c.b16 %v2641, %v2640
        %v2813 = vpack.c.b16 %v2643, %v2642
        %v2814 = vpack.c.b16 %v2645, %v2644
        %v2815 = vpack.c.b16 %v2647, %v2646
        %v2816 = vpack.c.b16 %v2649, %v2648
        %v2817 = vpack.c.b16 %v2651, %v2650
        %v2818 = vpack.c.b16 %v2653, %v2652
        %v2819 = vpack.c.b16 %v2655, %v2654
        %v2820 = vpack.c.b16 %v2657, %v2656
        %v2821 = vpack.c.b16 %v2659, %v2658
        %v2822 = vpack.c.b16 %v2661, %v2660
        %v2823 = vpack.c.b16 %v2663, %v2662
        %v2824 = vpack.c.b16 %v2665, %v2664
        %v2825 = vpack.c.b16 %v2667, %v2666
        %v2826 = vpack.c.b16 %v2669, %v2668
        %v2827 = vpack.c.b16 %v2671, %v2670
        %v2828 = vpack.c.b16 %v2673, %v2672
        %v2829 = vpack.c.b16 %v2675, %v2674
        %v2830 = vpack.c.b16 %v2677, %v2676
        %v2831 = vpack.c.b16 %v2679, %v2678
        %v2832 = vpack.c.b16 %v2681, %v2680
        %v2833 = vpack.c.b16 %v2683, %v2682
        %v2834 = vpack.c.b16 %v2685, %v2684
        %v2835 = vpack.c.b16 %v2687, %v2686
        %v2836 = vpack.c.b16 %v2689, %v2688
        %v2837 = vpack.c.b16 %v2691, %v2690
        %v2838 = vpack.c.b16 %v2693, %v2692
        %v2839 = vpack.c.b16 %v2695, %v2694
        %v2840 = vpack.c.b16 %v2697, %v2696
        %v2841 = vpack.c.b16 %v2699, %v2698
        %v2842 = vpack.c.b16 %v2701, %v2700
        %v2843 = vpack.c.b16 %v2703, %v2702
        %v2844 = vpack.c.b16 %v2705, %v2704
        %v2845 = vpack.c.b16 %v2707, %v2706
        %v2846 = vpack.c.b16 %v2709, %v2708
        %v2847 = vpack.c.b16 %v2711, %v2710
        %v2848 = vpack.c.b16 %v2713, %v2712
        %v2849 = vpack.c.b16 %v2715, %v2714
        %v2850 = vpack.c.b16 %v2717, %v2716
        %v2851 = vpack.c.b16 %v2719, %v2718
        %v2852 = vpack.c.b16 %v2721, %v2720
        %v2853 = vpack.c.b16 %v2723, %v2722
        %v2854 = vpack.c.b16 %v2725, %v2724
        %v2855 = vpack.c.b16 %v2727, %v2726
        %2984 = vmatpush.bf16.msra.mxu0 %v2735
        %2985 = vmatpush.bf16.msra.mxu0 %v2734
        %2986 = vmatpush.bf16.msra.mxu0 %v2733
        %2987 = vmatpush.bf16.msra.mxu0 %v2732
        %2988 = vmatpush.bf16.msra.mxu0 %v2731
        %2989 = vmatpush.bf16.msra.mxu0 %v2730
        %2990 = vmatpush.bf16.msra.mxu0 %v2729
        %2991 = vmatpush.bf16.msra.mxu0 %v2728
        %2992 = vmatmul.bf16.gmra.mxu0 %v2183
        %v2993 = vpop.f32.mrf.mxu0
        %v2994 = vadd.f32 %v2215, %v2993
        %v2995 = vpop.f32.mrf.mxu0
        %v2996 = vadd.f32 %v2215, %v2995
        %2997 = vmatmul.bf16.gmra.mxu0 %v2199
        %v2998 = vpop.f32.mrf.mxu0
        %v2999 = vadd.f32 %v2215, %v2998
        %v3000 = vpop.f32.mrf.mxu0
        %v3001 = vadd.f32 %v2215, %v3000
        %3002 = vdwg.mxu0
        %3003 = vmatpush.bf16.msra.mxu0 %v2743
        %3004 = vmatpush.bf16.msra.mxu0 %v2742
        %3005 = vmatpush.bf16.msra.mxu0 %v2741
        %3006 = vmatpush.bf16.msra.mxu0 %v2740
        %3007 = vmatpush.bf16.msra.mxu0 %v2739
        %3008 = vmatpush.bf16.msra.mxu0 %v2738
        %3009 = vmatpush.bf16.msra.mxu0 %v2737
        %3010 = vmatpush.bf16.msra.mxu0 %v2736
        %3011 = vmatmul.bf16.gmra.mxu0 %v2184
        %v3012 = vpop.f32.mrf.mxu0
        %v3013 = vadd.f32 %v2994, %v3012
        %v3014 = vpop.f32.mrf.mxu0
        %v3015 = vadd.f32 %v2996, %v3014
        %3016 = vmatmul.bf16.gmra.mxu0 %v2200
        %v3017 = vpop.f32.mrf.mxu0
        %v3018 = vadd.f32 %v2999, %v3017
        %v3019 = vpop.f32.mrf.mxu0
        %v3020 = vadd.f32 %v3001, %v3019
        %3021 = vdwg.mxu0
        %3022 = vmatpush.bf16.msra.mxu0 %v2751
        %3023 = vmatpush.bf16.msra.mxu0 %v2750
        %3024 = vmatpush.bf16.msra.mxu0 %v2749
        %3025 = vmatpush.bf16.msra.mxu0 %v2748
        %3026 = vmatpush.bf16.msra.mxu0 %v2747
        %3027 = vmatpush.bf16.msra.mxu0 %v2746
        %3028 = vmatpush.bf16.msra.mxu0 %v2745
        %3029 = vmatpush.bf16.msra.mxu0 %v2744
        %3030 = vmatmul.bf16.gmra.mxu0 %v2185
        %v3031 = vpop.f32.mrf.mxu0
        %v3032 = vadd.f32 %v3013, %v3031
        %v3033 = vpop.f32.mrf.mxu0
        %v3034 = vadd.f32 %v3015, %v3033
        %3035 = vmatmul.bf16.gmra.mxu0 %v2201
        %v3036 = vpop.f32.mrf.mxu0
        %v3037 = vadd.f32 %v3018, %v3036
        %v3038 = vpop.f32.mrf.mxu0
        %v3039 = vadd.f32 %v3020, %v3038
        %3040 = vdwg.mxu0
        %3041 = vmatpush.bf16.msra.mxu0 %v2759
        %3042 = vmatpush.bf16.msra.mxu0 %v2758
        %3043 = vmatpush.bf16.msra.mxu0 %v2757
        %3044 = vmatpush.bf16.msra.mxu0 %v2756
        %3045 = vmatpush.bf16.msra.mxu0 %v2755
        %3046 = vmatpush.bf16.msra.mxu0 %v2754
        %3047 = vmatpush.bf16.msra.mxu0 %v2753
        %3048 = vmatpush.bf16.msra.mxu0 %v2752
        %3049 = vmatmul.bf16.gmra.mxu0 %v2186
        %v3050 = vpop.f32.mrf.mxu0
        %v3051 = vadd.f32 %v3032, %v3050
        %v3052 = vpop.f32.mrf.mxu0
        %v3053 = vadd.f32 %v3034, %v3052
        %3054 = vmatmul.bf16.gmra.mxu0 %v2202
        %v3055 = vpop.f32.mrf.mxu0
        %v3056 = vadd.f32 %v3037, %v3055
        %v3057 = vpop.f32.mrf.mxu0
        %v3058 = vadd.f32 %v3039, %v3057
        %3059 = vdwg.mxu0
        %3060 = vmatpush.bf16.msra.mxu0 %v2767
        %3061 = vmatpush.bf16.msra.mxu0 %v2766
        %3062 = vmatpush.bf16.msra.mxu0 %v2765
        %3063 = vmatpush.bf16.msra.mxu0 %v2764
        %3064 = vmatpush.bf16.msra.mxu0 %v2763
        %3065 = vmatpush.bf16.msra.mxu0 %v2762
        %3066 = vmatpush.bf16.msra.mxu0 %v2761
        %3067 = vmatpush.bf16.msra.mxu0 %v2760
        %3068 = vmatmul.bf16.gmra.mxu0 %v2187
        %v3069 = vpop.f32.mrf.mxu0
        %v3070 = vadd.f32 %v3051, %v3069
        %v3071 = vpop.f32.mrf.mxu0
        %v3072 = vadd.f32 %v3053, %v3071
        %3073 = vmatmul.bf16.gmra.mxu0 %v2203
        %v3074 = vpop.f32.mrf.mxu0
        %v3075 = vadd.f32 %v3056, %v3074
        %v3076 = vpop.f32.mrf.mxu0
        %v3077 = vadd.f32 %v3058, %v3076
        %3078 = vdwg.mxu0
        %3079 = vmatpush.bf16.msra.mxu0 %v2775
        %3080 = vmatpush.bf16.msra.mxu0 %v2774
        %3081 = vmatpush.bf16.msra.mxu0 %v2773
        %3082 = vmatpush.bf16.msra.mxu0 %v2772
        %3083 = vmatpush.bf16.msra.mxu0 %v2771
        %3084 = vmatpush.bf16.msra.mxu0 %v2770
        %3085 = vmatpush.bf16.msra.mxu0 %v2769
        %3086 = vmatpush.bf16.msra.mxu0 %v2768
        %3087 = vmatmul.bf16.gmra.mxu0 %v2188
        %v3088 = vpop.f32.mrf.mxu0
        %v3089 = vadd.f32 %v3070, %v3088
        %v3090 = vpop.f32.mrf.mxu0
        %v3091 = vadd.f32 %v3072, %v3090
        %3092 = vmatmul.bf16.gmra.mxu0 %v2204
        %v3093 = vpop.f32.mrf.mxu0
        %v3094 = vadd.f32 %v3075, %v3093
        %v3095 = vpop.f32.mrf.mxu0
        %v3096 = vadd.f32 %v3077, %v3095
        %3097 = vdwg.mxu0
        %3098 = vmatpush.bf16.msra.mxu0 %v2783
        %3099 = vmatpush.bf16.msra.mxu0 %v2782
        %3100 = vmatpush.bf16.msra.mxu0 %v2781
        %3101 = vmatpush.bf16.msra.mxu0 %v2780
        %3102 = vmatpush.bf16.msra.mxu0 %v2779
        %3103 = vmatpush.bf16.msra.mxu0 %v2778
        %3104 = vmatpush.bf16.msra.mxu0 %v2777
        %3105 = vmatpush.bf16.msra.mxu0 %v2776
        %3106 = vmatmul.bf16.gmra.mxu0 %v2189
        %v3107 = vpop.f32.mrf.mxu0
        %v3108 = vadd.f32 %v3089, %v3107
        %v3109 = vpop.f32.mrf.mxu0
        %v3110 = vadd.f32 %v3091, %v3109
        %3111 = vmatmul.bf16.gmra.mxu0 %v2205
        %v3112 = vpop.f32.mrf.mxu0
        %v3113 = vadd.f32 %v3094, %v3112
        %v3114 = vpop.f32.mrf.mxu0
        %v3115 = vadd.f32 %v3096, %v3114
        %3116 = vdwg.mxu0
        %3117 = vmatpush.bf16.msra.mxu0 %v2791
        %3118 = vmatpush.bf16.msra.mxu0 %v2790
        %3119 = vmatpush.bf16.msra.mxu0 %v2789
        %3120 = vmatpush.bf16.msra.mxu0 %v2788
        %3121 = vmatpush.bf16.msra.mxu0 %v2787
        %3122 = vmatpush.bf16.msra.mxu0 %v2786
        %3123 = vmatpush.bf16.msra.mxu0 %v2785
        %3124 = vmatpush.bf16.msra.mxu0 %v2784
        %3125 = vmatmul.bf16.gmra.mxu0 %v2190
        %v3126 = vpop.f32.mrf.mxu0
        %v3127 = vadd.f32 %v3108, %v3126
        %v3128 = vpop.f32.mrf.mxu0
        %v3129 = vadd.f32 %v3110, %v3128
        %3130 = vmatmul.bf16.gmra.mxu0 %v2206
        %v3131 = vpop.f32.mrf.mxu0
        %v3132 = vadd.f32 %v3113, %v3131
        %v3133 = vpop.f32.mrf.mxu0
        %v3134 = vadd.f32 %v3115, %v3133
        %3135 = vdwg.mxu0
        %3136 = vmatpush.bf16.msra.mxu0 %v2799
        %3137 = vmatpush.bf16.msra.mxu0 %v2798
        %3138 = vmatpush.bf16.msra.mxu0 %v2797
        %3139 = vmatpush.bf16.msra.mxu0 %v2796
        %3140 = vmatpush.bf16.msra.mxu0 %v2795
        %3141 = vmatpush.bf16.msra.mxu0 %v2794
        %3142 = vmatpush.bf16.msra.mxu0 %v2793
        %3143 = vmatpush.bf16.msra.mxu0 %v2792
        %3144 = vmatmul.bf16.gmra.mxu0 %v2191
        %v3145 = vpop.f32.mrf.mxu0
        %v3146 = vadd.f32 %v3127, %v3145
        %v3147 = vpop.f32.mrf.mxu0
        %v3148 = vadd.f32 %v3129, %v3147
        %3149 = vmatmul.bf16.gmra.mxu0 %v2207
        %v3150 = vpop.f32.mrf.mxu0
        %v3151 = vadd.f32 %v3132, %v3150
        %v3152 = vpop.f32.mrf.mxu0
        %v3153 = vadd.f32 %v3134, %v3152
        %3154 = vdwg.mxu0
        %3155 = vmatpush.bf16.msra.mxu0 %v2807
        %3156 = vmatpush.bf16.msra.mxu0 %v2806
        %3157 = vmatpush.bf16.msra.mxu0 %v2805
        %3158 = vmatpush.bf16.msra.mxu0 %v2804
        %3159 = vmatpush.bf16.msra.mxu0 %v2803
        %3160 = vmatpush.bf16.msra.mxu0 %v2802
        %3161 = vmatpush.bf16.msra.mxu0 %v2801
        %3162 = vmatpush.bf16.msra.mxu0 %v2800
        %3163 = vmatmul.bf16.gmra.mxu0 %v2192
        %v3164 = vpop.f32.mrf.mxu0
        %v3165 = vadd.f32 %v3146, %v3164
        %v3166 = vpop.f32.mrf.mxu0
        %v3167 = vadd.f32 %v3148, %v3166
        %3168 = vmatmul.bf16.gmra.mxu0 %v2208
        %v3169 = vpop.f32.mrf.mxu0
        %v3170 = vadd.f32 %v3151, %v3169
        %v3171 = vpop.f32.mrf.mxu0
        %v3172 = vadd.f32 %v3153, %v3171
        %3173 = vdwg.mxu0
        %3174 = vmatpush.bf16.msra.mxu0 %v2815
        %3175 = vmatpush.bf16.msra.mxu0 %v2814
        %3176 = vmatpush.bf16.msra.mxu0 %v2813
        %3177 = vmatpush.bf16.msra.mxu0 %v2812
        %3178 = vmatpush.bf16.msra.mxu0 %v2811
        %3179 = vmatpush.bf16.msra.mxu0 %v2810
        %3180 = vmatpush.bf16.msra.mxu0 %v2809
        %3181 = vmatpush.bf16.msra.mxu0 %v2808
        %3182 = vmatmul.bf16.gmra.mxu0 %v2193
        %v3183 = vpop.f32.mrf.mxu0
        %v3184 = vadd.f32 %v3165, %v3183
        %v3185 = vpop.f32.mrf.mxu0
        %v3186 = vadd.f32 %v3167, %v3185
        %3187 = vmatmul.bf16.gmra.mxu0 %v2209
        %v3188 = vpop.f32.mrf.mxu0
        %v3189 = vadd.f32 %v3170, %v3188
        %v3190 = vpop.f32.mrf.mxu0
        %v3191 = vadd.f32 %v3172, %v3190
        %3192 = vdwg.mxu0
        %3193 = vmatpush.bf16.msra.mxu0 %v2823
        %3194 = vmatpush.bf16.msra.mxu0 %v2822
        %3195 = vmatpush.bf16.msra.mxu0 %v2821
        %3196 = vmatpush.bf16.msra.mxu0 %v2820
        %3197 = vmatpush.bf16.msra.mxu0 %v2819
        %3198 = vmatpush.bf16.msra.mxu0 %v2818
        %3199 = vmatpush.bf16.msra.mxu0 %v2817
        %3200 = vmatpush.bf16.msra.mxu0 %v2816
        %3201 = vmatmul.bf16.gmra.mxu0 %v2194
        %v3202 = vpop.f32.mrf.mxu0
        %v3203 = vadd.f32 %v3184, %v3202
        %v3204 = vpop.f32.mrf.mxu0
        %v3205 = vadd.f32 %v3186, %v3204
        %3206 = vmatmul.bf16.gmra.mxu0 %v2210
        %v3207 = vpop.f32.mrf.mxu0
        %v3208 = vadd.f32 %v3189, %v3207
        %v3209 = vpop.f32.mrf.mxu0
        %v3210 = vadd.f32 %v3191, %v3209
        %3211 = vdwg.mxu0
        %3212 = vmatpush.bf16.msra.mxu0 %v2831
        %3213 = vmatpush.bf16.msra.mxu0 %v2830
        %3214 = vmatpush.bf16.msra.mxu0 %v2829
        %3215 = vmatpush.bf16.msra.mxu0 %v2828
        %3216 = vmatpush.bf16.msra.mxu0 %v2827
        %3217 = vmatpush.bf16.msra.mxu0 %v2826
        %3218 = vmatpush.bf16.msra.mxu0 %v2825
        %3219 = vmatpush.bf16.msra.mxu0 %v2824
        %3220 = vmatmul.bf16.gmra.mxu0 %v2195
        %v3221 = vpop.f32.mrf.mxu0
        %v3222 = vadd.f32 %v3203, %v3221
        %v3223 = vpop.f32.mrf.mxu0
        %v3224 = vadd.f32 %v3205, %v3223
        %3225 = vmatmul.bf16.gmra.mxu0 %v2211
        %v3226 = vpop.f32.mrf.mxu0
        %v3227 = vadd.f32 %v3208, %v3226
        %v3228 = vpop.f32.mrf.mxu0
        %v3229 = vadd.f32 %v3210, %v3228
        %3230 = vdwg.mxu0
        %3231 = vmatpush.bf16.msra.mxu0 %v2839
        %3232 = vmatpush.bf16.msra.mxu0 %v2838
        %3233 = vmatpush.bf16.msra.mxu0 %v2837
        %3234 = vmatpush.bf16.msra.mxu0 %v2836
        %3235 = vmatpush.bf16.msra.mxu0 %v2835
        %3236 = vmatpush.bf16.msra.mxu0 %v2834
        %3237 = vmatpush.bf16.msra.mxu0 %v2833
        %3238 = vmatpush.bf16.msra.mxu0 %v2832
        %3239 = vmatmul.bf16.gmra.mxu0 %v2196
        %v3240 = vpop.f32.mrf.mxu0
        %v3241 = vadd.f32 %v3222, %v3240
        %v3242 = vpop.f32.mrf.mxu0
        %v3243 = vadd.f32 %v3224, %v3242
        %3244 = vmatmul.bf16.gmra.mxu0 %v2212
        %v3245 = vpop.f32.mrf.mxu0
        %v3246 = vadd.f32 %v3227, %v3245
        %v3247 = vpop.f32.mrf.mxu0
        %v3248 = vadd.f32 %v3229, %v3247
        %3249 = vdwg.mxu0
        %3250 = vmatpush.bf16.msra.mxu0 %v2847
        %3251 = vmatpush.bf16.msra.mxu0 %v2846
        %3252 = vmatpush.bf16.msra.mxu0 %v2845
        %3253 = vmatpush.bf16.msra.mxu0 %v2844
        %3254 = vmatpush.bf16.msra.mxu0 %v2843
        %3255 = vmatpush.bf16.msra.mxu0 %v2842
        %3256 = vmatpush.bf16.msra.mxu0 %v2841
        %3257 = vmatpush.bf16.msra.mxu0 %v2840
        %3258 = vmatmul.bf16.gmra.mxu0 %v2197
        %v3259 = vpop.f32.mrf.mxu0
        %v3260 = vadd.f32 %v3241, %v3259
        %v3261 = vpop.f32.mrf.mxu0
        %v3262 = vadd.f32 %v3243, %v3261
        %3263 = vmatmul.bf16.gmra.mxu0 %v2213
        %v3264 = vpop.f32.mrf.mxu0
        %v3265 = vadd.f32 %v3246, %v3264
        %v3266 = vpop.f32.mrf.mxu0
        %v3267 = vadd.f32 %v3248, %v3266
        %3268 = vdwg.mxu0
        %3269 = vmatpush.bf16.msra.mxu0 %v2855
        %3270 = vmatpush.bf16.msra.mxu0 %v2854
        %3271 = vmatpush.bf16.msra.mxu0 %v2853
        %3272 = vmatpush.bf16.msra.mxu0 %v2852
        %3273 = vmatpush.bf16.msra.mxu0 %v2851
        %3274 = vmatpush.bf16.msra.mxu0 %v2850
        %3275 = vmatpush.bf16.msra.mxu0 %v2849
        %3276 = vmatpush.bf16.msra.mxu0 %v2848
        %3277 = vmatmul.bf16.gmra.mxu0 %v2198
        %v3278 = vpop.f32.mrf.mxu0
        %v3279 = vadd.f32 %v3260, %v3278
        %v3280 = vpop.f32.mrf.mxu0
        %v3281 = vadd.f32 %v3262, %v3280
        %3282 = vmatmul.bf16.gmra.mxu0 %v2214
        %v3283 = vpop.f32.mrf.mxu0
        %v3284 = vadd.f32 %v3265, %v3283
        %v3285 = vpop.f32.mrf.mxu0
        %v3286 = vadd.f32 %v3267, %v3285
        %3287 = vdwg.mxu0
        %v3288 = vadd.f32 %v1609, %v3279
        %v3289 = vadd.f32 %v1610, %v3281
        %v3290 = vadd.f32 %v1611, %v3284
        %v3291 = vadd.f32 %v1612, %v3286
        %v3292 = vsel %vm840, %v3288, 0.0
        %3293 = vadd.xlane.f32.xlu0 %v3292
        %v3294 = vpop.xlane.xlu0 %3293
        %v3295 = vsel %vm840, %v3289, 0.0
        %3296 = vadd.xlane.f32.xlu0 %v3295
        %v3297 = vpop.xlane.xlu0 %3296
        %v3298 = vsel %vm840, %v3290, 0.0
        %3299 = vadd.xlane.f32.xlu0 %v3298
        %v3300 = vpop.xlane.xlu0 %3299
        %v3301 = vsel %vm840, %v3291, 0.0
        %3302 = vadd.xlane.f32.xlu0 %v3301
        %v3303 = vpop.xlane.xlu0 %3302
        %v3304 = vmul.f32 %v3294, %v1526
        %v3305 = vmul.f32 %v3297, %v1526
        %v3306 = vmul.f32 %v3300, %v1526
        %v3307 = vmul.f32 %v3303, %v1526
        %v3308 = vsub.f32 %v3288, %v3304
        %v3309 = vsub.f32 %v3289, %v3305
        %v3310 = vsub.f32 %v3290, %v3306
        %v3311 = vsub.f32 %v3291, %v3307
        %v3312 = vmul.f32 %v3308, %v3308
        %v3313 = vmul.f32 %v3309, %v3309
        %v3314 = vmul.f32 %v3310, %v3310
        %v3315 = vmul.f32 %v3311, %v3311
        %v3316 = vsel %vm840, %v3312, 0.0
        %3317 = vadd.xlane.f32.xlu0 %v3316
        %v3318 = vpop.xlane.xlu0 %3317
        %v3319 = vsel %vm840, %v3313, 0.0
        %3320 = vadd.xlane.f32.xlu0 %v3319
        %v3321 = vpop.xlane.xlu0 %3320
        %v3322 = vsel %vm840, %v3314, 0.0
        %3323 = vadd.xlane.f32.xlu0 %v3322
        %v3324 = vpop.xlane.xlu0 %3323
        %v3325 = vsel %vm840, %v3315, 0.0
        %3326 = vadd.xlane.f32.xlu0 %v3325
        %v3327 = vpop.xlane.xlu0 %3326
        %v3328 = vmul.f32 %v3318, %v1526
        %v3329 = vmul.f32 %v3321, %v1526
        %v3330 = vmul.f32 %v3324, %v1526
        %v3331 = vmul.f32 %v3327, %v1526
        %v3332 = vadd.f32 %v3328, 1e-05
        %v3333 = vadd.f32 %v3329, 1e-05
        %v3334 = vadd.f32 %v3330, 1e-05
        %v3335 = vadd.f32 %v3331, 1e-05
        %v3336 = vrsqrt.pop %v3332
        %v3337 = vmul.f32 %v3336, %v3332
        %v3338 = vmul.f32 %v3337, %v3336
        %v3339 = vmul.f32 0.5, %v3338
        %v3340 = vsub.f32 1.5, %v3339
        %v3341 = vmul.f32 %v3336, %v3340
        %vm3342 = vweird.f32 %v3332
        %vm3343 = vweird.f32 %v3336
        %vm3344 = vmor %vm3342, %vm3343
        %v3345 = vsel %vm3344, %v3336, %v3341
        %v3346 = vrsqrt.pop %v3333
        %v3347 = vmul.f32 %v3346, %v3333
        %v3348 = vmul.f32 %v3347, %v3346
        %v3349 = vmul.f32 0.5, %v3348
        %v3350 = vsub.f32 1.5, %v3349
        %v3351 = vmul.f32 %v3346, %v3350
        %vm3352 = vweird.f32 %v3333
        %vm3353 = vweird.f32 %v3346
        %vm3354 = vmor %vm3352, %vm3353
        %v3355 = vsel %vm3354, %v3346, %v3351
        %v3356 = vrsqrt.pop %v3334
        %v3357 = vmul.f32 %v3356, %v3334
        %v3358 = vmul.f32 %v3357, %v3356
        %v3359 = vmul.f32 0.5, %v3358
        %v3360 = vsub.f32 1.5, %v3359
        %v3361 = vmul.f32 %v3356, %v3360
        %vm3362 = vweird.f32 %v3334
        %vm3363 = vweird.f32 %v3356
        %vm3364 = vmor %vm3362, %vm3363
        %v3365 = vsel %vm3364, %v3356, %v3361
        %v3366 = vrsqrt.pop %v3335
        %v3367 = vmul.f32 %v3366, %v3335
        %v3368 = vmul.f32 %v3367, %v3366
        %v3369 = vmul.f32 0.5, %v3368
        %v3370 = vsub.f32 1.5, %v3369
        %v3371 = vmul.f32 %v3366, %v3370
        %vm3372 = vweird.f32 %v3335
        %vm3373 = vweird.f32 %v3366
        %vm3374 = vmor %vm3372, %vm3373
        %v3375 = vsel %vm3374, %v3366, %v3371
        %v3376 = vmul.f32 %v3308, %v3345
        %v3377 = vmul.f32 %v3309, %v3355
        %v3378 = vmul.f32 %v3310, %v3365
        %v3379 = vmul.f32 %v3311, %v3375
        %v3380 = vperm.slane %v532, 4
        %v3381 = vmul.f32 %v3376, %v3380
        %v3382 = vmul.f32 %v3377, %v3380
        %v3383 = vmul.f32 %v3378, %v3380
        %v3384 = vmul.f32 %v3379, %v3380
        %v3385 = vperm.slane %v532, 5
        %v3386 = vadd.f32 %v3381, %v3385
        %v3387 = vadd.f32 %v3382, %v3385
        %v3388 = vadd.f32 %v3383, %v3385
        %v3389 = vadd.f32 %v3384, %v3385
        %s3390 = scalar_lea.vmem %s4, 16
        %v3391 = vld [vmem:[%s3390] sm:$0xf]
        %v3392 = vld [vmem:[%s3390 + $0x4] sm:$0xf]
        %v3393 = vld [vmem:[%s3390 + $0x8] sm:$0xf]
        %v3394 = vld [vmem:[%s3390 + $0xc] sm:$0xf]
        %s3395 = scalar_lea.vmem %s5, 1
        %v3396 = vld [vmem:[%s3395] sm:$0x1]
        %s3397 = scalar_lea.vmem %s6, 16
        %v3398 = vld [vmem:[%s3397] sm:$0xf]
        %v3399 = vld [vmem:[%s3397 + $0x4] sm:$0xf]
        %v3400 = vld [vmem:[%s3397 + $0x8] sm:$0xf]
        %v3401 = vld [vmem:[%s3397 + $0xc] sm:$0xf]
        %s3402 = scalar_lea.vmem %s7, 8
        %v3403 = vld [vmem:[%s3402] sm:$0x3f]
        %s3404 = scalar_lea.vmem %s8, 256
        %v3405 = vld [vmem:[%s3404] sm:$0xff]
        %v3406 = vld [vmem:[%s3404 + $0x8] sm:$0xff]
        %v3407 = vld [vmem:[%s3404 + $0x10] sm:$0xff]
        %v3408 = vld [vmem:[%s3404 + $0x18] sm:$0xff]
        %v3409 = vld [vmem:[%s3404 + $0x20] sm:$0xff]
        %v3410 = vld [vmem:[%s3404 + $0x28] sm:$0xff]
        %v3411 = vld [vmem:[%s3404 + $0x30] sm:$0xff]
        %v3412 = vld [vmem:[%s3404 + $0x38] sm:$0xff]
        %v3413 = vld [vmem:[%s3404 + $0x40] sm:$0xff]
        %v3414 = vld [vmem:[%s3404 + $0x48] sm:$0xff]
        %v3415 = vld [vmem:[%s3404 + $0x50] sm:$0xff]
        %v3416 = vld [vmem:[%s3404 + $0x58] sm:$0xff]
        %v3417 = vld [vmem:[%s3404 + $0x60] sm:$0xff]
        %v3418 = vld [vmem:[%s3404 + $0x68] sm:$0xff]
        %v3419 = vld [vmem:[%s3404 + $0x70] sm:$0xff]
        %v3420 = vld [vmem:[%s3404 + $0x78] sm:$0xff]
        %v3421 = vld [vmem:[%s3404 + $0x80] sm:$0xff]
        %v3422 = vld [vmem:[%s3404 + $0x88] sm:$0xff]
        %v3423 = vld [vmem:[%s3404 + $0x90] sm:$0xff]
        %v3424 = vld [vmem:[%s3404 + $0x98] sm:$0xff]
        %v3425 = vld [vmem:[%s3404 + $0xa0] sm:$0xff]
        %v3426 = vld [vmem:[%s3404 + $0xa8] sm:$0xff]
        %v3427 = vld [vmem:[%s3404 + $0xb0] sm:$0xff]
        %v3428 = vld [vmem:[%s3404 + $0xb8] sm:$0xff]
        %v3429 = vld [vmem:[%s3404 + $0xc0] sm:$0xff]
        %v3430 = vld [vmem:[%s3404 + $0xc8] sm:$0xff]
        %v3431 = vld [vmem:[%s3404 + $0xd0] sm:$0xff]
        %v3432 = vld [vmem:[%s3404 + $0xd8] sm:$0xff]
        %v3433 = vld [vmem:[%s3404 + $0xe0] sm:$0xff]
        %v3434 = vld [vmem:[%s3404 + $0xe8] sm:$0xff]
        %v3435 = vld [vmem:[%s3404 + $0xf0] sm:$0xff]
        %v3436 = vld [vmem:[%s3404 + $0xf8] sm:$0xff]
        %s3437 = scalar_lea.vmem %s9, 16
        %v3438 = vld [vmem:[%s3437] sm:$0xff]
        %v3439 = vld [vmem:[%s3437 + $0x8] sm:$0xff]
        %s3440 = scalar_lea.vmem %s10, 1024
        %v3441 = vld [vmem:[%s3440] sm:$0xf]
        %v3442 = vld [vmem:[%s3440 + $0x4] sm:$0xf]
        %v3443 = vld [vmem:[%s3440 + $0x8] sm:$0xf]
        %v3444 = vld [vmem:[%s3440 + $0xc] sm:$0xf]
        %v3445 = vld [vmem:[%s3440 + $0x10] sm:$0xf]
        %v3446 = vld [vmem:[%s3440 + $0x14] sm:$0xf]
        %v3447 = vld [vmem:[%s3440 + $0x18] sm:$0xf]
        %v3448 = vld [vmem:[%s3440 + $0x1c] sm:$0xf]
        %v3449 = vld [vmem:[%s3440 + $0x20] sm:$0xf]
        %v3450 = vld [vmem:[%s3440 + $0x24] sm:$0xf]
        %v3451 = vld [vmem:[%s3440 + $0x28] sm:$0xf]
        %v3452 = vld [vmem:[%s3440 + $0x2c] sm:$0xf]
        %v3453 = vld [vmem:[%s3440 + $0x30] sm:$0xf]
        %v3454 = vld [vmem:[%s3440 + $0x34] sm:$0xf]
        %v3455 = vld [vmem:[%s3440 + $0x38] sm:$0xf]
        %v3456 = vld [vmem:[%s3440 + $0x3c] sm:$0xf]
        %v3457 = vld [vmem:[%s3440 + $0x40] sm:$0xf]
        %v3458 = vld [vmem:[%s3440 + $0x44] sm:$0xf]
        %v3459 = vld [vmem:[%s3440 + $0x48] sm:$0xf]
        %v3460 = vld [vmem:[%s3440 + $0x4c] sm:$0xf]
        %v3461 = vld [vmem:[%s3440 + $0x50] sm:$0xf]
        %v3462 = vld [vmem:[%s3440 + $0x54] sm:$0xf]
        %v3463 = vld [vmem:[%s3440 + $0x58] sm:$0xf]
        %v3464 = vld [vmem:[%s3440 + $0x5c] sm:$0xf]
        %v3465 = vld [vmem:[%s3440 + $0x60] sm:$0xf]
        %v3466 = vld [vmem:[%s3440 + $0x64] sm:$0xf]
        %v3467 = vld [vmem:[%s3440 + $0x68] sm:$0xf]
        %v3468 = vld [vmem:[%s3440 + $0x6c] sm:$0xf]
        %v3469 = vld [vmem:[%s3440 + $0x70] sm:$0xf]
        %v3470 = vld [vmem:[%s3440 + $0x74] sm:$0xf]
        %v3471 = vld [vmem:[%s3440 + $0x78] sm:$0xf]
        %v3472 = vld [vmem:[%s3440 + $0x7c] sm:$0xf]
        %v3473 = vld [vmem:[%s3440 + $0x80] sm:$0xf]
        %v3474 = vld [vmem:[%s3440 + $0x84] sm:$0xf]
        %v3475 = vld [vmem:[%s3440 + $0x88] sm:$0xf]
        %v3476 = vld [vmem:[%s3440 + $0x8c] sm:$0xf]
        %v3477 = vld [vmem:[%s3440 + $0x90] sm:$0xf]
        %v3478 = vld [vmem:[%s3440 + $0x94] sm:$0xf]
        %v3479 = vld [vmem:[%s3440 + $0x98] sm:$0xf]
        %v3480 = vld [vmem:[%s3440 + $0x9c] sm:$0xf]
        %v3481 = vld [vmem:[%s3440 + $0xa0] sm:$0xf]
        %v3482 = vld [vmem:[%s3440 + $0xa4] sm:$0xf]
        %v3483 = vld [vmem:[%s3440 + $0xa8] sm:$0xf]
        %v3484 = vld [vmem:[%s3440 + $0xac] sm:$0xf]
        %v3485 = vld [vmem:[%s3440 + $0xb0] sm:$0xf]
        %v3486 = vld [vmem:[%s3440 + $0xb4] sm:$0xf]
        %v3487 = vld [vmem:[%s3440 + $0xb8] sm:$0xf]
        %v3488 = vld [vmem:[%s3440 + $0xbc] sm:$0xf]
        %v3489 = vld [vmem:[%s3440 + $0xc0] sm:$0xf]
        %v3490 = vld [vmem:[%s3440 + $0xc4] sm:$0xf]
        %v3491 = vld [vmem:[%s3440 + $0xc8] sm:$0xf]
        %v3492 = vld [vmem:[%s3440 + $0xcc] sm:$0xf]
        %v3493 = vld [vmem:[%s3440 + $0xd0] sm:$0xf]
        %v3494 = vld [vmem:[%s3440 + $0xd4] sm:$0xf]
        %v3495 = vld [vmem:[%s3440 + $0xd8] sm:$0xf]
        %v3496 = vld [vmem:[%s3440 + $0xdc] sm:$0xf]
        %v3497 = vld [vmem:[%s3440 + $0xe0] sm:$0xf]
        %v3498 = vld [vmem:[%s3440 + $0xe4] sm:$0xf]
        %v3499 = vld [vmem:[%s3440 + $0xe8] sm:$0xf]
        %v3500 = vld [vmem:[%s3440 + $0xec] sm:$0xf]
        %v3501 = vld [vmem:[%s3440 + $0xf0] sm:$0xf]
        %v3502 = vld [vmem:[%s3440 + $0xf4] sm:$0xf]
        %v3503 = vld [vmem:[%s3440 + $0xf8] sm:$0xf]
        %v3504 = vld [vmem:[%s3440 + $0xfc] sm:$0xf]
        %v3505 = vld [vmem:[%s3440 + $0x100] sm:$0xf]
        %v3506 = vld [vmem:[%s3440 + $0x104] sm:$0xf]
        %v3507 = vld [vmem:[%s3440 + $0x108] sm:$0xf]
        %v3508 = vld [vmem:[%s3440 + $0x10c] sm:$0xf]
        %v3509 = vld [vmem:[%s3440 + $0x110] sm:$0xf]
        %v3510 = vld [vmem:[%s3440 + $0x114] sm:$0xf]
        %v3511 = vld [vmem:[%s3440 + $0x118] sm:$0xf]
        %v3512 = vld [vmem:[%s3440 + $0x11c] sm:$0xf]
        %v3513 = vld [vmem:[%s3440 + $0x120] sm:$0xf]
        %v3514 = vld [vmem:[%s3440 + $0x124] sm:$0xf]
        %v3515 = vld [vmem:[%s3440 + $0x128] sm:$0xf]
        %v3516 = vld [vmem:[%s3440 + $0x12c] sm:$0xf]
        %v3517 = vld [vmem:[%s3440 + $0x130] sm:$0xf]
        %v3518 = vld [vmem:[%s3440 + $0x134] sm:$0xf]
        %v3519 = vld [vmem:[%s3440 + $0x138] sm:$0xf]
        %v3520 = vld [vmem:[%s3440 + $0x13c] sm:$0xf]
        %v3521 = vld [vmem:[%s3440 + $0x140] sm:$0xf]
        %v3522 = vld [vmem:[%s3440 + $0x144] sm:$0xf]
        %v3523 = vld [vmem:[%s3440 + $0x148] sm:$0xf]
        %v3524 = vld [vmem:[%s3440 + $0x14c] sm:$0xf]
        %v3525 = vld [vmem:[%s3440 + $0x150] sm:$0xf]
        %v3526 = vld [vmem:[%s3440 + $0x154] sm:$0xf]
        %v3527 = vld [vmem:[%s3440 + $0x158] sm:$0xf]
        %v3528 = vld [vmem:[%s3440 + $0x15c] sm:$0xf]
        %v3529 = vld [vmem:[%s3440 + $0x160] sm:$0xf]
        %v3530 = vld [vmem:[%s3440 + $0x164] sm:$0xf]
        %v3531 = vld [vmem:[%s3440 + $0x168] sm:$0xf]
        %v3532 = vld [vmem:[%s3440 + $0x16c] sm:$0xf]
        %v3533 = vld [vmem:[%s3440 + $0x170] sm:$0xf]
        %v3534 = vld [vmem:[%s3440 + $0x174] sm:$0xf]
        %v3535 = vld [vmem:[%s3440 + $0x178] sm:$0xf]
        %v3536 = vld [vmem:[%s3440 + $0x17c] sm:$0xf]
        %v3537 = vld [vmem:[%s3440 + $0x180] sm:$0xf]
        %v3538 = vld [vmem:[%s3440 + $0x184] sm:$0xf]
        %v3539 = vld [vmem:[%s3440 + $0x188] sm:$0xf]
        %v3540 = vld [vmem:[%s3440 + $0x18c] sm:$0xf]
        %v3541 = vld [vmem:[%s3440 + $0x190] sm:$0xf]
        %v3542 = vld [vmem:[%s3440 + $0x194] sm:$0xf]
        %v3543 = vld [vmem:[%s3440 + $0x198] sm:$0xf]
        %v3544 = vld [vmem:[%s3440 + $0x19c] sm:$0xf]
        %v3545 = vld [vmem:[%s3440 + $0x1a0] sm:$0xf]
        %v3546 = vld [vmem:[%s3440 + $0x1a4] sm:$0xf]
        %v3547 = vld [vmem:[%s3440 + $0x1a8] sm:$0xf]
        %v3548 = vld [vmem:[%s3440 + $0x1ac] sm:$0xf]
        %v3549 = vld [vmem:[%s3440 + $0x1b0] sm:$0xf]
        %v3550 = vld [vmem:[%s3440 + $0x1b4] sm:$0xf]
        %v3551 = vld [vmem:[%s3440 + $0x1b8] sm:$0xf]
        %v3552 = vld [vmem:[%s3440 + $0x1bc] sm:$0xf]
        %v3553 = vld [vmem:[%s3440 + $0x1c0] sm:$0xf]
        %v3554 = vld [vmem:[%s3440 + $0x1c4] sm:$0xf]
        %v3555 = vld [vmem:[%s3440 + $0x1c8] sm:$0xf]
        %v3556 = vld [vmem:[%s3440 + $0x1cc] sm:$0xf]
        %v3557 = vld [vmem:[%s3440 + $0x1d0] sm:$0xf]
        %v3558 = vld [vmem:[%s3440 + $0x1d4] sm:$0xf]
        %v3559 = vld [vmem:[%s3440 + $0x1d8] sm:$0xf]
        %v3560 = vld [vmem:[%s3440 + $0x1dc] sm:$0xf]
        %v3561 = vld [vmem:[%s3440 + $0x1e0] sm:$0xf]
        %v3562 = vld [vmem:[%s3440 + $0x1e4] sm:$0xf]
        %v3563 = vld [vmem:[%s3440 + $0x1e8] sm:$0xf]
        %v3564 = vld [vmem:[%s3440 + $0x1ec] sm:$0xf]
        %v3565 = vld [vmem:[%s3440 + $0x1f0] sm:$0xf]
        %v3566 = vld [vmem:[%s3440 + $0x1f4] sm:$0xf]
        %v3567 = vld [vmem:[%s3440 + $0x1f8] sm:$0xf]
        %v3568 = vld [vmem:[%s3440 + $0x1fc] sm:$0xf]
        %v3569 = vld [vmem:[%s3440 + $0x200] sm:$0xf]
        %v3570 = vld [vmem:[%s3440 + $0x204] sm:$0xf]
        %v3571 = vld [vmem:[%s3440 + $0x208] sm:$0xf]
        %v3572 = vld [vmem:[%s3440 + $0x20c] sm:$0xf]
        %v3573 = vld [vmem:[%s3440 + $0x210] sm:$0xf]
        %v3574 = vld [vmem:[%s3440 + $0x214] sm:$0xf]
        %v3575 = vld [vmem:[%s3440 + $0x218] sm:$0xf]
        %v3576 = vld [vmem:[%s3440 + $0x21c] sm:$0xf]
        %v3577 = vld [vmem:[%s3440 + $0x220] sm:$0xf]
        %v3578 = vld [vmem:[%s3440 + $0x224] sm:$0xf]
        %v3579 = vld [vmem:[%s3440 + $0x228] sm:$0xf]
        %v3580 = vld [vmem:[%s3440 + $0x22c] sm:$0xf]
        %v3581 = vld [vmem:[%s3440 + $0x230] sm:$0xf]
        %v3582 = vld [vmem:[%s3440 + $0x234] sm:$0xf]
        %v3583 = vld [vmem:[%s3440 + $0x238] sm:$0xf]
        %v3584 = vld [vmem:[%s3440 + $0x23c] sm:$0xf]
        %v3585 = vld [vmem:[%s3440 + $0x240] sm:$0xf]
        %v3586 = vld [vmem:[%s3440 + $0x244] sm:$0xf]
        %v3587 = vld [vmem:[%s3440 + $0x248] sm:$0xf]
        %v3588 = vld [vmem:[%s3440 + $0x24c] sm:$0xf]
        %v3589 = vld [vmem:[%s3440 + $0x250] sm:$0xf]
        %v3590 = vld [vmem:[%s3440 + $0x254] sm:$0xf]
        %v3591 = vld [vmem:[%s3440 + $0x258] sm:$0xf]
        %v3592 = vld [vmem:[%s3440 + $0x25c] sm:$0xf]
        %v3593 = vld [vmem:[%s3440 + $0x260] sm:$0xf]
        %v3594 = vld [vmem:[%s3440 + $0x264] sm:$0xf]
        %v3595 = vld [vmem:[%s3440 + $0x268] sm:$0xf]
        %v3596 = vld [vmem:[%s3440 + $0x26c] sm:$0xf]
        %v3597 = vld [vmem:[%s3440 + $0x270] sm:$0xf]
        %v3598 = vld [vmem:[%s3440 + $0x274] sm:$0xf]
        %v3599 = vld [vmem:[%s3440 + $0x278] sm:$0xf]
        %v3600 = vld [vmem:[%s3440 + $0x27c] sm:$0xf]
        %v3601 = vld [vmem:[%s3440 + $0x280] sm:$0xf]
        %v3602 = vld [vmem:[%s3440 + $0x284] sm:$0xf]
        %v3603 = vld [vmem:[%s3440 + $0x288] sm:$0xf]
        %v3604 = vld [vmem:[%s3440 + $0x28c] sm:$0xf]
        %v3605 = vld [vmem:[%s3440 + $0x290] sm:$0xf]
        %v3606 = vld [vmem:[%s3440 + $0x294] sm:$0xf]
        %v3607 = vld [vmem:[%s3440 + $0x298] sm:$0xf]
        %v3608 = vld [vmem:[%s3440 + $0x29c] sm:$0xf]
        %v3609 = vld [vmem:[%s3440 + $0x2a0] sm:$0xf]
        %v3610 = vld [vmem:[%s3440 + $0x2a4] sm:$0xf]
        %v3611 = vld [vmem:[%s3440 + $0x2a8] sm:$0xf]
        %v3612 = vld [vmem:[%s3440 + $0x2ac] sm:$0xf]
        %v3613 = vld [vmem:[%s3440 + $0x2b0] sm:$0xf]
        %v3614 = vld [vmem:[%s3440 + $0x2b4] sm:$0xf]
        %v3615 = vld [vmem:[%s3440 + $0x2b8] sm:$0xf]
        %v3616 = vld [vmem:[%s3440 + $0x2bc] sm:$0xf]
        %v3617 = vld [vmem:[%s3440 + $0x2c0] sm:$0xf]
        %v3618 = vld [vmem:[%s3440 + $0x2c4] sm:$0xf]
        %v3619 = vld [vmem:[%s3440 + $0x2c8] sm:$0xf]
        %v3620 = vld [vmem:[%s3440 + $0x2cc] sm:$0xf]
        %v3621 = vld [vmem:[%s3440 + $0x2d0] sm:$0xf]
        %v3622 = vld [vmem:[%s3440 + $0x2d4] sm:$0xf]
        %v3623 = vld [vmem:[%s3440 + $0x2d8] sm:$0xf]
        %v3624 = vld [vmem:[%s3440 + $0x2dc] sm:$0xf]
        %v3625 = vld [vmem:[%s3440 + $0x2e0] sm:$0xf]
        %v3626 = vld [vmem:[%s3440 + $0x2e4] sm:$0xf]
        %v3627 = vld [vmem:[%s3440 + $0x2e8] sm:$0xf]
        %v3628 = vld [vmem:[%s3440 + $0x2ec] sm:$0xf]
        %v3629 = vld [vmem:[%s3440 + $0x2f0] sm:$0xf]
        %v3630 = vld [vmem:[%s3440 + $0x2f4] sm:$0xf]
        %v3631 = vld [vmem:[%s3440 + $0x2f8] sm:$0xf]
        %v3632 = vld [vmem:[%s3440 + $0x2fc] sm:$0xf]
        %v3633 = vld [vmem:[%s3440 + $0x300] sm:$0xf]
        %v3634 = vld [vmem:[%s3440 + $0x304] sm:$0xf]
        %v3635 = vld [vmem:[%s3440 + $0x308] sm:$0xf]
        %v3636 = vld [vmem:[%s3440 + $0x30c] sm:$0xf]
        %v3637 = vld [vmem:[%s3440 + $0x310] sm:$0xf]
        %v3638 = vld [vmem:[%s3440 + $0x314] sm:$0xf]
        %v3639 = vld [vmem:[%s3440 + $0x318] sm:$0xf]
        %v3640 = vld [vmem:[%s3440 + $0x31c] sm:$0xf]
        %v3641 = vld [vmem:[%s3440 + $0x320] sm:$0xf]
        %v3642 = vld [vmem:[%s3440 + $0x324] sm:$0xf]
        %v3643 = vld [vmem:[%s3440 + $0x328] sm:$0xf]
        %v3644 = vld [vmem:[%s3440 + $0x32c] sm:$0xf]
        %v3645 = vld [vmem:[%s3440 + $0x330] sm:$0xf]
        %v3646 = vld [vmem:[%s3440 + $0x334] sm:$0xf]
        %v3647 = vld [vmem:[%s3440 + $0x338] sm:$0xf]
        %v3648 = vld [vmem:[%s3440 + $0x33c] sm:$0xf]
        %v3649 = vld [vmem:[%s3440 + $0x340] sm:$0xf]
        %v3650 = vld [vmem:[%s3440 + $0x344] sm:$0xf]
        %v3651 = vld [vmem:[%s3440 + $0x348] sm:$0xf]
        %v3652 = vld [vmem:[%s3440 + $0x34c] sm:$0xf]
        %v3653 = vld [vmem:[%s3440 + $0x350] sm:$0xf]
        %v3654 = vld [vmem:[%s3440 + $0x354] sm:$0xf]
        %v3655 = vld [vmem:[%s3440 + $0x358] sm:$0xf]
        %v3656 = vld [vmem:[%s3440 + $0x35c] sm:$0xf]
        %v3657 = vld [vmem:[%s3440 + $0x360] sm:$0xf]
        %v3658 = vld [vmem:[%s3440 + $0x364] sm:$0xf]
        %v3659 = vld [vmem:[%s3440 + $0x368] sm:$0xf]
        %v3660 = vld [vmem:[%s3440 + $0x36c] sm:$0xf]
        %v3661 = vld [vmem:[%s3440 + $0x370] sm:$0xf]
        %v3662 = vld [vmem:[%s3440 + $0x374] sm:$0xf]
        %v3663 = vld [vmem:[%s3440 + $0x378] sm:$0xf]
        %v3664 = vld [vmem:[%s3440 + $0x37c] sm:$0xf]
        %v3665 = vld [vmem:[%s3440 + $0x380] sm:$0xf]
        %v3666 = vld [vmem:[%s3440 + $0x384] sm:$0xf]
        %v3667 = vld [vmem:[%s3440 + $0x388] sm:$0xf]
        %v3668 = vld [vmem:[%s3440 + $0x38c] sm:$0xf]
        %v3669 = vld [vmem:[%s3440 + $0x390] sm:$0xf]
        %v3670 = vld [vmem:[%s3440 + $0x394] sm:$0xf]
        %v3671 = vld [vmem:[%s3440 + $0x398] sm:$0xf]
        %v3672 = vld [vmem:[%s3440 + $0x39c] sm:$0xf]
        %v3673 = vld [vmem:[%s3440 + $0x3a0] sm:$0xf]
        %v3674 = vld [vmem:[%s3440 + $0x3a4] sm:$0xf]
        %v3675 = vld [vmem:[%s3440 + $0x3a8] sm:$0xf]
        %v3676 = vld [vmem:[%s3440 + $0x3ac] sm:$0xf]
        %v3677 = vld [vmem:[%s3440 + $0x3b0] sm:$0xf]
        %v3678 = vld [vmem:[%s3440 + $0x3b4] sm:$0xf]
        %v3679 = vld [vmem:[%s3440 + $0x3b8] sm:$0xf]
        %v3680 = vld [vmem:[%s3440 + $0x3bc] sm:$0xf]
        %v3681 = vld [vmem:[%s3440 + $0x3c0] sm:$0xf]
        %v3682 = vld [vmem:[%s3440 + $0x3c4] sm:$0xf]
        %v3683 = vld [vmem:[%s3440 + $0x3c8] sm:$0xf]
        %v3684 = vld [vmem:[%s3440 + $0x3cc] sm:$0xf]
        %v3685 = vld [vmem:[%s3440 + $0x3d0] sm:$0xf]
        %v3686 = vld [vmem:[%s3440 + $0x3d4] sm:$0xf]
        %v3687 = vld [vmem:[%s3440 + $0x3d8] sm:$0xf]
        %v3688 = vld [vmem:[%s3440 + $0x3dc] sm:$0xf]
        %v3689 = vld [vmem:[%s3440 + $0x3e0] sm:$0xf]
        %v3690 = vld [vmem:[%s3440 + $0x3e4] sm:$0xf]
        %v3691 = vld [vmem:[%s3440 + $0x3e8] sm:$0xf]
        %v3692 = vld [vmem:[%s3440 + $0x3ec] sm:$0xf]
        %v3693 = vld [vmem:[%s3440 + $0x3f0] sm:$0xf]
        %v3694 = vld [vmem:[%s3440 + $0x3f4] sm:$0xf]
        %v3695 = vld [vmem:[%s3440 + $0x3f8] sm:$0xf]
        %v3696 = vld [vmem:[%s3440 + $0x3fc] sm:$0xf]
        %v3697 = vpack.c.bf16 %v3387, %v3386
        %v3698 = vpack.c.bf16 %v3389, %v3388
        %v3700 = vperm.slane %v3396, 0
        %v3706 = vunpack.c.l.b16 %v3391
        %v3707 = vunpack.c.l.b16 %v3392
        %v3708 = vunpack.c.l.b16 %v3393
        %v3709 = vunpack.c.l.b16 %v3394
        %v3710 = vpack.c.b16 %v3707, %v3706
        %v3711 = vpack.c.b16 %v3709, %v3708
        %v3715 = vsel %vm840, %v3697, 0
        %v3718 = vsel %vm840, %v3698, 0
        %3720 = vmatpush.bf16.msra.mxu0 0
        %3721 = vmatpush.bf16.msra.mxu0 0
        %3722 = vmatpush.bf16.msra.mxu0 0
        %3723 = vmatpush.bf16.msra.mxu0 0
        %3724 = vmatpush.bf16.msra.mxu0 0
        %3725 = vmatpush.bf16.msra.mxu0 0
        %3726 = vmatpush.bf16.msra.mxu0 %v3711
        %3727 = vmatpush.bf16.msra.mxu0 %v3710
        %3728 = vmatmul.bf16.gmra.mxu0 %v3715
        %v3729 = vpop.f32.mrf.mxu0
        %v3730 = vadd.f32 %v3700, %v3729
        %v3731 = vpop.f32.mrf.mxu0
        %v3732 = vadd.f32 %v3700, %v3731
        %3733 = vmatmul.bf16.gmra.mxu0 %v3718
        %v3734 = vpop.f32.mrf.mxu0
        %v3735 = vadd.f32 %v3700, %v3734
        %v3736 = vpop.f32.mrf.mxu0
        %v3737 = vadd.f32 %v3700, %v3736
        %3738 = vdwg.mxu0
        %v3739 = vpack.c.bf16 %v3732, %v3730
        %3741 = vrot.lane.b32.xlu0 %v3739, 96
        %v3742 = vpop.permute.xlu0 %3741
        %v3744 = vsel %vm870, %v3739, 0
        %v3747 = vsel %vm870, %v3742, 0
        %3749 = vmatpush.bf16.xpose.msra.mxu0 0
        %3750 = vmatpush.bf16.xpose.msra.mxu0 0
        %3751 = vmatpush.bf16.xpose.msra.mxu0 0
        %3752 = vmatpush.bf16.xpose.msra.mxu0 0
        %3753 = vmatpush.bf16.xpose.msra.mxu0 0
        %3754 = vmatpush.bf16.xpose.msra.mxu0 0
        %3755 = vmatpush.bf16.xpose.msra.mxu0 0
        %3756 = vmatpush.bf16.xpose.msra.mxu0 %v3747
        %3757 = vmatmul.bf16.gmra.mxu0 %v3744
        %v3758 = vpop.f32.mrf.mxu0
        %v3759 = vadd.f32 0.0, %v3758
        %v3760 = vpop.f32.mrf.mxu0
        %v3761 = vadd.f32 0.0, %v3760
        %3762 = vdwg.mxu0
        %v3763 = vsel %vm493, %v3759, -inf
        %3764 = vmax.xlane.f32.xlu0 %v3763
        %v3765 = vpop.xlane.xlu0 %3764
        %v3766 = vsel %vm493, %v3761, -inf
        %3767 = vmax.xlane.f32.xlu0 %v3766
        %v3768 = vpop.xlane.xlu0 %3767
        %v3769 = vsub.f32 %v3759, %v3765
        %v3770 = vsub.f32 %v3761, %v3768
        %v3771 = vmul.f32 %v3769, 1.442695
        %v3772 = vpow.pop %v3771
        %v3773 = vmul.f32 %v3770, 1.442695
        %v3774 = vpow.pop %v3773
        %v3775 = vsel %vm493, %v3772, 0.0
        %3776 = vadd.xlane.f32.xlu0 %v3775
        %v3777 = vpop.xlane.xlu0 %3776
        %v3778 = vsel %vm493, %v3774, 0.0
        %3779 = vadd.xlane.f32.xlu0 %v3778
        %v3780 = vpop.xlane.xlu0 %3779
        %v3781 = vrcp.pop %v3777
        %v3782 = vrcp.pop %v3780
        %v3783 = vmul.f32 %v3772, %v3781
        %v3784 = vmul.f32 %v3774, %v3782
        %v3785 = vpack.c.bf16 %v3784, %v3783
        %3786 = vrot.lane.b32.xlu0 %v3739, 64
        %v3787 = vpop.permute.xlu0 %3786
        %v3790 = vsel %vm493, %v3785, 0
        %3792 = vmatpush.bf16.msra.mxu0 0
        %3793 = vmatpush.bf16.msra.mxu0 0
        %3794 = vmatpush.bf16.msra.mxu0 0
        %3795 = vmatpush.bf16.msra.mxu0 0
        %3796 = vmatpush.bf16.msra.mxu0 0
        %3797 = vmatpush.bf16.msra.mxu0 0
        %3798 = vmatpush.bf16.msra.mxu0 0
        %3799 = vmatpush.bf16.msra.mxu0 %v3787
        %3800 = vmatmul.bf16.gmra.mxu0 %v3790
        %v3801 = vpop.f32.mrf.mxu0
        %v3802 = vadd.f32 0.0, %v3801
        %v3803 = vpop.f32.mrf.mxu0
        %v3804 = vadd.f32 0.0, %v3803
        %3805 = vdwg.mxu0
        %3806 = vrot.lane.b32.xlu0 %v3739, 120
        %v3807 = vpop.permute.xlu0 %3806
        %3808 = vrot.lane.b32.xlu0 %v3739, 88
        %v3809 = vpop.permute.xlu0 %3808
        %v3811 = vsel %vm870, %v3807, 0
        %v3814 = vsel %vm870, %v3809, 0
        %3816 = vmatpush.bf16.xpose.msra.mxu0 0
        %3817 = vmatpush.bf16.xpose.msra.mxu0 0
        %3818 = vmatpush.bf16.xpose.msra.mxu0 0
        %3819 = vmatpush.bf16.xpose.msra.mxu0 0
        %3820 = vmatpush.bf16.xpose.msra.mxu0 0
        %3821 = vmatpush.bf16.xpose.msra.mxu0 0
        %3822 = vmatpush.bf16.xpose.msra.mxu0 0
        %3823 = vmatpush.bf16.xpose.msra.mxu0 %v3814
        %3824 = vmatmul.bf16.gmra.mxu0 %v3811
        %v3825 = vpop.f32.mrf.mxu0
        %v3826 = vadd.f32 0.0, %v3825
        %v3827 = vpop.f32.mrf.mxu0
        %v3828 = vadd.f32 0.0, %v3827
        %3829 = vdwg.mxu0
        %v3830 = vsel %vm493, %v3826, -inf
        %3831 = vmax.xlane.f32.xlu0 %v3830
        %v3832 = vpop.xlane.xlu0 %3831
        %v3833 = vsel %vm493, %v3828, -inf
        %3834 = vmax.xlane.f32.xlu0 %v3833
        %v3835 = vpop.xlane.xlu0 %3834
        %v3836 = vsub.f32 %v3826, %v3832
        %v3837 = vsub.f32 %v3828, %v3835
        %v3838 = vmul.f32 %v3836, 1.442695
        %v3839 = vpow.pop %v3838
        %v3840 = vmul.f32 %v3837, 1.442695
        %v3841 = vpow.pop %v3840
        %v3842 = vsel %vm493, %v3839, 0.0
        %3843 = vadd.xlane.f32.xlu0 %v3842
        %v3844 = vpop.xlane.xlu0 %3843
        %v3845 = vsel %vm493, %v3841, 0.0
        %3846 = vadd.xlane.f32.xlu0 %v3845
        %v3847 = vpop.xlane.xlu0 %3846
        %v3848 = vrcp.pop %v3844
        %v3849 = vrcp.pop %v3847
        %v3850 = vmul.f32 %v3839, %v3848
        %v3851 = vmul.f32 %v3841, %v3849
        %v3852 = vpack.c.bf16 %v3851, %v3850
        %3853 = vrot.lane.b32.xlu0 %v3739, 56
        %v3854 = vpop.permute.xlu0 %3853
        %v3857 = vsel %vm493, %v3852, 0
        %3859 = vmatpush.bf16.msra.mxu0 0
        %3860 = vmatpush.bf16.msra.mxu0 0
        %3861 = vmatpush.bf16.msra.mxu0 0
        %3862 = vmatpush.bf16.msra.mxu0 0
        %3863 = vmatpush.bf16.msra.mxu0 0
        %3864 = vmatpush.bf16.msra.mxu0 0
        %3865 = vmatpush.bf16.msra.mxu0 0
        %3866 = vmatpush.bf16.msra.mxu0 %v3854
        %3867 = vmatmul.bf16.gmra.mxu0 %v3857
        %v3868 = vpop.f32.mrf.mxu0
        %v3869 = vadd.f32 0.0, %v3868
        %v3870 = vpop.f32.mrf.mxu0
        %v3871 = vadd.f32 0.0, %v3870
        %3872 = vdwg.mxu0
        %3873 = vrot.lane.b32.xlu0 %v3739, 112
        %v3874 = vpop.permute.xlu0 %3873
        %3875 = vrot.lane.b32.xlu0 %v3739, 80
        %v3876 = vpop.permute.xlu0 %3875
        %v3878 = vsel %vm870, %v3874, 0
        %v3881 = vsel %vm870, %v3876, 0
        %3883 = vmatpush.bf16.xpose.msra.mxu0 0
        %3884 = vmatpush.bf16.xpose.msra.mxu0 0
        %3885 = vmatpush.bf16.xpose.msra.mxu0 0
        %3886 = vmatpush.bf16.xpose.msra.mxu0 0
        %3887 = vmatpush.bf16.xpose.msra.mxu0 0
        %3888 = vmatpush.bf16.xpose.msra.mxu0 0
        %3889 = vmatpush.bf16.xpose.msra.mxu0 0
        %3890 = vmatpush.bf16.xpose.msra.mxu0 %v3881
        %3891 = vmatmul.bf16.gmra.mxu0 %v3878
        %v3892 = vpop.f32.mrf.mxu0
        %v3893 = vadd.f32 0.0, %v3892
        %v3894 = vpop.f32.mrf.mxu0
        %v3895 = vadd.f32 0.0, %v3894
        %3896 = vdwg.mxu0
        %v3897 = vsel %vm493, %v3893, -inf
        %3898 = vmax.xlane.f32.xlu0 %v3897
        %v3899 = vpop.xlane.xlu0 %3898
        %v3900 = vsel %vm493, %v3895, -inf
        %3901 = vmax.xlane.f32.xlu0 %v3900
        %v3902 = vpop.xlane.xlu0 %3901
        %v3903 = vsub.f32 %v3893, %v3899
        %v3904 = vsub.f32 %v3895, %v3902
        %v3905 = vmul.f32 %v3903, 1.442695
        %v3906 = vpow.pop %v3905
        %v3907 = vmul.f32 %v3904, 1.442695
        %v3908 = vpow.pop %v3907
        %v3909 = vsel %vm493, %v3906, 0.0
        %3910 = vadd.xlane.f32.xlu0 %v3909
        %v3911 = vpop.xlane.xlu0 %3910
        %v3912 = vsel %vm493, %v3908, 0.0
        %3913 = vadd.xlane.f32.xlu0 %v3912
        %v3914 = vpop.xlane.xlu0 %3913
        %v3915 = vrcp.pop %v3911
        %v3916 = vrcp.pop %v3914
        %v3917 = vmul.f32 %v3906, %v3915
        %v3918 = vmul.f32 %v3908, %v3916
        %v3919 = vpack.c.bf16 %v3918, %v3917
        %3920 = vrot.lane.b32.xlu0 %v3739, 48
        %v3921 = vpop.permute.xlu0 %3920
        %v3924 = vsel %vm493, %v3919, 0
        %3926 = vmatpush.bf16.msra.mxu0 0
        %3927 = vmatpush.bf16.msra.mxu0 0
        %3928 = vmatpush.bf16.msra.mxu0 0
        %3929 = vmatpush.bf16.msra.mxu0 0
        %3930 = vmatpush.bf16.msra.mxu0 0
        %3931 = vmatpush.bf16.msra.mxu0 0
        %3932 = vmatpush.bf16.msra.mxu0 0
        %3933 = vmatpush.bf16.msra.mxu0 %v3921
        %3934 = vmatmul.bf16.gmra.mxu0 %v3924
        %v3935 = vpop.f32.mrf.mxu0
        %v3936 = vadd.f32 0.0, %v3935
        %v3937 = vpop.f32.mrf.mxu0
        %v3938 = vadd.f32 0.0, %v3937
        %3939 = vdwg.mxu0
        %3940 = vrot.lane.b32.xlu0 %v3739, 104
        %v3941 = vpop.permute.xlu0 %3940
        %3942 = vrot.lane.b32.xlu0 %v3739, 72
        %v3943 = vpop.permute.xlu0 %3942
        %v3945 = vsel %vm870, %v3941, 0
        %v3948 = vsel %vm870, %v3943, 0
        %3950 = vmatpush.bf16.xpose.msra.mxu0 0
        %3951 = vmatpush.bf16.xpose.msra.mxu0 0
        %3952 = vmatpush.bf16.xpose.msra.mxu0 0
        %3953 = vmatpush.bf16.xpose.msra.mxu0 0
        %3954 = vmatpush.bf16.xpose.msra.mxu0 0
        %3955 = vmatpush.bf16.xpose.msra.mxu0 0
        %3956 = vmatpush.bf16.xpose.msra.mxu0 0
        %3957 = vmatpush.bf16.xpose.msra.mxu0 %v3948
        %3958 = vmatmul.bf16.gmra.mxu0 %v3945
        %v3959 = vpop.f32.mrf.mxu0
        %v3960 = vadd.f32 0.0, %v3959
        %v3961 = vpop.f32.mrf.mxu0
        %v3962 = vadd.f32 0.0, %v3961
        %3963 = vdwg.mxu0
        %v3964 = vsel %vm493, %v3960, -inf
        %3965 = vmax.xlane.f32.xlu0 %v3964
        %v3966 = vpop.xlane.xlu0 %3965
        %v3967 = vsel %vm493, %v3962, -inf
        %3968 = vmax.xlane.f32.xlu0 %v3967
        %v3969 = vpop.xlane.xlu0 %3968
        %v3970 = vsub.f32 %v3960, %v3966
        %v3971 = vsub.f32 %v3962, %v3969
        %v3972 = vmul.f32 %v3970, 1.442695
        %v3973 = vpow.pop %v3972
        %v3974 = vmul.f32 %v3971, 1.442695
        %v3975 = vpow.pop %v3974
        %v3976 = vsel %vm493, %v3973, 0.0
        %3977 = vadd.xlane.f32.xlu0 %v3976
        %v3978 = vpop.xlane.xlu0 %3977
        %v3979 = vsel %vm493, %v3975, 0.0
        %3980 = vadd.xlane.f32.xlu0 %v3979
        %v3981 = vpop.xlane.xlu0 %3980
        %v3982 = vrcp.pop %v3978
        %v3983 = vrcp.pop %v3981
        %v3984 = vmul.f32 %v3973, %v3982
        %v3985 = vmul.f32 %v3975, %v3983
        %v3986 = vpack.c.bf16 %v3985, %v3984
        %3987 = vrot.lane.b32.xlu0 %v3739, 40
        %v3988 = vpop.permute.xlu0 %3987
        %v3991 = vsel %vm493, %v3986, 0
        %3993 = vmatpush.bf16.msra.mxu0 0
        %3994 = vmatpush.bf16.msra.mxu0 0
        %3995 = vmatpush.bf16.msra.mxu0 0
        %3996 = vmatpush.bf16.msra.mxu0 0
        %3997 = vmatpush.bf16.msra.mxu0 0
        %3998 = vmatpush.bf16.msra.mxu0 0
        %3999 = vmatpush.bf16.msra.mxu0 0
        %4000 = vmatpush.bf16.msra.mxu0 %v3988
        %4001 = vmatmul.bf16.gmra.mxu0 %v3991
        %v4002 = vpop.f32.mrf.mxu0
        %v4003 = vadd.f32 0.0, %v4002
        %v4004 = vpop.f32.mrf.mxu0
        %v4005 = vadd.f32 0.0, %v4004
        %4006 = vdwg.mxu0
        %4009 = vrot.lane.b32.xlu0 %v3869, 8
        %v4010 = vpop.permute.xlu0 %4009
        %4011 = vrot.lane.b32.xlu0 %v3871, 8
        %v4012 = vpop.permute.xlu0 %4011
        %4017 = vrot.lane.b32.xlu0 %v3936, 16
        %v4018 = vpop.permute.xlu0 %4017
        %4019 = vrot.lane.b32.xlu0 %v3938, 16
        %v4020 = vpop.permute.xlu0 %4019
        %4025 = vrot.lane.b32.xlu0 %v4003, 24
        %v4026 = vpop.permute.xlu0 %4025
        %4027 = vrot.lane.b32.xlu0 %v4005, 24
        %v4028 = vpop.permute.xlu0 %4027
        %v4031 = vsel %vm870, %v3802, %v4010
        %v4032 = vsel %vm870, %v3804, %v4012
        %v4033 = vsel %vm493, %v4031, %v4018
        %v4034 = vsel %vm493, %v4032, %v4020
        %v4035 = vsel %vm1163, %v4033, %v4026
        %v4036 = vsel %vm1163, %v4034, %v4028
        %v4037 = vpack.c.bf16 %v3737, %v3735
        %4039 = vrot.lane.b32.xlu0 %v4037, 96
        %v4040 = vpop.permute.xlu0 %4039
        %v4042 = vsel %vm870, %v4037, 0
        %v4045 = vsel %vm870, %v4040, 0
        %4047 = vmatpush.bf16.xpose.msra.mxu0 0
        %4048 = vmatpush.bf16.xpose.msra.mxu0 0
        %4049 = vmatpush.bf16.xpose.msra.mxu0 0
        %4050 = vmatpush.bf16.xpose.msra.mxu0 0
        %4051 = vmatpush.bf16.xpose.msra.mxu0 0
        %4052 = vmatpush.bf16.xpose.msra.mxu0 0
        %4053 = vmatpush.bf16.xpose.msra.mxu0 0
        %4054 = vmatpush.bf16.xpose.msra.mxu0 %v4045
        %4055 = vmatmul.bf16.gmra.mxu0 %v4042
        %v4056 = vpop.f32.mrf.mxu0
        %v4057 = vadd.f32 0.0, %v4056
        %v4058 = vpop.f32.mrf.mxu0
        %v4059 = vadd.f32 0.0, %v4058
        %4060 = vdwg.mxu0
        %v4061 = vsel %vm493, %v4057, -inf
        %4062 = vmax.xlane.f32.xlu0 %v4061
        %v4063 = vpop.xlane.xlu0 %4062
        %v4064 = vsel %vm493, %v4059, -inf
        %4065 = vmax.xlane.f32.xlu0 %v4064
        %v4066 = vpop.xlane.xlu0 %4065
        %v4067 = vsub.f32 %v4057, %v4063
        %v4068 = vsub.f32 %v4059, %v4066
        %v4069 = vmul.f32 %v4067, 1.442695
        %v4070 = vpow.pop %v4069
        %v4071 = vmul.f32 %v4068, 1.442695
        %v4072 = vpow.pop %v4071
        %v4073 = vsel %vm493, %v4070, 0.0
        %4074 = vadd.xlane.f32.xlu0 %v4073
        %v4075 = vpop.xlane.xlu0 %4074
        %v4076 = vsel %vm493, %v4072, 0.0
        %4077 = vadd.xlane.f32.xlu0 %v4076
        %v4078 = vpop.xlane.xlu0 %4077
        %v4079 = vrcp.pop %v4075
        %v4080 = vrcp.pop %v4078
        %v4081 = vmul.f32 %v4070, %v4079
        %v4082 = vmul.f32 %v4072, %v4080
        %v4083 = vpack.c.bf16 %v4082, %v4081
        %4084 = vrot.lane.b32.xlu0 %v4037, 64
        %v4085 = vpop.permute.xlu0 %4084
        %v4088 = vsel %vm493, %v4083, 0
        %4090 = vmatpush.bf16.msra.mxu0 0
        %4091 = vmatpush.bf16.msra.mxu0 0
        %4092 = vmatpush.bf16.msra.mxu0 0
        %4093 = vmatpush.bf16.msra.mxu0 0
        %4094 = vmatpush.bf16.msra.mxu0 0
        %4095 = vmatpush.bf16.msra.mxu0 0
        %4096 = vmatpush.bf16.msra.mxu0 0
        %4097 = vmatpush.bf16.msra.mxu0 %v4085
        %4098 = vmatmul.bf16.gmra.mxu0 %v4088
        %v4099 = vpop.f32.mrf.mxu0
        %v4100 = vadd.f32 0.0, %v4099
        %v4101 = vpop.f32.mrf.mxu0
        %v4102 = vadd.f32 0.0, %v4101
        %4103 = vdwg.mxu0
        %4104 = vrot.lane.b32.xlu0 %v4037, 120
        %v4105 = vpop.permute.xlu0 %4104
        %4106 = vrot.lane.b32.xlu0 %v4037, 88
        %v4107 = vpop.permute.xlu0 %4106
        %v4109 = vsel %vm870, %v4105, 0
        %v4112 = vsel %vm870, %v4107, 0
        %4114 = vmatpush.bf16.xpose.msra.mxu0 0
        %4115 = vmatpush.bf16.xpose.msra.mxu0 0
        %4116 = vmatpush.bf16.xpose.msra.mxu0 0
        %4117 = vmatpush.bf16.xpose.msra.mxu0 0
        %4118 = vmatpush.bf16.xpose.msra.mxu0 0
        %4119 = vmatpush.bf16.xpose.msra.mxu0 0
        %4120 = vmatpush.bf16.xpose.msra.mxu0 0
        %4121 = vmatpush.bf16.xpose.msra.mxu0 %v4112
        %4122 = vmatmul.bf16.gmra.mxu0 %v4109
        %v4123 = vpop.f32.mrf.mxu0
        %v4124 = vadd.f32 0.0, %v4123
        %v4125 = vpop.f32.mrf.mxu0
        %v4126 = vadd.f32 0.0, %v4125
        %4127 = vdwg.mxu0
        %v4128 = vsel %vm493, %v4124, -inf
        %4129 = vmax.xlane.f32.xlu0 %v4128
        %v4130 = vpop.xlane.xlu0 %4129
        %v4131 = vsel %vm493, %v4126, -inf
        %4132 = vmax.xlane.f32.xlu0 %v4131
        %v4133 = vpop.xlane.xlu0 %4132
        %v4134 = vsub.f32 %v4124, %v4130
        %v4135 = vsub.f32 %v4126, %v4133
        %v4136 = vmul.f32 %v4134, 1.442695
        %v4137 = vpow.pop %v4136
        %v4138 = vmul.f32 %v4135, 1.442695
        %v4139 = vpow.pop %v4138
        %v4140 = vsel %vm493, %v4137, 0.0
        %4141 = vadd.xlane.f32.xlu0 %v4140
        %v4142 = vpop.xlane.xlu0 %4141
        %v4143 = vsel %vm493, %v4139, 0.0
        %4144 = vadd.xlane.f32.xlu0 %v4143
        %v4145 = vpop.xlane.xlu0 %4144
        %v4146 = vrcp.pop %v4142
        %v4147 = vrcp.pop %v4145
        %v4148 = vmul.f32 %v4137, %v4146
        %v4149 = vmul.f32 %v4139, %v4147
        %v4150 = vpack.c.bf16 %v4149, %v4148
        %4151 = vrot.lane.b32.xlu0 %v4037, 56
        %v4152 = vpop.permute.xlu0 %4151
        %v4155 = vsel %vm493, %v4150, 0
        %4157 = vmatpush.bf16.msra.mxu0 0
        %4158 = vmatpush.bf16.msra.mxu0 0
        %4159 = vmatpush.bf16.msra.mxu0 0
        %4160 = vmatpush.bf16.msra.mxu0 0
        %4161 = vmatpush.bf16.msra.mxu0 0
        %4162 = vmatpush.bf16.msra.mxu0 0
        %4163 = vmatpush.bf16.msra.mxu0 0
        %4164 = vmatpush.bf16.msra.mxu0 %v4152
        %4165 = vmatmul.bf16.gmra.mxu0 %v4155
        %v4166 = vpop.f32.mrf.mxu0
        %v4167 = vadd.f32 0.0, %v4166
        %v4168 = vpop.f32.mrf.mxu0
        %v4169 = vadd.f32 0.0, %v4168
        %4170 = vdwg.mxu0
        %4171 = vrot.lane.b32.xlu0 %v4037, 112
        %v4172 = vpop.permute.xlu0 %4171
        %4173 = vrot.lane.b32.xlu0 %v4037, 80
        %v4174 = vpop.permute.xlu0 %4173
        %v4176 = vsel %vm870, %v4172, 0
        %v4179 = vsel %vm870, %v4174, 0
        %4181 = vmatpush.bf16.xpose.msra.mxu0 0
        %4182 = vmatpush.bf16.xpose.msra.mxu0 0
        %4183 = vmatpush.bf16.xpose.msra.mxu0 0
        %4184 = vmatpush.bf16.xpose.msra.mxu0 0
        %4185 = vmatpush.bf16.xpose.msra.mxu0 0
        %4186 = vmatpush.bf16.xpose.msra.mxu0 0
        %4187 = vmatpush.bf16.xpose.msra.mxu0 0
        %4188 = vmatpush.bf16.xpose.msra.mxu0 %v4179
        %4189 = vmatmul.bf16.gmra.mxu0 %v4176
        %v4190 = vpop.f32.mrf.mxu0
        %v4191 = vadd.f32 0.0, %v4190
        %v4192 = vpop.f32.mrf.mxu0
        %v4193 = vadd.f32 0.0, %v4192
        %4194 = vdwg.mxu0
        %v4195 = vsel %vm493, %v4191, -inf
        %4196 = vmax.xlane.f32.xlu0 %v4195
        %v4197 = vpop.xlane.xlu0 %4196
        %v4198 = vsel %vm493, %v4193, -inf
        %4199 = vmax.xlane.f32.xlu0 %v4198
        %v4200 = vpop.xlane.xlu0 %4199
        %v4201 = vsub.f32 %v4191, %v4197
        %v4202 = vsub.f32 %v4193, %v4200
        %v4203 = vmul.f32 %v4201, 1.442695
        %v4204 = vpow.pop %v4203
        %v4205 = vmul.f32 %v4202, 1.442695
        %v4206 = vpow.pop %v4205
        %v4207 = vsel %vm493, %v4204, 0.0
        %4208 = vadd.xlane.f32.xlu0 %v4207
        %v4209 = vpop.xlane.xlu0 %4208
        %v4210 = vsel %vm493, %v4206, 0.0
        %4211 = vadd.xlane.f32.xlu0 %v4210
        %v4212 = vpop.xlane.xlu0 %4211
        %v4213 = vrcp.pop %v4209
        %v4214 = vrcp.pop %v4212
        %v4215 = vmul.f32 %v4204, %v4213
        %v4216 = vmul.f32 %v4206, %v4214
        %v4217 = vpack.c.bf16 %v4216, %v4215
        %4218 = vrot.lane.b32.xlu0 %v4037, 48
        %v4219 = vpop.permute.xlu0 %4218
        %v4222 = vsel %vm493, %v4217, 0
        %4224 = vmatpush.bf16.msra.mxu0 0
        %4225 = vmatpush.bf16.msra.mxu0 0
        %4226 = vmatpush.bf16.msra.mxu0 0
        %4227 = vmatpush.bf16.msra.mxu0 0
        %4228 = vmatpush.bf16.msra.mxu0 0
        %4229 = vmatpush.bf16.msra.mxu0 0
        %4230 = vmatpush.bf16.msra.mxu0 0
        %4231 = vmatpush.bf16.msra.mxu0 %v4219
        %4232 = vmatmul.bf16.gmra.mxu0 %v4222
        %v4233 = vpop.f32.mrf.mxu0
        %v4234 = vadd.f32 0.0, %v4233
        %v4235 = vpop.f32.mrf.mxu0
        %v4236 = vadd.f32 0.0, %v4235
        %4237 = vdwg.mxu0
        %4238 = vrot.lane.b32.xlu0 %v4037, 104
        %v4239 = vpop.permute.xlu0 %4238
        %4240 = vrot.lane.b32.xlu0 %v4037, 72
        %v4241 = vpop.permute.xlu0 %4240
        %v4243 = vsel %vm870, %v4239, 0
        %v4246 = vsel %vm870, %v4241, 0
        %4248 = vmatpush.bf16.xpose.msra.mxu0 0
        %4249 = vmatpush.bf16.xpose.msra.mxu0 0
        %4250 = vmatpush.bf16.xpose.msra.mxu0 0
        %4251 = vmatpush.bf16.xpose.msra.mxu0 0
        %4252 = vmatpush.bf16.xpose.msra.mxu0 0
        %4253 = vmatpush.bf16.xpose.msra.mxu0 0
        %4254 = vmatpush.bf16.xpose.msra.mxu0 0
        %4255 = vmatpush.bf16.xpose.msra.mxu0 %v4246
        %4256 = vmatmul.bf16.gmra.mxu0 %v4243
        %v4257 = vpop.f32.mrf.mxu0
        %v4258 = vadd.f32 0.0, %v4257
        %v4259 = vpop.f32.mrf.mxu0
        %v4260 = vadd.f32 0.0, %v4259
        %4261 = vdwg.mxu0
        %v4262 = vsel %vm493, %v4258, -inf
        %4263 = vmax.xlane.f32.xlu0 %v4262
        %v4264 = vpop.xlane.xlu0 %4263
        %v4265 = vsel %vm493, %v4260, -inf
        %4266 = vmax.xlane.f32.xlu0 %v4265
        %v4267 = vpop.xlane.xlu0 %4266
        %v4268 = vsub.f32 %v4258, %v4264
        %v4269 = vsub.f32 %v4260, %v4267
        %v4270 = vmul.f32 %v4268, 1.442695
        %v4271 = vpow.pop %v4270
        %v4272 = vmul.f32 %v4269, 1.442695
        %v4273 = vpow.pop %v4272
        %v4274 = vsel %vm493, %v4271, 0.0
        %4275 = vadd.xlane.f32.xlu0 %v4274
        %v4276 = vpop.xlane.xlu0 %4275
        %v4277 = vsel %vm493, %v4273, 0.0
        %4278 = vadd.xlane.f32.xlu0 %v4277
        %v4279 = vpop.xlane.xlu0 %4278
        %v4280 = vrcp.pop %v4276
        %v4281 = vrcp.pop %v4279
        %v4282 = vmul.f32 %v4271, %v4280
        %v4283 = vmul.f32 %v4273, %v4281
        %v4284 = vpack.c.bf16 %v4283, %v4282
        %4285 = vrot.lane.b32.xlu0 %v4037, 40
        %v4286 = vpop.permute.xlu0 %4285
        %v4289 = vsel %vm493, %v4284, 0
        %4291 = vmatpush.bf16.msra.mxu0 0
        %4292 = vmatpush.bf16.msra.mxu0 0
        %4293 = vmatpush.bf16.msra.mxu0 0
        %4294 = vmatpush.bf16.msra.mxu0 0
        %4295 = vmatpush.bf16.msra.mxu0 0
        %4296 = vmatpush.bf16.msra.mxu0 0
        %4297 = vmatpush.bf16.msra.mxu0 0
        %4298 = vmatpush.bf16.msra.mxu0 %v4286
        %4299 = vmatmul.bf16.gmra.mxu0 %v4289
        %v4300 = vpop.f32.mrf.mxu0
        %v4301 = vadd.f32 0.0, %v4300
        %v4302 = vpop.f32.mrf.mxu0
        %v4303 = vadd.f32 0.0, %v4302
        %4304 = vdwg.mxu0
        %4307 = vrot.lane.b32.xlu0 %v4167, 8
        %v4308 = vpop.permute.xlu0 %4307
        %4309 = vrot.lane.b32.xlu0 %v4169, 8
        %v4310 = vpop.permute.xlu0 %4309
        %4315 = vrot.lane.b32.xlu0 %v4234, 16
        %v4316 = vpop.permute.xlu0 %4315
        %4317 = vrot.lane.b32.xlu0 %v4236, 16
        %v4318 = vpop.permute.xlu0 %4317
        %4323 = vrot.lane.b32.xlu0 %v4301, 24
        %v4324 = vpop.permute.xlu0 %4323
        %4325 = vrot.lane.b32.xlu0 %v4303, 24
        %v4326 = vpop.permute.xlu0 %4325
        %v4329 = vsel %vm870, %v4100, %v4308
        %v4330 = vsel %vm870, %v4102, %v4310
        %v4331 = vsel %vm493, %v4329, %v4316
        %v4332 = vsel %vm493, %v4330, %v4318
        %v4333 = vsel %vm1163, %v4331, %v4324
        %v4334 = vsel %vm1163, %v4332, %v4326
        %v4335 = vpack.c.bf16 %v4036, %v4035
        %v4336 = vpack.c.bf16 %v4334, %v4333
        %v4337 = vperm.slane %v3403, 0
        %v4342 = vunpack.c.l.b16 %v3398
        %v4343 = vunpack.c.l.b16 %v3399
        %v4344 = vunpack.c.l.b16 %v3400
        %v4345 = vunpack.c.l.b16 %v3401
        %v4346 = vpack.c.b16 %v4343, %v4342
        %v4347 = vpack.c.b16 %v4345, %v4344
        %v4351 = vsel %vm840, %v4335, 0
        %v4354 = vsel %vm840, %v4336, 0
        %4356 = vmatpush.bf16.msra.mxu0 0
        %4357 = vmatpush.bf16.msra.mxu0 0
        %4358 = vmatpush.bf16.msra.mxu0 0
        %4359 = vmatpush.bf16.msra.mxu0 0
        %4360 = vmatpush.bf16.msra.mxu0 0
        %4361 = vmatpush.bf16.msra.mxu0 0
        %4362 = vmatpush.bf16.msra.mxu0 %v4347
        %4363 = vmatpush.bf16.msra.mxu0 %v4346
        %4364 = vmatmul.bf16.gmra.mxu0 %v4351
        %v4365 = vpop.f32.mrf.mxu0
        %v4366 = vadd.f32 %v4337, %v4365
        %v4367 = vpop.f32.mrf.mxu0
        %v4368 = vadd.f32 %v4337, %v4367
        %4369 = vmatmul.bf16.gmra.mxu0 %v4354
        %v4370 = vpop.f32.mrf.mxu0
        %v4371 = vadd.f32 %v4337, %v4370
        %v4372 = vpop.f32.mrf.mxu0
        %v4373 = vadd.f32 %v4337, %v4372
        %4374 = vdwg.mxu0
        %v4375 = vadd.f32 %v3386, %v4366
        %v4376 = vadd.f32 %v3387, %v4368
        %v4377 = vadd.f32 %v3388, %v4371
        %v4378 = vadd.f32 %v3389, %v4373
        %v4379 = vsel %vm840, %v4375, 0.0
        %4380 = vadd.xlane.f32.xlu0 %v4379
        %v4381 = vpop.xlane.xlu0 %4380
        %v4382 = vsel %vm840, %v4376, 0.0
        %4383 = vadd.xlane.f32.xlu0 %v4382
        %v4384 = vpop.xlane.xlu0 %4383
        %v4385 = vsel %vm840, %v4377, 0.0
        %4386 = vadd.xlane.f32.xlu0 %v4385
        %v4387 = vpop.xlane.xlu0 %4386
        %v4388 = vsel %vm840, %v4378, 0.0
        %4389 = vadd.xlane.f32.xlu0 %v4388
        %v4390 = vpop.xlane.xlu0 %4389
        %v4391 = vmul.f32 %v4381, %v1526
        %v4392 = vmul.f32 %v4384, %v1526
        %v4393 = vmul.f32 %v4387, %v1526
        %v4394 = vmul.f32 %v4390, %v1526
        %v4395 = vsub.f32 %v4375, %v4391
        %v4396 = vsub.f32 %v4376, %v4392
        %v4397 = vsub.f32 %v4377, %v4393
        %v4398 = vsub.f32 %v4378, %v4394
        %v4399 = vmul.f32 %v4395, %v4395
        %v4400 = vmul.f32 %v4396, %v4396
        %v4401 = vmul.f32 %v4397, %v4397
        %v4402 = vmul.f32 %v4398, %v4398
        %v4403 = vsel %vm840, %v4399, 0.0
        %4404 = vadd.xlane.f32.xlu0 %v4403
        %v4405 = vpop.xlane.xlu0 %4404
        %v4406 = vsel %vm840, %v4400, 0.0
        %4407 = vadd.xlane.f32.xlu0 %v4406
        %v4408 = vpop.xlane.xlu0 %4407
        %v4409 = vsel %vm840, %v4401, 0.0
        %4410 = vadd.xlane.f32.xlu0 %v4409
        %v4411 = vpop.xlane.xlu0 %4410
        %v4412 = vsel %vm840, %v4402, 0.0
        %4413 = vadd.xlane.f32.xlu0 %v4412
        %v4414 = vpop.xlane.xlu0 %4413
        %v4415 = vmul.f32 %v4405, %v1526
        %v4416 = vmul.f32 %v4408, %v1526
        %v4417 = vmul.f32 %v4411, %v1526
        %v4418 = vmul.f32 %v4414, %v1526
        %v4419 = vadd.f32 %v4415, 1e-05
        %v4420 = vadd.f32 %v4416, 1e-05
        %v4421 = vadd.f32 %v4417, 1e-05
        %v4422 = vadd.f32 %v4418, 1e-05
        %v4423 = vrsqrt.pop %v4419
        %v4424 = vmul.f32 %v4423, %v4419
        %v4425 = vmul.f32 %v4424, %v4423
        %v4426 = vmul.f32 0.5, %v4425
        %v4427 = vsub.f32 1.5, %v4426
        %v4428 = vmul.f32 %v4423, %v4427
        %vm4429 = vweird.f32 %v4419
        %vm4430 = vweird.f32 %v4423
        %vm4431 = vmor %vm4429, %vm4430
        %v4432 = vsel %vm4431, %v4423, %v4428
        %v4433 = vrsqrt.pop %v4420
        %v4434 = vmul.f32 %v4433, %v4420
        %v4435 = vmul.f32 %v4434, %v4433
        %v4436 = vmul.f32 0.5, %v4435
        %v4437 = vsub.f32 1.5, %v4436
        %v4438 = vmul.f32 %v4433, %v4437
        %vm4439 = vweird.f32 %v4420
        %vm4440 = vweird.f32 %v4433
        %vm4441 = vmor %vm4439, %vm4440
        %v4442 = vsel %vm4441, %v4433, %v4438
        %v4443 = vrsqrt.pop %v4421
        %v4444 = vmul.f32 %v4443, %v4421
        %v4445 = vmul.f32 %v4444, %v4443
        %v4446 = vmul.f32 0.5, %v4445
        %v4447 = vsub.f32 1.5, %v4446
        %v4448 = vmul.f32 %v4443, %v4447
        %vm4449 = vweird.f32 %v4421
        %vm4450 = vweird.f32 %v4443
        %vm4451 = vmor %vm4449, %vm4450
        %v4452 = vsel %vm4451, %v4443, %v4448
        %v4453 = vrsqrt.pop %v4422
        %v4454 = vmul.f32 %v4453, %v4422
        %v4455 = vmul.f32 %v4454, %v4453
        %v4456 = vmul.f32 0.5, %v4455
        %v4457 = vsub.f32 1.5, %v4456
        %v4458 = vmul.f32 %v4453, %v4457
        %vm4459 = vweird.f32 %v4422
        %vm4460 = vweird.f32 %v4453
        %vm4461 = vmor %vm4459, %vm4460
        %v4462 = vsel %vm4461, %v4453, %v4458
        %v4463 = vmul.f32 %v4395, %v4432
        %v4464 = vmul.f32 %v4396, %v4442
        %v4465 = vmul.f32 %v4397, %v4452
        %v4466 = vmul.f32 %v4398, %v4462
        %v4467 = vperm.slane %v3403, 1
        %v4468 = vmul.f32 %v4463, %v4467
        %v4469 = vmul.f32 %v4464, %v4467
        %v4470 = vmul.f32 %v4465, %v4467
        %v4471 = vmul.f32 %v4466, %v4467
        %v4472 = vperm.slane %v3403, 2
        %v4473 = vadd.f32 %v4468, %v4472
        %v4474 = vadd.f32 %v4469, %v4472
        %v4475 = vadd.f32 %v4470, %v4472
        %v4476 = vadd.f32 %v4471, %v4472
        %v4477 = vpack.c.bf16 %v4474, %v4473
        %v4478 = vpack.c.bf16 %v4476, %v4475
        %v4481 = vperm.slane %v3438, 0
        %v4482 = vperm.slane %v3438, 1
        %v4483 = vperm.slane %v3438, 2
        %v4484 = vperm.slane %v3438, 3
        %v4485 = vperm.slane %v3438, 4
        %v4486 = vperm.slane %v3438, 5
        %v4487 = vperm.slane %v3438, 6
        %v4488 = vperm.slane %v3438, 7
        %v4489 = vperm.slane %v3439, 0
        %v4490 = vperm.slane %v3439, 1
        %v4491 = vperm.slane %v3439, 2
        %v4492 = vperm.slane %v3439, 3
        %v4493 = vperm.slane %v3439, 4
        %v4494 = vperm.slane %v3439, 5
        %v4495 = vperm.slane %v3439, 6
        %v4496 = vperm.slane %v3439, 7
        %v4545 = vunpack.c.l.b16 %v3405
        %v4546 = vunpack.c.h.b16 %v3405
        %v4547 = vunpack.c.l.b16 %v3406
        %v4548 = vunpack.c.h.b16 %v3406
        %v4549 = vunpack.c.l.b16 %v3407
        %v4550 = vunpack.c.h.b16 %v3407
        %v4551 = vunpack.c.l.b16 %v3408
        %v4552 = vunpack.c.h.b16 %v3408
        %v4553 = vunpack.c.l.b16 %v3409
        %v4554 = vunpack.c.h.b16 %v3409
        %v4555 = vunpack.c.l.b16 %v3410
        %v4556 = vunpack.c.h.b16 %v3410
        %v4557 = vunpack.c.l.b16 %v3411
        %v4558 = vunpack.c.h.b16 %v3411
        %v4559 = vunpack.c.l.b16 %v3412
        %v4560 = vunpack.c.h.b16 %v3412
        %v4561 = vunpack.c.l.b16 %v3413
        %v4562 = vunpack.c.h.b16 %v3413
        %v4563 = vunpack.c.l.b16 %v3414
        %v4564 = vunpack.c.h.b16 %v3414
        %v4565 = vunpack.c.l.b16 %v3415
        %v4566 = vunpack.c.h.b16 %v3415
        %v4567 = vunpack.c.l.b16 %v3416
        %v4568 = vunpack.c.h.b16 %v3416
        %v4569 = vunpack.c.l.b16 %v3417
        %v4570 = vunpack.c.h.b16 %v3417
        %v4571 = vunpack.c.l.b16 %v3418
        %v4572 = vunpack.c.h.b16 %v3418
        %v4573 = vunpack.c.l.b16 %v3419
        %v4574 = vunpack.c.h.b16 %v3419
        %v4575 = vunpack.c.l.b16 %v3420
        %v4576 = vunpack.c.h.b16 %v3420
        %v4577 = vunpack.c.l.b16 %v3421
        %v4578 = vunpack.c.h.b16 %v3421
        %v4579 = vunpack.c.l.b16 %v3422
        %v4580 = vunpack.c.h.b16 %v3422
        %v4581 = vunpack.c.l.b16 %v3423
        %v4582 = vunpack.c.h.b16 %v3423
        %v4583 = vunpack.c.l.b16 %v3424
        %v4584 = vunpack.c.h.b16 %v3424
        %v4585 = vunpack.c.l.b16 %v3425
        %v4586 = vunpack.c.h.b16 %v3425
        %v4587 = vunpack.c.l.b16 %v3426
        %v4588 = vunpack.c.h.b16 %v3426
        %v4589 = vunpack.c.l.b16 %v3427
        %v4590 = vunpack.c.h.b16 %v3427
        %v4591 = vunpack.c.l.b16 %v3428
        %v4592 = vunpack.c.h.b16 %v3428
        %v4593 = vunpack.c.l.b16 %v3429
        %v4594 = vunpack.c.h.b16 %v3429
        %v4595 = vunpack.c.l.b16 %v3430
        %v4596 = vunpack.c.h.b16 %v3430
        %v4597 = vunpack.c.l.b16 %v3431
        %v4598 = vunpack.c.h.b16 %v3431
        %v4599 = vunpack.c.l.b16 %v3432
        %v4600 = vunpack.c.h.b16 %v3432
        %v4601 = vunpack.c.l.b16 %v3433
        %v4602 = vunpack.c.h.b16 %v3433
        %v4603 = vunpack.c.l.b16 %v3434
        %v4604 = vunpack.c.h.b16 %v3434
        %v4605 = vunpack.c.l.b16 %v3435
        %v4606 = vunpack.c.h.b16 %v3435
        %v4607 = vunpack.c.l.b16 %v3436
        %v4608 = vunpack.c.h.b16 %v3436
        %v4609 = vpack.c.b16 %v4561, %v4545
        %v4610 = vpack.c.b16 %v4562, %v4546
        %v4611 = vpack.c.b16 %v4563, %v4547
        %v4612 = vpack.c.b16 %v4564, %v4548
        %v4613 = vpack.c.b16 %v4565, %v4549
        %v4614 = vpack.c.b16 %v4566, %v4550
        %v4615 = vpack.c.b16 %v4567, %v4551
        %v4616 = vpack.c.b16 %v4568, %v4552
        %v4617 = vpack.c.b16 %v4569, %v4553
        %v4618 = vpack.c.b16 %v4570, %v4554
        %v4619 = vpack.c.b16 %v4571, %v4555
        %v4620 = vpack.c.b16 %v4572, %v4556
        %v4621 = vpack.c.b16 %v4573, %v4557
        %v4622 = vpack.c.b16 %v4574, %v4558
        %v4623 = vpack.c.b16 %v4575, %v4559
        %v4624 = vpack.c.b16 %v4576, %v4560
        %v4625 = vpack.c.b16 %v4593, %v4577
        %v4626 = vpack.c.b16 %v4594, %v4578
        %v4627 = vpack.c.b16 %v4595, %v4579
        %v4628 = vpack.c.b16 %v4596, %v4580
        %v4629 = vpack.c.b16 %v4597, %v4581
        %v4630 = vpack.c.b16 %v4598, %v4582
        %v4631 = vpack.c.b16 %v4599, %v4583
        %v4632 = vpack.c.b16 %v4600, %v4584
        %v4633 = vpack.c.b16 %v4601, %v4585
        %v4634 = vpack.c.b16 %v4602, %v4586
        %v4635 = vpack.c.b16 %v4603, %v4587
        %v4636 = vpack.c.b16 %v4604, %v4588
        %v4637 = vpack.c.b16 %v4605, %v4589
        %v4638 = vpack.c.b16 %v4606, %v4590
        %v4639 = vpack.c.b16 %v4607, %v4591
        %v4640 = vpack.c.b16 %v4608, %v4592
        %v4674 = vsel %vm840, %v4477, 0
        %v4677 = vsel %vm840, %v4478, 0
        %4679 = vmatpush.bf16.msra.mxu0 0
        %4680 = vmatpush.bf16.msra.mxu0 0
        %4681 = vmatpush.bf16.msra.mxu0 0
        %4682 = vmatpush.bf16.msra.mxu0 0
        %4683 = vmatpush.bf16.msra.mxu0 0
        %4684 = vmatpush.bf16.msra.mxu0 0
        %4685 = vmatpush.bf16.msra.mxu0 %v4625
        %4686 = vmatpush.bf16.msra.mxu0 %v4609
        %4687 = vmatmul.bf16.gmra.mxu0 %v4674
        %v4688 = vpop.f32.mrf.mxu0
        %v4689 = vadd.f32 %v4481, %v4688
        %v4690 = vpop.f32.mrf.mxu0
        %v4691 = vadd.f32 %v4481, %v4690
        %4692 = vmatmul.bf16.gmra.mxu0 %v4677
        %v4693 = vpop.f32.mrf.mxu0
        %v4694 = vadd.f32 %v4481, %v4693
        %v4695 = vpop.f32.mrf.mxu0
        %v4696 = vadd.f32 %v4481, %v4695
        %4697 = vdwg.mxu0
        %4698 = vmatpush.bf16.msra.mxu0 0
        %4699 = vmatpush.bf16.msra.mxu0 0
        %4700 = vmatpush.bf16.msra.mxu0 0
        %4701 = vmatpush.bf16.msra.mxu0 0
        %4702 = vmatpush.bf16.msra.mxu0 0
        %4703 = vmatpush.bf16.msra.mxu0 0
        %4704 = vmatpush.bf16.msra.mxu0 %v4626
        %4705 = vmatpush.bf16.msra.mxu0 %v4610
        %4706 = vmatmul.bf16.gmra.mxu0 %v4674
        %v4707 = vpop.f32.mrf.mxu0
        %v4708 = vadd.f32 %v4482, %v4707
        %v4709 = vpop.f32.mrf.mxu0
        %v4710 = vadd.f32 %v4482, %v4709
        %4711 = vmatmul.bf16.gmra.mxu0 %v4677
        %v4712 = vpop.f32.mrf.mxu0
        %v4713 = vadd.f32 %v4482, %v4712
        %v4714 = vpop.f32.mrf.mxu0
        %v4715 = vadd.f32 %v4482, %v4714
        %4716 = vdwg.mxu0
        %4717 = vmatpush.bf16.msra.mxu0 0
        %4718 = vmatpush.bf16.msra.mxu0 0
        %4719 = vmatpush.bf16.msra.mxu0 0
        %4720 = vmatpush.bf16.msra.mxu0 0
        %4721 = vmatpush.bf16.msra.mxu0 0
        %4722 = vmatpush.bf16.msra.mxu0 0
        %4723 = vmatpush.bf16.msra.mxu0 %v4627
        %4724 = vmatpush.bf16.msra.mxu0 %v4611
        %4725 = vmatmul.bf16.gmra.mxu0 %v4674
        %v4726 = vpop.f32.mrf.mxu0
        %v4727 = vadd.f32 %v4483, %v4726
        %v4728 = vpop.f32.mrf.mxu0
        %v4729 = vadd.f32 %v4483, %v4728
        %4730 = vmatmul.bf16.gmra.mxu0 %v4677
        %v4731 = vpop.f32.mrf.mxu0
        %v4732 = vadd.f32 %v4483, %v4731
        %v4733 = vpop.f32.mrf.mxu0
        %v4734 = vadd.f32 %v4483, %v4733
        %4735 = vdwg.mxu0
        %4736 = vmatpush.bf16.msra.mxu0 0
        %4737 = vmatpush.bf16.msra.mxu0 0
        %4738 = vmatpush.bf16.msra.mxu0 0
        %4739 = vmatpush.bf16.msra.mxu0 0
        %4740 = vmatpush.bf16.msra.mxu0 0
        %4741 = vmatpush.bf16.msra.mxu0 0
        %4742 = vmatpush.bf16.msra.mxu0 %v4628
        %4743 = vmatpush.bf16.msra.mxu0 %v4612
        %4744 = vmatmul.bf16.gmra.mxu0 %v4674
        %v4745 = vpop.f32.mrf.mxu0
        %v4746 = vadd.f32 %v4484, %v4745
        %v4747 = vpop.f32.mrf.mxu0
        %v4748 = vadd.f32 %v4484, %v4747
        %4749 = vmatmul.bf16.gmra.mxu0 %v4677
        %v4750 = vpop.f32.mrf.mxu0
        %v4751 = vadd.f32 %v4484, %v4750
        %v4752 = vpop.f32.mrf.mxu0
        %v4753 = vadd.f32 %v4484, %v4752
        %4754 = vdwg.mxu0
        %4755 = vmatpush.bf16.msra.mxu0 0
        %4756 = vmatpush.bf16.msra.mxu0 0
        %4757 = vmatpush.bf16.msra.mxu0 0
        %4758 = vmatpush.bf16.msra.mxu0 0
        %4759 = vmatpush.bf16.msra.mxu0 0
        %4760 = vmatpush.bf16.msra.mxu0 0
        %4761 = vmatpush.bf16.msra.mxu0 %v4629
        %4762 = vmatpush.bf16.msra.mxu0 %v4613
        %4763 = vmatmul.bf16.gmra.mxu0 %v4674
        %v4764 = vpop.f32.mrf.mxu0
        %v4765 = vadd.f32 %v4485, %v4764
        %v4766 = vpop.f32.mrf.mxu0
        %v4767 = vadd.f32 %v4485, %v4766
        %4768 = vmatmul.bf16.gmra.mxu0 %v4677
        %v4769 = vpop.f32.mrf.mxu0
        %v4770 = vadd.f32 %v4485, %v4769
        %v4771 = vpop.f32.mrf.mxu0
        %v4772 = vadd.f32 %v4485, %v4771
        %4773 = vdwg.mxu0
        %4774 = vmatpush.bf16.msra.mxu0 0
        %4775 = vmatpush.bf16.msra.mxu0 0
        %4776 = vmatpush.bf16.msra.mxu0 0
        %4777 = vmatpush.bf16.msra.mxu0 0
        %4778 = vmatpush.bf16.msra.mxu0 0
        %4779 = vmatpush.bf16.msra.mxu0 0
        %4780 = vmatpush.bf16.msra.mxu0 %v4630
        %4781 = vmatpush.bf16.msra.mxu0 %v4614
        %4782 = vmatmul.bf16.gmra.mxu0 %v4674
        %v4783 = vpop.f32.mrf.mxu0
        %v4784 = vadd.f32 %v4486, %v4783
        %v4785 = vpop.f32.mrf.mxu0
        %v4786 = vadd.f32 %v4486, %v4785
        %4787 = vmatmul.bf16.gmra.mxu0 %v4677
        %v4788 = vpop.f32.mrf.mxu0
        %v4789 = vadd.f32 %v4486, %v4788
        %v4790 = vpop.f32.mrf.mxu0
        %v4791 = vadd.f32 %v4486, %v4790
        %4792 = vdwg.mxu0
        %4793 = vmatpush.bf16.msra.mxu0 0
        %4794 = vmatpush.bf16.msra.mxu0 0
        %4795 = vmatpush.bf16.msra.mxu0 0
        %4796 = vmatpush.bf16.msra.mxu0 0
        %4797 = vmatpush.bf16.msra.mxu0 0
        %4798 = vmatpush.bf16.msra.mxu0 0
        %4799 = vmatpush.bf16.msra.mxu0 %v4631
        %4800 = vmatpush.bf16.msra.mxu0 %v4615
        %4801 = vmatmul.bf16.gmra.mxu0 %v4674
        %v4802 = vpop.f32.mrf.mxu0
        %v4803 = vadd.f32 %v4487, %v4802
        %v4804 = vpop.f32.mrf.mxu0
        %v4805 = vadd.f32 %v4487, %v4804
        %4806 = vmatmul.bf16.gmra.mxu0 %v4677
        %v4807 = vpop.f32.mrf.mxu0
        %v4808 = vadd.f32 %v4487, %v4807
        %v4809 = vpop.f32.mrf.mxu0
        %v4810 = vadd.f32 %v4487, %v4809
        %4811 = vdwg.mxu0
        %4812 = vmatpush.bf16.msra.mxu0 0
        %4813 = vmatpush.bf16.msra.mxu0 0
        %4814 = vmatpush.bf16.msra.mxu0 0
        %4815 = vmatpush.bf16.msra.mxu0 0
        %4816 = vmatpush.bf16.msra.mxu0 0
        %4817 = vmatpush.bf16.msra.mxu0 0
        %4818 = vmatpush.bf16.msra.mxu0 %v4632
        %4819 = vmatpush.bf16.msra.mxu0 %v4616
        %4820 = vmatmul.bf16.gmra.mxu0 %v4674
        %v4821 = vpop.f32.mrf.mxu0
        %v4822 = vadd.f32 %v4488, %v4821
        %v4823 = vpop.f32.mrf.mxu0
        %v4824 = vadd.f32 %v4488, %v4823
        %4825 = vmatmul.bf16.gmra.mxu0 %v4677
        %v4826 = vpop.f32.mrf.mxu0
        %v4827 = vadd.f32 %v4488, %v4826
        %v4828 = vpop.f32.mrf.mxu0
        %v4829 = vadd.f32 %v4488, %v4828
        %4830 = vdwg.mxu0
        %4831 = vmatpush.bf16.msra.mxu0 0
        %4832 = vmatpush.bf16.msra.mxu0 0
        %4833 = vmatpush.bf16.msra.mxu0 0
        %4834 = vmatpush.bf16.msra.mxu0 0
        %4835 = vmatpush.bf16.msra.mxu0 0
        %4836 = vmatpush.bf16.msra.mxu0 0
        %4837 = vmatpush.bf16.msra.mxu0 %v4633
        %4838 = vmatpush.bf16.msra.mxu0 %v4617
        %4839 = vmatmul.bf16.gmra.mxu0 %v4674
        %v4840 = vpop.f32.mrf.mxu0
        %v4841 = vadd.f32 %v4489, %v4840
        %v4842 = vpop.f32.mrf.mxu0
        %v4843 = vadd.f32 %v4489, %v4842
        %4844 = vmatmul.bf16.gmra.mxu0 %v4677
        %v4845 = vpop.f32.mrf.mxu0
        %v4846 = vadd.f32 %v4489, %v4845
        %v4847 = vpop.f32.mrf.mxu0
        %v4848 = vadd.f32 %v4489, %v4847
        %4849 = vdwg.mxu0
        %4850 = vmatpush.bf16.msra.mxu0 0
        %4851 = vmatpush.bf16.msra.mxu0 0
        %4852 = vmatpush.bf16.msra.mxu0 0
        %4853 = vmatpush.bf16.msra.mxu0 0
        %4854 = vmatpush.bf16.msra.mxu0 0
        %4855 = vmatpush.bf16.msra.mxu0 0
        %4856 = vmatpush.bf16.msra.mxu0 %v4634
        %4857 = vmatpush.bf16.msra.mxu0 %v4618
        %4858 = vmatmul.bf16.gmra.mxu0 %v4674
        %v4859 = vpop.f32.mrf.mxu0
        %v4860 = vadd.f32 %v4490, %v4859
        %v4861 = vpop.f32.mrf.mxu0
        %v4862 = vadd.f32 %v4490, %v4861
        %4863 = vmatmul.bf16.gmra.mxu0 %v4677
        %v4864 = vpop.f32.mrf.mxu0
        %v4865 = vadd.f32 %v4490, %v4864
        %v4866 = vpop.f32.mrf.mxu0
        %v4867 = vadd.f32 %v4490, %v4866
        %4868 = vdwg.mxu0
        %4869 = vmatpush.bf16.msra.mxu0 0
        %4870 = vmatpush.bf16.msra.mxu0 0
        %4871 = vmatpush.bf16.msra.mxu0 0
        %4872 = vmatpush.bf16.msra.mxu0 0
        %4873 = vmatpush.bf16.msra.mxu0 0
        %4874 = vmatpush.bf16.msra.mxu0 0
        %4875 = vmatpush.bf16.msra.mxu0 %v4635
        %4876 = vmatpush.bf16.msra.mxu0 %v4619
        %4877 = vmatmul.bf16.gmra.mxu0 %v4674
        %v4878 = vpop.f32.mrf.mxu0
        %v4879 = vadd.f32 %v4491, %v4878
        %v4880 = vpop.f32.mrf.mxu0
        %v4881 = vadd.f32 %v4491, %v4880
        %4882 = vmatmul.bf16.gmra.mxu0 %v4677
        %v4883 = vpop.f32.mrf.mxu0
        %v4884 = vadd.f32 %v4491, %v4883
        %v4885 = vpop.f32.mrf.mxu0
        %v4886 = vadd.f32 %v4491, %v4885
        %4887 = vdwg.mxu0
        %4888 = vmatpush.bf16.msra.mxu0 0
        %4889 = vmatpush.bf16.msra.mxu0 0
        %4890 = vmatpush.bf16.msra.mxu0 0
        %4891 = vmatpush.bf16.msra.mxu0 0
        %4892 = vmatpush.bf16.msra.mxu0 0
        %4893 = vmatpush.bf16.msra.mxu0 0
        %4894 = vmatpush.bf16.msra.mxu0 %v4636
        %4895 = vmatpush.bf16.msra.mxu0 %v4620
        %4896 = vmatmul.bf16.gmra.mxu0 %v4674
        %v4897 = vpop.f32.mrf.mxu0
        %v4898 = vadd.f32 %v4492, %v4897
        %v4899 = vpop.f32.mrf.mxu0
        %v4900 = vadd.f32 %v4492, %v4899
        %4901 = vmatmul.bf16.gmra.mxu0 %v4677
        %v4902 = vpop.f32.mrf.mxu0
        %v4903 = vadd.f32 %v4492, %v4902
        %v4904 = vpop.f32.mrf.mxu0
        %v4905 = vadd.f32 %v4492, %v4904
        %4906 = vdwg.mxu0
        %4907 = vmatpush.bf16.msra.mxu0 0
        %4908 = vmatpush.bf16.msra.mxu0 0
        %4909 = vmatpush.bf16.msra.mxu0 0
        %4910 = vmatpush.bf16.msra.mxu0 0
        %4911 = vmatpush.bf16.msra.mxu0 0
        %4912 = vmatpush.bf16.msra.mxu0 0
        %4913 = vmatpush.bf16.msra.mxu0 %v4637
        %4914 = vmatpush.bf16.msra.mxu0 %v4621
        %4915 = vmatmul.bf16.gmra.mxu0 %v4674
        %v4916 = vpop.f32.mrf.mxu0
        %v4917 = vadd.f32 %v4493, %v4916
        %v4918 = vpop.f32.mrf.mxu0
        %v4919 = vadd.f32 %v4493, %v4918
        %4920 = vmatmul.bf16.gmra.mxu0 %v4677
        %v4921 = vpop.f32.mrf.mxu0
        %v4922 = vadd.f32 %v4493, %v4921
        %v4923 = vpop.f32.mrf.mxu0
        %v4924 = vadd.f32 %v4493, %v4923
        %4925 = vdwg.mxu0
        %4926 = vmatpush.bf16.msra.mxu0 0
        %4927 = vmatpush.bf16.msra.mxu0 0
        %4928 = vmatpush.bf16.msra.mxu0 0
        %4929 = vmatpush.bf16.msra.mxu0 0
        %4930 = vmatpush.bf16.msra.mxu0 0
        %4931 = vmatpush.bf16.msra.mxu0 0
        %4932 = vmatpush.bf16.msra.mxu0 %v4638
        %4933 = vmatpush.bf16.msra.mxu0 %v4622
        %4934 = vmatmul.bf16.gmra.mxu0 %v4674
        %v4935 = vpop.f32.mrf.mxu0
        %v4936 = vadd.f32 %v4494, %v4935
        %v4937 = vpop.f32.mrf.mxu0
        %v4938 = vadd.f32 %v4494, %v4937
        %4939 = vmatmul.bf16.gmra.mxu0 %v4677
        %v4940 = vpop.f32.mrf.mxu0
        %v4941 = vadd.f32 %v4494, %v4940
        %v4942 = vpop.f32.mrf.mxu0
        %v4943 = vadd.f32 %v4494, %v4942
        %4944 = vdwg.mxu0
        %4945 = vmatpush.bf16.msra.mxu0 0
        %4946 = vmatpush.bf16.msra.mxu0 0
        %4947 = vmatpush.bf16.msra.mxu0 0
        %4948 = vmatpush.bf16.msra.mxu0 0
        %4949 = vmatpush.bf16.msra.mxu0 0
        %4950 = vmatpush.bf16.msra.mxu0 0
        %4951 = vmatpush.bf16.msra.mxu0 %v4639
        %4952 = vmatpush.bf16.msra.mxu0 %v4623
        %4953 = vmatmul.bf16.gmra.mxu0 %v4674
        %v4954 = vpop.f32.mrf.mxu0
        %v4955 = vadd.f32 %v4495, %v4954
        %v4956 = vpop.f32.mrf.mxu0
        %v4957 = vadd.f32 %v4495, %v4956
        %4958 = vmatmul.bf16.gmra.mxu0 %v4677
        %v4959 = vpop.f32.mrf.mxu0
        %v4960 = vadd.f32 %v4495, %v4959
        %v4961 = vpop.f32.mrf.mxu0
        %v4962 = vadd.f32 %v4495, %v4961
        %4963 = vdwg.mxu0
        %4964 = vmatpush.bf16.msra.mxu0 0
        %4965 = vmatpush.bf16.msra.mxu0 0
        %4966 = vmatpush.bf16.msra.mxu0 0
        %4967 = vmatpush.bf16.msra.mxu0 0
        %4968 = vmatpush.bf16.msra.mxu0 0
        %4969 = vmatpush.bf16.msra.mxu0 0
        %4970 = vmatpush.bf16.msra.mxu0 %v4640
        %4971 = vmatpush.bf16.msra.mxu0 %v4624
        %4972 = vmatmul.bf16.gmra.mxu0 %v4674
        %v4973 = vpop.f32.mrf.mxu0
        %v4974 = vadd.f32 %v4496, %v4973
        %v4975 = vpop.f32.mrf.mxu0
        %v4976 = vadd.f32 %v4496, %v4975
        %4977 = vmatmul.bf16.gmra.mxu0 %v4677
        %v4978 = vpop.f32.mrf.mxu0
        %v4979 = vadd.f32 %v4496, %v4978
        %v4980 = vpop.f32.mrf.mxu0
        %v4981 = vadd.f32 %v4496, %v4980
        %4982 = vdwg.mxu0
        %v4983 = vmax.f32 %v4689, 0.0
        %v4984 = vmax.f32 %v4708, 0.0
        %v4985 = vmax.f32 %v4727, 0.0
        %v4986 = vmax.f32 %v4746, 0.0
        %v4987 = vmax.f32 %v4765, 0.0
        %v4988 = vmax.f32 %v4784, 0.0
        %v4989 = vmax.f32 %v4803, 0.0
        %v4990 = vmax.f32 %v4822, 0.0
        %v4991 = vmax.f32 %v4841, 0.0
        %v4992 = vmax.f32 %v4860, 0.0
        %v4993 = vmax.f32 %v4879, 0.0
        %v4994 = vmax.f32 %v4898, 0.0
        %v4995 = vmax.f32 %v4917, 0.0
        %v4996 = vmax.f32 %v4936, 0.0
        %v4997 = vmax.f32 %v4955, 0.0
        %v4998 = vmax.f32 %v4974, 0.0
        %v4999 = vmax.f32 %v4691, 0.0
        %v5000 = vmax.f32 %v4710, 0.0
        %v5001 = vmax.f32 %v4729, 0.0
        %v5002 = vmax.f32 %v4748, 0.0
        %v5003 = vmax.f32 %v4767, 0.0
        %v5004 = vmax.f32 %v4786, 0.0
        %v5005 = vmax.f32 %v4805, 0.0
        %v5006 = vmax.f32 %v4824, 0.0
        %v5007 = vmax.f32 %v4843, 0.0
        %v5008 = vmax.f32 %v4862, 0.0
        %v5009 = vmax.f32 %v4881, 0.0
        %v5010 = vmax.f32 %v4900, 0.0
        %v5011 = vmax.f32 %v4919, 0.0
        %v5012 = vmax.f32 %v4938, 0.0
        %v5013 = vmax.f32 %v4957, 0.0
        %v5014 = vmax.f32 %v4976, 0.0
        %v5015 = vmax.f32 %v4694, 0.0
        %v5016 = vmax.f32 %v4713, 0.0
        %v5017 = vmax.f32 %v4732, 0.0
        %v5018 = vmax.f32 %v4751, 0.0
        %v5019 = vmax.f32 %v4770, 0.0
        %v5020 = vmax.f32 %v4789, 0.0
        %v5021 = vmax.f32 %v4808, 0.0
        %v5022 = vmax.f32 %v4827, 0.0
        %v5023 = vmax.f32 %v4846, 0.0
        %v5024 = vmax.f32 %v4865, 0.0
        %v5025 = vmax.f32 %v4884, 0.0
        %v5026 = vmax.f32 %v4903, 0.0
        %v5027 = vmax.f32 %v4922, 0.0
        %v5028 = vmax.f32 %v4941, 0.0
        %v5029 = vmax.f32 %v4960, 0.0
        %v5030 = vmax.f32 %v4979, 0.0
        %v5031 = vmax.f32 %v4696, 0.0
        %v5032 = vmax.f32 %v4715, 0.0
        %v5033 = vmax.f32 %v4734, 0.0
        %v5034 = vmax.f32 %v4753, 0.0
        %v5035 = vmax.f32 %v4772, 0.0
        %v5036 = vmax.f32 %v4791, 0.0
        %v5037 = vmax.f32 %v4810, 0.0
        %v5038 = vmax.f32 %v4829, 0.0
        %v5039 = vmax.f32 %v4848, 0.0
        %v5040 = vmax.f32 %v4867, 0.0
        %v5041 = vmax.f32 %v4886, 0.0
        %v5042 = vmax.f32 %v4905, 0.0
        %v5043 = vmax.f32 %v4924, 0.0
        %v5044 = vmax.f32 %v4943, 0.0
        %v5045 = vmax.f32 %v4962, 0.0
        %v5046 = vmax.f32 %v4981, 0.0
        %v5047 = vpack.c.bf16 %v4999, %v4983
        %v5048 = vpack.c.bf16 %v5000, %v4984
        %v5049 = vpack.c.bf16 %v5001, %v4985
        %v5050 = vpack.c.bf16 %v5002, %v4986
        %v5051 = vpack.c.bf16 %v5003, %v4987
        %v5052 = vpack.c.bf16 %v5004, %v4988
        %v5053 = vpack.c.bf16 %v5005, %v4989
        %v5054 = vpack.c.bf16 %v5006, %v4990
        %v5055 = vpack.c.bf16 %v5007, %v4991
        %v5056 = vpack.c.bf16 %v5008, %v4992
        %v5057 = vpack.c.bf16 %v5009, %v4993
        %v5058 = vpack.c.bf16 %v5010, %v4994
        %v5059 = vpack.c.bf16 %v5011, %v4995
        %v5060 = vpack.c.bf16 %v5012, %v4996
        %v5061 = vpack.c.bf16 %v5013, %v4997
        %v5062 = vpack.c.bf16 %v5014, %v4998
        %v5063 = vpack.c.bf16 %v5031, %v5015
        %v5064 = vpack.c.bf16 %v5032, %v5016
        %v5065 = vpack.c.bf16 %v5033, %v5017
        %v5066 = vpack.c.bf16 %v5034, %v5018
        %v5067 = vpack.c.bf16 %v5035, %v5019
        %v5068 = vpack.c.bf16 %v5036, %v5020
        %v5069 = vpack.c.bf16 %v5037, %v5021
        %v5070 = vpack.c.bf16 %v5038, %v5022
        %v5071 = vpack.c.bf16 %v5039, %v5023
        %v5072 = vpack.c.bf16 %v5040, %v5024
        %v5073 = vpack.c.bf16 %v5041, %v5025
        %v5074 = vpack.c.bf16 %v5042, %v5026
        %v5075 = vpack.c.bf16 %v5043, %v5027
        %v5076 = vpack.c.bf16 %v5044, %v5028
        %v5077 = vpack.c.bf16 %v5045, %v5029
        %v5078 = vpack.c.bf16 %v5046, %v5030
        %v5079 = vperm.slane %v3403, 3
        %v5336 = vunpack.c.l.b16 %v3441
        %v5337 = vunpack.c.l.b16 %v3442
        %v5338 = vunpack.c.l.b16 %v3443
        %v5339 = vunpack.c.l.b16 %v3444
        %v5340 = vunpack.c.l.b16 %v3445
        %v5341 = vunpack.c.l.b16 %v3446
        %v5342 = vunpack.c.l.b16 %v3447
        %v5343 = vunpack.c.l.b16 %v3448
        %v5344 = vunpack.c.l.b16 %v3449
        %v5345 = vunpack.c.l.b16 %v3450
        %v5346 = vunpack.c.l.b16 %v3451
        %v5347 = vunpack.c.l.b16 %v3452
        %v5348 = vunpack.c.l.b16 %v3453
        %v5349 = vunpack.c.l.b16 %v3454
        %v5350 = vunpack.c.l.b16 %v3455
        %v5351 = vunpack.c.l.b16 %v3456
        %v5352 = vunpack.c.l.b16 %v3457
        %v5353 = vunpack.c.l.b16 %v3458
        %v5354 = vunpack.c.l.b16 %v3459
        %v5355 = vunpack.c.l.b16 %v3460
        %v5356 = vunpack.c.l.b16 %v3461
        %v5357 = vunpack.c.l.b16 %v3462
        %v5358 = vunpack.c.l.b16 %v3463
        %v5359 = vunpack.c.l.b16 %v3464
        %v5360 = vunpack.c.l.b16 %v3465
        %v5361 = vunpack.c.l.b16 %v3466
        %v5362 = vunpack.c.l.b16 %v3467
        %v5363 = vunpack.c.l.b16 %v3468
        %v5364 = vunpack.c.l.b16 %v3469
        %v5365 = vunpack.c.l.b16 %v3470
        %v5366 = vunpack.c.l.b16 %v3471
        %v5367 = vunpack.c.l.b16 %v3472
        %v5368 = vunpack.c.l.b16 %v3473
        %v5369 = vunpack.c.l.b16 %v3474
        %v5370 = vunpack.c.l.b16 %v3475
        %v5371 = vunpack.c.l.b16 %v3476
        %v5372 = vunpack.c.l.b16 %v3477
        %v5373 = vunpack.c.l.b16 %v3478
        %v5374 = vunpack.c.l.b16 %v3479
        %v5375 = vunpack.c.l.b16 %v3480
        %v5376 = vunpack.c.l.b16 %v3481
        %v5377 = vunpack.c.l.b16 %v3482
        %v5378 = vunpack.c.l.b16 %v3483
        %v5379 = vunpack.c.l.b16 %v3484
        %v5380 = vunpack.c.l.b16 %v3485
        %v5381 = vunpack.c.l.b16 %v3486
        %v5382 = vunpack.c.l.b16 %v3487
        %v5383 = vunpack.c.l.b16 %v3488
        %v5384 = vunpack.c.l.b16 %v3489
        %v5385 = vunpack.c.l.b16 %v3490
        %v5386 = vunpack.c.l.b16 %v3491
        %v5387 = vunpack.c.l.b16 %v3492
        %v5388 = vunpack.c.l.b16 %v3493
        %v5389 = vunpack.c.l.b16 %v3494
        %v5390 = vunpack.c.l.b16 %v3495
        %v5391 = vunpack.c.l.b16 %v3496
        %v5392 = vunpack.c.l.b16 %v3497
        %v5393 = vunpack.c.l.b16 %v3498
        %v5394 = vunpack.c.l.b16 %v3499
        %v5395 = vunpack.c.l.b16 %v3500
        %v5396 = vunpack.c.l.b16 %v3501
        %v5397 = vunpack.c.l.b16 %v3502
        %v5398 = vunpack.c.l.b16 %v3503
        %v5399 = vunpack.c.l.b16 %v3504
        %v5400 = vunpack.c.l.b16 %v3505
        %v5401 = vunpack.c.l.b16 %v3506
        %v5402 = vunpack.c.l.b16 %v3507
        %v5403 = vunpack.c.l.b16 %v3508
        %v5404 = vunpack.c.l.b16 %v3509
        %v5405 = vunpack.c.l.b16 %v3510
        %v5406 = vunpack.c.l.b16 %v3511
        %v5407 = vunpack.c.l.b16 %v3512
        %v5408 = vunpack.c.l.b16 %v3513
        %v5409 = vunpack.c.l.b16 %v3514
        %v5410 = vunpack.c.l.b16 %v3515
        %v5411 = vunpack.c.l.b16 %v3516
        %v5412 = vunpack.c.l.b16 %v3517
        %v5413 = vunpack.c.l.b16 %v3518
        %v5414 = vunpack.c.l.b16 %v3519
        %v5415 = vunpack.c.l.b16 %v3520
        %v5416 = vunpack.c.l.b16 %v3521
        %v5417 = vunpack.c.l.b16 %v3522
        %v5418 = vunpack.c.l.b16 %v3523
        %v5419 = vunpack.c.l.b16 %v3524
        %v5420 = vunpack.c.l.b16 %v3525
        %v5421 = vunpack.c.l.b16 %v3526
        %v5422 = vunpack.c.l.b16 %v3527
        %v5423 = vunpack.c.l.b16 %v3528
        %v5424 = vunpack.c.l.b16 %v3529
        %v5425 = vunpack.c.l.b16 %v3530
        %v5426 = vunpack.c.l.b16 %v3531
        %v5427 = vunpack.c.l.b16 %v3532
        %v5428 = vunpack.c.l.b16 %v3533
        %v5429 = vunpack.c.l.b16 %v3534
        %v5430 = vunpack.c.l.b16 %v3535
        %v5431 = vunpack.c.l.b16 %v3536
        %v5432 = vunpack.c.l.b16 %v3537
        %v5433 = vunpack.c.l.b16 %v3538
        %v5434 = vunpack.c.l.b16 %v3539
        %v5435 = vunpack.c.l.b16 %v3540
        %v5436 = vunpack.c.l.b16 %v3541
        %v5437 = vunpack.c.l.b16 %v3542
        %v5438 = vunpack.c.l.b16 %v3543
        %v5439 = vunpack.c.l.b16 %v3544
        %v5440 = vunpack.c.l.b16 %v3545
        %v5441 = vunpack.c.l.b16 %v3546
        %v5442 = vunpack.c.l.b16 %v3547
        %v5443 = vunpack.c.l.b16 %v3548
        %v5444 = vunpack.c.l.b16 %v3549
        %v5445 = vunpack.c.l.b16 %v3550
        %v5446 = vunpack.c.l.b16 %v3551
        %v5447 = vunpack.c.l.b16 %v3552
        %v5448 = vunpack.c.l.b16 %v3553
        %v5449 = vunpack.c.l.b16 %v3554
        %v5450 = vunpack.c.l.b16 %v3555
        %v5451 = vunpack.c.l.b16 %v3556
        %v5452 = vunpack.c.l.b16 %v3557
        %v5453 = vunpack.c.l.b16 %v3558
        %v5454 = vunpack.c.l.b16 %v3559
        %v5455 = vunpack.c.l.b16 %v3560
        %v5456 = vunpack.c.l.b16 %v3561
        %v5457 = vunpack.c.l.b16 %v3562
        %v5458 = vunpack.c.l.b16 %v3563
        %v5459 = vunpack.c.l.b16 %v3564
        %v5460 = vunpack.c.l.b16 %v3565
        %v5461 = vunpack.c.l.b16 %v3566
        %v5462 = vunpack.c.l.b16 %v3567
        %v5463 = vunpack.c.l.b16 %v3568
        %v5464 = vunpack.c.l.b16 %v3569
        %v5465 = vunpack.c.l.b16 %v3570
        %v5466 = vunpack.c.l.b16 %v3571
        %v5467 = vunpack.c.l.b16 %v3572
        %v5468 = vunpack.c.l.b16 %v3573
        %v5469 = vunpack.c.l.b16 %v3574
        %v5470 = vunpack.c.l.b16 %v3575
        %v5471 = vunpack.c.l.b16 %v3576
        %v5472 = vunpack.c.l.b16 %v3577
        %v5473 = vunpack.c.l.b16 %v3578
        %v5474 = vunpack.c.l.b16 %v3579
        %v5475 = vunpack.c.l.b16 %v3580
        %v5476 = vunpack.c.l.b16 %v3581
        %v5477 = vunpack.c.l.b16 %v3582
        %v5478 = vunpack.c.l.b16 %v3583
        %v5479 = vunpack.c.l.b16 %v3584
        %v5480 = vunpack.c.l.b16 %v3585
        %v5481 = vunpack.c.l.b16 %v3586
        %v5482 = vunpack.c.l.b16 %v3587
        %v5483 = vunpack.c.l.b16 %v3588
        %v5484 = vunpack.c.l.b16 %v3589
        %v5485 = vunpack.c.l.b16 %v3590
        %v5486 = vunpack.c.l.b16 %v3591
        %v5487 = vunpack.c.l.b16 %v3592
        %v5488 = vunpack.c.l.b16 %v3593
        %v5489 = vunpack.c.l.b16 %v3594
        %v5490 = vunpack.c.l.b16 %v3595
        %v5491 = vunpack.c.l.b16 %v3596
        %v5492 = vunpack.c.l.b16 %v3597
        %v5493 = vunpack.c.l.b16 %v3598
        %v5494 = vunpack.c.l.b16 %v3599
        %v5495 = vunpack.c.l.b16 %v3600
        %v5496 = vunpack.c.l.b16 %v3601
        %v5497 = vunpack.c.l.b16 %v3602
        %v5498 = vunpack.c.l.b16 %v3603
        %v5499 = vunpack.c.l.b16 %v3604
        %v5500 = vunpack.c.l.b16 %v3605
        %v5501 = vunpack.c.l.b16 %v3606
        %v5502 = vunpack.c.l.b16 %v3607
        %v5503 = vunpack.c.l.b16 %v3608
        %v5504 = vunpack.c.l.b16 %v3609
        %v5505 = vunpack.c.l.b16 %v3610
        %v5506 = vunpack.c.l.b16 %v3611
        %v5507 = vunpack.c.l.b16 %v3612
        %v5508 = vunpack.c.l.b16 %v3613
        %v5509 = vunpack.c.l.b16 %v3614
        %v5510 = vunpack.c.l.b16 %v3615
        %v5511 = vunpack.c.l.b16 %v3616
        %v5512 = vunpack.c.l.b16 %v3617
        %v5513 = vunpack.c.l.b16 %v3618
        %v5514 = vunpack.c.l.b16 %v3619
        %v5515 = vunpack.c.l.b16 %v3620
        %v5516 = vunpack.c.l.b16 %v3621
        %v5517 = vunpack.c.l.b16 %v3622
        %v5518 = vunpack.c.l.b16 %v3623
        %v5519 = vunpack.c.l.b16 %v3624
        %v5520 = vunpack.c.l.b16 %v3625
        %v5521 = vunpack.c.l.b16 %v3626
        %v5522 = vunpack.c.l.b16 %v3627
        %v5523 = vunpack.c.l.b16 %v3628
        %v5524 = vunpack.c.l.b16 %v3629
        %v5525 = vunpack.c.l.b16 %v3630
        %v5526 = vunpack.c.l.b16 %v3631
        %v5527 = vunpack.c.l.b16 %v3632
        %v5528 = vunpack.c.l.b16 %v3633
        %v5529 = vunpack.c.l.b16 %v3634
        %v5530 = vunpack.c.l.b16 %v3635
        %v5531 = vunpack.c.l.b16 %v3636
        %v5532 = vunpack.c.l.b16 %v3637
        %v5533 = vunpack.c.l.b16 %v3638
        %v5534 = vunpack.c.l.b16 %v3639
        %v5535 = vunpack.c.l.b16 %v3640
        %v5536 = vunpack.c.l.b16 %v3641
        %v5537 = vunpack.c.l.b16 %v3642
        %v5538 = vunpack.c.l.b16 %v3643
        %v5539 = vunpack.c.l.b16 %v3644
        %v5540 = vunpack.c.l.b16 %v3645
        %v5541 = vunpack.c.l.b16 %v3646
        %v5542 = vunpack.c.l.b16 %v3647
        %v5543 = vunpack.c.l.b16 %v3648
        %v5544 = vunpack.c.l.b16 %v3649
        %v5545 = vunpack.c.l.b16 %v3650
        %v5546 = vunpack.c.l.b16 %v3651
        %v5547 = vunpack.c.l.b16 %v3652
        %v5548 = vunpack.c.l.b16 %v3653
        %v5549 = vunpack.c.l.b16 %v3654
        %v5550 = vunpack.c.l.b16 %v3655
        %v5551 = vunpack.c.l.b16 %v3656
        %v5552 = vunpack.c.l.b16 %v3657
        %v5553 = vunpack.c.l.b16 %v3658
        %v5554 = vunpack.c.l.b16 %v3659
        %v5555 = vunpack.c.l.b16 %v3660
        %v5556 = vunpack.c.l.b16 %v3661
        %v5557 = vunpack.c.l.b16 %v3662
        %v5558 = vunpack.c.l.b16 %v3663
        %v5559 = vunpack.c.l.b16 %v3664
        %v5560 = vunpack.c.l.b16 %v3665
        %v5561 = vunpack.c.l.b16 %v3666
        %v5562 = vunpack.c.l.b16 %v3667
        %v5563 = vunpack.c.l.b16 %v3668
        %v5564 = vunpack.c.l.b16 %v3669
        %v5565 = vunpack.c.l.b16 %v3670
        %v5566 = vunpack.c.l.b16 %v3671
        %v5567 = vunpack.c.l.b16 %v3672
        %v5568 = vunpack.c.l.b16 %v3673
        %v5569 = vunpack.c.l.b16 %v3674
        %v5570 = vunpack.c.l.b16 %v3675
        %v5571 = vunpack.c.l.b16 %v3676
        %v5572 = vunpack.c.l.b16 %v3677
        %v5573 = vunpack.c.l.b16 %v3678
        %v5574 = vunpack.c.l.b16 %v3679
        %v5575 = vunpack.c.l.b16 %v3680
        %v5576 = vunpack.c.l.b16 %v3681
        %v5577 = vunpack.c.l.b16 %v3682
        %v5578 = vunpack.c.l.b16 %v3683
        %v5579 = vunpack.c.l.b16 %v3684
        %v5580 = vunpack.c.l.b16 %v3685
        %v5581 = vunpack.c.l.b16 %v3686
        %v5582 = vunpack.c.l.b16 %v3687
        %v5583 = vunpack.c.l.b16 %v3688
        %v5584 = vunpack.c.l.b16 %v3689
        %v5585 = vunpack.c.l.b16 %v3690
        %v5586 = vunpack.c.l.b16 %v3691
        %v5587 = vunpack.c.l.b16 %v3692
        %v5588 = vunpack.c.l.b16 %v3693
        %v5589 = vunpack.c.l.b16 %v3694
        %v5590 = vunpack.c.l.b16 %v3695
        %v5591 = vunpack.c.l.b16 %v3696
        %v5592 = vpack.c.b16 %v5337, %v5336
        %v5593 = vpack.c.b16 %v5339, %v5338
        %v5594 = vpack.c.b16 %v5341, %v5340
        %v5595 = vpack.c.b16 %v5343, %v5342
        %v5596 = vpack.c.b16 %v5345, %v5344
        %v5597 = vpack.c.b16 %v5347, %v5346
        %v5598 = vpack.c.b16 %v5349, %v5348
        %v5599 = vpack.c.b16 %v5351, %v5350
        %v5600 = vpack.c.b16 %v5353, %v5352
        %v5601 = vpack.c.b16 %v5355, %v5354
        %v5602 = vpack.c.b16 %v5357, %v5356
        %v5603 = vpack.c.b16 %v5359, %v5358
        %v5604 = vpack.c.b16 %v5361, %v5360
        %v5605 = vpack.c.b16 %v5363, %v5362
        %v5606 = vpack.c.b16 %v5365, %v5364
        %v5607 = vpack.c.b16 %v5367, %v5366
        %v5608 = vpack.c.b16 %v5369, %v5368
        %v5609 = vpack.c.b16 %v5371, %v5370
        %v5610 = vpack.c.b16 %v5373, %v5372
        %v5611 = vpack.c.b16 %v5375, %v5374
        %v5612 = vpack.c.b16 %v5377, %v5376
        %v5613 = vpack.c.b16 %v5379, %v5378
        %v5614 = vpack.c.b16 %v5381, %v5380
        %v5615 = vpack.c.b16 %v5383, %v5382
        %v5616 = vpack.c.b16 %v5385, %v5384
        %v5617 = vpack.c.b16 %v5387, %v5386
        %v5618 = vpack.c.b16 %v5389, %v5388
        %v5619 = vpack.c.b16 %v5391, %v5390
        %v5620 = vpack.c.b16 %v5393, %v5392
        %v5621 = vpack.c.b16 %v5395, %v5394
        %v5622 = vpack.c.b16 %v5397, %v5396
        %v5623 = vpack.c.b16 %v5399, %v5398
        %v5624 = vpack.c.b16 %v5401, %v5400
        %v5625 = vpack.c.b16 %v5403, %v5402
        %v5626 = vpack.c.b16 %v5405, %v5404
        %v5627 = vpack.c.b16 %v5407, %v5406
        %v5628 = vpack.c.b16 %v5409, %v5408
        %v5629 = vpack.c.b16 %v5411, %v5410
        %v5630 = vpack.c.b16 %v5413, %v5412
        %v5631 = vpack.c.b16 %v5415, %v5414
        %v5632 = vpack.c.b16 %v5417, %v5416
        %v5633 = vpack.c.b16 %v5419, %v5418
        %v5634 = vpack.c.b16 %v5421, %v5420
        %v5635 = vpack.c.b16 %v5423, %v5422
        %v5636 = vpack.c.b16 %v5425, %v5424
        %v5637 = vpack.c.b16 %v5427, %v5426
        %v5638 = vpack.c.b16 %v5429, %v5428
        %v5639 = vpack.c.b16 %v5431, %v5430
        %v5640 = vpack.c.b16 %v5433, %v5432
        %v5641 = vpack.c.b16 %v5435, %v5434
        %v5642 = vpack.c.b16 %v5437, %v5436
        %v5643 = vpack.c.b16 %v5439, %v5438
        %v5644 = vpack.c.b16 %v5441, %v5440
        %v5645 = vpack.c.b16 %v5443, %v5442
        %v5646 = vpack.c.b16 %v5445, %v5444
        %v5647 = vpack.c.b16 %v5447, %v5446
        %v5648 = vpack.c.b16 %v5449, %v5448
        %v5649 = vpack.c.b16 %v5451, %v5450
        %v5650 = vpack.c.b16 %v5453, %v5452
        %v5651 = vpack.c.b16 %v5455, %v5454
        %v5652 = vpack.c.b16 %v5457, %v5456
        %v5653 = vpack.c.b16 %v5459, %v5458
        %v5654 = vpack.c.b16 %v5461, %v5460
        %v5655 = vpack.c.b16 %v5463, %v5462
        %v5656 = vpack.c.b16 %v5465, %v5464
        %v5657 = vpack.c.b16 %v5467, %v5466
        %v5658 = vpack.c.b16 %v5469, %v5468
        %v5659 = vpack.c.b16 %v5471, %v5470
        %v5660 = vpack.c.b16 %v5473, %v5472
        %v5661 = vpack.c.b16 %v5475, %v5474
        %v5662 = vpack.c.b16 %v5477, %v5476
        %v5663 = vpack.c.b16 %v5479, %v5478
        %v5664 = vpack.c.b16 %v5481, %v5480
        %v5665 = vpack.c.b16 %v5483, %v5482
        %v5666 = vpack.c.b16 %v5485, %v5484
        %v5667 = vpack.c.b16 %v5487, %v5486
        %v5668 = vpack.c.b16 %v5489, %v5488
        %v5669 = vpack.c.b16 %v5491, %v5490
        %v5670 = vpack.c.b16 %v5493, %v5492
        %v5671 = vpack.c.b16 %v5495, %v5494
        %v5672 = vpack.c.b16 %v5497, %v5496
        %v5673 = vpack.c.b16 %v5499, %v5498
        %v5674 = vpack.c.b16 %v5501, %v5500
        %v5675 = vpack.c.b16 %v5503, %v5502
        %v5676 = vpack.c.b16 %v5505, %v5504
        %v5677 = vpack.c.b16 %v5507, %v5506
        %v5678 = vpack.c.b16 %v5509, %v5508
        %v5679 = vpack.c.b16 %v5511, %v5510
        %v5680 = vpack.c.b16 %v5513, %v5512
        %v5681 = vpack.c.b16 %v5515, %v5514
        %v5682 = vpack.c.b16 %v5517, %v5516
        %v5683 = vpack.c.b16 %v5519, %v5518
        %v5684 = vpack.c.b16 %v5521, %v5520
        %v5685 = vpack.c.b16 %v5523, %v5522
        %v5686 = vpack.c.b16 %v5525, %v5524
        %v5687 = vpack.c.b16 %v5527, %v5526
        %v5688 = vpack.c.b16 %v5529, %v5528
        %v5689 = vpack.c.b16 %v5531, %v5530
        %v5690 = vpack.c.b16 %v5533, %v5532
        %v5691 = vpack.c.b16 %v5535, %v5534
        %v5692 = vpack.c.b16 %v5537, %v5536
        %v5693 = vpack.c.b16 %v5539, %v5538
        %v5694 = vpack.c.b16 %v5541, %v5540
        %v5695 = vpack.c.b16 %v5543, %v5542
        %v5696 = vpack.c.b16 %v5545, %v5544
        %v5697 = vpack.c.b16 %v5547, %v5546
        %v5698 = vpack.c.b16 %v5549, %v5548
        %v5699 = vpack.c.b16 %v5551, %v5550
        %v5700 = vpack.c.b16 %v5553, %v5552
        %v5701 = vpack.c.b16 %v5555, %v5554
        %v5702 = vpack.c.b16 %v5557, %v5556
        %v5703 = vpack.c.b16 %v5559, %v5558
        %v5704 = vpack.c.b16 %v5561, %v5560
        %v5705 = vpack.c.b16 %v5563, %v5562
        %v5706 = vpack.c.b16 %v5565, %v5564
        %v5707 = vpack.c.b16 %v5567, %v5566
        %v5708 = vpack.c.b16 %v5569, %v5568
        %v5709 = vpack.c.b16 %v5571, %v5570
        %v5710 = vpack.c.b16 %v5573, %v5572
        %v5711 = vpack.c.b16 %v5575, %v5574
        %v5712 = vpack.c.b16 %v5577, %v5576
        %v5713 = vpack.c.b16 %v5579, %v5578
        %v5714 = vpack.c.b16 %v5581, %v5580
        %v5715 = vpack.c.b16 %v5583, %v5582
        %v5716 = vpack.c.b16 %v5585, %v5584
        %v5717 = vpack.c.b16 %v5587, %v5586
        %v5718 = vpack.c.b16 %v5589, %v5588
        %v5719 = vpack.c.b16 %v5591, %v5590
        %5848 = vmatpush.bf16.msra.mxu0 %v5599
        %5849 = vmatpush.bf16.msra.mxu0 %v5598
        %5850 = vmatpush.bf16.msra.mxu0 %v5597
        %5851 = vmatpush.bf16.msra.mxu0 %v5596
        %5852 = vmatpush.bf16.msra.mxu0 %v5595
        %5853 = vmatpush.bf16.msra.mxu0 %v5594
        %5854 = vmatpush.bf16.msra.mxu0 %v5593
        %5855 = vmatpush.bf16.msra.mxu0 %v5592
        %5856 = vmatmul.bf16.gmra.mxu0 %v5047
        %v5857 = vpop.f32.mrf.mxu0
        %v5858 = vadd.f32 %v5079, %v5857
        %v5859 = vpop.f32.mrf.mxu0
        %v5860 = vadd.f32 %v5079, %v5859
        %5861 = vmatmul.bf16.gmra.mxu0 %v5063
        %v5862 = vpop.f32.mrf.mxu0
        %v5863 = vadd.f32 %v5079, %v5862
        %v5864 = vpop.f32.mrf.mxu0
        %v5865 = vadd.f32 %v5079, %v5864
        %5866 = vdwg.mxu0
        %5867 = vmatpush.bf16.msra.mxu0 %v5607
        %5868 = vmatpush.bf16.msra.mxu0 %v5606
        %5869 = vmatpush.bf16.msra.mxu0 %v5605
        %5870 = vmatpush.bf16.msra.mxu0 %v5604
        %5871 = vmatpush.bf16.msra.mxu0 %v5603
        %5872 = vmatpush.bf16.msra.mxu0 %v5602
        %5873 = vmatpush.bf16.msra.mxu0 %v5601
        %5874 = vmatpush.bf16.msra.mxu0 %v5600
        %5875 = vmatmul.bf16.gmra.mxu0 %v5048
        %v5876 = vpop.f32.mrf.mxu0
        %v5877 = vadd.f32 %v5858, %v5876
        %v5878 = vpop.f32.mrf.mxu0
        %v5879 = vadd.f32 %v5860, %v5878
        %5880 = vmatmul.bf16.gmra.mxu0 %v5064
        %v5881 = vpop.f32.mrf.mxu0
        %v5882 = vadd.f32 %v5863, %v5881
        %v5883 = vpop.f32.mrf.mxu0
        %v5884 = vadd.f32 %v5865, %v5883
        %5885 = vdwg.mxu0
        %5886 = vmatpush.bf16.msra.mxu0 %v5615
        %5887 = vmatpush.bf16.msra.mxu0 %v5614
        %5888 = vmatpush.bf16.msra.mxu0 %v5613
        %5889 = vmatpush.bf16.msra.mxu0 %v5612
        %5890 = vmatpush.bf16.msra.mxu0 %v5611
        %5891 = vmatpush.bf16.msra.mxu0 %v5610
        %5892 = vmatpush.bf16.msra.mxu0 %v5609
        %5893 = vmatpush.bf16.msra.mxu0 %v5608
        %5894 = vmatmul.bf16.gmra.mxu0 %v5049
        %v5895 = vpop.f32.mrf.mxu0
        %v5896 = vadd.f32 %v5877, %v5895
        %v5897 = vpop.f32.mrf.mxu0
        %v5898 = vadd.f32 %v5879, %v5897
        %5899 = vmatmul.bf16.gmra.mxu0 %v5065
        %v5900 = vpop.f32.mrf.mxu0
        %v5901 = vadd.f32 %v5882, %v5900
        %v5902 = vpop.f32.mrf.mxu0
        %v5903 = vadd.f32 %v5884, %v5902
        %5904 = vdwg.mxu0
        %5905 = vmatpush.bf16.msra.mxu0 %v5623
        %5906 = vmatpush.bf16.msra.mxu0 %v5622
        %5907 = vmatpush.bf16.msra.mxu0 %v5621
        %5908 = vmatpush.bf16.msra.mxu0 %v5620
        %5909 = vmatpush.bf16.msra.mxu0 %v5619
        %5910 = vmatpush.bf16.msra.mxu0 %v5618
        %5911 = vmatpush.bf16.msra.mxu0 %v5617
        %5912 = vmatpush.bf16.msra.mxu0 %v5616
        %5913 = vmatmul.bf16.gmra.mxu0 %v5050
        %v5914 = vpop.f32.mrf.mxu0
        %v5915 = vadd.f32 %v5896, %v5914
        %v5916 = vpop.f32.mrf.mxu0
        %v5917 = vadd.f32 %v5898, %v5916
        %5918 = vmatmul.bf16.gmra.mxu0 %v5066
        %v5919 = vpop.f32.mrf.mxu0
        %v5920 = vadd.f32 %v5901, %v5919
        %v5921 = vpop.f32.mrf.mxu0
        %v5922 = vadd.f32 %v5903, %v5921
        %5923 = vdwg.mxu0
        %5924 = vmatpush.bf16.msra.mxu0 %v5631
        %5925 = vmatpush.bf16.msra.mxu0 %v5630
        %5926 = vmatpush.bf16.msra.mxu0 %v5629
        %5927 = vmatpush.bf16.msra.mxu0 %v5628
        %5928 = vmatpush.bf16.msra.mxu0 %v5627
        %5929 = vmatpush.bf16.msra.mxu0 %v5626
        %5930 = vmatpush.bf16.msra.mxu0 %v5625
        %5931 = vmatpush.bf16.msra.mxu0 %v5624
        %5932 = vmatmul.bf16.gmra.mxu0 %v5051
        %v5933 = vpop.f32.mrf.mxu0
        %v5934 = vadd.f32 %v5915, %v5933
        %v5935 = vpop.f32.mrf.mxu0
        %v5936 = vadd.f32 %v5917, %v5935
        %5937 = vmatmul.bf16.gmra.mxu0 %v5067
        %v5938 = vpop.f32.mrf.mxu0
        %v5939 = vadd.f32 %v5920, %v5938
        %v5940 = vpop.f32.mrf.mxu0
        %v5941 = vadd.f32 %v5922, %v5940
        %5942 = vdwg.mxu0
        %5943 = vmatpush.bf16.msra.mxu0 %v5639
        %5944 = vmatpush.bf16.msra.mxu0 %v5638
        %5945 = vmatpush.bf16.msra.mxu0 %v5637
        %5946 = vmatpush.bf16.msra.mxu0 %v5636
        %5947 = vmatpush.bf16.msra.mxu0 %v5635
        %5948 = vmatpush.bf16.msra.mxu0 %v5634
        %5949 = vmatpush.bf16.msra.mxu0 %v5633
        %5950 = vmatpush.bf16.msra.mxu0 %v5632
        %5951 = vmatmul.bf16.gmra.mxu0 %v5052
        %v5952 = vpop.f32.mrf.mxu0
        %v5953 = vadd.f32 %v5934, %v5952
        %v5954 = vpop.f32.mrf.mxu0
        %v5955 = vadd.f32 %v5936, %v5954
        %5956 = vmatmul.bf16.gmra.mxu0 %v5068
        %v5957 = vpop.f32.mrf.mxu0
        %v5958 = vadd.f32 %v5939, %v5957
        %v5959 = vpop.f32.mrf.mxu0
        %v5960 = vadd.f32 %v5941, %v5959
        %5961 = vdwg.mxu0
        %5962 = vmatpush.bf16.msra.mxu0 %v5647
        %5963 = vmatpush.bf16.msra.mxu0 %v5646
        %5964 = vmatpush.bf16.msra.mxu0 %v5645
        %5965 = vmatpush.bf16.msra.mxu0 %v5644
        %5966 = vmatpush.bf16.msra.mxu0 %v5643
        %5967 = vmatpush.bf16.msra.mxu0 %v5642
        %5968 = vmatpush.bf16.msra.mxu0 %v5641
        %5969 = vmatpush.bf16.msra.mxu0 %v5640
        %5970 = vmatmul.bf16.gmra.mxu0 %v5053
        %v5971 = vpop.f32.mrf.mxu0
        %v5972 = vadd.f32 %v5953, %v5971
        %v5973 = vpop.f32.mrf.mxu0
        %v5974 = vadd.f32 %v5955, %v5973
        %5975 = vmatmul.bf16.gmra.mxu0 %v5069
        %v5976 = vpop.f32.mrf.mxu0
        %v5977 = vadd.f32 %v5958, %v5976
        %v5978 = vpop.f32.mrf.mxu0
        %v5979 = vadd.f32 %v5960, %v5978
        %5980 = vdwg.mxu0
        %5981 = vmatpush.bf16.msra.mxu0 %v5655
        %5982 = vmatpush.bf16.msra.mxu0 %v5654
        %5983 = vmatpush.bf16.msra.mxu0 %v5653
        %5984 = vmatpush.bf16.msra.mxu0 %v5652
        %5985 = vmatpush.bf16.msra.mxu0 %v5651
        %5986 = vmatpush.bf16.msra.mxu0 %v5650
        %5987 = vmatpush.bf16.msra.mxu0 %v5649
        %5988 = vmatpush.bf16.msra.mxu0 %v5648
        %5989 = vmatmul.bf16.gmra.mxu0 %v5054
        %v5990 = vpop.f32.mrf.mxu0
        %v5991 = vadd.f32 %v5972, %v5990
        %v5992 = vpop.f32.mrf.mxu0
        %v5993 = vadd.f32 %v5974, %v5992
        %5994 = vmatmul.bf16.gmra.mxu0 %v5070
        %v5995 = vpop.f32.mrf.mxu0
        %v5996 = vadd.f32 %v5977, %v5995
        %v5997 = vpop.f32.mrf.mxu0
        %v5998 = vadd.f32 %v5979, %v5997
        %5999 = vdwg.mxu0
        %6000 = vmatpush.bf16.msra.mxu0 %v5663
        %6001 = vmatpush.bf16.msra.mxu0 %v5662
        %6002 = vmatpush.bf16.msra.mxu0 %v5661
        %6003 = vmatpush.bf16.msra.mxu0 %v5660
        %6004 = vmatpush.bf16.msra.mxu0 %v5659
        %6005 = vmatpush.bf16.msra.mxu0 %v5658
        %6006 = vmatpush.bf16.msra.mxu0 %v5657
        %6007 = vmatpush.bf16.msra.mxu0 %v5656
        %6008 = vmatmul.bf16.gmra.mxu0 %v5055
        %v6009 = vpop.f32.mrf.mxu0
        %v6010 = vadd.f32 %v5991, %v6009
        %v6011 = vpop.f32.mrf.mxu0
        %v6012 = vadd.f32 %v5993, %v6011
        %6013 = vmatmul.bf16.gmra.mxu0 %v5071
        %v6014 = vpop.f32.mrf.mxu0
        %v6015 = vadd.f32 %v5996, %v6014
        %v6016 = vpop.f32.mrf.mxu0
        %v6017 = vadd.f32 %v5998, %v6016
        %6018 = vdwg.mxu0
        %6019 = vmatpush.bf16.msra.mxu0 %v5671
        %6020 = vmatpush.bf16.msra.mxu0 %v5670
        %6021 = vmatpush.bf16.msra.mxu0 %v5669
        %6022 = vmatpush.bf16.msra.mxu0 %v5668
        %6023 = vmatpush.bf16.msra.mxu0 %v5667
        %6024 = vmatpush.bf16.msra.mxu0 %v5666
        %6025 = vmatpush.bf16.msra.mxu0 %v5665
        %6026 = vmatpush.bf16.msra.mxu0 %v5664
        %6027 = vmatmul.bf16.gmra.mxu0 %v5056
        %v6028 = vpop.f32.mrf.mxu0
        %v6029 = vadd.f32 %v6010, %v6028
        %v6030 = vpop.f32.mrf.mxu0
        %v6031 = vadd.f32 %v6012, %v6030
        %6032 = vmatmul.bf16.gmra.mxu0 %v5072
        %v6033 = vpop.f32.mrf.mxu0
        %v6034 = vadd.f32 %v6015, %v6033
        %v6035 = vpop.f32.mrf.mxu0
        %v6036 = vadd.f32 %v6017, %v6035
        %6037 = vdwg.mxu0
        %6038 = vmatpush.bf16.msra.mxu0 %v5679
        %6039 = vmatpush.bf16.msra.mxu0 %v5678
        %6040 = vmatpush.bf16.msra.mxu0 %v5677
        %6041 = vmatpush.bf16.msra.mxu0 %v5676
        %6042 = vmatpush.bf16.msra.mxu0 %v5675
        %6043 = vmatpush.bf16.msra.mxu0 %v5674
        %6044 = vmatpush.bf16.msra.mxu0 %v5673
        %6045 = vmatpush.bf16.msra.mxu0 %v5672
        %6046 = vmatmul.bf16.gmra.mxu0 %v5057
        %v6047 = vpop.f32.mrf.mxu0
        %v6048 = vadd.f32 %v6029, %v6047
        %v6049 = vpop.f32.mrf.mxu0
        %v6050 = vadd.f32 %v6031, %v6049
        %6051 = vmatmul.bf16.gmra.mxu0 %v5073
        %v6052 = vpop.f32.mrf.mxu0
        %v6053 = vadd.f32 %v6034, %v6052
        %v6054 = vpop.f32.mrf.mxu0
        %v6055 = vadd.f32 %v6036, %v6054
        %6056 = vdwg.mxu0
        %6057 = vmatpush.bf16.msra.mxu0 %v5687
        %6058 = vmatpush.bf16.msra.mxu0 %v5686
        %6059 = vmatpush.bf16.msra.mxu0 %v5685
        %6060 = vmatpush.bf16.msra.mxu0 %v5684
        %6061 = vmatpush.bf16.msra.mxu0 %v5683
        %6062 = vmatpush.bf16.msra.mxu0 %v5682
        %6063 = vmatpush.bf16.msra.mxu0 %v5681
        %6064 = vmatpush.bf16.msra.mxu0 %v5680
        %6065 = vmatmul.bf16.gmra.mxu0 %v5058
        %v6066 = vpop.f32.mrf.mxu0
        %v6067 = vadd.f32 %v6048, %v6066
        %v6068 = vpop.f32.mrf.mxu0
        %v6069 = vadd.f32 %v6050, %v6068
        %6070 = vmatmul.bf16.gmra.mxu0 %v5074
        %v6071 = vpop.f32.mrf.mxu0
        %v6072 = vadd.f32 %v6053, %v6071
        %v6073 = vpop.f32.mrf.mxu0
        %v6074 = vadd.f32 %v6055, %v6073
        %6075 = vdwg.mxu0
        %6076 = vmatpush.bf16.msra.mxu0 %v5695
        %6077 = vmatpush.bf16.msra.mxu0 %v5694
        %6078 = vmatpush.bf16.msra.mxu0 %v5693
        %6079 = vmatpush.bf16.msra.mxu0 %v5692
        %6080 = vmatpush.bf16.msra.mxu0 %v5691
        %6081 = vmatpush.bf16.msra.mxu0 %v5690
        %6082 = vmatpush.bf16.msra.mxu0 %v5689
        %6083 = vmatpush.bf16.msra.mxu0 %v5688
        %6084 = vmatmul.bf16.gmra.mxu0 %v5059
        %v6085 = vpop.f32.mrf.mxu0
        %v6086 = vadd.f32 %v6067, %v6085
        %v6087 = vpop.f32.mrf.mxu0
        %v6088 = vadd.f32 %v6069, %v6087
        %6089 = vmatmul.bf16.gmra.mxu0 %v5075
        %v6090 = vpop.f32.mrf.mxu0
        %v6091 = vadd.f32 %v6072, %v6090
        %v6092 = vpop.f32.mrf.mxu0
        %v6093 = vadd.f32 %v6074, %v6092
        %6094 = vdwg.mxu0
        %6095 = vmatpush.bf16.msra.mxu0 %v5703
        %6096 = vmatpush.bf16.msra.mxu0 %v5702
        %6097 = vmatpush.bf16.msra.mxu0 %v5701
        %6098 = vmatpush.bf16.msra.mxu0 %v5700
        %6099 = vmatpush.bf16.msra.mxu0 %v5699
        %6100 = vmatpush.bf16.msra.mxu0 %v5698
        %6101 = vmatpush.bf16.msra.mxu0 %v5697
        %6102 = vmatpush.bf16.msra.mxu0 %v5696
        %6103 = vmatmul.bf16.gmra.mxu0 %v5060
        %v6104 = vpop.f32.mrf.mxu0
        %v6105 = vadd.f32 %v6086, %v6104
        %v6106 = vpop.f32.mrf.mxu0
        %v6107 = vadd.f32 %v6088, %v6106
        %6108 = vmatmul.bf16.gmra.mxu0 %v5076
        %v6109 = vpop.f32.mrf.mxu0
        %v6110 = vadd.f32 %v6091, %v6109
        %v6111 = vpop.f32.mrf.mxu0
        %v6112 = vadd.f32 %v6093, %v6111
        %6113 = vdwg.mxu0
        %6114 = vmatpush.bf16.msra.mxu0 %v5711
        %6115 = vmatpush.bf16.msra.mxu0 %v5710
        %6116 = vmatpush.bf16.msra.mxu0 %v5709
        %6117 = vmatpush.bf16.msra.mxu0 %v5708
        %6118 = vmatpush.bf16.msra.mxu0 %v5707
        %6119 = vmatpush.bf16.msra.mxu0 %v5706
        %6120 = vmatpush.bf16.msra.mxu0 %v5705
        %6121 = vmatpush.bf16.msra.mxu0 %v5704
        %6122 = vmatmul.bf16.gmra.mxu0 %v5061
        %v6123 = vpop.f32.mrf.mxu0
        %v6124 = vadd.f32 %v6105, %v6123
        %v6125 = vpop.f32.mrf.mxu0
        %v6126 = vadd.f32 %v6107, %v6125
        %6127 = vmatmul.bf16.gmra.mxu0 %v5077
        %v6128 = vpop.f32.mrf.mxu0
        %v6129 = vadd.f32 %v6110, %v6128
        %v6130 = vpop.f32.mrf.mxu0
        %v6131 = vadd.f32 %v6112, %v6130
        %6132 = vdwg.mxu0
        %6133 = vmatpush.bf16.msra.mxu0 %v5719
        %6134 = vmatpush.bf16.msra.mxu0 %v5718
        %6135 = vmatpush.bf16.msra.mxu0 %v5717
        %6136 = vmatpush.bf16.msra.mxu0 %v5716
        %6137 = vmatpush.bf16.msra.mxu0 %v5715
        %6138 = vmatpush.bf16.msra.mxu0 %v5714
        %6139 = vmatpush.bf16.msra.mxu0 %v5713
        %6140 = vmatpush.bf16.msra.mxu0 %v5712
        %6141 = vmatmul.bf16.gmra.mxu0 %v5062
        %v6142 = vpop.f32.mrf.mxu0
        %v6143 = vadd.f32 %v6124, %v6142
        %v6144 = vpop.f32.mrf.mxu0
        %v6145 = vadd.f32 %v6126, %v6144
        %6146 = vmatmul.bf16.gmra.mxu0 %v5078
        %v6147 = vpop.f32.mrf.mxu0
        %v6148 = vadd.f32 %v6129, %v6147
        %v6149 = vpop.f32.mrf.mxu0
        %v6150 = vadd.f32 %v6131, %v6149
        %6151 = vdwg.mxu0
        %v6152 = vadd.f32 %v4473, %v6143
        %v6153 = vadd.f32 %v4474, %v6145
        %v6154 = vadd.f32 %v4475, %v6148
        %v6155 = vadd.f32 %v4476, %v6150
        %v6156 = vsel %vm840, %v6152, 0.0
        %6157 = vadd.xlane.f32.xlu0 %v6156
        %v6158 = vpop.xlane.xlu0 %6157
        %v6159 = vsel %vm840, %v6153, 0.0
        %6160 = vadd.xlane.f32.xlu0 %v6159
        %v6161 = vpop.xlane.xlu0 %6160
        %v6162 = vsel %vm840, %v6154, 0.0
        %6163 = vadd.xlane.f32.xlu0 %v6162
        %v6164 = vpop.xlane.xlu0 %6163
        %v6165 = vsel %vm840, %v6155, 0.0
        %6166 = vadd.xlane.f32.xlu0 %v6165
        %v6167 = vpop.xlane.xlu0 %6166
        %v6168 = vmul.f32 %v6158, %v1526
        %v6169 = vmul.f32 %v6161, %v1526
        %v6170 = vmul.f32 %v6164, %v1526
        %v6171 = vmul.f32 %v6167, %v1526
        %v6172 = vsub.f32 %v6152, %v6168
        %v6173 = vsub.f32 %v6153, %v6169
        %v6174 = vsub.f32 %v6154, %v6170
        %v6175 = vsub.f32 %v6155, %v6171
        %v6176 = vmul.f32 %v6172, %v6172
        %v6177 = vmul.f32 %v6173, %v6173
        %v6178 = vmul.f32 %v6174, %v6174
        %v6179 = vmul.f32 %v6175, %v6175
        %v6180 = vsel %vm840, %v6176, 0.0
        %6181 = vadd.xlane.f32.xlu0 %v6180
        %v6182 = vpop.xlane.xlu0 %6181
        %v6183 = vsel %vm840, %v6177, 0.0
        %6184 = vadd.xlane.f32.xlu0 %v6183
        %v6185 = vpop.xlane.xlu0 %6184
        %v6186 = vsel %vm840, %v6178, 0.0
        %6187 = vadd.xlane.f32.xlu0 %v6186
        %v6188 = vpop.xlane.xlu0 %6187
        %v6189 = vsel %vm840, %v6179, 0.0
        %6190 = vadd.xlane.f32.xlu0 %v6189
        %v6191 = vpop.xlane.xlu0 %6190
        %v6192 = vmul.f32 %v6182, %v1526
        %v6193 = vmul.f32 %v6185, %v1526
        %v6194 = vmul.f32 %v6188, %v1526
        %v6195 = vmul.f32 %v6191, %v1526
        %v6196 = vadd.f32 %v6192, 1e-05
        %v6197 = vadd.f32 %v6193, 1e-05
        %v6198 = vadd.f32 %v6194, 1e-05
        %v6199 = vadd.f32 %v6195, 1e-05
        %v6200 = vrsqrt.pop %v6196
        %v6201 = vmul.f32 %v6200, %v6196
        %v6202 = vmul.f32 %v6201, %v6200
        %v6203 = vmul.f32 0.5, %v6202
        %v6204 = vsub.f32 1.5, %v6203
        %v6205 = vmul.f32 %v6200, %v6204
        %vm6206 = vweird.f32 %v6196
        %vm6207 = vweird.f32 %v6200
        %vm6208 = vmor %vm6206, %vm6207
        %v6209 = vsel %vm6208, %v6200, %v6205
        %v6210 = vrsqrt.pop %v6197
        %v6211 = vmul.f32 %v6210, %v6197
        %v6212 = vmul.f32 %v6211, %v6210
        %v6213 = vmul.f32 0.5, %v6212
        %v6214 = vsub.f32 1.5, %v6213
        %v6215 = vmul.f32 %v6210, %v6214
        %vm6216 = vweird.f32 %v6197
        %vm6217 = vweird.f32 %v6210
        %vm6218 = vmor %vm6216, %vm6217
        %v6219 = vsel %vm6218, %v6210, %v6215
        %v6220 = vrsqrt.pop %v6198
        %v6221 = vmul.f32 %v6220, %v6198
        %v6222 = vmul.f32 %v6221, %v6220
        %v6223 = vmul.f32 0.5, %v6222
        %v6224 = vsub.f32 1.5, %v6223
        %v6225 = vmul.f32 %v6220, %v6224
        %vm6226 = vweird.f32 %v6198
        %vm6227 = vweird.f32 %v6220
        %vm6228 = vmor %vm6226, %vm6227
        %v6229 = vsel %vm6228, %v6220, %v6225
        %v6230 = vrsqrt.pop %v6199
        %v6231 = vmul.f32 %v6230, %v6199
        %v6232 = vmul.f32 %v6231, %v6230
        %v6233 = vmul.f32 0.5, %v6232
        %v6234 = vsub.f32 1.5, %v6233
        %v6235 = vmul.f32 %v6230, %v6234
        %vm6236 = vweird.f32 %v6199
        %vm6237 = vweird.f32 %v6230
        %vm6238 = vmor %vm6236, %vm6237
        %v6239 = vsel %vm6238, %v6230, %v6235
        %v6240 = vmul.f32 %v6172, %v6209
        %v6241 = vmul.f32 %v6173, %v6219
        %v6242 = vmul.f32 %v6174, %v6229
        %v6243 = vmul.f32 %v6175, %v6239
        %v6244 = vperm.slane %v3403, 4
        %v6245 = vmul.f32 %v6240, %v6244
        %v6246 = vmul.f32 %v6241, %v6244
        %v6247 = vmul.f32 %v6242, %v6244
        %v6248 = vmul.f32 %v6243, %v6244
        %v6249 = vperm.slane %v3403, 5
        %v6250 = vadd.f32 %v6245, %v6249
        %v6251 = vadd.f32 %v6246, %v6249
        %v6252 = vadd.f32 %v6247, %v6249
        %v6253 = vadd.f32 %v6248, %v6249
        %v6254 = vpack.c.bf16 %v6251, %v6250
        %v6255 = vpack.c.bf16 %v6253, %v6252
        %v6256 = vld [vmem:[%s11] sm:$0xf]
        %v6257 = vld [vmem:[%s11 + $0x4] sm:$0xf]
        %v6258 = vld [vmem:[%s11 + $0x8] sm:$0xf]
        %v6259 = vld [vmem:[%s11 + $0xc] sm:$0xf]
        %v6260 = vld [vmem:[%s12] sm:$0x1]
        %v6262 = vperm.slane %v6260, 0
        %v6268 = vunpack.c.l.b16 %v6256
        %v6269 = vunpack.c.l.b16 %v6257
        %v6270 = vunpack.c.l.b16 %v6258
        %v6271 = vunpack.c.l.b16 %v6259
        %v6272 = vpack.c.b16 %v6269, %v6268
        %v6273 = vpack.c.b16 %v6271, %v6270
        %v6277 = vsel %vm840, %v6254, 0
        %v6280 = vsel %vm840, %v6255, 0
        %6282 = vmatpush.bf16.msra.mxu0 0
        %6283 = vmatpush.bf16.msra.mxu0 0
        %6284 = vmatpush.bf16.msra.mxu0 0
        %6285 = vmatpush.bf16.msra.mxu0 0
        %6286 = vmatpush.bf16.msra.mxu0 0
        %6287 = vmatpush.bf16.msra.mxu0 0
        %6288 = vmatpush.bf16.msra.mxu0 %v6273
        %6289 = vmatpush.bf16.msra.mxu0 %v6272
        %6290 = vmatmul.bf16.gmra.mxu0 %v6277
        %v6291 = vpop.f32.mrf.mxu0
        %v6292 = vadd.f32 %v6262, %v6291
        %v6293 = vpop.f32.mrf.mxu0
        %v6294 = vadd.f32 %v6262, %v6293
        %6295 = vmatmul.bf16.gmra.mxu0 %v6280
        %v6296 = vpop.f32.mrf.mxu0
        %v6297 = vadd.f32 %v6262, %v6296
        %v6298 = vpop.f32.mrf.mxu0
        %v6299 = vadd.f32 %v6262, %v6298
        %6300 = vdwg.mxu0
        %6301 = vst [vmem:[%s454] sm:$0xff] %v6292
        %6302 = vst [vmem:[%s454 + $0x8] sm:$0xff] %v6294
        %6303 = vst [vmem:[%s454 + $0x10] sm:$0xff] %v6297
        %6304 = vst [vmem:[%s454 + $0x18] sm:$0xff] %v6299
        %s6305 = sand.u32 %s318, 1
        %s6306 = scalar_lea.sflag [#allocation3], %s6305
        %s6307 = sand.u32 %s318, 1
        %s6308 = smul.addr %s6307, 32
        %s6309 = scalar_lea.vmem [#allocation2], %s6308
        // Predicated region
        $region73: #{tpu_custom_call.1} parent=71 // pred_check
          %p6310 = pneg %p328
        $region74: #{tpu_custom_call.1} parent=71 // pred_check_branch
          %6312 = sbr.rel (%p6310) target = $region76
        $region75: #{tpu_custom_call.1} parent=71 // pred_region
          %s6313 = smul.u32 2, %s27
          %6315 = vsyncadd %s6306, 0
          %s6316 = smul.addr %s6313, 2
          %s6317 = smul.addr %s6316, 8
          %s6318 = scalar_lea.hbm %s13, %s6317
          %s6319 = sshll.u32 %s6309, 4
          %s6320 = int_to_ptr.vmem [resolvable:$true] %s6319
          %s6321 = sshll.u32 %s6318, 4
          %s6322 = int_to_ptr.hbm [resolvable:$true] %s6321
          %6327 = dma.vmem_to_hbm [thread:$0]  %s6320, 512, %s6322, %s6306, 128, 128, 8
        $region76: #{tpu_custom_call.1} parent=71 // pred_fallthru
          _
      $region72: #{tpu_custom_call.1} parent=5 // pred_fallthru
        _
      %p6328 = scmp.le.s32.totalorder 2, %s22
      // Predicated region
      $region77: #{tpu_custom_call.1} parent=5 // pred_check
        %p6329 = pneg %p6328
      $region78: #{tpu_custom_call.1} parent=5 // pred_check_branch
        %6331 = sbr.rel (%p6329) target = $region80
      $region79: #{tpu_custom_call.1} parent=5 // pred_region
        %s6332 = ssub.s32 %s22, 2
        // Predicated region
        $region81: #{tpu_custom_call.1} parent=79 // pred_check
          %p6333 = pneg %p334
        $region82: #{tpu_custom_call.1} parent=79 // pred_check_branch
          %6335 = sbr.rel (%p6333) target = $region84
        $region83: #{tpu_custom_call.1} parent=79 // pred_region
          %s6336 = sand.u32 %s319, 1
          %s6337 = scalar_lea.sflag [#allocation3], %s6336
          %s6338 = sand.u32 %s319, 1
          %s6339 = smul.addr %s6338, 32
          %s6340 = scalar_lea.vmem [#allocation2], %s6339
          %6342 = dma.done %s6337, 512
        $region84: #{tpu_custom_call.1} parent=79 // pred_fallthru
          _
      $region80: #{tpu_custom_call.1} parent=5 // pred_fallthru
        _
    $region6: #{tpu_custom_call.1} parent=1 // loop_footer
      %s26 = sadd.s32 1, %s22
    $region7: #{tpu_custom_call.1} parent=1 // loop_footer_branch
      %21 = sbr.rel target = $region3
    $region8: #{tpu_custom_call.1} parent=1 // loop_exit
      _
    %6343 = vsyncpa [#allocation3], 1
    %s6344 = scalar_lea.sflag [#allocation3], 1
    %6345 = vsyncpa %s6344, 1

</llo_original>
